<compile_context>
chip_gen: v6e
topology: v6e:2x2x1
jax: 0.10.0
libtpu: 0.0.40
codegen_flags: <defaults>
</compile_context>

<pallas_src>
import functools

import jax
import jax.numpy as jnp
from jax import lax
from jax.experimental import pallas as pl
from jax.experimental.pallas import tpu as pltpu

LANE = 128


def _round_up(x, m):
    return (x + m - 1) // m * m


# ----------------------------------------------------------------------------
# Single fused bottleneck kernel (one image per grid step)
# ----------------------------------------------------------------------------
def _bottleneck_kernel(x_ref, w1_ref, b1_ref, w2_ref, b2_ref, w3_ref, b3_ref,
                       *rest, H, W, has_shortcut):
    if has_shortcut:
        ws_ref, bs_ref, o_ref, buf0, buf1, buf2, acc_ref = rest
    else:
        o_ref, buf0, buf1, buf2, acc_ref = rest
        ws_ref = bs_ref = None

    M = H * W
    Cm = w1_ref.shape[1]                               # padded mid channels

    x = x_ref[...]                                     # (M, cin_p) bf16

    # ---- conv1 (1x1) + folded-bn1 + ReLU  (Dropout2d eval = identity) ----
    h1 = jnp.dot(x, w1_ref[...], preferred_element_type=jnp.float32)
    h1 = jnp.maximum(h1 + b1_ref[...], 0.0)            # (M, Cm) f32

    # ---- build the 3 column-shifted images ONCE (kw = -1, 0, +1) ----------
    # pltpu.roll rotates on the XLU; boundary columns are re-zeroed so the
    # wrap-around across image rows behaves like the conv's zero padding.
    w_pos = lax.broadcasted_iota(jnp.int32, (M, Cm), 0) % W
    left = jnp.where(w_pos == 0, 0.0, pltpu.roll(h1, 1, axis=0))        # x[h, w-1]
    right = jnp.where(w_pos == W - 1, 0.0, pltpu.roll(h1, M - 1, axis=0))  # x[h, w+1]

    # Row-halo-padded bf16 buffers in VMEM scratch; W % 8 == 0 so every later
    # kh-shifted read (offset kh*W) is a tile-aligned sublane slice.
    zero_halo = jnp.zeros((W, Cm), jnp.bfloat16)
    for buf, val in ((buf0, left), (buf1, h1), (buf2, right)):
        buf[pl.ds(0, W), :] = zero_halo                # top halo (padded row -1)
        buf[pl.ds(W, M), :] = val.astype(jnp.bfloat16)
        buf[pl.ds(W + M, W), :] = zero_halo            # bottom halo (padded row H)

    # ---- conv2 (3x3, stride 1, pad 1) + folded-bn2 + ReLU ------------------
    # 9 accumulated MXU matmuls into an f32 VMEM scratch (first tap assigns).
    bufs = (buf0, buf1, buf2)
    for kh in range(3):
        for kw in range(3):
            src = bufs[kw][pl.ds(kh * W, M), :]        # aligned, no relayout
            part = jnp.dot(src, w2_ref[kh * 3 + kw],
                           preferred_element_type=jnp.float32)
            if kh == 0 and kw == 0:
                acc_ref[...] = part
            else:
                acc_ref[...] += part
    h2 = jnp.maximum(acc_ref[...] + b2_ref[...], 0.0).astype(jnp.bfloat16)

    # ---- conv3 (1x1) + folded-bn3 + shortcut + residual add + ReLU ---------
    out = jnp.dot(h2, w3_ref[...], preferred_element_type=jnp.float32)
    out = out + b3_ref[...]
    if has_shortcut:
        res = jnp.dot(x, ws_ref[...], preferred_element_type=jnp.float32)
        res = res + bs_ref[...]
    else:
        res = x.astype(jnp.float32)                    # cin_p == cout_p here
    o_ref[...] = jnp.maximum(out + res, 0.0).astype(o_ref.dtype)


def bottleneck_block_fused(x_flat, w1, b1, w2, b2, w3, b3, shortcut,
                           *, H, W, out_dtype=jnp.bfloat16):
    """x_flat: (Nb, H*W, cin_p) bf16, channel-padded. Weights BN-folded bf16,
    biases (1, C) f32.  Returns (Nb, H*W, cout_p) out_dtype."""
    Nb, M, cin_p = x_flat.shape
    assert M == H * W and W % 8 == 0, (M, H, W)
    cmid_p = w1.shape[1]
    cout_p = w3.shape[1]
    has_shortcut = shortcut is not None

    args = [x_flat, w1, b1, w2, b2, w3, b3]
    in_specs = [
        pl.BlockSpec((None, M, cin_p), lambda b: (b, 0, 0)),
        pl.BlockSpec((cin_p, cmid_p), lambda b: (0, 0)),
        pl.BlockSpec((1, cmid_p), lambda b: (0, 0)),
        pl.BlockSpec((9, cmid_p, cmid_p), lambda b: (0, 0, 0)),
        pl.BlockSpec((1, cmid_p), lambda b: (0, 0)),
        pl.BlockSpec((cmid_p, cout_p), lambda b: (0, 0)),
        pl.BlockSpec((1, cout_p), lambda b: (0, 0)),
    ]
    if has_shortcut:
        ws, bs = shortcut
        args += [ws, bs]
        in_specs += [
            pl.BlockSpec((cin_p, cout_p), lambda b: (0, 0)),
            pl.BlockSpec((1, cout_p), lambda b: (0, 0)),
        ]

    return pl.pallas_call(
        functools.partial(_bottleneck_kernel, H=H, W=W,
                          has_shortcut=has_shortcut),
        out_shape=jax.ShapeDtypeStruct((Nb, M, cout_p), out_dtype),
        grid=(Nb,),
        in_specs=in_specs,
        out_specs=pl.BlockSpec((None, M, cout_p), lambda b: (b, 0, 0)),
        scratch_shapes=[
            pltpu.VMEM((M + 2 * W, cmid_p), jnp.bfloat16),   # kw = -1 buffer
            pltpu.VMEM((M + 2 * W, cmid_p), jnp.bfloat16),   # kw =  0 buffer
            pltpu.VMEM((M + 2 * W, cmid_p), jnp.bfloat16),   # kw = +1 buffer
            pltpu.VMEM((M, cmid_p), jnp.float32),            # 3x3 accumulator
        ],
        compiler_params=pltpu.CompilerParams(
            dimension_semantics=("parallel",)),
    )(*args)


# ----------------------------------------------------------------------------
# Parameter init, BN folding, padding
# ----------------------------------------------------------------------------
def _init_bn(key, c):
    k1, k2, k3, k4 = jax.random.split(key, 4)
    gamma = jax.random.uniform(k1, (c,), jnp.float32, 0.5, 1.5)
    beta = jax.random.normal(k2, (c,), jnp.float32) * 0.1
    mean = jax.random.normal(k3, (c,), jnp.float32) * 0.1
    var = jax.random.uniform(k4, (c,), jnp.float32, 0.5, 1.5)
    return gamma, beta, mean, var


def _fold_bn(w, bn, eps=1e-5):
    gamma, beta, mean, var = bn
    scale = gamma / jnp.sqrt(var + eps)      # per output channel (last w axis)
    return w * scale, beta - mean * scale


def _pad_to(a, shape):
    out = jnp.zeros(shape, a.dtype)
    return out.at[tuple(slice(0, s) for s in a.shape)].set(a)


def _pad_bias(b, n):
    return _pad_to(b, (n,)).reshape(1, n).astype(jnp.float32)


# ----------------------------------------------------------------------------
# BottleneckBlock (eval mode) built on the fused Pallas kernel
# ----------------------------------------------------------------------------
class PallasBottleneckBlock:
    expansion = 4

    def __init__(self, key, in_channels, channels, expansion=4, stride=1,
                 with_dropout=True):
        self.expansion = expansion
        self.stride = stride
        self.with_dropout = with_dropout   # Dropout2d is identity in eval mode
        self.in_channels = in_channels
        self.channels = channels
        self.c_out = channels * expansion

        self.cin_p = _round_up(in_channels, LANE)
        self.cmid_p = _round_up(channels, LANE)
        self.cout_p = _round_up(self.c_out, LANE)

        keys = jax.random.split(key, 8)

        # conv1: 1x1, in_channels -> channels (BN scale folded into weights).
        w1 = jax.random.normal(keys[0], (in_channels, channels), jnp.float32)
        w1 = w1 * (2.0 / in_channels) ** 0.5
        w1, b1 = _fold_bn(w1, _init_bn(keys[1], channels))
        self.w1 = _pad_to(w1, (self.cin_p, self.cmid_p)).astype(jnp.bfloat16)
        self.b1 = _pad_bias(b1, self.cmid_p)

        # conv2: 3x3, channels -> channels, stride 1, pad 1. Stored as
        # (tap, Cin, Cout) with tap = kh*3 + kw (kh-major) — matmul layout.
        w2 = jax.random.normal(keys[2], (9, channels, channels), jnp.float32)
        w2 = w2 * (2.0 / (9 * channels)) ** 0.5
        w2, b2 = _fold_bn(w2, _init_bn(keys[3], channels))
        self.w2 = _pad_to(w2, (9, self.cmid_p, self.cmid_p)).astype(jnp.bfloat16)
        self.b2 = _pad_bias(b2, self.cmid_p)

        # conv3: 1x1, channels -> channels * expansion.
        w3 = jax.random.normal(keys[4], (channels, self.c_out), jnp.float32)
        w3 = w3 * (2.0 / channels) ** 0.5
        w3, b3 = _fold_bn(w3, _init_bn(keys[5], self.c_out))
        self.w3 = _pad_to(w3, (self.cmid_p, self.cout_p)).astype(jnp.bfloat16)
        self.b3 = _pad_bias(b3, self.cout_p)

        # shortcut (1x1 conv + bn) iff stride != 1 or channel mismatch.
        self.has_shortcut = stride != 1 or in_channels != self.c_out
        if self.has_shortcut:
            ws = jax.random.normal(keys[6], (in_channels, self.c_out),
                                   jnp.float32)
            ws = ws * (2.0 / in_channels) ** 0.5
            ws, bs = _fold_bn(ws, _init_bn(keys[7], self.c_out))
            self.ws = _pad_to(ws, (self.cin_p, self.cout_p)).astype(jnp.bfloat16)
            self.bs = _pad_bias(bs, self.cout_p)

    def __call__(self, x_nhwc_pad, out_dtype=jnp.bfloat16):
        # x_nhwc_pad: (Nb, H, W, cin_p) bf16, channel zero-padded.
        # Stride via input subsampling == stride inside the 1x1 conv1 and the
        # 1x1 shortcut conv of the reference (exact equivalence for k=1).
        s = self.stride
        x_s = x_nhwc_pad if s == 1 else x_nhwc_pad[:, ::s, ::s, :]
        Nb, Hs, Ws, _ = x_s.shape
        x_flat = x_s.reshape(Nb, Hs * Ws, self.cin_p)

        shortcut = (self.ws, self.bs) if self.has_shortcut else None
        y = bottleneck_block_fused(
            x_flat, self.w1, self.b1, self.w2, self.b2, self.w3, self.b3,
            shortcut, H=Hs, W=Ws, out_dtype=out_dtype)
        return y.reshape(Nb, Hs, Ws, self.cout_p)


class PallasResNet:
    """Mirror of the abstract `ResNet(ABC, nn.Module)` wrapper.

    The reference `ResNet.forward` is `pass`; concrete subclasses chain
    BottleneckBlocks.  Here the forward applies one configured block.  For
    chained blocks the padded-NHWC bf16 activation would be fed directly into
    the next block (no slice / transpose in between)."""

    def __init__(self, key, block_cls=PallasBottleneckBlock, in_channels=4,
                 channels=8, with_dropout=True):
        self.in_channels = in_channels
        self.with_dropout = with_dropout
        self.block = block_cls(key, in_channels, channels,
                               with_dropout=with_dropout)

    def forward(self, x_nchw):
        # NCHW -> NHWC once per network, channel-pad to a lane multiple (128)
        # and cast activations to bf16 for the MXU (accumulation stays f32).
        x = jnp.transpose(x_nchw, (0, 2, 3, 1))
        Nb, H, W, C = x.shape
        x_pad = jnp.zeros((Nb, H, W, self.block.cin_p), jnp.bfloat16)
        x_pad = x_pad.at[..., :C].set(x.astype(jnp.bfloat16))
        y = self.block(x_pad)                        # (Nb, Hs, Ws, cout_p) bf16
        y = y[..., :self.block.c_out]                # drop channel padding
        # Final network output: back to NCHW, f32 (tiny tensor).
        return jnp.transpose(y, (0, 3, 1, 2)).astype(jnp.float32)


# ----------------------------------------------------------------------------
if __name__ == "__main__":
    key = jax.random.PRNGKey(0)
    k_param, k_x = jax.random.split(key)

    # Small shapes consistent with the module: batch=2, in_channels=4, 16x16.
    x = jax.random.normal(k_x, (2, 4, 16, 16), jnp.float32)   # NCHW

    model = PallasResNet(k_param, in_channels=4, channels=8, with_dropout=True)
    fwd = jax.jit(model.forward)
    y = jax.block_until_ready(fwd(x))

    assert y.shape == (2, 32, 16, 16), y.shape
    assert bool(jnp.all(jnp.isfinite(y)))
    assert bool(jnp.all(y >= 0.0))   # final ReLU

    print("KERNEL_OK")
</pallas_src>

<mosaic_0001>
module attributes {stable_mosaic.version = 11 : i64} {
  func.func @_bottleneck_kernel(%arg0: i32, %arg1: memref<1x256x128xbf16, #tpu.memory_space<vmem>>, %arg2: memref<128x128xbf16, #tpu.memory_space<vmem>>, %arg3: memref<1x128xf32, #tpu.memory_space<vmem>>, %arg4: memref<9x128x128xbf16, #tpu.memory_space<vmem>>, %arg5: memref<1x128xf32, #tpu.memory_space<vmem>>, %arg6: memref<128x128xbf16, #tpu.memory_space<vmem>>, %arg7: memref<1x128xf32, #tpu.memory_space<vmem>>, %arg8: memref<128x128xbf16, #tpu.memory_space<vmem>>, %arg9: memref<1x128xf32, #tpu.memory_space<vmem>>, %arg10: memref<1x256x128xbf16, #tpu.memory_space<vmem>>, %arg11: memref<288x128xbf16, #tpu.memory_space<vmem>>, %arg12: memref<288x128xbf16, #tpu.memory_space<vmem>>, %arg13: memref<288x128xbf16, #tpu.memory_space<vmem>>, %arg14: memref<256x128xf32, #tpu.memory_space<vmem>>) attributes {dimension_semantics = [#tpu.dimension_semantics<parallel>], iteration_bounds = array<i64: 2>, scalar_prefetch = 0 : i64, scratch_operands = 4 : i64, tpu.core_type = #tpu.core_type<tc>, window_params = [{transform_indices = @transform_0, window_bounds = array<i64: 1, 256, 128>}, {pipeline_mode = #tpu.pipeline_mode<synchronous>, transform_indices = @transform_1, window_bounds = array<i64: 128, 128>}, {pipeline_mode = #tpu.pipeline_mode<synchronous>, transform_indices = @transform_2, window_bounds = array<i64: 1, 128>}, {pipeline_mode = #tpu.pipeline_mode<synchronous>, transform_indices = @transform_3, window_bounds = array<i64: 9, 128, 128>}, {pipeline_mode = #tpu.pipeline_mode<synchronous>, transform_indices = @transform_4, window_bounds = array<i64: 1, 128>}, {pipeline_mode = #tpu.pipeline_mode<synchronous>, transform_indices = @transform_5, window_bounds = array<i64: 128, 128>}, {pipeline_mode = #tpu.pipeline_mode<synchronous>, transform_indices = @transform_6, window_bounds = array<i64: 1, 128>}, {pipeline_mode = #tpu.pipeline_mode<synchronous>, transform_indices = @transform_7, window_bounds = array<i64: 128, 128>}, {pipeline_mode = #tpu.pipeline_mode<synchronous>, transform_indices = @transform_8, window_bounds = array<i64: 1, 128>}, {transform_indices = @transform_9, window_bounds = array<i64: 1, 256, 128>}]} {
    %c0 = arith.constant 0 : index
    %c0_0 = arith.constant 0 : index
    %c0_1 = arith.constant 0 : index
    %0 = vector.load %arg1[%c0, %c0_0, %c0_1] : memref<1x256x128xbf16, #tpu.memory_space<vmem>>, vector<1x256x128xbf16>
    %1 = vector.shape_cast %0 : vector<1x256x128xbf16> to vector<256x128xbf16>
    %c0_2 = arith.constant 0 : index
    %c0_3 = arith.constant 0 : index
    %2 = vector.load %arg2[%c0_2, %c0_3] : memref<128x128xbf16, #tpu.memory_space<vmem>>, vector<128x128xbf16>
    %cst = arith.constant dense<0.000000e+00> : vector<256x128xf32>
    %3 = tpu.matmul %1, %2, %cst {dimension_numbers = #tpu.dot_dimension_numbers<[1], [0], [0], [1], [0, 0, 1, 1], [], []>} : vector<256x128xbf16>, vector<128x128xbf16>, vector<256x128xf32> -> vector<256x128xf32>
    %c0_4 = arith.constant 0 : index
    %c0_5 = arith.constant 0 : index
    %4 = vector.load %arg3[%c0_4, %c0_5] : memref<1x128xf32, #tpu.memory_space<vmem>>, vector<1x128xf32>
    %5 = vector.broadcast %4 : vector<1x128xf32> to vector<256x128xf32>
    %6 = arith.addf %3, %5 : vector<256x128xf32>
    %cst_6 = arith.constant 0.000000e+00 : f32
    %7 = vector.broadcast %cst_6 : f32 to vector<256x128xf32>
    %8 = arith.maximumf %6, %7 : vector<256x128xf32>
    %9 = tpu.iota {dimensions = array<i32: 0>} : vector<256x128xi32>
    %c16_i32 = arith.constant 16 : i32
    %c0_i32 = arith.constant 0 : i32
    %10 = arith.cmpi eq, %c16_i32, %c0_i32 : i32
    %c1_i32 = arith.constant 1 : i32
    %11 = arith.select %10, %c1_i32, %c16_i32 : i32
    %12 = vector.broadcast %11 : i32 to vector<256x128xi32>
    %13 = arith.remsi %9, %12 : vector<256x128xi32>
    %c0_i32_7 = arith.constant 0 : i32
    %14 = vector.broadcast %c0_i32_7 : i32 to vector<256x128xi32>
    %15 = arith.cmpi ne, %13, %14 : vector<256x128xi32>
    %c0_i32_8 = arith.constant 0 : i32
    %16 = vector.broadcast %c0_i32_8 : i32 to vector<256x128xi32>
    %17 = arith.cmpi slt, %13, %16 : vector<256x128xi32>
    %c0_i32_9 = arith.constant 0 : i32
    %18 = arith.cmpi slt, %11, %c0_i32_9 : i32
    %19 = vector.broadcast %18 : i1 to vector<256x128xi1>
    %20 = vector.broadcast %19 : vector<256x128xi1> to vector<256x128xi1>
    %21 = arith.xori %17, %20 : vector<256x128xi1>
    %22 = arith.andi %21, %15 : vector<256x128xi1>
    %23 = vector.broadcast %11 : i32 to vector<256x128xi32>
    %24 = arith.addi %13, %23 : vector<256x128xi32>
    %25 = arith.select %22, %24, %13 : vector<256x128xi1>, vector<256x128xi32>
    %c0_i32_10 = arith.constant 0 : i32
    %26 = vector.broadcast %c0_i32_10 : i32 to vector<256x128xi32>
    %27 = arith.cmpi eq, %25, %26 : vector<256x128xi32>
    %c1_i32_11 = arith.constant 1 : i32
    %28 = tpu.dynamic_rotate %8 by %c1_i32_11 dim 0 : vector<256x128xf32>, i32 -> vector<256x128xf32>
    %cst_12 = arith.constant 0.000000e+00 : f32
    %29 = vector.broadcast %cst_12 : f32 to vector<256x128xf32>
    %30 = arith.select %27, %29, %28 : vector<256x128xi1>, vector<256x128xf32>
    %c15_i32 = arith.constant 15 : i32
    %31 = vector.broadcast %c15_i32 : i32 to vector<256x128xi32>
    %32 = arith.cmpi eq, %25, %31 : vector<256x128xi32>
    %c255_i32 = arith.constant 255 : i32
    %33 = tpu.dynamic_rotate %8 by %c255_i32 dim 0 : vector<256x128xf32>, i32 -> vector<256x128xf32>
    %cst_13 = arith.constant 0.000000e+00 : f32
    %34 = vector.broadcast %cst_13 : f32 to vector<256x128xf32>
    %35 = arith.select %32, %34, %33 : vector<256x128xi1>, vector<256x128xf32>
    %cst_14 = arith.constant 0.000000e+00 : bf16
    %36 = vector.broadcast %cst_14 : bf16 to vector<16x128xbf16>
    %c0_15 = arith.constant 0 : index
    %c0_16 = arith.constant 0 : index
    %37 = vector.load %arg11[%c0_15, %c0_16] : memref<288x128xbf16, #tpu.memory_space<vmem>>, vector<16x128xbf16>
    tpu.vector_store %arg11[%c0_15, %c0_16], %36 {strides = array<i32>} : memref<288x128xbf16, #tpu.memory_space<vmem>>, vector<16x128xbf16>,
    %38 = arith.truncf %30 : vector<256x128xf32> to vector<256x128xbf16>
    %c16 = arith.constant 16 : index
    %c0_17 = arith.constant 0 : index
    %39 = vector.load %arg11[%c16, %c0_17] : memref<288x128xbf16, #tpu.memory_space<vmem>>, vector<256x128xbf16>
    tpu.vector_store %arg11[%c16, %c0_17], %38 {strides = array<i32>} : memref<288x128xbf16, #tpu.memory_space<vmem>>, vector<256x128xbf16>,
    %c272 = arith.constant 272 : index
    %c0_18 = arith.constant 0 : index
    %40 = vector.load %arg11[%c272, %c0_18] : memref<288x128xbf16, #tpu.memory_space<vmem>>, vector<16x128xbf16>
    tpu.vector_store %arg11[%c272, %c0_18], %36 {strides = array<i32>} : memref<288x128xbf16, #tpu.memory_space<vmem>>, vector<16x128xbf16>,
    %c0_19 = arith.constant 0 : index
    %c0_20 = arith.constant 0 : index
    %41 = vector.load %arg12[%c0_19, %c0_20] : memref<288x128xbf16, #tpu.memory_space<vmem>>, vector<16x128xbf16>
    tpu.vector_store %arg12[%c0_19, %c0_20], %36 {strides = array<i32>} : memref<288x128xbf16, #tpu.memory_space<vmem>>, vector<16x128xbf16>,
    %42 = arith.truncf %8 : vector<256x128xf32> to vector<256x128xbf16>
    %c16_21 = arith.constant 16 : index
    %c0_22 = arith.constant 0 : index
    %43 = vector.load %arg12[%c16_21, %c0_22] : memref<288x128xbf16, #tpu.memory_space<vmem>>, vector<256x128xbf16>
    tpu.vector_store %arg12[%c16_21, %c0_22], %42 {strides = array<i32>} : memref<288x128xbf16, #tpu.memory_space<vmem>>, vector<256x128xbf16>,
    %c272_23 = arith.constant 272 : index
    %c0_24 = arith.constant 0 : index
    %44 = vector.load %arg12[%c272_23, %c0_24] : memref<288x128xbf16, #tpu.memory_space<vmem>>, vector<16x128xbf16>
    tpu.vector_store %arg12[%c272_23, %c0_24], %36 {strides = array<i32>} : memref<288x128xbf16, #tpu.memory_space<vmem>>, vector<16x128xbf16>,
    %c0_25 = arith.constant 0 : index
    %c0_26 = arith.constant 0 : index
    %45 = vector.load %arg13[%c0_25, %c0_26] : memref<288x128xbf16, #tpu.memory_space<vmem>>, vector<16x128xbf16>
    tpu.vector_store %arg13[%c0_25, %c0_26], %36 {strides = array<i32>} : memref<288x128xbf16, #tpu.memory_space<vmem>>, vector<16x128xbf16>,
    %46 = arith.truncf %35 : vector<256x128xf32> to vector<256x128xbf16>
    %c16_27 = arith.constant 16 : index
    %c0_28 = arith.constant 0 : index
    %47 = vector.load %arg13[%c16_27, %c0_28] : memref<288x128xbf16, #tpu.memory_space<vmem>>, vector<256x128xbf16>
    tpu.vector_store %arg13[%c16_27, %c0_28], %46 {strides = array<i32>} : memref<288x128xbf16, #tpu.memory_space<vmem>>, vector<256x128xbf16>,
    %c272_29 = arith.constant 272 : index
    %c0_30 = arith.constant 0 : index
    %48 = vector.load %arg13[%c272_29, %c0_30] : memref<288x128xbf16, #tpu.memory_space<vmem>>, vector<16x128xbf16>
    tpu.vector_store %arg13[%c272_29, %c0_30], %36 {strides = array<i32>} : memref<288x128xbf16, #tpu.memory_space<vmem>>, vector<16x128xbf16>,
    %c0_31 = arith.constant 0 : index
    %c0_32 = arith.constant 0 : index
    %49 = vector.load %arg11[%c0_31, %c0_32] : memref<288x128xbf16, #tpu.memory_space<vmem>>, vector<256x128xbf16>
    %c0_33 = arith.constant 0 : index
    %c0_34 = arith.constant 0 : index
    %c0_35 = arith.constant 0 : index
    %50 = vector.load %arg4[%c0_33, %c0_34, %c0_35] : memref<9x128x128xbf16, #tpu.memory_space<vmem>>, vector<1x128x128xbf16>
    %51 = vector.shape_cast %50 : vector<1x128x128xbf16> to vector<128x128xbf16>
    %cst_36 = arith.constant dense<0.000000e+00> : vector<256x128xf32>
    %52 = tpu.matmul %49, %51, %cst_36 {dimension_numbers = #tpu.dot_dimension_numbers<[1], [0], [0], [1], [0, 0, 1, 1], [], []>} : vector<256x128xbf16>, vector<128x128xbf16>, vector<256x128xf32> -> vector<256x128xf32>
    %c0_37 = arith.constant 0 : index
    %c0_38 = arith.constant 0 : index
    %53 = vector.load %arg14[%c0_37, %c0_38] : memref<256x128xf32, #tpu.memory_space<vmem>>, vector<256x128xf32>
    tpu.vector_store %arg14[%c0_37, %c0_38], %52 {strides = array<i32>} : memref<256x128xf32, #tpu.memory_space<vmem>>, vector<256x128xf32>,
    %c0_39 = arith.constant 0 : index
    %c0_40 = arith.constant 0 : index
    %54 = vector.load %arg12[%c0_39, %c0_40] : memref<288x128xbf16, #tpu.memory_space<vmem>>, vector<256x128xbf16>
    %c1 = arith.constant 1 : index
    %c0_41 = arith.constant 0 : index
    %c0_42 = arith.constant 0 : index
    %55 = vector.load %arg4[%c1, %c0_41, %c0_42] : memref<9x128x128xbf16, #tpu.memory_space<vmem>>, vector<1x128x128xbf16>
    %56 = vector.shape_cast %55 : vector<1x128x128xbf16> to vector<128x128xbf16>
    %cst_43 = arith.constant dense<0.000000e+00> : vector<256x128xf32>
    %57 = tpu.matmul %54, %56, %cst_43 {dimension_numbers = #tpu.dot_dimension_numbers<[1], [0], [0], [1], [0, 0, 1, 1], [], []>} : vector<256x128xbf16>, vector<128x128xbf16>, vector<256x128xf32> -> vector<256x128xf32>
    %c0_44 = arith.constant 0 : index
    %c0_45 = arith.constant 0 : index
    %58 = vector.load %arg14[%c0_44, %c0_45] : memref<256x128xf32, #tpu.memory_space<vmem>>, vector<256x128xf32>
    %59 = arith.addf %58, %57 : vector<256x128xf32>
    %c0_46 = arith.constant 0 : index
    %c0_47 = arith.constant 0 : index
    %60 = vector.load %arg14[%c0_46, %c0_47] : memref<256x128xf32, #tpu.memory_space<vmem>>, vector<256x128xf32>
    tpu.vector_store %arg14[%c0_46, %c0_47], %59 {strides = array<i32>} : memref<256x128xf32, #tpu.memory_space<vmem>>, vector<256x128xf32>,
    %c0_48 = arith.constant 0 : index
    %c0_49 = arith.constant 0 : index
    %61 = vector.load %arg13[%c0_48, %c0_49] : memref<288x128xbf16, #tpu.memory_space<vmem>>, vector<256x128xbf16>
    %c2 = arith.constant 2 : index
    %c0_50 = arith.constant 0 : index
    %c0_51 = arith.constant 0 : index
    %62 = vector.load %arg4[%c2, %c0_50, %c0_51] : memref<9x128x128xbf16, #tpu.memory_space<vmem>>, vector<1x128x128xbf16>
    %63 = vector.shape_cast %62 : vector<1x128x128xbf16> to vector<128x128xbf16>
    %cst_52 = arith.constant dense<0.000000e+00> : vector<256x128xf32>
    %64 = tpu.matmul %61, %63, %cst_52 {dimension_numbers = #tpu.dot_dimension_numbers<[1], [0], [0], [1], [0, 0, 1, 1], [], []>} : vector<256x128xbf16>, vector<128x128xbf16>, vector<256x128xf32> -> vector<256x128xf32>
    %c0_53 = arith.constant 0 : index
    %c0_54 = arith.constant 0 : index
    %65 = vector.load %arg14[%c0_53, %c0_54] : memref<256x128xf32, #tpu.memory_space<vmem>>, vector<256x128xf32>
    %66 = arith.addf %65, %64 : vector<256x128xf32>
    %c0_55 = arith.constant 0 : index
    %c0_56 = arith.constant 0 : index
    %67 = vector.load %arg14[%c0_55, %c0_56] : memref<256x128xf32, #tpu.memory_space<vmem>>, vector<256x128xf32>
    tpu.vector_store %arg14[%c0_55, %c0_56], %66 {strides = array<i32>} : memref<256x128xf32, #tpu.memory_space<vmem>>, vector<256x128xf32>,
    %c16_57 = arith.constant 16 : index
    %c0_58 = arith.constant 0 : index
    %68 = vector.load %arg11[%c16_57, %c0_58] : memref<288x128xbf16, #tpu.memory_space<vmem>>, vector<256x128xbf16>
    %c3 = arith.constant 3 : index
    %c0_59 = arith.constant 0 : index
    %c0_60 = arith.constant 0 : index
    %69 = vector.load %arg4[%c3, %c0_59, %c0_60] : memref<9x128x128xbf16, #tpu.memory_space<vmem>>, vector<1x128x128xbf16>
    %70 = vector.shape_cast %69 : vector<1x128x128xbf16> to vector<128x128xbf16>
    %cst_61 = arith.constant dense<0.000000e+00> : vector<256x128xf32>
    %71 = tpu.matmul %68, %70, %cst_61 {dimension_numbers = #tpu.dot_dimension_numbers<[1], [0], [0], [1], [0, 0, 1, 1], [], []>} : vector<256x128xbf16>, vector<128x128xbf16>, vector<256x128xf32> -> vector<256x128xf32>
    %c0_62 = arith.constant 0 : index
    %c0_63 = arith.constant 0 : index
    %72 = vector.load %arg14[%c0_62, %c0_63] : memref<256x128xf32, #tpu.memory_space<vmem>>, vector<256x128xf32>
    %73 = arith.addf %72, %71 : vector<256x128xf32>
    %c0_64 = arith.constant 0 : index
    %c0_65 = arith.constant 0 : index
    %74 = vector.load %arg14[%c0_64, %c0_65] : memref<256x128xf32, #tpu.memory_space<vmem>>, vector<256x128xf32>
    tpu.vector_store %arg14[%c0_64, %c0_65], %73 {strides = array<i32>} : memref<256x128xf32, #tpu.memory_space<vmem>>, vector<256x128xf32>,
    %c16_66 = arith.constant 16 : index
    %c0_67 = arith.constant 0 : index
    %75 = vector.load %arg12[%c16_66, %c0_67] : memref<288x128xbf16, #tpu.memory_space<vmem>>, vector<256x128xbf16>
    %c4 = arith.constant 4 : index
    %c0_68 = arith.constant 0 : index
    %c0_69 = arith.constant 0 : index
    %76 = vector.load %arg4[%c4, %c0_68, %c0_69] : memref<9x128x128xbf16, #tpu.memory_space<vmem>>, vector<1x128x128xbf16>
    %77 = vector.shape_cast %76 : vector<1x128x128xbf16> to vector<128x128xbf16>
    %cst_70 = arith.constant dense<0.000000e+00> : vector<256x128xf32>
    %78 = tpu.matmul %75, %77, %cst_70 {dimension_numbers = #tpu.dot_dimension_numbers<[1], [0], [0], [1], [0, 0, 1, 1], [], []>} : vector<256x128xbf16>, vector<128x128xbf16>, vector<256x128xf32> -> vector<256x128xf32>
    %c0_71 = arith.constant 0 : index
    %c0_72 = arith.constant 0 : index
    %79 = vector.load %arg14[%c0_71, %c0_72] : memref<256x128xf32, #tpu.memory_space<vmem>>, vector<256x128xf32>
    %80 = arith.addf %79, %78 : vector<256x128xf32>
    %c0_73 = arith.constant 0 : index
    %c0_74 = arith.constant 0 : index
    %81 = vector.load %arg14[%c0_73, %c0_74] : memref<256x128xf32, #tpu.memory_space<vmem>>, vector<256x128xf32>
    tpu.vector_store %arg14[%c0_73, %c0_74], %80 {strides = array<i32>} : memref<256x128xf32, #tpu.memory_space<vmem>>, vector<256x128xf32>,
    %c16_75 = arith.constant 16 : index
    %c0_76 = arith.constant 0 : index
    %82 = vector.load %arg13[%c16_75, %c0_76] : memref<288x128xbf16, #tpu.memory_space<vmem>>, vector<256x128xbf16>
    %c5 = arith.constant 5 : index
    %c0_77 = arith.constant 0 : index
    %c0_78 = arith.constant 0 : index
    %83 = vector.load %arg4[%c5, %c0_77, %c0_78] : memref<9x128x128xbf16, #tpu.memory_space<vmem>>, vector<1x128x128xbf16>
    %84 = vector.shape_cast %83 : vector<1x128x128xbf16> to vector<128x128xbf16>
    %cst_79 = arith.constant dense<0.000000e+00> : vector<256x128xf32>
    %85 = tpu.matmul %82, %84, %cst_79 {dimension_numbers = #tpu.dot_dimension_numbers<[1], [0], [0], [1], [0, 0, 1, 1], [], []>} : vector<256x128xbf16>, vector<128x128xbf16>, vector<256x128xf32> -> vector<256x128xf32>
    %c0_80 = arith.constant 0 : index
    %c0_81 = arith.constant 0 : index
    %86 = vector.load %arg14[%c0_80, %c0_81] : memref<256x128xf32, #tpu.memory_space<vmem>>, vector<256x128xf32>
    %87 = arith.addf %86, %85 : vector<256x128xf32>
    %c0_82 = arith.constant 0 : index
    %c0_83 = arith.constant 0 : index
    %88 = vector.load %arg14[%c0_82, %c0_83] : memref<256x128xf32, #tpu.memory_space<vmem>>, vector<256x128xf32>
    tpu.vector_store %arg14[%c0_82, %c0_83], %87 {strides = array<i32>} : memref<256x128xf32, #tpu.memory_space<vmem>>, vector<256x128xf32>,
    %c32 = arith.constant 32 : index
    %c0_84 = arith.constant 0 : index
    %89 = vector.load %arg11[%c32, %c0_84] : memref<288x128xbf16, #tpu.memory_space<vmem>>, vector<256x128xbf16>
    %c6 = arith.constant 6 : index
    %c0_85 = arith.constant 0 : index
    %c0_86 = arith.constant 0 : index
    %90 = vector.load %arg4[%c6, %c0_85, %c0_86] : memref<9x128x128xbf16, #tpu.memory_space<vmem>>, vector<1x128x128xbf16>
    %91 = vector.shape_cast %90 : vector<1x128x128xbf16> to vector<128x128xbf16>
    %cst_87 = arith.constant dense<0.000000e+00> : vector<256x128xf32>
    %92 = tpu.matmul %89, %91, %cst_87 {dimension_numbers = #tpu.dot_dimension_numbers<[1], [0], [0], [1], [0, 0, 1, 1], [], []>} : vector<256x128xbf16>, vector<128x128xbf16>, vector<256x128xf32> -> vector<256x128xf32>
    %c0_88 = arith.constant 0 : index
    %c0_89 = arith.constant 0 : index
    %93 = vector.load %arg14[%c0_88, %c0_89] : memref<256x128xf32, #tpu.memory_space<vmem>>, vector<256x128xf32>
    %94 = arith.addf %93, %92 : vector<256x128xf32>
    %c0_90 = arith.constant 0 : index
    %c0_91 = arith.constant 0 : index
    %95 = vector.load %arg14[%c0_90, %c0_91] : memref<256x128xf32, #tpu.memory_space<vmem>>, vector<256x128xf32>
    tpu.vector_store %arg14[%c0_90, %c0_91], %94 {strides = array<i32>} : memref<256x128xf32, #tpu.memory_space<vmem>>, vector<256x128xf32>,
    %c32_92 = arith.constant 32 : index
    %c0_93 = arith.constant 0 : index
    %96 = vector.load %arg12[%c32_92, %c0_93] : memref<288x128xbf16, #tpu.memory_space<vmem>>, vector<256x128xbf16>
    %c7 = arith.constant 7 : index
    %c0_94 = arith.constant 0 : index
    %c0_95 = arith.constant 0 : index
    %97 = vector.load %arg4[%c7, %c0_94, %c0_95] : memref<9x128x128xbf16, #tpu.memory_space<vmem>>, vector<1x128x128xbf16>
    %98 = vector.shape_cast %97 : vector<1x128x128xbf16> to vector<128x128xbf16>
    %cst_96 = arith.constant dense<0.000000e+00> : vector<256x128xf32>
    %99 = tpu.matmul %96, %98, %cst_96 {dimension_numbers = #tpu.dot_dimension_numbers<[1], [0], [0], [1], [0, 0, 1, 1], [], []>} : vector<256x128xbf16>, vector<128x128xbf16>, vector<256x128xf32> -> vector<256x128xf32>
    %c0_97 = arith.constant 0 : index
    %c0_98 = arith.constant 0 : index
    %100 = vector.load %arg14[%c0_97, %c0_98] : memref<256x128xf32, #tpu.memory_space<vmem>>, vector<256x128xf32>
    %101 = arith.addf %100, %99 : vector<256x128xf32>
    %c0_99 = arith.constant 0 : index
    %c0_100 = arith.constant 0 : index
    %102 = vector.load %arg14[%c0_99, %c0_100] : memref<256x128xf32, #tpu.memory_space<vmem>>, vector<256x128xf32>
    tpu.vector_store %arg14[%c0_99, %c0_100], %101 {strides = array<i32>} : memref<256x128xf32, #tpu.memory_space<vmem>>, vector<256x128xf32>,
    %c32_101 = arith.constant 32 : index
    %c0_102 = arith.constant 0 : index
    %103 = vector.load %arg13[%c32_101, %c0_102] : memref<288x128xbf16, #tpu.memory_space<vmem>>, vector<256x128xbf16>
    %c8 = arith.constant 8 : index
    %c0_103 = arith.constant 0 : index
    %c0_104 = arith.constant 0 : index
    %104 = vector.load %arg4[%c8, %c0_103, %c0_104] : memref<9x128x128xbf16, #tpu.memory_space<vmem>>, vector<1x128x128xbf16>
    %105 = vector.shape_cast %104 : vector<1x128x128xbf16> to vector<128x128xbf16>
    %cst_105 = arith.constant dense<0.000000e+00> : vector<256x128xf32>
    %106 = tpu.matmul %103, %105, %cst_105 {dimension_numbers = #tpu.dot_dimension_numbers<[1], [0], [0], [1], [0, 0, 1, 1], [], []>} : vector<256x128xbf16>, vector<128x128xbf16>, vector<256x128xf32> -> vector<256x128xf32>
    %c0_106 = arith.constant 0 : index
    %c0_107 = arith.constant 0 : index
    %107 = vector.load %arg14[%c0_106, %c0_107] : memref<256x128xf32, #tpu.memory_space<vmem>>, vector<256x128xf32>
    %108 = arith.addf %107, %106 : vector<256x128xf32>
    %c0_108 = arith.constant 0 : index
    %c0_109 = arith.constant 0 : index
    %109 = vector.load %arg14[%c0_108, %c0_109] : memref<256x128xf32, #tpu.memory_space<vmem>>, vector<256x128xf32>
    tpu.vector_store %arg14[%c0_108, %c0_109], %108 {strides = array<i32>} : memref<256x128xf32, #tpu.memory_space<vmem>>, vector<256x128xf32>,
    %c0_110 = arith.constant 0 : index
    %c0_111 = arith.constant 0 : index
    %110 = vector.load %arg14[%c0_110, %c0_111] : memref<256x128xf32, #tpu.memory_space<vmem>>, vector<256x128xf32>
    %c0_112 = arith.constant 0 : index
    %c0_113 = arith.constant 0 : index
    %111 = vector.load %arg5[%c0_112, %c0_113] : memref<1x128xf32, #tpu.memory_space<vmem>>, vector<1x128xf32>
    %112 = vector.broadcast %111 : vector<1x128xf32> to vector<256x128xf32>
    %113 = arith.addf %110, %112 : vector<256x128xf32>
    %cst_114 = arith.constant 0.000000e+00 : f32
    %114 = vector.broadcast %cst_114 : f32 to vector<256x128xf32>
    %115 = arith.maximumf %113, %114 : vector<256x128xf32>
    %116 = arith.truncf %115 : vector<256x128xf32> to vector<256x128xbf16>
    %c0_115 = arith.constant 0 : index
    %c0_116 = arith.constant 0 : index
    %117 = vector.load %arg6[%c0_115, %c0_116] : memref<128x128xbf16, #tpu.memory_space<vmem>>, vector<128x128xbf16>
    %cst_117 = arith.constant dense<0.000000e+00> : vector<256x128xf32>
    %118 = tpu.matmul %116, %117, %cst_117 {dimension_numbers = #tpu.dot_dimension_numbers<[1], [0], [0], [1], [0, 0, 1, 1], [], []>} : vector<256x128xbf16>, vector<128x128xbf16>, vector<256x128xf32> -> vector<256x128xf32>
    %c0_118 = arith.constant 0 : index
    %c0_119 = arith.constant 0 : index
    %119 = vector.load %arg7[%c0_118, %c0_119] : memref<1x128xf32, #tpu.memory_space<vmem>>, vector<1x128xf32>
    %120 = vector.broadcast %119 : vector<1x128xf32> to vector<256x128xf32>
    %121 = arith.addf %118, %120 : vector<256x128xf32>
    %c0_120 = arith.constant 0 : index
    %c0_121 = arith.constant 0 : index
    %122 = vector.load %arg8[%c0_120, %c0_121] : memref<128x128xbf16, #tpu.memory_space<vmem>>, vector<128x128xbf16>
    %cst_122 = arith.constant dense<0.000000e+00> : vector<256x128xf32>
    %123 = tpu.matmul %1, %122, %cst_122 {dimension_numbers = #tpu.dot_dimension_numbers<[1], [0], [0], [1], [0, 0, 1, 1], [], []>} : vector<256x128xbf16>, vector<128x128xbf16>, vector<256x128xf32> -> vector<256x128xf32>
    %c0_123 = arith.constant 0 : index
    %c0_124 = arith.constant 0 : index
    %124 = vector.load %arg9[%c0_123, %c0_124] : memref<1x128xf32, #tpu.memory_space<vmem>>, vector<1x128xf32>
    %125 = vector.broadcast %124 : vector<1x128xf32> to vector<256x128xf32>
    %126 = arith.addf %123, %125 : vector<256x128xf32>
    %127 = arith.addf %121, %126 : vector<256x128xf32>
    %cst_125 = arith.constant 0.000000e+00 : f32
    %128 = vector.broadcast %cst_125 : f32 to vector<256x128xf32>
    %129 = arith.maximumf %127, %128 : vector<256x128xf32>
    %130 = arith.truncf %129 : vector<256x128xf32> to vector<256x128xbf16>
    %c0_126 = arith.constant 0 : index
    %c0_127 = arith.constant 0 : index
    %c0_128 = arith.constant 0 : index
    %131 = vector.load %arg10[%c0_126, %c0_127, %c0_128] : memref<1x256x128xbf16, #tpu.memory_space<vmem>>, vector<1x256x128xbf16>
    %132 = vector.shape_cast %131 : vector<1x256x128xbf16> to vector<256x128xbf16>
    %133 = vector.shape_cast %130 : vector<256x128xbf16> to vector<1x256x128xbf16>
    tpu.vector_store %arg10[%c0_126, %c0_127, %c0_128], %133 {strides = array<i32>} : memref<1x256x128xbf16, #tpu.memory_space<vmem>>, vector<1x256x128xbf16>,
    return
  }
  func.func @transform_0(%arg0: i32) -> (i32, i32, i32) {
    %c0_i32 = arith.constant 0 : i32
    %c0_i32_0 = arith.constant 0 : i32
    %c0_i32_1 = arith.constant 0 : i32
    return %arg0, %c0_i32, %c0_i32_0 : i32, i32, i32
  }
  func.func @transform_1(%arg0: i32) -> (i32, i32) {
    %c0_i32 = arith.constant 0 : i32
    %c0_i32_0 = arith.constant 0 : i32
    %c0_i32_1 = arith.constant 0 : i32
    return %c0_i32, %c0_i32_0 : i32, i32
  }
  func.func @transform_2(%arg0: i32) -> (i32, i32) {
    %c0_i32 = arith.constant 0 : i32
    %c0_i32_0 = arith.constant 0 : i32
    %c0_i32_1 = arith.constant 0 : i32
    return %c0_i32, %c0_i32_0 : i32, i32
  }
  func.func @transform_3(%arg0: i32) -> (i32, i32, i32) {
    %c0_i32 = arith.constant 0 : i32
    %c0_i32_0 = arith.constant 0 : i32
    %c0_i32_1 = arith.constant 0 : i32
    %c0_i32_2 = arith.constant 0 : i32
    return %c0_i32, %c0_i32_0, %c0_i32_1 : i32, i32, i32
  }
  func.func @transform_4(%arg0: i32) -> (i32, i32) {
    %c0_i32 = arith.constant 0 : i32
    %c0_i32_0 = arith.constant 0 : i32
    %c0_i32_1 = arith.constant 0 : i32
    return %c0_i32, %c0_i32_0 : i32, i32
  }
  func.func @transform_5(%arg0: i32) -> (i32, i32) {
    %c0_i32 = arith.constant 0 : i32
    %c0_i32_0 = arith.constant 0 : i32
    %c0_i32_1 = arith.constant 0 : i32
    return %c0_i32, %c0_i32_0 : i32, i32
  }
  func.func @transform_6(%arg0: i32) -> (i32, i32) {
    %c0_i32 = arith.constant 0 : i32
    %c0_i32_0 = arith.constant 0 : i32
    %c0_i32_1 = arith.constant 0 : i32
    return %c0_i32, %c0_i32_0 : i32, i32
  }
  func.func @transform_7(%arg0: i32) -> (i32, i32) {
    %c0_i32 = arith.constant 0 : i32
    %c0_i32_0 = arith.constant 0 : i32
    %c0_i32_1 = arith.constant 0 : i32
    return %c0_i32, %c0_i32_0 : i32, i32
  }
  func.func @transform_8(%arg0: i32) -> (i32, i32) {
    %c0_i32 = arith.constant 0 : i32
    %c0_i32_0 = arith.constant 0 : i32
    %c0_i32_1 = arith.constant 0 : i32
    return %c0_i32, %c0_i32_0 : i32, i32
  }
  func.func @transform_9(%arg0: i32) -> (i32, i32, i32) {
    %c0_i32 = arith.constant 0 : i32
    %c0_i32_0 = arith.constant 0 : i32
    %c0_i32_1 = arith.constant 0 : i32
    return %arg0, %c0_i32, %c0_i32_0 : i32, i32, i32
  }
}

</mosaic_0001>

<llo_original>
// kernel: forward.1
$region0: #{forward.1}
  #allocation0 [shape = 'u32[]', space=smem, size = 0x4, offset = 0x4, fixed_abs, tag = 'smem constant byte address 0x4 - core index']
  #allocation1 [shape = 'u32[144,128]{1,0:T(1,128)}', space=vmem, size = 0x12000, scoped, tag = 'internal scratch']
  #allocation2 [shape = 'bf16[288,128]{1,0:T(8,128)(2,1)}', space=vmem, size = 0x12000, scoped, tag = 'scratch operand']
  #allocation3 [shape = 'bf16[288,128]{1,0:T(8,128)(2,1)}', space=vmem, size = 0x12000, scoped, tag = 'scratch operand']
  #allocation4 [shape = 'bf16[288,128]{1,0:T(8,128)(2,1)}', space=vmem, size = 0x12000, scoped, tag = 'scratch operand']
  #allocation5 [shape = 'f32[256,128]{1,0:T(8,128)}', space=vmem, size = 0x20000, scoped, tag = 'scratch operand']
  %s0 = inlined_call_operand.vmem [shape: bf16[2,256,128], index: 0, kind: input, shape index: {}]
  %s1 = inlined_call_operand.vmem [shape: bf16[128,128], index: 1, kind: input, shape index: {}]
  %s2 = inlined_call_operand.vmem [shape: f32[1,128], index: 2, kind: input, shape index: {}]
  %s3 = inlined_call_operand.vmem [shape: bf16[9,128,128], index: 3, kind: input, shape index: {}]
  %s4 = inlined_call_operand.vmem [shape: f32[1,128], index: 4, kind: input, shape index: {}]
  %s5 = inlined_call_operand.vmem [shape: bf16[128,128], index: 5, kind: input, shape index: {}]
  %s6 = inlined_call_operand.vmem [shape: f32[1,128], index: 6, kind: input, shape index: {}]
  %s7 = inlined_call_operand.vmem [shape: bf16[128,128], index: 7, kind: input, shape index: {}]
  %s8 = inlined_call_operand.vmem [shape: f32[1,128], index: 8, kind: input, shape index: {}]
  %s9 = inlined_call_operand.vmem [shape: bf16[2,256,128], index: 9, kind: output, shape index: {}]
  %s10 = sld [smem:[#allocation0]]
  $region69: #{forward.1} parent=0
    _
  %s12 = ssub.s32 1, %s10
  %s13 = scalar_select 0, %s12, %s10
  loop: start=0, step=1, limit=4
  $region2: #{forward.1} parent=0 // loop_pre_header
    _
  $region3: #{forward.1} parent=0 // loop_header
    %s15 = sphi 0, %s19
    %p16 = scmp.ge.s32.totalorder %s15, 4
    %s25 = sphi 0, %s27
    %s28 = sphi 0, %s25
    %s29 = sphi 0, %s28
    %s45 = sphi 0, %s29
    %s49 = sphi 0, %s49
    %s51 = sphi 0, %s49
    %s52 = sphi 0, %s51
    %s66 = sphi 0, %s52
    %s70 = sphi 0, %s70
    %s72 = sphi 0, %s70
    %s73 = sphi 0, %s72
    %s87 = sphi 0, %s73
    %s91 = sphi 0, %s91
    %s93 = sphi 0, %s91
    %s94 = sphi 0, %s93
    %s108 = sphi 0, %s94
    %s112 = sphi 0, %s112
    %s114 = sphi 0, %s112
    %s115 = sphi 0, %s114
    %s129 = sphi 0, %s115
    %s133 = sphi 0, %s133
    %s135 = sphi 0, %s133
    %s136 = sphi 0, %s135
    %s150 = sphi 0, %s136
    %s154 = sphi 0, %s154
    %s156 = sphi 0, %s154
    %s157 = sphi 0, %s156
    %s171 = sphi 0, %s157
    %s175 = sphi 0, %s175
    %s177 = sphi 0, %s175
    %s178 = sphi 0, %s177
    %s192 = sphi 0, %s178
    %s196 = sphi 0, %s196
    %s198 = sphi 0, %s196
    %s199 = sphi 0, %s198
    %s213 = sphi 0, %s199
    %s219 = sphi 0, %s221
    %s222 = sphi 0, %s219
    %s223 = sphi 0, %s222
    %s239 = sphi 0, %s223
  $region4: #{forward.1} parent=0 // loop_header_branch
    %18 = sbr.rel (%p16) target = $region8
  $region5: #{forward.1} parent=0 // loop_body
    %s20 = ssub.s32 %s15, 1
    %s21 = ssub.s32 %s15, 2
    %s22 = sadd.s32 %s15, 1
    %s23 = ssub.s32 %s15, %s22
    %p24 = scmp.eq.s32.totalorder %s23, 0
    %s26 = sadd.s32 %s25, 1
    %s27 = scalar_select %p24, %s25, %s26
    %p30 = pneg %p24
    %p31 = scmp.eq.s32.totalorder %s15, 1
    %p32 = por %p30, %p31
    %p33 = scmp.ne.s32.totalorder %s25, %s28
    %p34 = scmp.eq.s32.totalorder %s15, 0
    %p35 = por %p33, %p34
    %p36 = scmp.ne.s32.totalorder %s25, %s28
    %p37 = scmp.eq.s32.totalorder %s20, 1
    %p38 = por %p36, %p37
    %p39 = scmp.ne.s32.totalorder %s28, %s29
    %p40 = scmp.eq.s32.totalorder %s20, 0
    %p41 = por %p39, %p40
    %p42 = scmp.ne.s32.totalorder %s28, %s29
    %p43 = scmp.eq.s32.totalorder %s21, 1
    %p44 = por %p42, %p43
    %p46 = scmp.ne.s32.totalorder %s29, %s45
    %p47 = scmp.eq.s32.totalorder %s21, 0
    %p48 = por %p46, %p47
    %s50 = sadd.s32 %s49, 1
    %p53 = scmp.eq.s32.totalorder %s15, 1
    %p54 = scmp.ne.s32.totalorder %s49, %s51
    %p55 = scmp.eq.s32.totalorder %s15, 0
    %p56 = por %p54, %p55
    %p57 = scmp.ne.s32.totalorder %s49, %s51
    %p58 = scmp.eq.s32.totalorder %s20, 1
    %p59 = por %p57, %p58
    %p60 = scmp.ne.s32.totalorder %s51, %s52
    %p61 = scmp.eq.s32.totalorder %s20, 0
    %p62 = por %p60, %p61
    %p63 = scmp.ne.s32.totalorder %s51, %s52
    %p64 = scmp.eq.s32.totalorder %s21, 1
    %p65 = por %p63, %p64
    %p67 = scmp.ne.s32.totalorder %s52, %s66
    %p68 = scmp.eq.s32.totalorder %s21, 0
    %p69 = por %p67, %p68
    %s71 = sadd.s32 %s70, 1
    %p74 = scmp.eq.s32.totalorder %s15, 1
    %p75 = scmp.ne.s32.totalorder %s70, %s72
    %p76 = scmp.eq.s32.totalorder %s15, 0
    %p77 = por %p75, %p76
    %p78 = scmp.ne.s32.totalorder %s70, %s72
    %p79 = scmp.eq.s32.totalorder %s20, 1
    %p80 = por %p78, %p79
    %p81 = scmp.ne.s32.totalorder %s72, %s73
    %p82 = scmp.eq.s32.totalorder %s20, 0
    %p83 = por %p81, %p82
    %p84 = scmp.ne.s32.totalorder %s72, %s73
    %p85 = scmp.eq.s32.totalorder %s21, 1
    %p86 = por %p84, %p85
    %p88 = scmp.ne.s32.totalorder %s73, %s87
    %p89 = scmp.eq.s32.totalorder %s21, 0
    %p90 = por %p88, %p89
    %s92 = sadd.s32 %s91, 1
    %p95 = scmp.eq.s32.totalorder %s15, 1
    %p96 = scmp.ne.s32.totalorder %s91, %s93
    %p97 = scmp.eq.s32.totalorder %s15, 0
    %p98 = por %p96, %p97
    %p99 = scmp.ne.s32.totalorder %s91, %s93
    %p100 = scmp.eq.s32.totalorder %s20, 1
    %p101 = por %p99, %p100
    %p102 = scmp.ne.s32.totalorder %s93, %s94
    %p103 = scmp.eq.s32.totalorder %s20, 0
    %p104 = por %p102, %p103
    %p105 = scmp.ne.s32.totalorder %s93, %s94
    %p106 = scmp.eq.s32.totalorder %s21, 1
    %p107 = por %p105, %p106
    %p109 = scmp.ne.s32.totalorder %s94, %s108
    %p110 = scmp.eq.s32.totalorder %s21, 0
    %p111 = por %p109, %p110
    %s113 = sadd.s32 %s112, 1
    %p116 = scmp.eq.s32.totalorder %s15, 1
    %p117 = scmp.ne.s32.totalorder %s112, %s114
    %p118 = scmp.eq.s32.totalorder %s15, 0
    %p119 = por %p117, %p118
    %p120 = scmp.ne.s32.totalorder %s112, %s114
    %p121 = scmp.eq.s32.totalorder %s20, 1
    %p122 = por %p120, %p121
    %p123 = scmp.ne.s32.totalorder %s114, %s115
    %p124 = scmp.eq.s32.totalorder %s20, 0
    %p125 = por %p123, %p124
    %p126 = scmp.ne.s32.totalorder %s114, %s115
    %p127 = scmp.eq.s32.totalorder %s21, 1
    %p128 = por %p126, %p127
    %p130 = scmp.ne.s32.totalorder %s115, %s129
    %p131 = scmp.eq.s32.totalorder %s21, 0
    %p132 = por %p130, %p131
    %s134 = sadd.s32 %s133, 1
    %p137 = scmp.eq.s32.totalorder %s15, 1
    %p138 = scmp.ne.s32.totalorder %s133, %s135
    %p139 = scmp.eq.s32.totalorder %s15, 0
    %p140 = por %p138, %p139
    %p141 = scmp.ne.s32.totalorder %s133, %s135
    %p142 = scmp.eq.s32.totalorder %s20, 1
    %p143 = por %p141, %p142
    %p144 = scmp.ne.s32.totalorder %s135, %s136
    %p145 = scmp.eq.s32.totalorder %s20, 0
    %p146 = por %p144, %p145
    %p147 = scmp.ne.s32.totalorder %s135, %s136
    %p148 = scmp.eq.s32.totalorder %s21, 1
    %p149 = por %p147, %p148
    %p151 = scmp.ne.s32.totalorder %s136, %s150
    %p152 = scmp.eq.s32.totalorder %s21, 0
    %p153 = por %p151, %p152
    %s155 = sadd.s32 %s154, 1
    %p158 = scmp.eq.s32.totalorder %s15, 1
    %p159 = scmp.ne.s32.totalorder %s154, %s156
    %p160 = scmp.eq.s32.totalorder %s15, 0
    %p161 = por %p159, %p160
    %p162 = scmp.ne.s32.totalorder %s154, %s156
    %p163 = scmp.eq.s32.totalorder %s20, 1
    %p164 = por %p162, %p163
    %p165 = scmp.ne.s32.totalorder %s156, %s157
    %p166 = scmp.eq.s32.totalorder %s20, 0
    %p167 = por %p165, %p166
    %p168 = scmp.ne.s32.totalorder %s156, %s157
    %p169 = scmp.eq.s32.totalorder %s21, 1
    %p170 = por %p168, %p169
    %p172 = scmp.ne.s32.totalorder %s157, %s171
    %p173 = scmp.eq.s32.totalorder %s21, 0
    %p174 = por %p172, %p173
    %s176 = sadd.s32 %s175, 1
    %p179 = scmp.eq.s32.totalorder %s15, 1
    %p180 = scmp.ne.s32.totalorder %s175, %s177
    %p181 = scmp.eq.s32.totalorder %s15, 0
    %p182 = por %p180, %p181
    %p183 = scmp.ne.s32.totalorder %s175, %s177
    %p184 = scmp.eq.s32.totalorder %s20, 1
    %p185 = por %p183, %p184
    %p186 = scmp.ne.s32.totalorder %s177, %s178
    %p187 = scmp.eq.s32.totalorder %s20, 0
    %p188 = por %p186, %p187
    %p189 = scmp.ne.s32.totalorder %s177, %s178
    %p190 = scmp.eq.s32.totalorder %s21, 1
    %p191 = por %p189, %p190
    %p193 = scmp.ne.s32.totalorder %s178, %s192
    %p194 = scmp.eq.s32.totalorder %s21, 0
    %p195 = por %p193, %p194
    %s197 = sadd.s32 %s196, 1
    %p200 = scmp.eq.s32.totalorder %s15, 1
    %p201 = scmp.ne.s32.totalorder %s196, %s198
    %p202 = scmp.eq.s32.totalorder %s15, 0
    %p203 = por %p201, %p202
    %p204 = scmp.ne.s32.totalorder %s196, %s198
    %p205 = scmp.eq.s32.totalorder %s20, 1
    %p206 = por %p204, %p205
    %p207 = scmp.ne.s32.totalorder %s198, %s199
    %p208 = scmp.eq.s32.totalorder %s20, 0
    %p209 = por %p207, %p208
    %p210 = scmp.ne.s32.totalorder %s198, %s199
    %p211 = scmp.eq.s32.totalorder %s21, 1
    %p212 = por %p210, %p211
    %p214 = scmp.ne.s32.totalorder %s199, %s213
    %p215 = scmp.eq.s32.totalorder %s21, 0
    %p216 = por %p214, %p215
    %s217 = ssub.s32 %s15, %s22
    %p218 = scmp.eq.s32.totalorder %s217, 0
    %s220 = sadd.s32 %s219, 1
    %s221 = scalar_select %p218, %s219, %s220
    %p224 = pneg %p218
    %p225 = scmp.eq.s32.totalorder %s15, 1
    %p226 = por %p224, %p225
    %p227 = scmp.ne.s32.totalorder %s219, %s222
    %p228 = scmp.eq.s32.totalorder %s15, 0
    %p229 = por %p227, %p228
    %p230 = scmp.ne.s32.totalorder %s219, %s222
    %p231 = scmp.eq.s32.totalorder %s20, 1
    %p232 = por %p230, %p231
    %p233 = scmp.ne.s32.totalorder %s222, %s223
    %p234 = scmp.eq.s32.totalorder %s20, 0
    %p235 = por %p233, %p234
    %p236 = scmp.ne.s32.totalorder %s222, %s223
    %p237 = scmp.eq.s32.totalorder %s21, 1
    %p238 = por %p236, %p237
    %p240 = scmp.ne.s32.totalorder %s223, %s239
    %p241 = scmp.eq.s32.totalorder %s21, 0
    %p242 = por %p240, %p241
    %p243 = scmp.le.s32.totalorder 1, %s15
    %p244 = scmp.lt.s32.totalorder %s15, 3
    %p245 = pnand %p243, %p244
    %p246 = pneg %p245
    // Predicated region
    $region9: #{forward.1} parent=5 // pred_check
      _
    $region10: #{forward.1} parent=5 // pred_check_branch
      %248 = sbr.rel (%p245) target = $region12
    $region11: #{forward.1} parent=5 // pred_region
      %s249 = ssub.s32 %s15, 1
      // Predicated region
      $region13: #{forward.1} parent=11 // pred_check
        %p250 = pneg %p62
      $region14: #{forward.1} parent=11 // pred_check_branch
        %252 = sbr.rel (%p250) target = $region16
      $region15: #{forward.1} parent=11 // pred_region
        _
      $region16: #{forward.1} parent=11 // pred_fallthru
        _
      // Predicated region
      $region17: #{forward.1} parent=11 // pred_check
        %p253 = pneg %p83
      $region18: #{forward.1} parent=11 // pred_check_branch
        %255 = sbr.rel (%p253) target = $region20
      $region19: #{forward.1} parent=11 // pred_region
        _
      $region20: #{forward.1} parent=11 // pred_fallthru
        _
      // Predicated region
      $region21: #{forward.1} parent=11 // pred_check
        %p256 = pneg %p104
      $region22: #{forward.1} parent=11 // pred_check_branch
        %258 = sbr.rel (%p256) target = $region24
      $region23: #{forward.1} parent=11 // pred_region
        _
      $region24: #{forward.1} parent=11 // pred_fallthru
        _
      // Predicated region
      $region25: #{forward.1} parent=11 // pred_check
        %p259 = pneg %p125
      $region26: #{forward.1} parent=11 // pred_check_branch
        %261 = sbr.rel (%p259) target = $region28
      $region27: #{forward.1} parent=11 // pred_region
        _
      $region28: #{forward.1} parent=11 // pred_fallthru
        _
      // Predicated region
      $region29: #{forward.1} parent=11 // pred_check
        %p262 = pneg %p146
      $region30: #{forward.1} parent=11 // pred_check_branch
        %264 = sbr.rel (%p262) target = $region32
      $region31: #{forward.1} parent=11 // pred_region
        _
      $region32: #{forward.1} parent=11 // pred_fallthru
        _
      // Predicated region
      $region33: #{forward.1} parent=11 // pred_check
        %p265 = pneg %p167
      $region34: #{forward.1} parent=11 // pred_check_branch
        %267 = sbr.rel (%p265) target = $region36
      $region35: #{forward.1} parent=11 // pred_region
        _
      $region36: #{forward.1} parent=11 // pred_fallthru
        _
      // Predicated region
      $region37: #{forward.1} parent=11 // pred_check
        %p268 = pneg %p188
      $region38: #{forward.1} parent=11 // pred_check_branch
        %270 = sbr.rel (%p268) target = $region40
      $region39: #{forward.1} parent=11 // pred_region
        _
      $region40: #{forward.1} parent=11 // pred_fallthru
        _
      // Predicated region
      $region41: #{forward.1} parent=11 // pred_check
        %p271 = pneg %p209
      $region42: #{forward.1} parent=11 // pred_check_branch
        %273 = sbr.rel (%p271) target = $region44
      $region43: #{forward.1} parent=11 // pred_region
        _
      $region44: #{forward.1} parent=11 // pred_fallthru
        _
    $region12: #{forward.1} parent=5 // pred_fallthru
      _
    %p274 = scmp.lt.s32.totalorder %s15, 2
    // Predicated region
    $region45: #{forward.1} parent=5 // pred_check
      %p275 = pneg %p274
    $region46: #{forward.1} parent=5 // pred_check_branch
      %277 = sbr.rel (%p275) target = $region48
    $region47: #{forward.1} parent=5 // pred_region
      // Predicated region
      $region49: #{forward.1} parent=47 // pred_check
        %p278 = pneg %p35
      $region50: #{forward.1} parent=47 // pred_check_branch
        %280 = sbr.rel (%p278) target = $region52
      $region51: #{forward.1} parent=47 // pred_region
        %p281 = scmp.lt.s32.totalorder %s15, 1
        %s282 = scalar_select %p281, %s15, 1
        %s283 = smul.addr %s282, 32
        %s284 = smul.addr %s283, 4
        %s285 = scalar_lea.vmem %s0, %s284
      $region52: #{forward.1} parent=47 // pred_fallthru
        _
    $region48: #{forward.1} parent=5 // pred_fallthru
      _
    %p286 = scmp.le.s32.totalorder 1, %s15
    %p287 = scmp.lt.s32.totalorder %s15, 3
    %p288 = pnand %p286, %p287
    %p289 = pneg %p288
    // Predicated region
    $region53: #{forward.1} parent=5 // pred_check
      _
    $region54: #{forward.1} parent=5 // pred_check_branch
      %291 = sbr.rel (%p288) target = $region56
    $region55: #{forward.1} parent=5 // pred_region
      %s292 = ssub.s32 %s15, 1
      %p293 = scmp.lt.s32.totalorder %s20, 1
      %s294 = scalar_select %p293, %s20, 1
      %s295 = smul.addr %s294, 32
      %s296 = smul.addr %s295, 4
      %s297 = scalar_lea.vmem %s0, %s296
      %p298 = pneg %p41
      %p299 = pneg %p38
      %p300 = pneg %p62
      %p301 = pneg %p59
      %p302 = pneg %p83
      %p303 = pneg %p80
      %p304 = pneg %p104
      %p305 = pneg %p101
      %p306 = pneg %p125
      %p307 = pneg %p122
      %p308 = pneg %p146
      %p309 = pneg %p143
      %p310 = pneg %p167
      %p311 = pneg %p164
      %p312 = pneg %p188
      %p313 = pneg %p185
      %p314 = pneg %p209
      %p315 = pneg %p206
      %p316 = pneg %p235
      %p317 = pneg %p232
      %p318 = scmp.lt.s32.totalorder %s20, 1
      %s319 = scalar_select %p318, %s20, 1
      %s320 = smul.addr %s319, 32
      %s321 = smul.addr %s320, 4
      %s322 = scalar_lea.vmem %s9, %s321
      %p323 = scmp.lt.s32.totalorder %s20, 1
      %s324 = scalar_select %p323, %s20, 1
      %s325 = smul.addr %s324, 32
      %s326 = smul.addr %s325, 4
      %s327 = scalar_lea.vmem %s0, %s326
      %p328 = scmp.lt.s32.totalorder %s20, 1
      %s329 = scalar_select %p328, %s20, 1
      %s330 = smul.addr %s329, 32
      %s331 = smul.addr %s330, 4
      %s332 = scalar_lea.vmem %s9, %s331
      %v334 = vld [vmem:[%s327] sm:$0xf]
      %v335 = vld [vmem:[%s327 + $0x4] sm:$0xf]
      %v336 = vld [vmem:[%s327 + $0x8] sm:$0xf]
      %v337 = vld [vmem:[%s327 + $0xc] sm:$0xf]
      %v338 = vld [vmem:[%s327 + $0x10] sm:$0xf]
      %v339 = vld [vmem:[%s327 + $0x14] sm:$0xf]
      %v340 = vld [vmem:[%s327 + $0x18] sm:$0xf]
      %v341 = vld [vmem:[%s327 + $0x1c] sm:$0xf]
      %v342 = vld [vmem:[%s327 + $0x20] sm:$0xf]
      %v343 = vld [vmem:[%s327 + $0x24] sm:$0xf]
      %v344 = vld [vmem:[%s327 + $0x28] sm:$0xf]
      %v345 = vld [vmem:[%s327 + $0x2c] sm:$0xf]
      %v346 = vld [vmem:[%s327 + $0x30] sm:$0xf]
      %v347 = vld [vmem:[%s327 + $0x34] sm:$0xf]
      %v348 = vld [vmem:[%s327 + $0x38] sm:$0xf]
      %v349 = vld [vmem:[%s327 + $0x3c] sm:$0xf]
      %v350 = vld [vmem:[%s327 + $0x40] sm:$0xf]
      %v351 = vld [vmem:[%s327 + $0x44] sm:$0xf]
      %v352 = vld [vmem:[%s327 + $0x48] sm:$0xf]
      %v353 = vld [vmem:[%s327 + $0x4c] sm:$0xf]
      %v354 = vld [vmem:[%s327 + $0x50] sm:$0xf]
      %v355 = vld [vmem:[%s327 + $0x54] sm:$0xf]
      %v356 = vld [vmem:[%s327 + $0x58] sm:$0xf]
      %v357 = vld [vmem:[%s327 + $0x5c] sm:$0xf]
      %v358 = vld [vmem:[%s327 + $0x60] sm:$0xf]
      %v359 = vld [vmem:[%s327 + $0x64] sm:$0xf]
      %v360 = vld [vmem:[%s327 + $0x68] sm:$0xf]
      %v361 = vld [vmem:[%s327 + $0x6c] sm:$0xf]
      %v362 = vld [vmem:[%s327 + $0x70] sm:$0xf]
      %v363 = vld [vmem:[%s327 + $0x74] sm:$0xf]
      %v364 = vld [vmem:[%s327 + $0x78] sm:$0xf]
      %v365 = vld [vmem:[%s327 + $0x7c] sm:$0xf]
      %v366 = vld [vmem:[%s1] sm:$0xf]
      %v367 = vld [vmem:[%s1 + $0x4] sm:$0xf]
      %v368 = vld [vmem:[%s1 + $0x8] sm:$0xf]
      %v369 = vld [vmem:[%s1 + $0xc] sm:$0xf]
      %v370 = vld [vmem:[%s1 + $0x10] sm:$0xf]
      %v371 = vld [vmem:[%s1 + $0x14] sm:$0xf]
      %v372 = vld [vmem:[%s1 + $0x18] sm:$0xf]
      %v373 = vld [vmem:[%s1 + $0x1c] sm:$0xf]
      %v374 = vld [vmem:[%s1 + $0x20] sm:$0xf]
      %v375 = vld [vmem:[%s1 + $0x24] sm:$0xf]
      %v376 = vld [vmem:[%s1 + $0x28] sm:$0xf]
      %v377 = vld [vmem:[%s1 + $0x2c] sm:$0xf]
      %v378 = vld [vmem:[%s1 + $0x30] sm:$0xf]
      %v379 = vld [vmem:[%s1 + $0x34] sm:$0xf]
      %v380 = vld [vmem:[%s1 + $0x38] sm:$0xf]
      %v381 = vld [vmem:[%s1 + $0x3c] sm:$0xf]
      %v382 = vld [vmem:[%s2] sm:$0x1]
      %v384 = vlaneseq
      %v385 = vshrl.u32 %v384, 7
      %v386 = vsub.s32 0, %v385
      %v387 = vrot.slane %v382, %v386
      %v421 = vunpack.c.l.b16 %v334
      %v422 = vunpack.c.l.b16 %v335
      %v423 = vunpack.c.l.b16 %v336
      %v424 = vunpack.c.l.b16 %v337
      %v425 = vunpack.c.l.b16 %v338
      %v426 = vunpack.c.l.b16 %v339
      %v427 = vunpack.c.l.b16 %v340
      %v428 = vunpack.c.l.b16 %v341
      %v429 = vunpack.c.l.b16 %v342
      %v430 = vunpack.c.l.b16 %v343
      %v431 = vunpack.c.l.b16 %v344
      %v432 = vunpack.c.l.b16 %v345
      %v433 = vunpack.c.l.b16 %v346
      %v434 = vunpack.c.l.b16 %v347
      %v435 = vunpack.c.l.b16 %v348
      %v436 = vunpack.c.l.b16 %v349
      %v437 = vunpack.c.l.b16 %v350
      %v438 = vunpack.c.l.b16 %v351
      %v439 = vunpack.c.l.b16 %v352
      %v440 = vunpack.c.l.b16 %v353
      %v441 = vunpack.c.l.b16 %v354
      %v442 = vunpack.c.l.b16 %v355
      %v443 = vunpack.c.l.b16 %v356
      %v444 = vunpack.c.l.b16 %v357
      %v445 = vunpack.c.l.b16 %v358
      %v446 = vunpack.c.l.b16 %v359
      %v447 = vunpack.c.l.b16 %v360
      %v448 = vunpack.c.l.b16 %v361
      %v449 = vunpack.c.l.b16 %v362
      %v450 = vunpack.c.l.b16 %v363
      %v451 = vunpack.c.l.b16 %v364
      %v452 = vunpack.c.l.b16 %v365
      %v453 = vpack.c.b16 %v422, %v421
      %v454 = vpack.c.b16 %v424, %v423
      %v455 = vpack.c.b16 %v426, %v425
      %v456 = vpack.c.b16 %v428, %v427
      %v457 = vpack.c.b16 %v430, %v429
      %v458 = vpack.c.b16 %v432, %v431
      %v459 = vpack.c.b16 %v434, %v433
      %v460 = vpack.c.b16 %v436, %v435
      %v461 = vpack.c.b16 %v438, %v437
      %v462 = vpack.c.b16 %v440, %v439
      %v463 = vpack.c.b16 %v442, %v441
      %v464 = vpack.c.b16 %v444, %v443
      %v465 = vpack.c.b16 %v446, %v445
      %v466 = vpack.c.b16 %v448, %v447
      %v467 = vpack.c.b16 %v450, %v449
      %v468 = vpack.c.b16 %v452, %v451
      %v501 = vunpack.c.l.b16 %v366
      %v502 = vunpack.c.l.b16 %v367
      %v503 = vunpack.c.l.b16 %v368
      %v504 = vunpack.c.l.b16 %v369
      %v505 = vunpack.c.l.b16 %v370
      %v506 = vunpack.c.l.b16 %v371
      %v507 = vunpack.c.l.b16 %v372
      %v508 = vunpack.c.l.b16 %v373
      %v509 = vunpack.c.l.b16 %v374
      %v510 = vunpack.c.l.b16 %v375
      %v511 = vunpack.c.l.b16 %v376
      %v512 = vunpack.c.l.b16 %v377
      %v513 = vunpack.c.l.b16 %v378
      %v514 = vunpack.c.l.b16 %v379
      %v515 = vunpack.c.l.b16 %v380
      %v516 = vunpack.c.l.b16 %v381
      %v517 = vpack.c.b16 %v502, %v501
      %v518 = vpack.c.b16 %v504, %v503
      %v519 = vpack.c.b16 %v506, %v505
      %v520 = vpack.c.b16 %v508, %v507
      %v521 = vpack.c.b16 %v510, %v509
      %v522 = vpack.c.b16 %v512, %v511
      %v523 = vpack.c.b16 %v514, %v513
      %v524 = vpack.c.b16 %v516, %v515
      %533 = vmatprep.subr.bf16.mxu0 0
      %534 = vmatpush1.bf16.msra.mxu0 %v524
      %535 = vmatprep.subr.bf16.mxu0 0
      %536 = vmatpush1.bf16.msra.mxu0 %v523
      %537 = vmatprep.subr.bf16.mxu0 0
      %538 = vmatpush1.bf16.msra.mxu0 %v522
      %539 = vmatprep.subr.bf16.mxu0 0
      %540 = vmatpush1.bf16.msra.mxu0 %v521
      %541 = vmatprep.subr.bf16.mxu0 0
      %542 = vmatpush1.bf16.msra.mxu0 %v520
      %543 = vmatprep.subr.bf16.mxu0 0
      %544 = vmatpush1.bf16.msra.mxu0 %v519
      %545 = vmatprep.subr.bf16.mxu0 0
      %546 = vmatpush1.bf16.msra.mxu0 %v518
      %547 = vmatprep.subr.bf16.mxu0 0
      %548 = vmatpush1.bf16.msra.mxu0 %v517
      %549 = vmatprep.subr.bf16.mxu0 0
      %550 = vmatpush2.bf16.msra.mxu0 0
      %551 = vmatprep.subr.bf16.mxu0 0
      %552 = vmatpush2.bf16.msra.mxu0 0
      %553 = vmatprep.subr.bf16.mxu0 0
      %554 = vmatpush2.bf16.msra.mxu0 0
      %555 = vmatprep.subr.bf16.mxu0 0
      %556 = vmatpush2.bf16.msra.mxu0 0
      %557 = vmatprep.subr.bf16.mxu0 0
      %558 = vmatpush2.bf16.msra.mxu0 0
      %559 = vmatprep.subr.bf16.mxu0 0
      %560 = vmatpush2.bf16.msra.mxu0 0
      %561 = vmatprep.subr.bf16.mxu0 0
      %562 = vmatpush2.bf16.msra.mxu0 0
      %563 = vmatprep.subr.bf16.mxu0 0
      %564 = vmatpush2.bf16.msra.mxu0 0
      %565 = vmatprep.mubr.bf16.mxu0 0
      %566 = vmatmul.mubr.bf16.gmra.mxu0 %v453
      %v567 = vpop.f32.mrf.mxu0
      %v568 = vadd.f32 %v387, %v567
      %v569 = vpop.f32.mrf.mxu0
      %v570 = vpop.f32.mrf.mxu0
      %v571 = vadd.f32 %v387, %v570
      %v572 = vpop.f32.mrf.mxu0
      %573 = vmatprep.mubr.bf16.mxu0 0
      %574 = vmatmul.mubr.bf16.gmra.mxu0 %v454
      %v575 = vpop.f32.mrf.mxu0
      %v576 = vadd.f32 %v387, %v575
      %v577 = vpop.f32.mrf.mxu0
      %v578 = vpop.f32.mrf.mxu0
      %v579 = vadd.f32 %v387, %v578
      %v580 = vpop.f32.mrf.mxu0
      %581 = vmatprep.mubr.bf16.mxu0 0
      %582 = vmatmul.mubr.bf16.gmra.mxu0 %v455
      %v583 = vpop.f32.mrf.mxu0
      %v584 = vadd.f32 %v387, %v583
      %v585 = vpop.f32.mrf.mxu0
      %v586 = vpop.f32.mrf.mxu0
      %v587 = vadd.f32 %v387, %v586
      %v588 = vpop.f32.mrf.mxu0
      %589 = vmatprep.mubr.bf16.mxu0 0
      %590 = vmatmul.mubr.bf16.gmra.mxu0 %v456
      %v591 = vpop.f32.mrf.mxu0
      %v592 = vadd.f32 %v387, %v591
      %v593 = vpop.f32.mrf.mxu0
      %v594 = vpop.f32.mrf.mxu0
      %v595 = vadd.f32 %v387, %v594
      %v596 = vpop.f32.mrf.mxu0
      %597 = vmatprep.mubr.bf16.mxu0 0
      %598 = vmatmul.mubr.bf16.gmra.mxu0 %v457
      %v599 = vpop.f32.mrf.mxu0
      %v600 = vadd.f32 %v387, %v599
      %v601 = vpop.f32.mrf.mxu0
      %v602 = vpop.f32.mrf.mxu0
      %v603 = vadd.f32 %v387, %v602
      %v604 = vpop.f32.mrf.mxu0
      %605 = vmatprep.mubr.bf16.mxu0 0
      %606 = vmatmul.mubr.bf16.gmra.mxu0 %v458
      %v607 = vpop.f32.mrf.mxu0
      %v608 = vadd.f32 %v387, %v607
      %v609 = vpop.f32.mrf.mxu0
      %v610 = vpop.f32.mrf.mxu0
      %v611 = vadd.f32 %v387, %v610
      %v612 = vpop.f32.mrf.mxu0
      %613 = vmatprep.mubr.bf16.mxu0 0
      %614 = vmatmul.mubr.bf16.gmra.mxu0 %v459
      %v615 = vpop.f32.mrf.mxu0
      %v616 = vadd.f32 %v387, %v615
      %v617 = vpop.f32.mrf.mxu0
      %v618 = vpop.f32.mrf.mxu0
      %v619 = vadd.f32 %v387, %v618
      %v620 = vpop.f32.mrf.mxu0
      %621 = vmatprep.mubr.bf16.mxu0 0
      %622 = vmatmul.mubr.bf16.gmra.mxu0 %v460
      %v623 = vpop.f32.mrf.mxu0
      %v624 = vadd.f32 %v387, %v623
      %v625 = vpop.f32.mrf.mxu0
      %v626 = vpop.f32.mrf.mxu0
      %v627 = vadd.f32 %v387, %v626
      %v628 = vpop.f32.mrf.mxu0
      %629 = vmatprep.mubr.bf16.mxu0 0
      %630 = vmatmul.mubr.bf16.gmra.mxu0 %v461
      %v631 = vpop.f32.mrf.mxu0
      %v632 = vadd.f32 %v387, %v631
      %v633 = vpop.f32.mrf.mxu0
      %v634 = vpop.f32.mrf.mxu0
      %v635 = vadd.f32 %v387, %v634
      %v636 = vpop.f32.mrf.mxu0
      %637 = vmatprep.mubr.bf16.mxu0 0
      %638 = vmatmul.mubr.bf16.gmra.mxu0 %v462
      %v639 = vpop.f32.mrf.mxu0
      %v640 = vadd.f32 %v387, %v639
      %v641 = vpop.f32.mrf.mxu0
      %v642 = vpop.f32.mrf.mxu0
      %v643 = vadd.f32 %v387, %v642
      %v644 = vpop.f32.mrf.mxu0
      %645 = vmatprep.mubr.bf16.mxu0 0
      %646 = vmatmul.mubr.bf16.gmra.mxu0 %v463
      %v647 = vpop.f32.mrf.mxu0
      %v648 = vadd.f32 %v387, %v647
      %v649 = vpop.f32.mrf.mxu0
      %v650 = vpop.f32.mrf.mxu0
      %v651 = vadd.f32 %v387, %v650
      %v652 = vpop.f32.mrf.mxu0
      %653 = vmatprep.mubr.bf16.mxu0 0
      %654 = vmatmul.mubr.bf16.gmra.mxu0 %v464
      %v655 = vpop.f32.mrf.mxu0
      %v656 = vadd.f32 %v387, %v655
      %v657 = vpop.f32.mrf.mxu0
      %v658 = vpop.f32.mrf.mxu0
      %v659 = vadd.f32 %v387, %v658
      %v660 = vpop.f32.mrf.mxu0
      %661 = vmatprep.mubr.bf16.mxu0 0
      %662 = vmatmul.mubr.bf16.gmra.mxu0 %v465
      %v663 = vpop.f32.mrf.mxu0
      %v664 = vadd.f32 %v387, %v663
      %v665 = vpop.f32.mrf.mxu0
      %v666 = vpop.f32.mrf.mxu0
      %v667 = vadd.f32 %v387, %v666
      %v668 = vpop.f32.mrf.mxu0
      %669 = vmatprep.mubr.bf16.mxu0 0
      %670 = vmatmul.mubr.bf16.gmra.mxu0 %v466
      %v671 = vpop.f32.mrf.mxu0
      %v672 = vadd.f32 %v387, %v671
      %v673 = vpop.f32.mrf.mxu0
      %v674 = vpop.f32.mrf.mxu0
      %v675 = vadd.f32 %v387, %v674
      %v676 = vpop.f32.mrf.mxu0
      %677 = vmatprep.mubr.bf16.mxu0 0
      %678 = vmatmul.mubr.bf16.gmra.mxu0 %v467
      %v679 = vpop.f32.mrf.mxu0
      %v680 = vadd.f32 %v387, %v679
      %v681 = vpop.f32.mrf.mxu0
      %v682 = vpop.f32.mrf.mxu0
      %v683 = vadd.f32 %v387, %v682
      %v684 = vpop.f32.mrf.mxu0
      %685 = vmatprep.mubr.bf16.mxu0 0
      %686 = vmatmul.mubr.bf16.gmra.mxu0 %v468
      %v687 = vpop.f32.mrf.mxu0
      %v688 = vadd.f32 %v387, %v687
      %v689 = vpop.f32.mrf.mxu0
      %v690 = vpop.f32.mrf.mxu0
      %v691 = vadd.f32 %v387, %v690
      %v692 = vpop.f32.mrf.mxu0
      %693 = vdwg.mxu0
      %v694 = vmax.f32 %v568, 0.0
      %v695 = vmax.f32 %v571, 0.0
      %v696 = vmax.f32 %v576, 0.0
      %v697 = vmax.f32 %v579, 0.0
      %v698 = vmax.f32 %v584, 0.0
      %v699 = vmax.f32 %v587, 0.0
      %v700 = vmax.f32 %v592, 0.0
      %v701 = vmax.f32 %v595, 0.0
      %v702 = vmax.f32 %v600, 0.0
      %v703 = vmax.f32 %v603, 0.0
      %v704 = vmax.f32 %v608, 0.0
      %v705 = vmax.f32 %v611, 0.0
      %v706 = vmax.f32 %v616, 0.0
      %v707 = vmax.f32 %v619, 0.0
      %v708 = vmax.f32 %v624, 0.0
      %v709 = vmax.f32 %v627, 0.0
      %v710 = vmax.f32 %v632, 0.0
      %v711 = vmax.f32 %v635, 0.0
      %v712 = vmax.f32 %v640, 0.0
      %v713 = vmax.f32 %v643, 0.0
      %v714 = vmax.f32 %v648, 0.0
      %v715 = vmax.f32 %v651, 0.0
      %v716 = vmax.f32 %v656, 0.0
      %v717 = vmax.f32 %v659, 0.0
      %v718 = vmax.f32 %v664, 0.0
      %v719 = vmax.f32 %v667, 0.0
      %v720 = vmax.f32 %v672, 0.0
      %v721 = vmax.f32 %v675, 0.0
      %v722 = vmax.f32 %v680, 0.0
      %v723 = vmax.f32 %v683, 0.0
      %v724 = vmax.f32 %v688, 0.0
      %v725 = vmax.f32 %v691, 0.0
      %v726 = vlaneseq
      %v727 = vshrl.u32 %v726, 7
      %v728 = vadd.s32 %v727, 8
      %v729 = vadd.s32 %v727, 16
      %v730 = vadd.s32 %v727, 24
      %v731 = vadd.s32 %v727, 32
      %v732 = vadd.s32 %v727, 40
      %v733 = vadd.s32 %v727, 48
      %v734 = vadd.s32 %v727, 56
      %v735 = vadd.s32 %v727, 64
      %v736 = vadd.s32 %v727, 72
      %v737 = vadd.s32 %v727, 80
      %v738 = vadd.s32 %v727, 88
      %v739 = vadd.s32 %v727, 96
      %v740 = vadd.s32 %v727, 104
      %v741 = vadd.s32 %v727, 112
      %v742 = vadd.s32 %v727, 120
      %v743 = vadd.s32 %v727, 128
      %v744 = vadd.s32 %v727, 136
      %v745 = vadd.s32 %v727, 144
      %v746 = vadd.s32 %v727, 152
      %v747 = vadd.s32 %v727, 160
      %v748 = vadd.s32 %v727, 168
      %v749 = vadd.s32 %v727, 176
      %v750 = vadd.s32 %v727, 184
      %v751 = vadd.s32 %v727, 192
      %v752 = vadd.s32 %v727, 200
      %v753 = vadd.s32 %v727, 208
      %v754 = vadd.s32 %v727, 216
      %v755 = vadd.s32 %v727, 224
      %v756 = vadd.s32 %v727, 232
      %v757 = vadd.s32 %v727, 240
      %v758 = vadd.s32 %v727, 248
      %vm759 = vcmp.lt.s32.totalorder %v727, 0
      %v760 = vsub.s32 0, %v727
      %v761 = vsel %vm759, %v760, %v727
      %v762 = vshrl.u32 %v761, 4
      %v763 = vand.u32 %v761, 15
      %v764 = vsub.s32 0, %v763
      %v765 = vsel %vm759, %v764, %v763
      %vm766 = vcmp.lt.s32.totalorder %v728, 0
      %v767 = vsub.s32 0, %v728
      %v768 = vsel %vm766, %v767, %v728
      %v769 = vshrl.u32 %v768, 4
      %v770 = vand.u32 %v768, 15
      %v771 = vsub.s32 0, %v770
      %v772 = vsel %vm766, %v771, %v770
      %vm773 = vcmp.lt.s32.totalorder %v729, 0
      %v774 = vsub.s32 0, %v729
      %v775 = vsel %vm773, %v774, %v729
      %v776 = vshrl.u32 %v775, 4
      %v777 = vand.u32 %v775, 15
      %v778 = vsub.s32 0, %v777
      %v779 = vsel %vm773, %v778, %v777
      %vm780 = vcmp.lt.s32.totalorder %v730, 0
      %v781 = vsub.s32 0, %v730
      %v782 = vsel %vm780, %v781, %v730
      %v783 = vshrl.u32 %v782, 4
      %v784 = vand.u32 %v782, 15
      %v785 = vsub.s32 0, %v784
      %v786 = vsel %vm780, %v785, %v784
      %vm787 = vcmp.lt.s32.totalorder %v731, 0
      %v788 = vsub.s32 0, %v731
      %v789 = vsel %vm787, %v788, %v731
      %v790 = vshrl.u32 %v789, 4
      %v791 = vand.u32 %v789, 15
      %v792 = vsub.s32 0, %v791
      %v793 = vsel %vm787, %v792, %v791
      %vm794 = vcmp.lt.s32.totalorder %v732, 0
      %v795 = vsub.s32 0, %v732
      %v796 = vsel %vm794, %v795, %v732
      %v797 = vshrl.u32 %v796, 4
      %v798 = vand.u32 %v796, 15
      %v799 = vsub.s32 0, %v798
      %v800 = vsel %vm794, %v799, %v798
      %vm801 = vcmp.lt.s32.totalorder %v733, 0
      %v802 = vsub.s32 0, %v733
      %v803 = vsel %vm801, %v802, %v733
      %v804 = vshrl.u32 %v803, 4
      %v805 = vand.u32 %v803, 15
      %v806 = vsub.s32 0, %v805
      %v807 = vsel %vm801, %v806, %v805
      %vm808 = vcmp.lt.s32.totalorder %v734, 0
      %v809 = vsub.s32 0, %v734
      %v810 = vsel %vm808, %v809, %v734
      %v811 = vshrl.u32 %v810, 4
      %v812 = vand.u32 %v810, 15
      %v813 = vsub.s32 0, %v812
      %v814 = vsel %vm808, %v813, %v812
      %vm815 = vcmp.lt.s32.totalorder %v735, 0
      %v816 = vsub.s32 0, %v735
      %v817 = vsel %vm815, %v816, %v735
      %v818 = vshrl.u32 %v817, 4
      %v819 = vand.u32 %v817, 15
      %v820 = vsub.s32 0, %v819
      %v821 = vsel %vm815, %v820, %v819
      %vm822 = vcmp.lt.s32.totalorder %v736, 0
      %v823 = vsub.s32 0, %v736
      %v824 = vsel %vm822, %v823, %v736
      %v825 = vshrl.u32 %v824, 4
      %v826 = vand.u32 %v824, 15
      %v827 = vsub.s32 0, %v826
      %v828 = vsel %vm822, %v827, %v826
      %vm829 = vcmp.lt.s32.totalorder %v737, 0
      %v830 = vsub.s32 0, %v737
      %v831 = vsel %vm829, %v830, %v737
      %v832 = vshrl.u32 %v831, 4
      %v833 = vand.u32 %v831, 15
      %v834 = vsub.s32 0, %v833
      %v835 = vsel %vm829, %v834, %v833
      %vm836 = vcmp.lt.s32.totalorder %v738, 0
      %v837 = vsub.s32 0, %v738
      %v838 = vsel %vm836, %v837, %v738
      %v839 = vshrl.u32 %v838, 4
      %v840 = vand.u32 %v838, 15
      %v841 = vsub.s32 0, %v840
      %v842 = vsel %vm836, %v841, %v840
      %vm843 = vcmp.lt.s32.totalorder %v739, 0
      %v844 = vsub.s32 0, %v739
      %v845 = vsel %vm843, %v844, %v739
      %v846 = vshrl.u32 %v845, 4
      %v847 = vand.u32 %v845, 15
      %v848 = vsub.s32 0, %v847
      %v849 = vsel %vm843, %v848, %v847
      %vm850 = vcmp.lt.s32.totalorder %v740, 0
      %v851 = vsub.s32 0, %v740
      %v852 = vsel %vm850, %v851, %v740
      %v853 = vshrl.u32 %v852, 4
      %v854 = vand.u32 %v852, 15
      %v855 = vsub.s32 0, %v854
      %v856 = vsel %vm850, %v855, %v854
      %vm857 = vcmp.lt.s32.totalorder %v741, 0
      %v858 = vsub.s32 0, %v741
      %v859 = vsel %vm857, %v858, %v741
      %v860 = vshrl.u32 %v859, 4
      %v861 = vand.u32 %v859, 15
      %v862 = vsub.s32 0, %v861
      %v863 = vsel %vm857, %v862, %v861
      %vm864 = vcmp.lt.s32.totalorder %v742, 0
      %v865 = vsub.s32 0, %v742
      %v866 = vsel %vm864, %v865, %v742
      %v867 = vshrl.u32 %v866, 4
      %v868 = vand.u32 %v866, 15
      %v869 = vsub.s32 0, %v868
      %v870 = vsel %vm864, %v869, %v868
      %vm871 = vcmp.lt.s32.totalorder %v743, 0
      %v872 = vsub.s32 0, %v743
      %v873 = vsel %vm871, %v872, %v743
      %v874 = vshrl.u32 %v873, 4
      %v875 = vand.u32 %v873, 15
      %v876 = vsub.s32 0, %v875
      %v877 = vsel %vm871, %v876, %v875
      %vm878 = vcmp.lt.s32.totalorder %v744, 0
      %v879 = vsub.s32 0, %v744
      %v880 = vsel %vm878, %v879, %v744
      %v881 = vshrl.u32 %v880, 4
      %v882 = vand.u32 %v880, 15
      %v883 = vsub.s32 0, %v882
      %v884 = vsel %vm878, %v883, %v882
      %vm885 = vcmp.lt.s32.totalorder %v745, 0
      %v886 = vsub.s32 0, %v745
      %v887 = vsel %vm885, %v886, %v745
      %v888 = vshrl.u32 %v887, 4
      %v889 = vand.u32 %v887, 15
      %v890 = vsub.s32 0, %v889
      %v891 = vsel %vm885, %v890, %v889
      %vm892 = vcmp.lt.s32.totalorder %v746, 0
      %v893 = vsub.s32 0, %v746
      %v894 = vsel %vm892, %v893, %v746
      %v895 = vshrl.u32 %v894, 4
      %v896 = vand.u32 %v894, 15
      %v897 = vsub.s32 0, %v896
      %v898 = vsel %vm892, %v897, %v896
      %vm899 = vcmp.lt.s32.totalorder %v747, 0
      %v900 = vsub.s32 0, %v747
      %v901 = vsel %vm899, %v900, %v747
      %v902 = vshrl.u32 %v901, 4
      %v903 = vand.u32 %v901, 15
      %v904 = vsub.s32 0, %v903
      %v905 = vsel %vm899, %v904, %v903
      %vm906 = vcmp.lt.s32.totalorder %v748, 0
      %v907 = vsub.s32 0, %v748
      %v908 = vsel %vm906, %v907, %v748
      %v909 = vshrl.u32 %v908, 4
      %v910 = vand.u32 %v908, 15
      %v911 = vsub.s32 0, %v910
      %v912 = vsel %vm906, %v911, %v910
      %vm913 = vcmp.lt.s32.totalorder %v749, 0
      %v914 = vsub.s32 0, %v749
      %v915 = vsel %vm913, %v914, %v749
      %v916 = vshrl.u32 %v915, 4
      %v917 = vand.u32 %v915, 15
      %v918 = vsub.s32 0, %v917
      %v919 = vsel %vm913, %v918, %v917
      %vm920 = vcmp.lt.s32.totalorder %v750, 0
      %v921 = vsub.s32 0, %v750
      %v922 = vsel %vm920, %v921, %v750
      %v923 = vshrl.u32 %v922, 4
      %v924 = vand.u32 %v922, 15
      %v925 = vsub.s32 0, %v924
      %v926 = vsel %vm920, %v925, %v924
      %vm927 = vcmp.lt.s32.totalorder %v751, 0
      %v928 = vsub.s32 0, %v751
      %v929 = vsel %vm927, %v928, %v751
      %v930 = vshrl.u32 %v929, 4
      %v931 = vand.u32 %v929, 15
      %v932 = vsub.s32 0, %v931
      %v933 = vsel %vm927, %v932, %v931
      %vm934 = vcmp.lt.s32.totalorder %v752, 0
      %v935 = vsub.s32 0, %v752
      %v936 = vsel %vm934, %v935, %v752
      %v937 = vshrl.u32 %v936, 4
      %v938 = vand.u32 %v936, 15
      %v939 = vsub.s32 0, %v938
      %v940 = vsel %vm934, %v939, %v938
      %vm941 = vcmp.lt.s32.totalorder %v753, 0
      %v942 = vsub.s32 0, %v753
      %v943 = vsel %vm941, %v942, %v753
      %v944 = vshrl.u32 %v943, 4
      %v945 = vand.u32 %v943, 15
      %v946 = vsub.s32 0, %v945
      %v947 = vsel %vm941, %v946, %v945
      %vm948 = vcmp.lt.s32.totalorder %v754, 0
      %v949 = vsub.s32 0, %v754
      %v950 = vsel %vm948, %v949, %v754
      %v951 = vshrl.u32 %v950, 4
      %v952 = vand.u32 %v950, 15
      %v953 = vsub.s32 0, %v952
      %v954 = vsel %vm948, %v953, %v952
      %vm955 = vcmp.lt.s32.totalorder %v755, 0
      %v956 = vsub.s32 0, %v755
      %v957 = vsel %vm955, %v956, %v755
      %v958 = vshrl.u32 %v957, 4
      %v959 = vand.u32 %v957, 15
      %v960 = vsub.s32 0, %v959
      %v961 = vsel %vm955, %v960, %v959
      %vm962 = vcmp.lt.s32.totalorder %v756, 0
      %v963 = vsub.s32 0, %v756
      %v964 = vsel %vm962, %v963, %v756
      %v965 = vshrl.u32 %v964, 4
      %v966 = vand.u32 %v964, 15
      %v967 = vsub.s32 0, %v966
      %v968 = vsel %vm962, %v967, %v966
      %vm969 = vcmp.lt.s32.totalorder %v757, 0
      %v970 = vsub.s32 0, %v757
      %v971 = vsel %vm969, %v970, %v757
      %v972 = vshrl.u32 %v971, 4
      %v973 = vand.u32 %v971, 15
      %v974 = vsub.s32 0, %v973
      %v975 = vsel %vm969, %v974, %v973
      %vm976 = vcmp.lt.s32.totalorder %v758, 0
      %v977 = vsub.s32 0, %v758
      %v978 = vsel %vm976, %v977, %v758
      %v979 = vshrl.u32 %v978, 4
      %v980 = vand.u32 %v978, 15
      %v981 = vsub.s32 0, %v980
      %v982 = vsel %vm976, %v981, %v980
      %vm983 = vcmp.ne.s32.totalorder %v765, 0
      %vm984 = vcmp.ne.s32.totalorder %v772, 0
      %vm985 = vcmp.ne.s32.totalorder %v779, 0
      %vm986 = vcmp.ne.s32.totalorder %v786, 0
      %vm987 = vcmp.ne.s32.totalorder %v793, 0
      %vm988 = vcmp.ne.s32.totalorder %v800, 0
      %vm989 = vcmp.ne.s32.totalorder %v807, 0
      %vm990 = vcmp.ne.s32.totalorder %v814, 0
      %vm991 = vcmp.ne.s32.totalorder %v821, 0
      %vm992 = vcmp.ne.s32.totalorder %v828, 0
      %vm993 = vcmp.ne.s32.totalorder %v835, 0
      %vm994 = vcmp.ne.s32.totalorder %v842, 0
      %vm995 = vcmp.ne.s32.totalorder %v849, 0
      %vm996 = vcmp.ne.s32.totalorder %v856, 0
      %vm997 = vcmp.ne.s32.totalorder %v863, 0
      %vm998 = vcmp.ne.s32.totalorder %v870, 0
      %vm999 = vcmp.ne.s32.totalorder %v877, 0
      %vm1000 = vcmp.ne.s32.totalorder %v884, 0
      %vm1001 = vcmp.ne.s32.totalorder %v891, 0
      %vm1002 = vcmp.ne.s32.totalorder %v898, 0
      %vm1003 = vcmp.ne.s32.totalorder %v905, 0
      %vm1004 = vcmp.ne.s32.totalorder %v912, 0
      %vm1005 = vcmp.ne.s32.totalorder %v919, 0
      %vm1006 = vcmp.ne.s32.totalorder %v926, 0
      %vm1007 = vcmp.ne.s32.totalorder %v933, 0
      %vm1008 = vcmp.ne.s32.totalorder %v940, 0
      %vm1009 = vcmp.ne.s32.totalorder %v947, 0
      %vm1010 = vcmp.ne.s32.totalorder %v954, 0
      %vm1011 = vcmp.ne.s32.totalorder %v961, 0
      %vm1012 = vcmp.ne.s32.totalorder %v968, 0
      %vm1013 = vcmp.ne.s32.totalorder %v975, 0
      %vm1014 = vcmp.ne.s32.totalorder %v982, 0
      %vm1015 = vcmp.lt.s32.totalorder %v765, 0
      %vm1016 = vcmp.lt.s32.totalorder %v772, 0
      %vm1017 = vcmp.lt.s32.totalorder %v779, 0
      %vm1018 = vcmp.lt.s32.totalorder %v786, 0
      %vm1019 = vcmp.lt.s32.totalorder %v793, 0
      %vm1020 = vcmp.lt.s32.totalorder %v800, 0
      %vm1021 = vcmp.lt.s32.totalorder %v807, 0
      %vm1022 = vcmp.lt.s32.totalorder %v814, 0
      %vm1023 = vcmp.lt.s32.totalorder %v821, 0
      %vm1024 = vcmp.lt.s32.totalorder %v828, 0
      %vm1025 = vcmp.lt.s32.totalorder %v835, 0
      %vm1026 = vcmp.lt.s32.totalorder %v842, 0
      %vm1027 = vcmp.lt.s32.totalorder %v849, 0
      %vm1028 = vcmp.lt.s32.totalorder %v856, 0
      %vm1029 = vcmp.lt.s32.totalorder %v863, 0
      %vm1030 = vcmp.lt.s32.totalorder %v870, 0
      %vm1031 = vcmp.lt.s32.totalorder %v877, 0
      %vm1032 = vcmp.lt.s32.totalorder %v884, 0
      %vm1033 = vcmp.lt.s32.totalorder %v891, 0
      %vm1034 = vcmp.lt.s32.totalorder %v898, 0
      %vm1035 = vcmp.lt.s32.totalorder %v905, 0
      %vm1036 = vcmp.lt.s32.totalorder %v912, 0
      %vm1037 = vcmp.lt.s32.totalorder %v919, 0
      %vm1038 = vcmp.lt.s32.totalorder %v926, 0
      %vm1039 = vcmp.lt.s32.totalorder %v933, 0
      %vm1040 = vcmp.lt.s32.totalorder %v940, 0
      %vm1041 = vcmp.lt.s32.totalorder %v947, 0
      %vm1042 = vcmp.lt.s32.totalorder %v954, 0
      %vm1043 = vcmp.lt.s32.totalorder %v961, 0
      %vm1044 = vcmp.lt.s32.totalorder %v968, 0
      %vm1045 = vcmp.lt.s32.totalorder %v975, 0
      %vm1046 = vcmp.lt.s32.totalorder %v982, 0
      %vm1047 = vmand %vm1015, %vm983
      %vm1048 = vmand %vm1016, %vm984
      %vm1049 = vmand %vm1017, %vm985
      %vm1050 = vmand %vm1018, %vm986
      %vm1051 = vmand %vm1019, %vm987
      %vm1052 = vmand %vm1020, %vm988
      %vm1053 = vmand %vm1021, %vm989
      %vm1054 = vmand %vm1022, %vm990
      %vm1055 = vmand %vm1023, %vm991
      %vm1056 = vmand %vm1024, %vm992
      %vm1057 = vmand %vm1025, %vm993
      %vm1058 = vmand %vm1026, %vm994
      %vm1059 = vmand %vm1027, %vm995
      %vm1060 = vmand %vm1028, %vm996
      %vm1061 = vmand %vm1029, %vm997
      %vm1062 = vmand %vm1030, %vm998
      %vm1063 = vmand %vm1031, %vm999
      %vm1064 = vmand %vm1032, %vm1000
      %vm1065 = vmand %vm1033, %vm1001
      %vm1066 = vmand %vm1034, %vm1002
      %vm1067 = vmand %vm1035, %vm1003
      %vm1068 = vmand %vm1036, %vm1004
      %vm1069 = vmand %vm1037, %vm1005
      %vm1070 = vmand %vm1038, %vm1006
      %vm1071 = vmand %vm1039, %vm1007
      %vm1072 = vmand %vm1040, %vm1008
      %vm1073 = vmand %vm1041, %vm1009
      %vm1074 = vmand %vm1042, %vm1010
      %vm1075 = vmand %vm1043, %vm1011
      %vm1076 = vmand %vm1044, %vm1012
      %vm1077 = vmand %vm1045, %vm1013
      %vm1078 = vmand %vm1046, %vm1014
      %v1079 = vadd.s32 %v765, 16
      %v1080 = vadd.s32 %v772, 16
      %v1081 = vadd.s32 %v779, 16
      %v1082 = vadd.s32 %v786, 16
      %v1083 = vadd.s32 %v793, 16
      %v1084 = vadd.s32 %v800, 16
      %v1085 = vadd.s32 %v807, 16
      %v1086 = vadd.s32 %v814, 16
      %v1087 = vadd.s32 %v821, 16
      %v1088 = vadd.s32 %v828, 16
      %v1089 = vadd.s32 %v835, 16
      %v1090 = vadd.s32 %v842, 16
      %v1091 = vadd.s32 %v849, 16
      %v1092 = vadd.s32 %v856, 16
      %v1093 = vadd.s32 %v863, 16
      %v1094 = vadd.s32 %v870, 16
      %v1095 = vadd.s32 %v877, 16
      %v1096 = vadd.s32 %v884, 16
      %v1097 = vadd.s32 %v891, 16
      %v1098 = vadd.s32 %v898, 16
      %v1099 = vadd.s32 %v905, 16
      %v1100 = vadd.s32 %v912, 16
      %v1101 = vadd.s32 %v919, 16
      %v1102 = vadd.s32 %v926, 16
      %v1103 = vadd.s32 %v933, 16
      %v1104 = vadd.s32 %v940, 16
      %v1105 = vadd.s32 %v947, 16
      %v1106 = vadd.s32 %v954, 16
      %v1107 = vadd.s32 %v961, 16
      %v1108 = vadd.s32 %v968, 16
      %v1109 = vadd.s32 %v975, 16
      %v1110 = vadd.s32 %v982, 16
      %v1111 = vsel %vm1047, %v1079, %v765
      %v1112 = vsel %vm1048, %v1080, %v772
      %v1113 = vsel %vm1049, %v1081, %v779
      %v1114 = vsel %vm1050, %v1082, %v786
      %v1115 = vsel %vm1051, %v1083, %v793
      %v1116 = vsel %vm1052, %v1084, %v800
      %v1117 = vsel %vm1053, %v1085, %v807
      %v1118 = vsel %vm1054, %v1086, %v814
      %v1119 = vsel %vm1055, %v1087, %v821
      %v1120 = vsel %vm1056, %v1088, %v828
      %v1121 = vsel %vm1057, %v1089, %v835
      %v1122 = vsel %vm1058, %v1090, %v842
      %v1123 = vsel %vm1059, %v1091, %v849
      %v1124 = vsel %vm1060, %v1092, %v856
      %v1125 = vsel %vm1061, %v1093, %v863
      %v1126 = vsel %vm1062, %v1094, %v870
      %v1127 = vsel %vm1063, %v1095, %v877
      %v1128 = vsel %vm1064, %v1096, %v884
      %v1129 = vsel %vm1065, %v1097, %v891
      %v1130 = vsel %vm1066, %v1098, %v898
      %v1131 = vsel %vm1067, %v1099, %v905
      %v1132 = vsel %vm1068, %v1100, %v912
      %v1133 = vsel %vm1069, %v1101, %v919
      %v1134 = vsel %vm1070, %v1102, %v926
      %v1135 = vsel %vm1071, %v1103, %v933
      %v1136 = vsel %vm1072, %v1104, %v940
      %v1137 = vsel %vm1073, %v1105, %v947
      %v1138 = vsel %vm1074, %v1106, %v954
      %v1139 = vsel %vm1075, %v1107, %v961
      %v1140 = vsel %vm1076, %v1108, %v968
      %v1141 = vsel %vm1077, %v1109, %v975
      %v1142 = vsel %vm1078, %v1110, %v982
      %vm1143 = vcmp.eq.s32.totalorder %v1111, 0
      %vm1144 = vcmp.eq.s32.totalorder %v1112, 0
      %vm1145 = vcmp.eq.s32.totalorder %v1113, 0
      %vm1146 = vcmp.eq.s32.totalorder %v1114, 0
      %vm1147 = vcmp.eq.s32.totalorder %v1115, 0
      %vm1148 = vcmp.eq.s32.totalorder %v1116, 0
      %vm1149 = vcmp.eq.s32.totalorder %v1117, 0
      %vm1150 = vcmp.eq.s32.totalorder %v1118, 0
      %vm1151 = vcmp.eq.s32.totalorder %v1119, 0
      %vm1152 = vcmp.eq.s32.totalorder %v1120, 0
      %vm1153 = vcmp.eq.s32.totalorder %v1121, 0
      %vm1154 = vcmp.eq.s32.totalorder %v1122, 0
      %vm1155 = vcmp.eq.s32.totalorder %v1123, 0
      %vm1156 = vcmp.eq.s32.totalorder %v1124, 0
      %vm1157 = vcmp.eq.s32.totalorder %v1125, 0
      %vm1158 = vcmp.eq.s32.totalorder %v1126, 0
      %vm1159 = vcmp.eq.s32.totalorder %v1127, 0
      %vm1160 = vcmp.eq.s32.totalorder %v1128, 0
      %vm1161 = vcmp.eq.s32.totalorder %v1129, 0
      %vm1162 = vcmp.eq.s32.totalorder %v1130, 0
      %vm1163 = vcmp.eq.s32.totalorder %v1131, 0
      %vm1164 = vcmp.eq.s32.totalorder %v1132, 0
      %vm1165 = vcmp.eq.s32.totalorder %v1133, 0
      %vm1166 = vcmp.eq.s32.totalorder %v1134, 0
      %vm1167 = vcmp.eq.s32.totalorder %v1135, 0
      %vm1168 = vcmp.eq.s32.totalorder %v1136, 0
      %vm1169 = vcmp.eq.s32.totalorder %v1137, 0
      %vm1170 = vcmp.eq.s32.totalorder %v1138, 0
      %vm1171 = vcmp.eq.s32.totalorder %v1139, 0
      %vm1172 = vcmp.eq.s32.totalorder %v1140, 0
      %vm1173 = vcmp.eq.s32.totalorder %v1141, 0
      %vm1174 = vcmp.eq.s32.totalorder %v1142, 0
      %v1175 = vrot.slane %v694, 7
      %v1176 = vrot.slane %v695, 7
      %v1177 = vrot.slane %v696, 7
      %v1178 = vrot.slane %v697, 7
      %v1179 = vrot.slane %v698, 7
      %v1180 = vrot.slane %v699, 7
      %v1181 = vrot.slane %v700, 7
      %v1182 = vrot.slane %v701, 7
      %v1183 = vrot.slane %v702, 7
      %v1184 = vrot.slane %v703, 7
      %v1185 = vrot.slane %v704, 7
      %v1186 = vrot.slane %v705, 7
      %v1187 = vrot.slane %v706, 7
      %v1188 = vrot.slane %v707, 7
      %v1189 = vrot.slane %v708, 7
      %v1190 = vrot.slane %v709, 7
      %v1191 = vrot.slane %v710, 7
      %v1192 = vrot.slane %v711, 7
      %v1193 = vrot.slane %v712, 7
      %v1194 = vrot.slane %v713, 7
      %v1195 = vrot.slane %v714, 7
      %v1196 = vrot.slane %v715, 7
      %v1197 = vrot.slane %v716, 7
      %v1198 = vrot.slane %v717, 7
      %v1199 = vrot.slane %v718, 7
      %v1200 = vrot.slane %v719, 7
      %v1201 = vrot.slane %v720, 7
      %v1202 = vrot.slane %v721, 7
      %v1203 = vrot.slane %v722, 7
      %v1204 = vrot.slane %v723, 7
      %v1205 = vrot.slane %v724, 7
      %v1206 = vrot.slane %v725, 7
      %vm1207 = vcmp.lt.s32.totalorder %v727, 1
      %v1208 = vsel %vm1207, %v1205, %v1206
      %v1209 = vsel %vm1207, %v1204, %v1205
      %v1210 = vsel %vm1207, %v1203, %v1204
      %v1211 = vsel %vm1207, %v1202, %v1203
      %v1212 = vsel %vm1207, %v1201, %v1202
      %v1213 = vsel %vm1207, %v1200, %v1201
      %v1214 = vsel %vm1207, %v1199, %v1200
      %v1215 = vsel %vm1207, %v1198, %v1199
      %v1216 = vsel %vm1207, %v1197, %v1198
      %v1217 = vsel %vm1207, %v1196, %v1197
      %v1218 = vsel %vm1207, %v1195, %v1196
      %v1219 = vsel %vm1207, %v1194, %v1195
      %v1220 = vsel %vm1207, %v1193, %v1194
      %v1221 = vsel %vm1207, %v1192, %v1193
      %v1222 = vsel %vm1207, %v1191, %v1192
      %v1223 = vsel %vm1207, %v1190, %v1191
      %v1224 = vsel %vm1207, %v1189, %v1190
      %v1225 = vsel %vm1207, %v1188, %v1189
      %v1226 = vsel %vm1207, %v1187, %v1188
      %v1227 = vsel %vm1207, %v1186, %v1187
      %v1228 = vsel %vm1207, %v1185, %v1186
      %v1229 = vsel %vm1207, %v1184, %v1185
      %v1230 = vsel %vm1207, %v1183, %v1184
      %v1231 = vsel %vm1207, %v1182, %v1183
      %v1232 = vsel %vm1207, %v1181, %v1182
      %v1233 = vsel %vm1207, %v1180, %v1181
      %v1234 = vsel %vm1207, %v1179, %v1180
      %v1235 = vsel %vm1207, %v1178, %v1179
      %v1236 = vsel %vm1207, %v1177, %v1178
      %v1237 = vsel %vm1207, %v1176, %v1177
      %v1238 = vsel %vm1207, %v1175, %v1176
      %v1239 = vsel %vm1207, %v1206, %v1175
      %v1240 = vsel %vm1143, 0.0, %v1239
      %v1241 = vsel %vm1144, 0.0, %v1238
      %v1242 = vsel %vm1145, 0.0, %v1237
      %v1243 = vsel %vm1146, 0.0, %v1236
      %v1244 = vsel %vm1147, 0.0, %v1235
      %v1245 = vsel %vm1148, 0.0, %v1234
      %v1246 = vsel %vm1149, 0.0, %v1233
      %v1247 = vsel %vm1150, 0.0, %v1232
      %v1248 = vsel %vm1151, 0.0, %v1231
      %v1249 = vsel %vm1152, 0.0, %v1230
      %v1250 = vsel %vm1153, 0.0, %v1229
      %v1251 = vsel %vm1154, 0.0, %v1228
      %v1252 = vsel %vm1155, 0.0, %v1227
      %v1253 = vsel %vm1156, 0.0, %v1226
      %v1254 = vsel %vm1157, 0.0, %v1225
      %v1255 = vsel %vm1158, 0.0, %v1224
      %v1256 = vsel %vm1159, 0.0, %v1223
      %v1257 = vsel %vm1160, 0.0, %v1222
      %v1258 = vsel %vm1161, 0.0, %v1221
      %v1259 = vsel %vm1162, 0.0, %v1220
      %v1260 = vsel %vm1163, 0.0, %v1219
      %v1261 = vsel %vm1164, 0.0, %v1218
      %v1262 = vsel %vm1165, 0.0, %v1217
      %v1263 = vsel %vm1166, 0.0, %v1216
      %v1264 = vsel %vm1167, 0.0, %v1215
      %v1265 = vsel %vm1168, 0.0, %v1214
      %v1266 = vsel %vm1169, 0.0, %v1213
      %v1267 = vsel %vm1170, 0.0, %v1212
      %v1268 = vsel %vm1171, 0.0, %v1211
      %v1269 = vsel %vm1172, 0.0, %v1210
      %v1270 = vsel %vm1173, 0.0, %v1209
      %v1271 = vsel %vm1174, 0.0, %v1208
      %vm1272 = vcmp.eq.s32.totalorder %v1111, 15
      %vm1273 = vcmp.eq.s32.totalorder %v1112, 15
      %vm1274 = vcmp.eq.s32.totalorder %v1113, 15
      %vm1275 = vcmp.eq.s32.totalorder %v1114, 15
      %vm1276 = vcmp.eq.s32.totalorder %v1115, 15
      %vm1277 = vcmp.eq.s32.totalorder %v1116, 15
      %vm1278 = vcmp.eq.s32.totalorder %v1117, 15
      %vm1279 = vcmp.eq.s32.totalorder %v1118, 15
      %vm1280 = vcmp.eq.s32.totalorder %v1119, 15
      %vm1281 = vcmp.eq.s32.totalorder %v1120, 15
      %vm1282 = vcmp.eq.s32.totalorder %v1121, 15
      %vm1283 = vcmp.eq.s32.totalorder %v1122, 15
      %vm1284 = vcmp.eq.s32.totalorder %v1123, 15
      %vm1285 = vcmp.eq.s32.totalorder %v1124, 15
      %vm1286 = vcmp.eq.s32.totalorder %v1125, 15
      %vm1287 = vcmp.eq.s32.totalorder %v1126, 15
      %vm1288 = vcmp.eq.s32.totalorder %v1127, 15
      %vm1289 = vcmp.eq.s32.totalorder %v1128, 15
      %vm1290 = vcmp.eq.s32.totalorder %v1129, 15
      %vm1291 = vcmp.eq.s32.totalorder %v1130, 15
      %vm1292 = vcmp.eq.s32.totalorder %v1131, 15
      %vm1293 = vcmp.eq.s32.totalorder %v1132, 15
      %vm1294 = vcmp.eq.s32.totalorder %v1133, 15
      %vm1295 = vcmp.eq.s32.totalorder %v1134, 15
      %vm1296 = vcmp.eq.s32.totalorder %v1135, 15
      %vm1297 = vcmp.eq.s32.totalorder %v1136, 15
      %vm1298 = vcmp.eq.s32.totalorder %v1137, 15
      %vm1299 = vcmp.eq.s32.totalorder %v1138, 15
      %vm1300 = vcmp.eq.s32.totalorder %v1139, 15
      %vm1301 = vcmp.eq.s32.totalorder %v1140, 15
      %vm1302 = vcmp.eq.s32.totalorder %v1141, 15
      %vm1303 = vcmp.eq.s32.totalorder %v1142, 15
      %v1304 = vrot.slane %v694, 1
      %v1305 = vrot.slane %v695, 1
      %v1306 = vrot.slane %v696, 1
      %v1307 = vrot.slane %v697, 1
      %v1308 = vrot.slane %v698, 1
      %v1309 = vrot.slane %v699, 1
      %v1310 = vrot.slane %v700, 1
      %v1311 = vrot.slane %v701, 1
      %v1312 = vrot.slane %v702, 1
      %v1313 = vrot.slane %v703, 1
      %v1314 = vrot.slane %v704, 1
      %v1315 = vrot.slane %v705, 1
      %v1316 = vrot.slane %v706, 1
      %v1317 = vrot.slane %v707, 1
      %v1318 = vrot.slane %v708, 1
      %v1319 = vrot.slane %v709, 1
      %v1320 = vrot.slane %v710, 1
      %v1321 = vrot.slane %v711, 1
      %v1322 = vrot.slane %v712, 1
      %v1323 = vrot.slane %v713, 1
      %v1324 = vrot.slane %v714, 1
      %v1325 = vrot.slane %v715, 1
      %v1326 = vrot.slane %v716, 1
      %v1327 = vrot.slane %v717, 1
      %v1328 = vrot.slane %v718, 1
      %v1329 = vrot.slane %v719, 1
      %v1330 = vrot.slane %v720, 1
      %v1331 = vrot.slane %v721, 1
      %v1332 = vrot.slane %v722, 1
      %v1333 = vrot.slane %v723, 1
      %v1334 = vrot.slane %v724, 1
      %v1335 = vrot.slane %v725, 1
      %vm1336 = vcmp.lt.s32.totalorder %v727, 7
      %v1337 = vsel %vm1336, %v1334, %v1335
      %v1338 = vsel %vm1336, %v1333, %v1334
      %v1339 = vsel %vm1336, %v1332, %v1333
      %v1340 = vsel %vm1336, %v1331, %v1332
      %v1341 = vsel %vm1336, %v1330, %v1331
      %v1342 = vsel %vm1336, %v1329, %v1330
      %v1343 = vsel %vm1336, %v1328, %v1329
      %v1344 = vsel %vm1336, %v1327, %v1328
      %v1345 = vsel %vm1336, %v1326, %v1327
      %v1346 = vsel %vm1336, %v1325, %v1326
      %v1347 = vsel %vm1336, %v1324, %v1325
      %v1348 = vsel %vm1336, %v1323, %v1324
      %v1349 = vsel %vm1336, %v1322, %v1323
      %v1350 = vsel %vm1336, %v1321, %v1322
      %v1351 = vsel %vm1336, %v1320, %v1321
      %v1352 = vsel %vm1336, %v1319, %v1320
      %v1353 = vsel %vm1336, %v1318, %v1319
      %v1354 = vsel %vm1336, %v1317, %v1318
      %v1355 = vsel %vm1336, %v1316, %v1317
      %v1356 = vsel %vm1336, %v1315, %v1316
      %v1357 = vsel %vm1336, %v1314, %v1315
      %v1358 = vsel %vm1336, %v1313, %v1314
      %v1359 = vsel %vm1336, %v1312, %v1313
      %v1360 = vsel %vm1336, %v1311, %v1312
      %v1361 = vsel %vm1336, %v1310, %v1311
      %v1362 = vsel %vm1336, %v1309, %v1310
      %v1363 = vsel %vm1336, %v1308, %v1309
      %v1364 = vsel %vm1336, %v1307, %v1308
      %v1365 = vsel %vm1336, %v1306, %v1307
      %v1366 = vsel %vm1336, %v1305, %v1306
      %v1367 = vsel %vm1336, %v1304, %v1305
      %v1368 = vsel %vm1336, %v1335, %v1304
      %v1369 = vsel %vm1272, 0.0, %v1367
      %v1370 = vsel %vm1273, 0.0, %v1366
      %v1371 = vsel %vm1274, 0.0, %v1365
      %v1372 = vsel %vm1275, 0.0, %v1364
      %v1373 = vsel %vm1276, 0.0, %v1363
      %v1374 = vsel %vm1277, 0.0, %v1362
      %v1375 = vsel %vm1278, 0.0, %v1361
      %v1376 = vsel %vm1279, 0.0, %v1360
      %v1377 = vsel %vm1280, 0.0, %v1359
      %v1378 = vsel %vm1281, 0.0, %v1358
      %v1379 = vsel %vm1282, 0.0, %v1357
      %v1380 = vsel %vm1283, 0.0, %v1356
      %v1381 = vsel %vm1284, 0.0, %v1355
      %v1382 = vsel %vm1285, 0.0, %v1354
      %v1383 = vsel %vm1286, 0.0, %v1353
      %v1384 = vsel %vm1287, 0.0, %v1352
      %v1385 = vsel %vm1288, 0.0, %v1351
      %v1386 = vsel %vm1289, 0.0, %v1350
      %v1387 = vsel %vm1290, 0.0, %v1349
      %v1388 = vsel %vm1291, 0.0, %v1348
      %v1389 = vsel %vm1292, 0.0, %v1347
      %v1390 = vsel %vm1293, 0.0, %v1346
      %v1391 = vsel %vm1294, 0.0, %v1345
      %v1392 = vsel %vm1295, 0.0, %v1344
      %v1393 = vsel %vm1296, 0.0, %v1343
      %v1394 = vsel %vm1297, 0.0, %v1342
      %v1395 = vsel %vm1298, 0.0, %v1341
      %v1396 = vsel %vm1299, 0.0, %v1340
      %v1397 = vsel %vm1300, 0.0, %v1339
      %v1398 = vsel %vm1301, 0.0, %v1338
      %v1399 = vsel %vm1302, 0.0, %v1337
      %v1400 = vsel %vm1303, 0.0, %v1368
      %1401 = vst [vmem:[#allocation2] sm:$0xf] 0
      %1402 = vst [vmem:[#allocation2 + $0x4] sm:$0xf] 0
      %v1403 = vpack.c.bf16 %v1241, %v1240
      %v1404 = vpack.c.bf16 %v1243, %v1242
      %v1405 = vpack.c.bf16 %v1245, %v1244
      %v1406 = vpack.c.bf16 %v1247, %v1246
      %v1407 = vpack.c.bf16 %v1249, %v1248
      %v1408 = vpack.c.bf16 %v1251, %v1250
      %v1409 = vpack.c.bf16 %v1253, %v1252
      %v1410 = vpack.c.bf16 %v1255, %v1254
      %v1411 = vpack.c.bf16 %v1257, %v1256
      %v1412 = vpack.c.bf16 %v1259, %v1258
      %v1413 = vpack.c.bf16 %v1261, %v1260
      %v1414 = vpack.c.bf16 %v1263, %v1262
      %v1415 = vpack.c.bf16 %v1265, %v1264
      %v1416 = vpack.c.bf16 %v1267, %v1266
      %v1417 = vpack.c.bf16 %v1269, %v1268
      %v1418 = vpack.c.bf16 %v1271, %v1270
      %v1435 = vunpack.c.l.b16 %v1403
      %v1436 = vunpack.c.h.b16 %v1403
      %v1437 = vunpack.c.l.b16 %v1404
      %v1438 = vunpack.c.h.b16 %v1404
      %v1439 = vunpack.c.l.b16 %v1405
      %v1440 = vunpack.c.h.b16 %v1405
      %v1441 = vunpack.c.l.b16 %v1406
      %v1442 = vunpack.c.h.b16 %v1406
      %v1443 = vunpack.c.l.b16 %v1407
      %v1444 = vunpack.c.h.b16 %v1407
      %v1445 = vunpack.c.l.b16 %v1408
      %v1446 = vunpack.c.h.b16 %v1408
      %v1447 = vunpack.c.l.b16 %v1409
      %v1448 = vunpack.c.h.b16 %v1409
      %v1449 = vunpack.c.l.b16 %v1410
      %v1450 = vunpack.c.h.b16 %v1410
      %v1451 = vunpack.c.l.b16 %v1411
      %v1452 = vunpack.c.h.b16 %v1411
      %v1453 = vunpack.c.l.b16 %v1412
      %v1454 = vunpack.c.h.b16 %v1412
      %v1455 = vunpack.c.l.b16 %v1413
      %v1456 = vunpack.c.h.b16 %v1413
      %v1457 = vunpack.c.l.b16 %v1414
      %v1458 = vunpack.c.h.b16 %v1414
      %v1459 = vunpack.c.l.b16 %v1415
      %v1460 = vunpack.c.h.b16 %v1415
      %v1461 = vunpack.c.l.b16 %v1416
      %v1462 = vunpack.c.h.b16 %v1416
      %v1463 = vunpack.c.l.b16 %v1417
      %v1464 = vunpack.c.h.b16 %v1417
      %v1465 = vunpack.c.l.b16 %v1418
      %v1466 = vunpack.c.h.b16 %v1418
      %v1467 = vpack.c.b16 %v1435, %v1435
      %v1468 = vpack.c.b16 %v1436, %v1436
      %v1469 = vpack.c.b16 %v1437, %v1437
      %v1470 = vpack.c.b16 %v1438, %v1438
      %v1471 = vpack.c.b16 %v1439, %v1439
      %v1472 = vpack.c.b16 %v1440, %v1440
      %v1473 = vpack.c.b16 %v1441, %v1441
      %v1474 = vpack.c.b16 %v1442, %v1442
      %v1475 = vpack.c.b16 %v1443, %v1443
      %v1476 = vpack.c.b16 %v1444, %v1444
      %v1477 = vpack.c.b16 %v1445, %v1445
      %v1478 = vpack.c.b16 %v1446, %v1446
      %v1479 = vpack.c.b16 %v1447, %v1447
      %v1480 = vpack.c.b16 %v1448, %v1448
      %v1481 = vpack.c.b16 %v1449, %v1449
      %v1482 = vpack.c.b16 %v1450, %v1450
      %v1483 = vpack.c.b16 %v1451, %v1451
      %v1484 = vpack.c.b16 %v1452, %v1452
      %v1485 = vpack.c.b16 %v1453, %v1453
      %v1486 = vpack.c.b16 %v1454, %v1454
      %v1487 = vpack.c.b16 %v1455, %v1455
      %v1488 = vpack.c.b16 %v1456, %v1456
      %v1489 = vpack.c.b16 %v1457, %v1457
      %v1490 = vpack.c.b16 %v1458, %v1458
      %v1491 = vpack.c.b16 %v1459, %v1459
      %v1492 = vpack.c.b16 %v1460, %v1460
      %v1493 = vpack.c.b16 %v1461, %v1461
      %v1494 = vpack.c.b16 %v1462, %v1462
      %v1495 = vpack.c.b16 %v1463, %v1463
      %v1496 = vpack.c.b16 %v1464, %v1464
      %v1497 = vpack.c.b16 %v1465, %v1465
      %v1498 = vpack.c.b16 %v1466, %v1466
      %1531 = vst [vmem:[#allocation2 + $0x8] sm:$0xf] %v1467
      %1532 = vst [vmem:[#allocation2 + $0xc] sm:$0xf] %v1468
      %1533 = vst [vmem:[#allocation2 + $0x10] sm:$0xf] %v1469
      %1534 = vst [vmem:[#allocation2 + $0x14] sm:$0xf] %v1470
      %1535 = vst [vmem:[#allocation2 + $0x18] sm:$0xf] %v1471
      %1536 = vst [vmem:[#allocation2 + $0x1c] sm:$0xf] %v1472
      %1537 = vst [vmem:[#allocation2 + $0x20] sm:$0xf] %v1473
      %1538 = vst [vmem:[#allocation2 + $0x24] sm:$0xf] %v1474
      %1539 = vst [vmem:[#allocation2 + $0x28] sm:$0xf] %v1475
      %1540 = vst [vmem:[#allocation2 + $0x2c] sm:$0xf] %v1476
      %1541 = vst [vmem:[#allocation2 + $0x30] sm:$0xf] %v1477
      %1542 = vst [vmem:[#allocation2 + $0x34] sm:$0xf] %v1478
      %1543 = vst [vmem:[#allocation2 + $0x38] sm:$0xf] %v1479
      %1544 = vst [vmem:[#allocation2 + $0x3c] sm:$0xf] %v1480
      %1545 = vst [vmem:[#allocation2 + $0x40] sm:$0xf] %v1481
      %1546 = vst [vmem:[#allocation2 + $0x44] sm:$0xf] %v1482
      %1547 = vst [vmem:[#allocation2 + $0x48] sm:$0xf] %v1483
      %1548 = vst [vmem:[#allocation2 + $0x4c] sm:$0xf] %v1484
      %1549 = vst [vmem:[#allocation2 + $0x50] sm:$0xf] %v1485
      %1550 = vst [vmem:[#allocation2 + $0x54] sm:$0xf] %v1486
      %1551 = vst [vmem:[#allocation2 + $0x58] sm:$0xf] %v1487
      %1552 = vst [vmem:[#allocation2 + $0x5c] sm:$0xf] %v1488
      %1553 = vst [vmem:[#allocation2 + $0x60] sm:$0xf] %v1489
      %1554 = vst [vmem:[#allocation2 + $0x64] sm:$0xf] %v1490
      %1555 = vst [vmem:[#allocation2 + $0x68] sm:$0xf] %v1491
      %1556 = vst [vmem:[#allocation2 + $0x6c] sm:$0xf] %v1492
      %1557 = vst [vmem:[#allocation2 + $0x70] sm:$0xf] %v1493
      %1558 = vst [vmem:[#allocation2 + $0x74] sm:$0xf] %v1494
      %1559 = vst [vmem:[#allocation2 + $0x78] sm:$0xf] %v1495
      %1560 = vst [vmem:[#allocation2 + $0x7c] sm:$0xf] %v1496
      %1561 = vst [vmem:[#allocation2 + $0x80] sm:$0xf] %v1497
      %1562 = vst [vmem:[#allocation2 + $0x84] sm:$0xf] %v1498
      %1563 = vst [vmem:[#allocation2 + $0x88] sm:$0xf] 0
      %1564 = vst [vmem:[#allocation2 + $0x8c] sm:$0xf] 0
      %1565 = vst [vmem:[#allocation3] sm:$0xf] 0
      %1566 = vst [vmem:[#allocation3 + $0x4] sm:$0xf] 0
      %v1567 = vpack.c.bf16 %v695, %v694
      %v1568 = vpack.c.bf16 %v697, %v696
      %v1569 = vpack.c.bf16 %v699, %v698
      %v1570 = vpack.c.bf16 %v701, %v700
      %v1571 = vpack.c.bf16 %v703, %v702
      %v1572 = vpack.c.bf16 %v705, %v704
      %v1573 = vpack.c.bf16 %v707, %v706
      %v1574 = vpack.c.bf16 %v709, %v708
      %v1575 = vpack.c.bf16 %v711, %v710
      %v1576 = vpack.c.bf16 %v713, %v712
      %v1577 = vpack.c.bf16 %v715, %v714
      %v1578 = vpack.c.bf16 %v717, %v716
      %v1579 = vpack.c.bf16 %v719, %v718
      %v1580 = vpack.c.bf16 %v721, %v720
      %v1581 = vpack.c.bf16 %v723, %v722
      %v1582 = vpack.c.bf16 %v725, %v724
      %v1599 = vunpack.c.l.b16 %v1567
      %v1600 = vunpack.c.h.b16 %v1567
      %v1601 = vunpack.c.l.b16 %v1568
      %v1602 = vunpack.c.h.b16 %v1568
      %v1603 = vunpack.c.l.b16 %v1569
      %v1604 = vunpack.c.h.b16 %v1569
      %v1605 = vunpack.c.l.b16 %v1570
      %v1606 = vunpack.c.h.b16 %v1570
      %v1607 = vunpack.c.l.b16 %v1571
      %v1608 = vunpack.c.h.b16 %v1571
      %v1609 = vunpack.c.l.b16 %v1572
      %v1610 = vunpack.c.h.b16 %v1572
      %v1611 = vunpack.c.l.b16 %v1573
      %v1612 = vunpack.c.h.b16 %v1573
      %v1613 = vunpack.c.l.b16 %v1574
      %v1614 = vunpack.c.h.b16 %v1574
      %v1615 = vunpack.c.l.b16 %v1575
      %v1616 = vunpack.c.h.b16 %v1575
      %v1617 = vunpack.c.l.b16 %v1576
      %v1618 = vunpack.c.h.b16 %v1576
      %v1619 = vunpack.c.l.b16 %v1577
      %v1620 = vunpack.c.h.b16 %v1577
      %v1621 = vunpack.c.l.b16 %v1578
      %v1622 = vunpack.c.h.b16 %v1578
      %v1623 = vunpack.c.l.b16 %v1579
      %v1624 = vunpack.c.h.b16 %v1579
      %v1625 = vunpack.c.l.b16 %v1580
      %v1626 = vunpack.c.h.b16 %v1580
      %v1627 = vunpack.c.l.b16 %v1581
      %v1628 = vunpack.c.h.b16 %v1581
      %v1629 = vunpack.c.l.b16 %v1582
      %v1630 = vunpack.c.h.b16 %v1582
      %v1631 = vpack.c.b16 %v1599, %v1599
      %v1632 = vpack.c.b16 %v1600, %v1600
      %v1633 = vpack.c.b16 %v1601, %v1601
      %v1634 = vpack.c.b16 %v1602, %v1602
      %v1635 = vpack.c.b16 %v1603, %v1603
      %v1636 = vpack.c.b16 %v1604, %v1604
      %v1637 = vpack.c.b16 %v1605, %v1605
      %v1638 = vpack.c.b16 %v1606, %v1606
      %v1639 = vpack.c.b16 %v1607, %v1607
      %v1640 = vpack.c.b16 %v1608, %v1608
      %v1641 = vpack.c.b16 %v1609, %v1609
      %v1642 = vpack.c.b16 %v1610, %v1610
      %v1643 = vpack.c.b16 %v1611, %v1611
      %v1644 = vpack.c.b16 %v1612, %v1612
      %v1645 = vpack.c.b16 %v1613, %v1613
      %v1646 = vpack.c.b16 %v1614, %v1614
      %v1647 = vpack.c.b16 %v1615, %v1615
      %v1648 = vpack.c.b16 %v1616, %v1616
      %v1649 = vpack.c.b16 %v1617, %v1617
      %v1650 = vpack.c.b16 %v1618, %v1618
      %v1651 = vpack.c.b16 %v1619, %v1619
      %v1652 = vpack.c.b16 %v1620, %v1620
      %v1653 = vpack.c.b16 %v1621, %v1621
      %v1654 = vpack.c.b16 %v1622, %v1622
      %v1655 = vpack.c.b16 %v1623, %v1623
      %v1656 = vpack.c.b16 %v1624, %v1624
      %v1657 = vpack.c.b16 %v1625, %v1625
      %v1658 = vpack.c.b16 %v1626, %v1626
      %v1659 = vpack.c.b16 %v1627, %v1627
      %v1660 = vpack.c.b16 %v1628, %v1628
      %v1661 = vpack.c.b16 %v1629, %v1629
      %v1662 = vpack.c.b16 %v1630, %v1630
      %1695 = vst [vmem:[#allocation3 + $0x8] sm:$0xf] %v1631
      %1696 = vst [vmem:[#allocation3 + $0xc] sm:$0xf] %v1632
      %1697 = vst [vmem:[#allocation3 + $0x10] sm:$0xf] %v1633
      %1698 = vst [vmem:[#allocation3 + $0x14] sm:$0xf] %v1634
      %1699 = vst [vmem:[#allocation3 + $0x18] sm:$0xf] %v1635
      %1700 = vst [vmem:[#allocation3 + $0x1c] sm:$0xf] %v1636
      %1701 = vst [vmem:[#allocation3 + $0x20] sm:$0xf] %v1637
      %1702 = vst [vmem:[#allocation3 + $0x24] sm:$0xf] %v1638
      %1703 = vst [vmem:[#allocation3 + $0x28] sm:$0xf] %v1639
      %1704 = vst [vmem:[#allocation3 + $0x2c] sm:$0xf] %v1640
      %1705 = vst [vmem:[#allocation3 + $0x30] sm:$0xf] %v1641
      %1706 = vst [vmem:[#allocation3 + $0x34] sm:$0xf] %v1642
      %1707 = vst [vmem:[#allocation3 + $0x38] sm:$0xf] %v1643
      %1708 = vst [vmem:[#allocation3 + $0x3c] sm:$0xf] %v1644
      %1709 = vst [vmem:[#allocation3 + $0x40] sm:$0xf] %v1645
      %1710 = vst [vmem:[#allocation3 + $0x44] sm:$0xf] %v1646
      %1711 = vst [vmem:[#allocation3 + $0x48] sm:$0xf] %v1647
      %1712 = vst [vmem:[#allocation3 + $0x4c] sm:$0xf] %v1648
      %1713 = vst [vmem:[#allocation3 + $0x50] sm:$0xf] %v1649
      %1714 = vst [vmem:[#allocation3 + $0x54] sm:$0xf] %v1650
      %1715 = vst [vmem:[#allocation3 + $0x58] sm:$0xf] %v1651
      %1716 = vst [vmem:[#allocation3 + $0x5c] sm:$0xf] %v1652
      %1717 = vst [vmem:[#allocation3 + $0x60] sm:$0xf] %v1653
      %1718 = vst [vmem:[#allocation3 + $0x64] sm:$0xf] %v1654
      %1719 = vst [vmem:[#allocation3 + $0x68] sm:$0xf] %v1655
      %1720 = vst [vmem:[#allocation3 + $0x6c] sm:$0xf] %v1656
      %1721 = vst [vmem:[#allocation3 + $0x70] sm:$0xf] %v1657
      %1722 = vst [vmem:[#allocation3 + $0x74] sm:$0xf] %v1658
      %1723 = vst [vmem:[#allocation3 + $0x78] sm:$0xf] %v1659
      %1724 = vst [vmem:[#allocation3 + $0x7c] sm:$0xf] %v1660
      %1725 = vst [vmem:[#allocation3 + $0x80] sm:$0xf] %v1661
      %1726 = vst [vmem:[#allocation3 + $0x84] sm:$0xf] %v1662
      %1727 = vst [vmem:[#allocation3 + $0x88] sm:$0xf] 0
      %1728 = vst [vmem:[#allocation3 + $0x8c] sm:$0xf] 0
      %1729 = vst [vmem:[#allocation4] sm:$0xf] 0
      %1730 = vst [vmem:[#allocation4 + $0x4] sm:$0xf] 0
      %v1731 = vpack.c.bf16 %v1370, %v1369
      %v1732 = vpack.c.bf16 %v1372, %v1371
      %v1733 = vpack.c.bf16 %v1374, %v1373
      %v1734 = vpack.c.bf16 %v1376, %v1375
      %v1735 = vpack.c.bf16 %v1378, %v1377
      %v1736 = vpack.c.bf16 %v1380, %v1379
      %v1737 = vpack.c.bf16 %v1382, %v1381
      %v1738 = vpack.c.bf16 %v1384, %v1383
      %v1739 = vpack.c.bf16 %v1386, %v1385
      %v1740 = vpack.c.bf16 %v1388, %v1387
      %v1741 = vpack.c.bf16 %v1390, %v1389
      %v1742 = vpack.c.bf16 %v1392, %v1391
      %v1743 = vpack.c.bf16 %v1394, %v1393
      %v1744 = vpack.c.bf16 %v1396, %v1395
      %v1745 = vpack.c.bf16 %v1398, %v1397
      %v1746 = vpack.c.bf16 %v1400, %v1399
      %v1763 = vunpack.c.l.b16 %v1731
      %v1764 = vunpack.c.h.b16 %v1731
      %v1765 = vunpack.c.l.b16 %v1732
      %v1766 = vunpack.c.h.b16 %v1732
      %v1767 = vunpack.c.l.b16 %v1733
      %v1768 = vunpack.c.h.b16 %v1733
      %v1769 = vunpack.c.l.b16 %v1734
      %v1770 = vunpack.c.h.b16 %v1734
      %v1771 = vunpack.c.l.b16 %v1735
      %v1772 = vunpack.c.h.b16 %v1735
      %v1773 = vunpack.c.l.b16 %v1736
      %v1774 = vunpack.c.h.b16 %v1736
      %v1775 = vunpack.c.l.b16 %v1737
      %v1776 = vunpack.c.h.b16 %v1737
      %v1777 = vunpack.c.l.b16 %v1738
      %v1778 = vunpack.c.h.b16 %v1738
      %v1779 = vunpack.c.l.b16 %v1739
      %v1780 = vunpack.c.h.b16 %v1739
      %v1781 = vunpack.c.l.b16 %v1740
      %v1782 = vunpack.c.h.b16 %v1740
      %v1783 = vunpack.c.l.b16 %v1741
      %v1784 = vunpack.c.h.b16 %v1741
      %v1785 = vunpack.c.l.b16 %v1742
      %v1786 = vunpack.c.h.b16 %v1742
      %v1787 = vunpack.c.l.b16 %v1743
      %v1788 = vunpack.c.h.b16 %v1743
      %v1789 = vunpack.c.l.b16 %v1744
      %v1790 = vunpack.c.h.b16 %v1744
      %v1791 = vunpack.c.l.b16 %v1745
      %v1792 = vunpack.c.h.b16 %v1745
      %v1793 = vunpack.c.l.b16 %v1746
      %v1794 = vunpack.c.h.b16 %v1746
      %v1795 = vpack.c.b16 %v1763, %v1763
      %v1796 = vpack.c.b16 %v1764, %v1764
      %v1797 = vpack.c.b16 %v1765, %v1765
      %v1798 = vpack.c.b16 %v1766, %v1766
      %v1799 = vpack.c.b16 %v1767, %v1767
      %v1800 = vpack.c.b16 %v1768, %v1768
      %v1801 = vpack.c.b16 %v1769, %v1769
      %v1802 = vpack.c.b16 %v1770, %v1770
      %v1803 = vpack.c.b16 %v1771, %v1771
      %v1804 = vpack.c.b16 %v1772, %v1772
      %v1805 = vpack.c.b16 %v1773, %v1773
      %v1806 = vpack.c.b16 %v1774, %v1774
      %v1807 = vpack.c.b16 %v1775, %v1775
      %v1808 = vpack.c.b16 %v1776, %v1776
      %v1809 = vpack.c.b16 %v1777, %v1777
      %v1810 = vpack.c.b16 %v1778, %v1778
      %v1811 = vpack.c.b16 %v1779, %v1779
      %v1812 = vpack.c.b16 %v1780, %v1780
      %v1813 = vpack.c.b16 %v1781, %v1781
      %v1814 = vpack.c.b16 %v1782, %v1782
      %v1815 = vpack.c.b16 %v1783, %v1783
      %v1816 = vpack.c.b16 %v1784, %v1784
      %v1817 = vpack.c.b16 %v1785, %v1785
      %v1818 = vpack.c.b16 %v1786, %v1786
      %v1819 = vpack.c.b16 %v1787, %v1787
      %v1820 = vpack.c.b16 %v1788, %v1788
      %v1821 = vpack.c.b16 %v1789, %v1789
      %v1822 = vpack.c.b16 %v1790, %v1790
      %v1823 = vpack.c.b16 %v1791, %v1791
      %v1824 = vpack.c.b16 %v1792, %v1792
      %v1825 = vpack.c.b16 %v1793, %v1793
      %v1826 = vpack.c.b16 %v1794, %v1794
      %1859 = vst [vmem:[#allocation4 + $0x8] sm:$0xf] %v1795
      %1860 = vst [vmem:[#allocation4 + $0xc] sm:$0xf] %v1796
      %1861 = vst [vmem:[#allocation4 + $0x10] sm:$0xf] %v1797
      %1862 = vst [vmem:[#allocation4 + $0x14] sm:$0xf] %v1798
      %1863 = vst [vmem:[#allocation4 + $0x18] sm:$0xf] %v1799
      %1864 = vst [vmem:[#allocation4 + $0x1c] sm:$0xf] %v1800
      %1865 = vst [vmem:[#allocation4 + $0x20] sm:$0xf] %v1801
      %1866 = vst [vmem:[#allocation4 + $0x24] sm:$0xf] %v1802
      %1867 = vst [vmem:[#allocation4 + $0x28] sm:$0xf] %v1803
      %1868 = vst [vmem:[#allocation4 + $0x2c] sm:$0xf] %v1804
      %1869 = vst [vmem:[#allocation4 + $0x30] sm:$0xf] %v1805
      %1870 = vst [vmem:[#allocation4 + $0x34] sm:$0xf] %v1806
      %1871 = vst [vmem:[#allocation4 + $0x38] sm:$0xf] %v1807
      %1872 = vst [vmem:[#allocation4 + $0x3c] sm:$0xf] %v1808
      %1873 = vst [vmem:[#allocation4 + $0x40] sm:$0xf] %v1809
      %1874 = vst [vmem:[#allocation4 + $0x44] sm:$0xf] %v1810
      %1875 = vst [vmem:[#allocation4 + $0x48] sm:$0xf] %v1811
      %1876 = vst [vmem:[#allocation4 + $0x4c] sm:$0xf] %v1812
      %1877 = vst [vmem:[#allocation4 + $0x50] sm:$0xf] %v1813
      %1878 = vst [vmem:[#allocation4 + $0x54] sm:$0xf] %v1814
      %1879 = vst [vmem:[#allocation4 + $0x58] sm:$0xf] %v1815
      %1880 = vst [vmem:[#allocation4 + $0x5c] sm:$0xf] %v1816
      %1881 = vst [vmem:[#allocation4 + $0x60] sm:$0xf] %v1817
      %1882 = vst [vmem:[#allocation4 + $0x64] sm:$0xf] %v1818
      %1883 = vst [vmem:[#allocation4 + $0x68] sm:$0xf] %v1819
      %1884 = vst [vmem:[#allocation4 + $0x6c] sm:$0xf] %v1820
      %1885 = vst [vmem:[#allocation4 + $0x70] sm:$0xf] %v1821
      %1886 = vst [vmem:[#allocation4 + $0x74] sm:$0xf] %v1822
      %1887 = vst [vmem:[#allocation4 + $0x78] sm:$0xf] %v1823
      %1888 = vst [vmem:[#allocation4 + $0x7c] sm:$0xf] %v1824
      %1889 = vst [vmem:[#allocation4 + $0x80] sm:$0xf] %v1825
      %1890 = vst [vmem:[#allocation4 + $0x84] sm:$0xf] %v1826
      %1891 = vst [vmem:[#allocation4 + $0x88] sm:$0xf] 0
      %1892 = vst [vmem:[#allocation4 + $0x8c] sm:$0xf] 0
      %v1893 = vld [vmem:[#allocation2] sm:$0xf]
      %v1894 = vld [vmem:[#allocation2 + $0x4] sm:$0xf]
      %v1895 = vld [vmem:[#allocation2 + $0x8] sm:$0xf]
      %v1896 = vld [vmem:[#allocation2 + $0xc] sm:$0xf]
      %v1897 = vld [vmem:[#allocation2 + $0x10] sm:$0xf]
      %v1898 = vld [vmem:[#allocation2 + $0x14] sm:$0xf]
      %v1899 = vld [vmem:[#allocation2 + $0x18] sm:$0xf]
      %v1900 = vld [vmem:[#allocation2 + $0x1c] sm:$0xf]
      %v1901 = vld [vmem:[#allocation2 + $0x20] sm:$0xf]
      %v1902 = vld [vmem:[#allocation2 + $0x24] sm:$0xf]
      %v1903 = vld [vmem:[#allocation2 + $0x28] sm:$0xf]
      %v1904 = vld [vmem:[#allocation2 + $0x2c] sm:$0xf]
      %v1905 = vld [vmem:[#allocation2 + $0x30] sm:$0xf]
      %v1906 = vld [vmem:[#allocation2 + $0x34] sm:$0xf]
      %v1907 = vld [vmem:[#allocation2 + $0x38] sm:$0xf]
      %v1908 = vld [vmem:[#allocation2 + $0x3c] sm:$0xf]
      %v1909 = vld [vmem:[#allocation2 + $0x40] sm:$0xf]
      %v1910 = vld [vmem:[#allocation2 + $0x44] sm:$0xf]
      %v1911 = vld [vmem:[#allocation2 + $0x48] sm:$0xf]
      %v1912 = vld [vmem:[#allocation2 + $0x4c] sm:$0xf]
      %v1913 = vld [vmem:[#allocation2 + $0x50] sm:$0xf]
      %v1914 = vld [vmem:[#allocation2 + $0x54] sm:$0xf]
      %v1915 = vld [vmem:[#allocation2 + $0x58] sm:$0xf]
      %v1916 = vld [vmem:[#allocation2 + $0x5c] sm:$0xf]
      %v1917 = vld [vmem:[#allocation2 + $0x60] sm:$0xf]
      %v1918 = vld [vmem:[#allocation2 + $0x64] sm:$0xf]
      %v1919 = vld [vmem:[#allocation2 + $0x68] sm:$0xf]
      %v1920 = vld [vmem:[#allocation2 + $0x6c] sm:$0xf]
      %v1921 = vld [vmem:[#allocation2 + $0x70] sm:$0xf]
      %v1922 = vld [vmem:[#allocation2 + $0x74] sm:$0xf]
      %v1923 = vld [vmem:[#allocation2 + $0x78] sm:$0xf]
      %v1924 = vld [vmem:[#allocation2 + $0x7c] sm:$0xf]
      %v1925 = vld [vmem:[%s3] sm:$0xf]
      %v1926 = vld [vmem:[%s3 + $0x4] sm:$0xf]
      %v1927 = vld [vmem:[%s3 + $0x8] sm:$0xf]
      %v1928 = vld [vmem:[%s3 + $0xc] sm:$0xf]
      %v1929 = vld [vmem:[%s3 + $0x10] sm:$0xf]
      %v1930 = vld [vmem:[%s3 + $0x14] sm:$0xf]
      %v1931 = vld [vmem:[%s3 + $0x18] sm:$0xf]
      %v1932 = vld [vmem:[%s3 + $0x1c] sm:$0xf]
      %v1933 = vld [vmem:[%s3 + $0x20] sm:$0xf]
      %v1934 = vld [vmem:[%s3 + $0x24] sm:$0xf]
      %v1935 = vld [vmem:[%s3 + $0x28] sm:$0xf]
      %v1936 = vld [vmem:[%s3 + $0x2c] sm:$0xf]
      %v1937 = vld [vmem:[%s3 + $0x30] sm:$0xf]
      %v1938 = vld [vmem:[%s3 + $0x34] sm:$0xf]
      %v1939 = vld [vmem:[%s3 + $0x38] sm:$0xf]
      %v1940 = vld [vmem:[%s3 + $0x3c] sm:$0xf]
      %v1973 = vunpack.c.l.b16 %v1893
      %v1974 = vunpack.c.l.b16 %v1894
      %v1975 = vunpack.c.l.b16 %v1895
      %v1976 = vunpack.c.l.b16 %v1896
      %v1977 = vunpack.c.l.b16 %v1897
      %v1978 = vunpack.c.l.b16 %v1898
      %v1979 = vunpack.c.l.b16 %v1899
      %v1980 = vunpack.c.l.b16 %v1900
      %v1981 = vunpack.c.l.b16 %v1901
      %v1982 = vunpack.c.l.b16 %v1902
      %v1983 = vunpack.c.l.b16 %v1903
      %v1984 = vunpack.c.l.b16 %v1904
      %v1985 = vunpack.c.l.b16 %v1905
      %v1986 = vunpack.c.l.b16 %v1906
      %v1987 = vunpack.c.l.b16 %v1907
      %v1988 = vunpack.c.l.b16 %v1908
      %v1989 = vunpack.c.l.b16 %v1909
      %v1990 = vunpack.c.l.b16 %v1910
      %v1991 = vunpack.c.l.b16 %v1911
      %v1992 = vunpack.c.l.b16 %v1912
      %v1993 = vunpack.c.l.b16 %v1913
      %v1994 = vunpack.c.l.b16 %v1914
      %v1995 = vunpack.c.l.b16 %v1915
      %v1996 = vunpack.c.l.b16 %v1916
      %v1997 = vunpack.c.l.b16 %v1917
      %v1998 = vunpack.c.l.b16 %v1918
      %v1999 = vunpack.c.l.b16 %v1919
      %v2000 = vunpack.c.l.b16 %v1920
      %v2001 = vunpack.c.l.b16 %v1921
      %v2002 = vunpack.c.l.b16 %v1922
      %v2003 = vunpack.c.l.b16 %v1923
      %v2004 = vunpack.c.l.b16 %v1924
      %v2005 = vpack.c.b16 %v1974, %v1973
      %v2006 = vpack.c.b16 %v1976, %v1975
      %v2007 = vpack.c.b16 %v1978, %v1977
      %v2008 = vpack.c.b16 %v1980, %v1979
      %v2009 = vpack.c.b16 %v1982, %v1981
      %v2010 = vpack.c.b16 %v1984, %v1983
      %v2011 = vpack.c.b16 %v1986, %v1985
      %v2012 = vpack.c.b16 %v1988, %v1987
      %v2013 = vpack.c.b16 %v1990, %v1989
      %v2014 = vpack.c.b16 %v1992, %v1991
      %v2015 = vpack.c.b16 %v1994, %v1993
      %v2016 = vpack.c.b16 %v1996, %v1995
      %v2017 = vpack.c.b16 %v1998, %v1997
      %v2018 = vpack.c.b16 %v2000, %v1999
      %v2019 = vpack.c.b16 %v2002, %v2001
      %v2020 = vpack.c.b16 %v2004, %v2003
      %v2053 = vunpack.c.l.b16 %v1925
      %v2054 = vunpack.c.l.b16 %v1926
      %v2055 = vunpack.c.l.b16 %v1927
      %v2056 = vunpack.c.l.b16 %v1928
      %v2057 = vunpack.c.l.b16 %v1929
      %v2058 = vunpack.c.l.b16 %v1930
      %v2059 = vunpack.c.l.b16 %v1931
      %v2060 = vunpack.c.l.b16 %v1932
      %v2061 = vunpack.c.l.b16 %v1933
      %v2062 = vunpack.c.l.b16 %v1934
      %v2063 = vunpack.c.l.b16 %v1935
      %v2064 = vunpack.c.l.b16 %v1936
      %v2065 = vunpack.c.l.b16 %v1937
      %v2066 = vunpack.c.l.b16 %v1938
      %v2067 = vunpack.c.l.b16 %v1939
      %v2068 = vunpack.c.l.b16 %v1940
      %v2069 = vpack.c.b16 %v2054, %v2053
      %v2070 = vpack.c.b16 %v2056, %v2055
      %v2071 = vpack.c.b16 %v2058, %v2057
      %v2072 = vpack.c.b16 %v2060, %v2059
      %v2073 = vpack.c.b16 %v2062, %v2061
      %v2074 = vpack.c.b16 %v2064, %v2063
      %v2075 = vpack.c.b16 %v2066, %v2065
      %v2076 = vpack.c.b16 %v2068, %v2067
      %2085 = vmatprep.subr.bf16.mxu0 0
      %2086 = vmatpush1.bf16.msra.mxu0 %v2076
      %2087 = vmatprep.subr.bf16.mxu0 0
      %2088 = vmatpush1.bf16.msra.mxu0 %v2075
      %2089 = vmatprep.subr.bf16.mxu0 0
      %2090 = vmatpush1.bf16.msra.mxu0 %v2074
      %2091 = vmatprep.subr.bf16.mxu0 0
      %2092 = vmatpush1.bf16.msra.mxu0 %v2073
      %2093 = vmatprep.subr.bf16.mxu0 0
      %2094 = vmatpush1.bf16.msra.mxu0 %v2072
      %2095 = vmatprep.subr.bf16.mxu0 0
      %2096 = vmatpush1.bf16.msra.mxu0 %v2071
      %2097 = vmatprep.subr.bf16.mxu0 0
      %2098 = vmatpush1.bf16.msra.mxu0 %v2070
      %2099 = vmatprep.subr.bf16.mxu0 0
      %2100 = vmatpush1.bf16.msra.mxu0 %v2069
      %2101 = vmatprep.subr.bf16.mxu0 0
      %2102 = vmatpush2.bf16.msra.mxu0 0
      %2103 = vmatprep.subr.bf16.mxu0 0
      %2104 = vmatpush2.bf16.msra.mxu0 0
      %2105 = vmatprep.subr.bf16.mxu0 0
      %2106 = vmatpush2.bf16.msra.mxu0 0
      %2107 = vmatprep.subr.bf16.mxu0 0
      %2108 = vmatpush2.bf16.msra.mxu0 0
      %2109 = vmatprep.subr.bf16.mxu0 0
      %2110 = vmatpush2.bf16.msra.mxu0 0
      %2111 = vmatprep.subr.bf16.mxu0 0
      %2112 = vmatpush2.bf16.msra.mxu0 0
      %2113 = vmatprep.subr.bf16.mxu0 0
      %2114 = vmatpush2.bf16.msra.mxu0 0
      %2115 = vmatprep.subr.bf16.mxu0 0
      %2116 = vmatpush2.bf16.msra.mxu0 0
      %2117 = vmatprep.mubr.bf16.mxu0 0
      %2118 = vmatmul.mubr.bf16.gmra.mxu0 %v2005
      %v2119 = vpop.f32.mrf.mxu0
      %v2120 = vadd.f32 0.0, %v2119
      %v2121 = vpop.f32.mrf.mxu0
      %v2122 = vpop.f32.mrf.mxu0
      %v2123 = vadd.f32 0.0, %v2122
      %v2124 = vpop.f32.mrf.mxu0
      %2125 = vmatprep.mubr.bf16.mxu0 0
      %2126 = vmatmul.mubr.bf16.gmra.mxu0 %v2006
      %v2127 = vpop.f32.mrf.mxu0
      %v2128 = vadd.f32 0.0, %v2127
      %v2129 = vpop.f32.mrf.mxu0
      %v2130 = vpop.f32.mrf.mxu0
      %v2131 = vadd.f32 0.0, %v2130
      %v2132 = vpop.f32.mrf.mxu0
      %2133 = vmatprep.mubr.bf16.mxu0 0
      %2134 = vmatmul.mubr.bf16.gmra.mxu0 %v2007
      %v2135 = vpop.f32.mrf.mxu0
      %v2136 = vadd.f32 0.0, %v2135
      %v2137 = vpop.f32.mrf.mxu0
      %v2138 = vpop.f32.mrf.mxu0
      %v2139 = vadd.f32 0.0, %v2138
      %v2140 = vpop.f32.mrf.mxu0
      %2141 = vmatprep.mubr.bf16.mxu0 0
      %2142 = vmatmul.mubr.bf16.gmra.mxu0 %v2008
      %v2143 = vpop.f32.mrf.mxu0
      %v2144 = vadd.f32 0.0, %v2143
      %v2145 = vpop.f32.mrf.mxu0
      %v2146 = vpop.f32.mrf.mxu0
      %v2147 = vadd.f32 0.0, %v2146
      %v2148 = vpop.f32.mrf.mxu0
      %2149 = vmatprep.mubr.bf16.mxu0 0
      %2150 = vmatmul.mubr.bf16.gmra.mxu0 %v2009
      %v2151 = vpop.f32.mrf.mxu0
      %v2152 = vadd.f32 0.0, %v2151
      %v2153 = vpop.f32.mrf.mxu0
      %v2154 = vpop.f32.mrf.mxu0
      %v2155 = vadd.f32 0.0, %v2154
      %v2156 = vpop.f32.mrf.mxu0
      %2157 = vmatprep.mubr.bf16.mxu0 0
      %2158 = vmatmul.mubr.bf16.gmra.mxu0 %v2010
      %v2159 = vpop.f32.mrf.mxu0
      %v2160 = vadd.f32 0.0, %v2159
      %v2161 = vpop.f32.mrf.mxu0
      %v2162 = vpop.f32.mrf.mxu0
      %v2163 = vadd.f32 0.0, %v2162
      %v2164 = vpop.f32.mrf.mxu0
      %2165 = vmatprep.mubr.bf16.mxu0 0
      %2166 = vmatmul.mubr.bf16.gmra.mxu0 %v2011
      %v2167 = vpop.f32.mrf.mxu0
      %v2168 = vadd.f32 0.0, %v2167
      %v2169 = vpop.f32.mrf.mxu0
      %v2170 = vpop.f32.mrf.mxu0
      %v2171 = vadd.f32 0.0, %v2170
      %v2172 = vpop.f32.mrf.mxu0
      %2173 = vmatprep.mubr.bf16.mxu0 0
      %2174 = vmatmul.mubr.bf16.gmra.mxu0 %v2012
      %v2175 = vpop.f32.mrf.mxu0
      %v2176 = vadd.f32 0.0, %v2175
      %v2177 = vpop.f32.mrf.mxu0
      %v2178 = vpop.f32.mrf.mxu0
      %v2179 = vadd.f32 0.0, %v2178
      %v2180 = vpop.f32.mrf.mxu0
      %2181 = vmatprep.mubr.bf16.mxu0 0
      %2182 = vmatmul.mubr.bf16.gmra.mxu0 %v2013
      %v2183 = vpop.f32.mrf.mxu0
      %v2184 = vadd.f32 0.0, %v2183
      %v2185 = vpop.f32.mrf.mxu0
      %v2186 = vpop.f32.mrf.mxu0
      %v2187 = vadd.f32 0.0, %v2186
      %v2188 = vpop.f32.mrf.mxu0
      %2189 = vmatprep.mubr.bf16.mxu0 0
      %2190 = vmatmul.mubr.bf16.gmra.mxu0 %v2014
      %v2191 = vpop.f32.mrf.mxu0
      %v2192 = vadd.f32 0.0, %v2191
      %v2193 = vpop.f32.mrf.mxu0
      %v2194 = vpop.f32.mrf.mxu0
      %v2195 = vadd.f32 0.0, %v2194
      %v2196 = vpop.f32.mrf.mxu0
      %2197 = vmatprep.mubr.bf16.mxu0 0
      %2198 = vmatmul.mubr.bf16.gmra.mxu0 %v2015
      %v2199 = vpop.f32.mrf.mxu0
      %v2200 = vadd.f32 0.0, %v2199
      %v2201 = vpop.f32.mrf.mxu0
      %v2202 = vpop.f32.mrf.mxu0
      %v2203 = vadd.f32 0.0, %v2202
      %v2204 = vpop.f32.mrf.mxu0
      %2205 = vmatprep.mubr.bf16.mxu0 0
      %2206 = vmatmul.mubr.bf16.gmra.mxu0 %v2016
      %v2207 = vpop.f32.mrf.mxu0
      %v2208 = vadd.f32 0.0, %v2207
      %v2209 = vpop.f32.mrf.mxu0
      %v2210 = vpop.f32.mrf.mxu0
      %v2211 = vadd.f32 0.0, %v2210
      %v2212 = vpop.f32.mrf.mxu0
      %2213 = vmatprep.mubr.bf16.mxu0 0
      %2214 = vmatmul.mubr.bf16.gmra.mxu0 %v2017
      %v2215 = vpop.f32.mrf.mxu0
      %v2216 = vadd.f32 0.0, %v2215
      %v2217 = vpop.f32.mrf.mxu0
      %v2218 = vpop.f32.mrf.mxu0
      %v2219 = vadd.f32 0.0, %v2218
      %v2220 = vpop.f32.mrf.mxu0
      %2221 = vmatprep.mubr.bf16.mxu0 0
      %2222 = vmatmul.mubr.bf16.gmra.mxu0 %v2018
      %v2223 = vpop.f32.mrf.mxu0
      %v2224 = vadd.f32 0.0, %v2223
      %v2225 = vpop.f32.mrf.mxu0
      %v2226 = vpop.f32.mrf.mxu0
      %v2227 = vadd.f32 0.0, %v2226
      %v2228 = vpop.f32.mrf.mxu0
      %2229 = vmatprep.mubr.bf16.mxu0 0
      %2230 = vmatmul.mubr.bf16.gmra.mxu0 %v2019
      %v2231 = vpop.f32.mrf.mxu0
      %v2232 = vadd.f32 0.0, %v2231
      %v2233 = vpop.f32.mrf.mxu0
      %v2234 = vpop.f32.mrf.mxu0
      %v2235 = vadd.f32 0.0, %v2234
      %v2236 = vpop.f32.mrf.mxu0
      %2237 = vmatprep.mubr.bf16.mxu0 0
      %2238 = vmatmul.mubr.bf16.gmra.mxu0 %v2020
      %v2239 = vpop.f32.mrf.mxu0
      %v2240 = vadd.f32 0.0, %v2239
      %v2241 = vpop.f32.mrf.mxu0
      %v2242 = vpop.f32.mrf.mxu0
      %v2243 = vadd.f32 0.0, %v2242
      %v2244 = vpop.f32.mrf.mxu0
      %2245 = vdwg.mxu0
      %2246 = vst [vmem:[#allocation5] sm:$0xff] %v2120
      %2247 = vst [vmem:[#allocation5 + $0x8] sm:$0xff] %v2123
      %2248 = vst [vmem:[#allocation5 + $0x10] sm:$0xff] %v2128
      %2249 = vst [vmem:[#allocation5 + $0x18] sm:$0xff] %v2131
      %2250 = vst [vmem:[#allocation5 + $0x20] sm:$0xff] %v2136
      %2251 = vst [vmem:[#allocation5 + $0x28] sm:$0xff] %v2139
      %2252 = vst [vmem:[#allocation5 + $0x30] sm:$0xff] %v2144
      %2253 = vst [vmem:[#allocation5 + $0x38] sm:$0xff] %v2147
      %2254 = vst [vmem:[#allocation5 + $0x40] sm:$0xff] %v2152
      %2255 = vst [vmem:[#allocation5 + $0x48] sm:$0xff] %v2155
      %2256 = vst [vmem:[#allocation5 + $0x50] sm:$0xff] %v2160
      %2257 = vst [vmem:[#allocation5 + $0x58] sm:$0xff] %v2163
      %2258 = vst [vmem:[#allocation5 + $0x60] sm:$0xff] %v2168
      %2259 = vst [vmem:[#allocation5 + $0x68] sm:$0xff] %v2171
      %2260 = vst [vmem:[#allocation5 + $0x70] sm:$0xff] %v2176
      %2261 = vst [vmem:[#allocation5 + $0x78] sm:$0xff] %v2179
      %2262 = vst [vmem:[#allocation5 + $0x80] sm:$0xff] %v2184
      %2263 = vst [vmem:[#allocation5 + $0x88] sm:$0xff] %v2187
      %2264 = vst [vmem:[#allocation5 + $0x90] sm:$0xff] %v2192
      %2265 = vst [vmem:[#allocation5 + $0x98] sm:$0xff] %v2195
      %2266 = vst [vmem:[#allocation5 + $0xa0] sm:$0xff] %v2200
      %2267 = vst [vmem:[#allocation5 + $0xa8] sm:$0xff] %v2203
      %2268 = vst [vmem:[#allocation5 + $0xb0] sm:$0xff] %v2208
      %2269 = vst [vmem:[#allocation5 + $0xb8] sm:$0xff] %v2211
      %2270 = vst [vmem:[#allocation5 + $0xc0] sm:$0xff] %v2216
      %2271 = vst [vmem:[#allocation5 + $0xc8] sm:$0xff] %v2219
      %2272 = vst [vmem:[#allocation5 + $0xd0] sm:$0xff] %v2224
      %2273 = vst [vmem:[#allocation5 + $0xd8] sm:$0xff] %v2227
      %2274 = vst [vmem:[#allocation5 + $0xe0] sm:$0xff] %v2232
      %2275 = vst [vmem:[#allocation5 + $0xe8] sm:$0xff] %v2235
      %2276 = vst [vmem:[#allocation5 + $0xf0] sm:$0xff] %v2240
      %2277 = vst [vmem:[#allocation5 + $0xf8] sm:$0xff] %v2243
      %v2278 = vld [vmem:[#allocation3] sm:$0xf]
      %v2279 = vld [vmem:[#allocation3 + $0x4] sm:$0xf]
      %v2280 = vld [vmem:[#allocation3 + $0x8] sm:$0xf]
      %v2281 = vld [vmem:[#allocation3 + $0xc] sm:$0xf]
      %v2282 = vld [vmem:[#allocation3 + $0x10] sm:$0xf]
      %v2283 = vld [vmem:[#allocation3 + $0x14] sm:$0xf]
      %v2284 = vld [vmem:[#allocation3 + $0x18] sm:$0xf]
      %v2285 = vld [vmem:[#allocation3 + $0x1c] sm:$0xf]
      %v2286 = vld [vmem:[#allocation3 + $0x20] sm:$0xf]
      %v2287 = vld [vmem:[#allocation3 + $0x24] sm:$0xf]
      %v2288 = vld [vmem:[#allocation3 + $0x28] sm:$0xf]
      %v2289 = vld [vmem:[#allocation3 + $0x2c] sm:$0xf]
      %v2290 = vld [vmem:[#allocation3 + $0x30] sm:$0xf]
      %v2291 = vld [vmem:[#allocation3 + $0x34] sm:$0xf]
      %v2292 = vld [vmem:[#allocation3 + $0x38] sm:$0xf]
      %v2293 = vld [vmem:[#allocation3 + $0x3c] sm:$0xf]
      %v2294 = vld [vmem:[#allocation3 + $0x40] sm:$0xf]
      %v2295 = vld [vmem:[#allocation3 + $0x44] sm:$0xf]
      %v2296 = vld [vmem:[#allocation3 + $0x48] sm:$0xf]
      %v2297 = vld [vmem:[#allocation3 + $0x4c] sm:$0xf]
      %v2298 = vld [vmem:[#allocation3 + $0x50] sm:$0xf]
      %v2299 = vld [vmem:[#allocation3 + $0x54] sm:$0xf]
      %v2300 = vld [vmem:[#allocation3 + $0x58] sm:$0xf]
      %v2301 = vld [vmem:[#allocation3 + $0x5c] sm:$0xf]
      %v2302 = vld [vmem:[#allocation3 + $0x60] sm:$0xf]
      %v2303 = vld [vmem:[#allocation3 + $0x64] sm:$0xf]
      %v2304 = vld [vmem:[#allocation3 + $0x68] sm:$0xf]
      %v2305 = vld [vmem:[#allocation3 + $0x6c] sm:$0xf]
      %v2306 = vld [vmem:[#allocation3 + $0x70] sm:$0xf]
      %v2307 = vld [vmem:[#allocation3 + $0x74] sm:$0xf]
      %v2308 = vld [vmem:[#allocation3 + $0x78] sm:$0xf]
      %v2309 = vld [vmem:[#allocation3 + $0x7c] sm:$0xf]
      %s2310 = scalar_lea.vmem %s3, 64
      %v2311 = vld [vmem:[%s2310] sm:$0xf]
      %v2312 = vld [vmem:[%s2310 + $0x4] sm:$0xf]
      %v2313 = vld [vmem:[%s2310 + $0x8] sm:$0xf]
      %v2314 = vld [vmem:[%s2310 + $0xc] sm:$0xf]
      %v2315 = vld [vmem:[%s2310 + $0x10] sm:$0xf]
      %v2316 = vld [vmem:[%s2310 + $0x14] sm:$0xf]
      %v2317 = vld [vmem:[%s2310 + $0x18] sm:$0xf]
      %v2318 = vld [vmem:[%s2310 + $0x1c] sm:$0xf]
      %v2319 = vld [vmem:[%s2310 + $0x20] sm:$0xf]
      %v2320 = vld [vmem:[%s2310 + $0x24] sm:$0xf]
      %v2321 = vld [vmem:[%s2310 + $0x28] sm:$0xf]
      %v2322 = vld [vmem:[%s2310 + $0x2c] sm:$0xf]
      %v2323 = vld [vmem:[%s2310 + $0x30] sm:$0xf]
      %v2324 = vld [vmem:[%s2310 + $0x34] sm:$0xf]
      %v2325 = vld [vmem:[%s2310 + $0x38] sm:$0xf]
      %v2326 = vld [vmem:[%s2310 + $0x3c] sm:$0xf]
      %v2359 = vunpack.c.l.b16 %v2278
      %v2360 = vunpack.c.l.b16 %v2279
      %v2361 = vunpack.c.l.b16 %v2280
      %v2362 = vunpack.c.l.b16 %v2281
      %v2363 = vunpack.c.l.b16 %v2282
      %v2364 = vunpack.c.l.b16 %v2283
      %v2365 = vunpack.c.l.b16 %v2284
      %v2366 = vunpack.c.l.b16 %v2285
      %v2367 = vunpack.c.l.b16 %v2286
      %v2368 = vunpack.c.l.b16 %v2287
      %v2369 = vunpack.c.l.b16 %v2288
      %v2370 = vunpack.c.l.b16 %v2289
      %v2371 = vunpack.c.l.b16 %v2290
      %v2372 = vunpack.c.l.b16 %v2291
      %v2373 = vunpack.c.l.b16 %v2292
      %v2374 = vunpack.c.l.b16 %v2293
      %v2375 = vunpack.c.l.b16 %v2294
      %v2376 = vunpack.c.l.b16 %v2295
      %v2377 = vunpack.c.l.b16 %v2296
      %v2378 = vunpack.c.l.b16 %v2297
      %v2379 = vunpack.c.l.b16 %v2298
      %v2380 = vunpack.c.l.b16 %v2299
      %v2381 = vunpack.c.l.b16 %v2300
      %v2382 = vunpack.c.l.b16 %v2301
      %v2383 = vunpack.c.l.b16 %v2302
      %v2384 = vunpack.c.l.b16 %v2303
      %v2385 = vunpack.c.l.b16 %v2304
      %v2386 = vunpack.c.l.b16 %v2305
      %v2387 = vunpack.c.l.b16 %v2306
      %v2388 = vunpack.c.l.b16 %v2307
      %v2389 = vunpack.c.l.b16 %v2308
      %v2390 = vunpack.c.l.b16 %v2309
      %v2391 = vpack.c.b16 %v2360, %v2359
      %v2392 = vpack.c.b16 %v2362, %v2361
      %v2393 = vpack.c.b16 %v2364, %v2363
      %v2394 = vpack.c.b16 %v2366, %v2365
      %v2395 = vpack.c.b16 %v2368, %v2367
      %v2396 = vpack.c.b16 %v2370, %v2369
      %v2397 = vpack.c.b16 %v2372, %v2371
      %v2398 = vpack.c.b16 %v2374, %v2373
      %v2399 = vpack.c.b16 %v2376, %v2375
      %v2400 = vpack.c.b16 %v2378, %v2377
      %v2401 = vpack.c.b16 %v2380, %v2379
      %v2402 = vpack.c.b16 %v2382, %v2381
      %v2403 = vpack.c.b16 %v2384, %v2383
      %v2404 = vpack.c.b16 %v2386, %v2385
      %v2405 = vpack.c.b16 %v2388, %v2387
      %v2406 = vpack.c.b16 %v2390, %v2389
      %v2439 = vunpack.c.l.b16 %v2311
      %v2440 = vunpack.c.l.b16 %v2312
      %v2441 = vunpack.c.l.b16 %v2313
      %v2442 = vunpack.c.l.b16 %v2314
      %v2443 = vunpack.c.l.b16 %v2315
      %v2444 = vunpack.c.l.b16 %v2316
      %v2445 = vunpack.c.l.b16 %v2317
      %v2446 = vunpack.c.l.b16 %v2318
      %v2447 = vunpack.c.l.b16 %v2319
      %v2448 = vunpack.c.l.b16 %v2320
      %v2449 = vunpack.c.l.b16 %v2321
      %v2450 = vunpack.c.l.b16 %v2322
      %v2451 = vunpack.c.l.b16 %v2323
      %v2452 = vunpack.c.l.b16 %v2324
      %v2453 = vunpack.c.l.b16 %v2325
      %v2454 = vunpack.c.l.b16 %v2326
      %v2455 = vpack.c.b16 %v2440, %v2439
      %v2456 = vpack.c.b16 %v2442, %v2441
      %v2457 = vpack.c.b16 %v2444, %v2443
      %v2458 = vpack.c.b16 %v2446, %v2445
      %v2459 = vpack.c.b16 %v2448, %v2447
      %v2460 = vpack.c.b16 %v2450, %v2449
      %v2461 = vpack.c.b16 %v2452, %v2451
      %v2462 = vpack.c.b16 %v2454, %v2453
      %2471 = vmatprep.subr.bf16.mxu0 0
      %2472 = vmatpush1.bf16.msra.mxu0 %v2462
      %2473 = vmatprep.subr.bf16.mxu0 0
      %2474 = vmatpush1.bf16.msra.mxu0 %v2461
      %2475 = vmatprep.subr.bf16.mxu0 0
      %2476 = vmatpush1.bf16.msra.mxu0 %v2460
      %2477 = vmatprep.subr.bf16.mxu0 0
      %2478 = vmatpush1.bf16.msra.mxu0 %v2459
      %2479 = vmatprep.subr.bf16.mxu0 0
      %2480 = vmatpush1.bf16.msra.mxu0 %v2458
      %2481 = vmatprep.subr.bf16.mxu0 0
      %2482 = vmatpush1.bf16.msra.mxu0 %v2457
      %2483 = vmatprep.subr.bf16.mxu0 0
      %2484 = vmatpush1.bf16.msra.mxu0 %v2456
      %2485 = vmatprep.subr.bf16.mxu0 0
      %2486 = vmatpush1.bf16.msra.mxu0 %v2455
      %2487 = vmatprep.subr.bf16.mxu0 0
      %2488 = vmatpush2.bf16.msra.mxu0 0
      %2489 = vmatprep.subr.bf16.mxu0 0
      %2490 = vmatpush2.bf16.msra.mxu0 0
      %2491 = vmatprep.subr.bf16.mxu0 0
      %2492 = vmatpush2.bf16.msra.mxu0 0
      %2493 = vmatprep.subr.bf16.mxu0 0
      %2494 = vmatpush2.bf16.msra.mxu0 0
      %2495 = vmatprep.subr.bf16.mxu0 0
      %2496 = vmatpush2.bf16.msra.mxu0 0
      %2497 = vmatprep.subr.bf16.mxu0 0
      %2498 = vmatpush2.bf16.msra.mxu0 0
      %2499 = vmatprep.subr.bf16.mxu0 0
      %2500 = vmatpush2.bf16.msra.mxu0 0
      %2501 = vmatprep.subr.bf16.mxu0 0
      %2502 = vmatpush2.bf16.msra.mxu0 0
      %2503 = vmatprep.mubr.bf16.mxu0 0
      %2504 = vmatmul.mubr.bf16.gmra.mxu0 %v2391
      %v2505 = vpop.f32.mrf.mxu0
      %v2506 = vadd.f32 0.0, %v2505
      %v2507 = vpop.f32.mrf.mxu0
      %v2508 = vpop.f32.mrf.mxu0
      %v2509 = vadd.f32 0.0, %v2508
      %v2510 = vpop.f32.mrf.mxu0
      %2511 = vmatprep.mubr.bf16.mxu0 0
      %2512 = vmatmul.mubr.bf16.gmra.mxu0 %v2392
      %v2513 = vpop.f32.mrf.mxu0
      %v2514 = vadd.f32 0.0, %v2513
      %v2515 = vpop.f32.mrf.mxu0
      %v2516 = vpop.f32.mrf.mxu0
      %v2517 = vadd.f32 0.0, %v2516
      %v2518 = vpop.f32.mrf.mxu0
      %2519 = vmatprep.mubr.bf16.mxu0 0
      %2520 = vmatmul.mubr.bf16.gmra.mxu0 %v2393
      %v2521 = vpop.f32.mrf.mxu0
      %v2522 = vadd.f32 0.0, %v2521
      %v2523 = vpop.f32.mrf.mxu0
      %v2524 = vpop.f32.mrf.mxu0
      %v2525 = vadd.f32 0.0, %v2524
      %v2526 = vpop.f32.mrf.mxu0
      %2527 = vmatprep.mubr.bf16.mxu0 0
      %2528 = vmatmul.mubr.bf16.gmra.mxu0 %v2394
      %v2529 = vpop.f32.mrf.mxu0
      %v2530 = vadd.f32 0.0, %v2529
      %v2531 = vpop.f32.mrf.mxu0
      %v2532 = vpop.f32.mrf.mxu0
      %v2533 = vadd.f32 0.0, %v2532
      %v2534 = vpop.f32.mrf.mxu0
      %2535 = vmatprep.mubr.bf16.mxu0 0
      %2536 = vmatmul.mubr.bf16.gmra.mxu0 %v2395
      %v2537 = vpop.f32.mrf.mxu0
      %v2538 = vadd.f32 0.0, %v2537
      %v2539 = vpop.f32.mrf.mxu0
      %v2540 = vpop.f32.mrf.mxu0
      %v2541 = vadd.f32 0.0, %v2540
      %v2542 = vpop.f32.mrf.mxu0
      %2543 = vmatprep.mubr.bf16.mxu0 0
      %2544 = vmatmul.mubr.bf16.gmra.mxu0 %v2396
      %v2545 = vpop.f32.mrf.mxu0
      %v2546 = vadd.f32 0.0, %v2545
      %v2547 = vpop.f32.mrf.mxu0
      %v2548 = vpop.f32.mrf.mxu0
      %v2549 = vadd.f32 0.0, %v2548
      %v2550 = vpop.f32.mrf.mxu0
      %2551 = vmatprep.mubr.bf16.mxu0 0
      %2552 = vmatmul.mubr.bf16.gmra.mxu0 %v2397
      %v2553 = vpop.f32.mrf.mxu0
      %v2554 = vadd.f32 0.0, %v2553
      %v2555 = vpop.f32.mrf.mxu0
      %v2556 = vpop.f32.mrf.mxu0
      %v2557 = vadd.f32 0.0, %v2556
      %v2558 = vpop.f32.mrf.mxu0
      %2559 = vmatprep.mubr.bf16.mxu0 0
      %2560 = vmatmul.mubr.bf16.gmra.mxu0 %v2398
      %v2561 = vpop.f32.mrf.mxu0
      %v2562 = vadd.f32 0.0, %v2561
      %v2563 = vpop.f32.mrf.mxu0
      %v2564 = vpop.f32.mrf.mxu0
      %v2565 = vadd.f32 0.0, %v2564
      %v2566 = vpop.f32.mrf.mxu0
      %2567 = vmatprep.mubr.bf16.mxu0 0
      %2568 = vmatmul.mubr.bf16.gmra.mxu0 %v2399
      %v2569 = vpop.f32.mrf.mxu0
      %v2570 = vadd.f32 0.0, %v2569
      %v2571 = vpop.f32.mrf.mxu0
      %v2572 = vpop.f32.mrf.mxu0
      %v2573 = vadd.f32 0.0, %v2572
      %v2574 = vpop.f32.mrf.mxu0
      %2575 = vmatprep.mubr.bf16.mxu0 0
      %2576 = vmatmul.mubr.bf16.gmra.mxu0 %v2400
      %v2577 = vpop.f32.mrf.mxu0
      %v2578 = vadd.f32 0.0, %v2577
      %v2579 = vpop.f32.mrf.mxu0
      %v2580 = vpop.f32.mrf.mxu0
      %v2581 = vadd.f32 0.0, %v2580
      %v2582 = vpop.f32.mrf.mxu0
      %2583 = vmatprep.mubr.bf16.mxu0 0
      %2584 = vmatmul.mubr.bf16.gmra.mxu0 %v2401
      %v2585 = vpop.f32.mrf.mxu0
      %v2586 = vadd.f32 0.0, %v2585
      %v2587 = vpop.f32.mrf.mxu0
      %v2588 = vpop.f32.mrf.mxu0
      %v2589 = vadd.f32 0.0, %v2588
      %v2590 = vpop.f32.mrf.mxu0
      %2591 = vmatprep.mubr.bf16.mxu0 0
      %2592 = vmatmul.mubr.bf16.gmra.mxu0 %v2402
      %v2593 = vpop.f32.mrf.mxu0
      %v2594 = vadd.f32 0.0, %v2593
      %v2595 = vpop.f32.mrf.mxu0
      %v2596 = vpop.f32.mrf.mxu0
      %v2597 = vadd.f32 0.0, %v2596
      %v2598 = vpop.f32.mrf.mxu0
      %2599 = vmatprep.mubr.bf16.mxu0 0
      %2600 = vmatmul.mubr.bf16.gmra.mxu0 %v2403
      %v2601 = vpop.f32.mrf.mxu0
      %v2602 = vadd.f32 0.0, %v2601
      %v2603 = vpop.f32.mrf.mxu0
      %v2604 = vpop.f32.mrf.mxu0
      %v2605 = vadd.f32 0.0, %v2604
      %v2606 = vpop.f32.mrf.mxu0
      %2607 = vmatprep.mubr.bf16.mxu0 0
      %2608 = vmatmul.mubr.bf16.gmra.mxu0 %v2404
      %v2609 = vpop.f32.mrf.mxu0
      %v2610 = vadd.f32 0.0, %v2609
      %v2611 = vpop.f32.mrf.mxu0
      %v2612 = vpop.f32.mrf.mxu0
      %v2613 = vadd.f32 0.0, %v2612
      %v2614 = vpop.f32.mrf.mxu0
      %2615 = vmatprep.mubr.bf16.mxu0 0
      %2616 = vmatmul.mubr.bf16.gmra.mxu0 %v2405
      %v2617 = vpop.f32.mrf.mxu0
      %v2618 = vadd.f32 0.0, %v2617
      %v2619 = vpop.f32.mrf.mxu0
      %v2620 = vpop.f32.mrf.mxu0
      %v2621 = vadd.f32 0.0, %v2620
      %v2622 = vpop.f32.mrf.mxu0
      %2623 = vmatprep.mubr.bf16.mxu0 0
      %2624 = vmatmul.mubr.bf16.gmra.mxu0 %v2406
      %v2625 = vpop.f32.mrf.mxu0
      %v2626 = vadd.f32 0.0, %v2625
      %v2627 = vpop.f32.mrf.mxu0
      %v2628 = vpop.f32.mrf.mxu0
      %v2629 = vadd.f32 0.0, %v2628
      %v2630 = vpop.f32.mrf.mxu0
      %2631 = vdwg.mxu0
      %v2632 = vld [vmem:[#allocation5] sm:$0xff]
      %v2633 = vld [vmem:[#allocation5 + $0x8] sm:$0xff]
      %v2634 = vld [vmem:[#allocation5 + $0x10] sm:$0xff]
      %v2635 = vld [vmem:[#allocation5 + $0x18] sm:$0xff]
      %v2636 = vld [vmem:[#allocation5 + $0x20] sm:$0xff]
      %v2637 = vld [vmem:[#allocation5 + $0x28] sm:$0xff]
      %v2638 = vld [vmem:[#allocation5 + $0x30] sm:$0xff]
      %v2639 = vld [vmem:[#allocation5 + $0x38] sm:$0xff]
      %v2640 = vld [vmem:[#allocation5 + $0x40] sm:$0xff]
      %v2641 = vld [vmem:[#allocation5 + $0x48] sm:$0xff]
      %v2642 = vld [vmem:[#allocation5 + $0x50] sm:$0xff]
      %v2643 = vld [vmem:[#allocation5 + $0x58] sm:$0xff]
      %v2644 = vld [vmem:[#allocation5 + $0x60] sm:$0xff]
      %v2645 = vld [vmem:[#allocation5 + $0x68] sm:$0xff]
      %v2646 = vld [vmem:[#allocation5 + $0x70] sm:$0xff]
      %v2647 = vld [vmem:[#allocation5 + $0x78] sm:$0xff]
      %v2648 = vld [vmem:[#allocation5 + $0x80] sm:$0xff]
      %v2649 = vld [vmem:[#allocation5 + $0x88] sm:$0xff]
      %v2650 = vld [vmem:[#allocation5 + $0x90] sm:$0xff]
      %v2651 = vld [vmem:[#allocation5 + $0x98] sm:$0xff]
      %v2652 = vld [vmem:[#allocation5 + $0xa0] sm:$0xff]
      %v2653 = vld [vmem:[#allocation5 + $0xa8] sm:$0xff]
      %v2654 = vld [vmem:[#allocation5 + $0xb0] sm:$0xff]
      %v2655 = vld [vmem:[#allocation5 + $0xb8] sm:$0xff]
      %v2656 = vld [vmem:[#allocation5 + $0xc0] sm:$0xff]
      %v2657 = vld [vmem:[#allocation5 + $0xc8] sm:$0xff]
      %v2658 = vld [vmem:[#allocation5 + $0xd0] sm:$0xff]
      %v2659 = vld [vmem:[#allocation5 + $0xd8] sm:$0xff]
      %v2660 = vld [vmem:[#allocation5 + $0xe0] sm:$0xff]
      %v2661 = vld [vmem:[#allocation5 + $0xe8] sm:$0xff]
      %v2662 = vld [vmem:[#allocation5 + $0xf0] sm:$0xff]
      %v2663 = vld [vmem:[#allocation5 + $0xf8] sm:$0xff]
      %v2664 = vadd.f32 %v2632, %v2506
      %v2665 = vadd.f32 %v2633, %v2509
      %v2666 = vadd.f32 %v2634, %v2514
      %v2667 = vadd.f32 %v2635, %v2517
      %v2668 = vadd.f32 %v2636, %v2522
      %v2669 = vadd.f32 %v2637, %v2525
      %v2670 = vadd.f32 %v2638, %v2530
      %v2671 = vadd.f32 %v2639, %v2533
      %v2672 = vadd.f32 %v2640, %v2538
      %v2673 = vadd.f32 %v2641, %v2541
      %v2674 = vadd.f32 %v2642, %v2546
      %v2675 = vadd.f32 %v2643, %v2549
      %v2676 = vadd.f32 %v2644, %v2554
      %v2677 = vadd.f32 %v2645, %v2557
      %v2678 = vadd.f32 %v2646, %v2562
      %v2679 = vadd.f32 %v2647, %v2565
      %v2680 = vadd.f32 %v2648, %v2570
      %v2681 = vadd.f32 %v2649, %v2573
      %v2682 = vadd.f32 %v2650, %v2578
      %v2683 = vadd.f32 %v2651, %v2581
      %v2684 = vadd.f32 %v2652, %v2586
      %v2685 = vadd.f32 %v2653, %v2589
      %v2686 = vadd.f32 %v2654, %v2594
      %v2687 = vadd.f32 %v2655, %v2597
      %v2688 = vadd.f32 %v2656, %v2602
      %v2689 = vadd.f32 %v2657, %v2605
      %v2690 = vadd.f32 %v2658, %v2610
      %v2691 = vadd.f32 %v2659, %v2613
      %v2692 = vadd.f32 %v2660, %v2618
      %v2693 = vadd.f32 %v2661, %v2621
      %v2694 = vadd.f32 %v2662, %v2626
      %v2695 = vadd.f32 %v2663, %v2629
      %2696 = vst [vmem:[#allocation5] sm:$0xff] %v2664
      %2697 = vst [vmem:[#allocation5 + $0x8] sm:$0xff] %v2665
      %2698 = vst [vmem:[#allocation5 + $0x10] sm:$0xff] %v2666
      %2699 = vst [vmem:[#allocation5 + $0x18] sm:$0xff] %v2667
      %2700 = vst [vmem:[#allocation5 + $0x20] sm:$0xff] %v2668
      %2701 = vst [vmem:[#allocation5 + $0x28] sm:$0xff] %v2669
      %2702 = vst [vmem:[#allocation5 + $0x30] sm:$0xff] %v2670
      %2703 = vst [vmem:[#allocation5 + $0x38] sm:$0xff] %v2671
      %2704 = vst [vmem:[#allocation5 + $0x40] sm:$0xff] %v2672
      %2705 = vst [vmem:[#allocation5 + $0x48] sm:$0xff] %v2673
      %2706 = vst [vmem:[#allocation5 + $0x50] sm:$0xff] %v2674
      %2707 = vst [vmem:[#allocation5 + $0x58] sm:$0xff] %v2675
      %2708 = vst [vmem:[#allocation5 + $0x60] sm:$0xff] %v2676
      %2709 = vst [vmem:[#allocation5 + $0x68] sm:$0xff] %v2677
      %2710 = vst [vmem:[#allocation5 + $0x70] sm:$0xff] %v2678
      %2711 = vst [vmem:[#allocation5 + $0x78] sm:$0xff] %v2679
      %2712 = vst [vmem:[#allocation5 + $0x80] sm:$0xff] %v2680
      %2713 = vst [vmem:[#allocation5 + $0x88] sm:$0xff] %v2681
      %2714 = vst [vmem:[#allocation5 + $0x90] sm:$0xff] %v2682
      %2715 = vst [vmem:[#allocation5 + $0x98] sm:$0xff] %v2683
      %2716 = vst [vmem:[#allocation5 + $0xa0] sm:$0xff] %v2684
      %2717 = vst [vmem:[#allocation5 + $0xa8] sm:$0xff] %v2685
      %2718 = vst [vmem:[#allocation5 + $0xb0] sm:$0xff] %v2686
      %2719 = vst [vmem:[#allocation5 + $0xb8] sm:$0xff] %v2687
      %2720 = vst [vmem:[#allocation5 + $0xc0] sm:$0xff] %v2688
      %2721 = vst [vmem:[#allocation5 + $0xc8] sm:$0xff] %v2689
      %2722 = vst [vmem:[#allocation5 + $0xd0] sm:$0xff] %v2690
      %2723 = vst [vmem:[#allocation5 + $0xd8] sm:$0xff] %v2691
      %2724 = vst [vmem:[#allocation5 + $0xe0] sm:$0xff] %v2692
      %2725 = vst [vmem:[#allocation5 + $0xe8] sm:$0xff] %v2693
      %2726 = vst [vmem:[#allocation5 + $0xf0] sm:$0xff] %v2694
      %2727 = vst [vmem:[#allocation5 + $0xf8] sm:$0xff] %v2695
      %v2728 = vld [vmem:[#allocation4] sm:$0xf]
      %v2729 = vld [vmem:[#allocation4 + $0x4] sm:$0xf]
      %v2730 = vld [vmem:[#allocation4 + $0x8] sm:$0xf]
      %v2731 = vld [vmem:[#allocation4 + $0xc] sm:$0xf]
      %v2732 = vld [vmem:[#allocation4 + $0x10] sm:$0xf]
      %v2733 = vld [vmem:[#allocation4 + $0x14] sm:$0xf]
      %v2734 = vld [vmem:[#allocation4 + $0x18] sm:$0xf]
      %v2735 = vld [vmem:[#allocation4 + $0x1c] sm:$0xf]
      %v2736 = vld [vmem:[#allocation4 + $0x20] sm:$0xf]
      %v2737 = vld [vmem:[#allocation4 + $0x24] sm:$0xf]
      %v2738 = vld [vmem:[#allocation4 + $0x28] sm:$0xf]
      %v2739 = vld [vmem:[#allocation4 + $0x2c] sm:$0xf]
      %v2740 = vld [vmem:[#allocation4 + $0x30] sm:$0xf]
      %v2741 = vld [vmem:[#allocation4 + $0x34] sm:$0xf]
      %v2742 = vld [vmem:[#allocation4 + $0x38] sm:$0xf]
      %v2743 = vld [vmem:[#allocation4 + $0x3c] sm:$0xf]
      %v2744 = vld [vmem:[#allocation4 + $0x40] sm:$0xf]
      %v2745 = vld [vmem:[#allocation4 + $0x44] sm:$0xf]
      %v2746 = vld [vmem:[#allocation4 + $0x48] sm:$0xf]
      %v2747 = vld [vmem:[#allocation4 + $0x4c] sm:$0xf]
      %v2748 = vld [vmem:[#allocation4 + $0x50] sm:$0xf]
      %v2749 = vld [vmem:[#allocation4 + $0x54] sm:$0xf]
      %v2750 = vld [vmem:[#allocation4 + $0x58] sm:$0xf]
      %v2751 = vld [vmem:[#allocation4 + $0x5c] sm:$0xf]
      %v2752 = vld [vmem:[#allocation4 + $0x60] sm:$0xf]
      %v2753 = vld [vmem:[#allocation4 + $0x64] sm:$0xf]
      %v2754 = vld [vmem:[#allocation4 + $0x68] sm:$0xf]
      %v2755 = vld [vmem:[#allocation4 + $0x6c] sm:$0xf]
      %v2756 = vld [vmem:[#allocation4 + $0x70] sm:$0xf]
      %v2757 = vld [vmem:[#allocation4 + $0x74] sm:$0xf]
      %v2758 = vld [vmem:[#allocation4 + $0x78] sm:$0xf]
      %v2759 = vld [vmem:[#allocation4 + $0x7c] sm:$0xf]
      %s2760 = scalar_lea.vmem %s3, 128
      %v2761 = vld [vmem:[%s2760] sm:$0xf]
      %v2762 = vld [vmem:[%s2760 + $0x4] sm:$0xf]
      %v2763 = vld [vmem:[%s2760 + $0x8] sm:$0xf]
      %v2764 = vld [vmem:[%s2760 + $0xc] sm:$0xf]
      %v2765 = vld [vmem:[%s2760 + $0x10] sm:$0xf]
      %v2766 = vld [vmem:[%s2760 + $0x14] sm:$0xf]
      %v2767 = vld [vmem:[%s2760 + $0x18] sm:$0xf]
      %v2768 = vld [vmem:[%s2760 + $0x1c] sm:$0xf]
      %v2769 = vld [vmem:[%s2760 + $0x20] sm:$0xf]
      %v2770 = vld [vmem:[%s2760 + $0x24] sm:$0xf]
      %v2771 = vld [vmem:[%s2760 + $0x28] sm:$0xf]
      %v2772 = vld [vmem:[%s2760 + $0x2c] sm:$0xf]
      %v2773 = vld [vmem:[%s2760 + $0x30] sm:$0xf]
      %v2774 = vld [vmem:[%s2760 + $0x34] sm:$0xf]
      %v2775 = vld [vmem:[%s2760 + $0x38] sm:$0xf]
      %v2776 = vld [vmem:[%s2760 + $0x3c] sm:$0xf]
      %v2809 = vunpack.c.l.b16 %v2728
      %v2810 = vunpack.c.l.b16 %v2729
      %v2811 = vunpack.c.l.b16 %v2730
      %v2812 = vunpack.c.l.b16 %v2731
      %v2813 = vunpack.c.l.b16 %v2732
      %v2814 = vunpack.c.l.b16 %v2733
      %v2815 = vunpack.c.l.b16 %v2734
      %v2816 = vunpack.c.l.b16 %v2735
      %v2817 = vunpack.c.l.b16 %v2736
      %v2818 = vunpack.c.l.b16 %v2737
      %v2819 = vunpack.c.l.b16 %v2738
      %v2820 = vunpack.c.l.b16 %v2739
      %v2821 = vunpack.c.l.b16 %v2740
      %v2822 = vunpack.c.l.b16 %v2741
      %v2823 = vunpack.c.l.b16 %v2742
      %v2824 = vunpack.c.l.b16 %v2743
      %v2825 = vunpack.c.l.b16 %v2744
      %v2826 = vunpack.c.l.b16 %v2745
      %v2827 = vunpack.c.l.b16 %v2746
      %v2828 = vunpack.c.l.b16 %v2747
      %v2829 = vunpack.c.l.b16 %v2748
      %v2830 = vunpack.c.l.b16 %v2749
      %v2831 = vunpack.c.l.b16 %v2750
      %v2832 = vunpack.c.l.b16 %v2751
      %v2833 = vunpack.c.l.b16 %v2752
      %v2834 = vunpack.c.l.b16 %v2753
      %v2835 = vunpack.c.l.b16 %v2754
      %v2836 = vunpack.c.l.b16 %v2755
      %v2837 = vunpack.c.l.b16 %v2756
      %v2838 = vunpack.c.l.b16 %v2757
      %v2839 = vunpack.c.l.b16 %v2758
      %v2840 = vunpack.c.l.b16 %v2759
      %v2841 = vpack.c.b16 %v2810, %v2809
      %v2842 = vpack.c.b16 %v2812, %v2811
      %v2843 = vpack.c.b16 %v2814, %v2813
      %v2844 = vpack.c.b16 %v2816, %v2815
      %v2845 = vpack.c.b16 %v2818, %v2817
      %v2846 = vpack.c.b16 %v2820, %v2819
      %v2847 = vpack.c.b16 %v2822, %v2821
      %v2848 = vpack.c.b16 %v2824, %v2823
      %v2849 = vpack.c.b16 %v2826, %v2825
      %v2850 = vpack.c.b16 %v2828, %v2827
      %v2851 = vpack.c.b16 %v2830, %v2829
      %v2852 = vpack.c.b16 %v2832, %v2831
      %v2853 = vpack.c.b16 %v2834, %v2833
      %v2854 = vpack.c.b16 %v2836, %v2835
      %v2855 = vpack.c.b16 %v2838, %v2837
      %v2856 = vpack.c.b16 %v2840, %v2839
      %v2889 = vunpack.c.l.b16 %v2761
      %v2890 = vunpack.c.l.b16 %v2762
      %v2891 = vunpack.c.l.b16 %v2763
      %v2892 = vunpack.c.l.b16 %v2764
      %v2893 = vunpack.c.l.b16 %v2765
      %v2894 = vunpack.c.l.b16 %v2766
      %v2895 = vunpack.c.l.b16 %v2767
      %v2896 = vunpack.c.l.b16 %v2768
      %v2897 = vunpack.c.l.b16 %v2769
      %v2898 = vunpack.c.l.b16 %v2770
      %v2899 = vunpack.c.l.b16 %v2771
      %v2900 = vunpack.c.l.b16 %v2772
      %v2901 = vunpack.c.l.b16 %v2773
      %v2902 = vunpack.c.l.b16 %v2774
      %v2903 = vunpack.c.l.b16 %v2775
      %v2904 = vunpack.c.l.b16 %v2776
      %v2905 = vpack.c.b16 %v2890, %v2889
      %v2906 = vpack.c.b16 %v2892, %v2891
      %v2907 = vpack.c.b16 %v2894, %v2893
      %v2908 = vpack.c.b16 %v2896, %v2895
      %v2909 = vpack.c.b16 %v2898, %v2897
      %v2910 = vpack.c.b16 %v2900, %v2899
      %v2911 = vpack.c.b16 %v2902, %v2901
      %v2912 = vpack.c.b16 %v2904, %v2903
      %2921 = vmatprep.subr.bf16.mxu0 0
      %2922 = vmatpush1.bf16.msra.mxu0 %v2912
      %2923 = vmatprep.subr.bf16.mxu0 0
      %2924 = vmatpush1.bf16.msra.mxu0 %v2911
      %2925 = vmatprep.subr.bf16.mxu0 0
      %2926 = vmatpush1.bf16.msra.mxu0 %v2910
      %2927 = vmatprep.subr.bf16.mxu0 0
      %2928 = vmatpush1.bf16.msra.mxu0 %v2909
      %2929 = vmatprep.subr.bf16.mxu0 0
      %2930 = vmatpush1.bf16.msra.mxu0 %v2908
      %2931 = vmatprep.subr.bf16.mxu0 0
      %2932 = vmatpush1.bf16.msra.mxu0 %v2907
      %2933 = vmatprep.subr.bf16.mxu0 0
      %2934 = vmatpush1.bf16.msra.mxu0 %v2906
      %2935 = vmatprep.subr.bf16.mxu0 0
      %2936 = vmatpush1.bf16.msra.mxu0 %v2905
      %2937 = vmatprep.subr.bf16.mxu0 0
      %2938 = vmatpush2.bf16.msra.mxu0 0
      %2939 = vmatprep.subr.bf16.mxu0 0
      %2940 = vmatpush2.bf16.msra.mxu0 0
      %2941 = vmatprep.subr.bf16.mxu0 0
      %2942 = vmatpush2.bf16.msra.mxu0 0
      %2943 = vmatprep.subr.bf16.mxu0 0
      %2944 = vmatpush2.bf16.msra.mxu0 0
      %2945 = vmatprep.subr.bf16.mxu0 0
      %2946 = vmatpush2.bf16.msra.mxu0 0
      %2947 = vmatprep.subr.bf16.mxu0 0
      %2948 = vmatpush2.bf16.msra.mxu0 0
      %2949 = vmatprep.subr.bf16.mxu0 0
      %2950 = vmatpush2.bf16.msra.mxu0 0
      %2951 = vmatprep.subr.bf16.mxu0 0
      %2952 = vmatpush2.bf16.msra.mxu0 0
      %2953 = vmatprep.mubr.bf16.mxu0 0
      %2954 = vmatmul.mubr.bf16.gmra.mxu0 %v2841
      %v2955 = vpop.f32.mrf.mxu0
      %v2956 = vadd.f32 0.0, %v2955
      %v2957 = vpop.f32.mrf.mxu0
      %v2958 = vpop.f32.mrf.mxu0
      %v2959 = vadd.f32 0.0, %v2958
      %v2960 = vpop.f32.mrf.mxu0
      %2961 = vmatprep.mubr.bf16.mxu0 0
      %2962 = vmatmul.mubr.bf16.gmra.mxu0 %v2842
      %v2963 = vpop.f32.mrf.mxu0
      %v2964 = vadd.f32 0.0, %v2963
      %v2965 = vpop.f32.mrf.mxu0
      %v2966 = vpop.f32.mrf.mxu0
      %v2967 = vadd.f32 0.0, %v2966
      %v2968 = vpop.f32.mrf.mxu0
      %2969 = vmatprep.mubr.bf16.mxu0 0
      %2970 = vmatmul.mubr.bf16.gmra.mxu0 %v2843
      %v2971 = vpop.f32.mrf.mxu0
      %v2972 = vadd.f32 0.0, %v2971
      %v2973 = vpop.f32.mrf.mxu0
      %v2974 = vpop.f32.mrf.mxu0
      %v2975 = vadd.f32 0.0, %v2974
      %v2976 = vpop.f32.mrf.mxu0
      %2977 = vmatprep.mubr.bf16.mxu0 0
      %2978 = vmatmul.mubr.bf16.gmra.mxu0 %v2844
      %v2979 = vpop.f32.mrf.mxu0
      %v2980 = vadd.f32 0.0, %v2979
      %v2981 = vpop.f32.mrf.mxu0
      %v2982 = vpop.f32.mrf.mxu0
      %v2983 = vadd.f32 0.0, %v2982
      %v2984 = vpop.f32.mrf.mxu0
      %2985 = vmatprep.mubr.bf16.mxu0 0
      %2986 = vmatmul.mubr.bf16.gmra.mxu0 %v2845
      %v2987 = vpop.f32.mrf.mxu0
      %v2988 = vadd.f32 0.0, %v2987
      %v2989 = vpop.f32.mrf.mxu0
      %v2990 = vpop.f32.mrf.mxu0
      %v2991 = vadd.f32 0.0, %v2990
      %v2992 = vpop.f32.mrf.mxu0
      %2993 = vmatprep.mubr.bf16.mxu0 0
      %2994 = vmatmul.mubr.bf16.gmra.mxu0 %v2846
      %v2995 = vpop.f32.mrf.mxu0
      %v2996 = vadd.f32 0.0, %v2995
      %v2997 = vpop.f32.mrf.mxu0
      %v2998 = vpop.f32.mrf.mxu0
      %v2999 = vadd.f32 0.0, %v2998
      %v3000 = vpop.f32.mrf.mxu0
      %3001 = vmatprep.mubr.bf16.mxu0 0
      %3002 = vmatmul.mubr.bf16.gmra.mxu0 %v2847
      %v3003 = vpop.f32.mrf.mxu0
      %v3004 = vadd.f32 0.0, %v3003
      %v3005 = vpop.f32.mrf.mxu0
      %v3006 = vpop.f32.mrf.mxu0
      %v3007 = vadd.f32 0.0, %v3006
      %v3008 = vpop.f32.mrf.mxu0
      %3009 = vmatprep.mubr.bf16.mxu0 0
      %3010 = vmatmul.mubr.bf16.gmra.mxu0 %v2848
      %v3011 = vpop.f32.mrf.mxu0
      %v3012 = vadd.f32 0.0, %v3011
      %v3013 = vpop.f32.mrf.mxu0
      %v3014 = vpop.f32.mrf.mxu0
      %v3015 = vadd.f32 0.0, %v3014
      %v3016 = vpop.f32.mrf.mxu0
      %3017 = vmatprep.mubr.bf16.mxu0 0
      %3018 = vmatmul.mubr.bf16.gmra.mxu0 %v2849
      %v3019 = vpop.f32.mrf.mxu0
      %v3020 = vadd.f32 0.0, %v3019
      %v3021 = vpop.f32.mrf.mxu0
      %v3022 = vpop.f32.mrf.mxu0
      %v3023 = vadd.f32 0.0, %v3022
      %v3024 = vpop.f32.mrf.mxu0
      %3025 = vmatprep.mubr.bf16.mxu0 0
      %3026 = vmatmul.mubr.bf16.gmra.mxu0 %v2850
      %v3027 = vpop.f32.mrf.mxu0
      %v3028 = vadd.f32 0.0, %v3027
      %v3029 = vpop.f32.mrf.mxu0
      %v3030 = vpop.f32.mrf.mxu0
      %v3031 = vadd.f32 0.0, %v3030
      %v3032 = vpop.f32.mrf.mxu0
      %3033 = vmatprep.mubr.bf16.mxu0 0
      %3034 = vmatmul.mubr.bf16.gmra.mxu0 %v2851
      %v3035 = vpop.f32.mrf.mxu0
      %v3036 = vadd.f32 0.0, %v3035
      %v3037 = vpop.f32.mrf.mxu0
      %v3038 = vpop.f32.mrf.mxu0
      %v3039 = vadd.f32 0.0, %v3038
      %v3040 = vpop.f32.mrf.mxu0
      %3041 = vmatprep.mubr.bf16.mxu0 0
      %3042 = vmatmul.mubr.bf16.gmra.mxu0 %v2852
      %v3043 = vpop.f32.mrf.mxu0
      %v3044 = vadd.f32 0.0, %v3043
      %v3045 = vpop.f32.mrf.mxu0
      %v3046 = vpop.f32.mrf.mxu0
      %v3047 = vadd.f32 0.0, %v3046
      %v3048 = vpop.f32.mrf.mxu0
      %3049 = vmatprep.mubr.bf16.mxu0 0
      %3050 = vmatmul.mubr.bf16.gmra.mxu0 %v2853
      %v3051 = vpop.f32.mrf.mxu0
      %v3052 = vadd.f32 0.0, %v3051
      %v3053 = vpop.f32.mrf.mxu0
      %v3054 = vpop.f32.mrf.mxu0
      %v3055 = vadd.f32 0.0, %v3054
      %v3056 = vpop.f32.mrf.mxu0
      %3057 = vmatprep.mubr.bf16.mxu0 0
      %3058 = vmatmul.mubr.bf16.gmra.mxu0 %v2854
      %v3059 = vpop.f32.mrf.mxu0
      %v3060 = vadd.f32 0.0, %v3059
      %v3061 = vpop.f32.mrf.mxu0
      %v3062 = vpop.f32.mrf.mxu0
      %v3063 = vadd.f32 0.0, %v3062
      %v3064 = vpop.f32.mrf.mxu0
      %3065 = vmatprep.mubr.bf16.mxu0 0
      %3066 = vmatmul.mubr.bf16.gmra.mxu0 %v2855
      %v3067 = vpop.f32.mrf.mxu0
      %v3068 = vadd.f32 0.0, %v3067
      %v3069 = vpop.f32.mrf.mxu0
      %v3070 = vpop.f32.mrf.mxu0
      %v3071 = vadd.f32 0.0, %v3070
      %v3072 = vpop.f32.mrf.mxu0
      %3073 = vmatprep.mubr.bf16.mxu0 0
      %3074 = vmatmul.mubr.bf16.gmra.mxu0 %v2856
      %v3075 = vpop.f32.mrf.mxu0
      %v3076 = vadd.f32 0.0, %v3075
      %v3077 = vpop.f32.mrf.mxu0
      %v3078 = vpop.f32.mrf.mxu0
      %v3079 = vadd.f32 0.0, %v3078
      %v3080 = vpop.f32.mrf.mxu0
      %3081 = vdwg.mxu0
      %v3082 = vld [vmem:[#allocation5] sm:$0xff]
      %v3083 = vld [vmem:[#allocation5 + $0x8] sm:$0xff]
      %v3084 = vld [vmem:[#allocation5 + $0x10] sm:$0xff]
      %v3085 = vld [vmem:[#allocation5 + $0x18] sm:$0xff]
      %v3086 = vld [vmem:[#allocation5 + $0x20] sm:$0xff]
      %v3087 = vld [vmem:[#allocation5 + $0x28] sm:$0xff]
      %v3088 = vld [vmem:[#allocation5 + $0x30] sm:$0xff]
      %v3089 = vld [vmem:[#allocation5 + $0x38] sm:$0xff]
      %v3090 = vld [vmem:[#allocation5 + $0x40] sm:$0xff]
      %v3091 = vld [vmem:[#allocation5 + $0x48] sm:$0xff]
      %v3092 = vld [vmem:[#allocation5 + $0x50] sm:$0xff]
      %v3093 = vld [vmem:[#allocation5 + $0x58] sm:$0xff]
      %v3094 = vld [vmem:[#allocation5 + $0x60] sm:$0xff]
      %v3095 = vld [vmem:[#allocation5 + $0x68] sm:$0xff]
      %v3096 = vld [vmem:[#allocation5 + $0x70] sm:$0xff]
      %v3097 = vld [vmem:[#allocation5 + $0x78] sm:$0xff]
      %v3098 = vld [vmem:[#allocation5 + $0x80] sm:$0xff]
      %v3099 = vld [vmem:[#allocation5 + $0x88] sm:$0xff]
      %v3100 = vld [vmem:[#allocation5 + $0x90] sm:$0xff]
      %v3101 = vld [vmem:[#allocation5 + $0x98] sm:$0xff]
      %v3102 = vld [vmem:[#allocation5 + $0xa0] sm:$0xff]
      %v3103 = vld [vmem:[#allocation5 + $0xa8] sm:$0xff]
      %v3104 = vld [vmem:[#allocation5 + $0xb0] sm:$0xff]
      %v3105 = vld [vmem:[#allocation5 + $0xb8] sm:$0xff]
      %v3106 = vld [vmem:[#allocation5 + $0xc0] sm:$0xff]
      %v3107 = vld [vmem:[#allocation5 + $0xc8] sm:$0xff]
      %v3108 = vld [vmem:[#allocation5 + $0xd0] sm:$0xff]
      %v3109 = vld [vmem:[#allocation5 + $0xd8] sm:$0xff]
      %v3110 = vld [vmem:[#allocation5 + $0xe0] sm:$0xff]
      %v3111 = vld [vmem:[#allocation5 + $0xe8] sm:$0xff]
      %v3112 = vld [vmem:[#allocation5 + $0xf0] sm:$0xff]
      %v3113 = vld [vmem:[#allocation5 + $0xf8] sm:$0xff]
      %v3114 = vadd.f32 %v3082, %v2956
      %v3115 = vadd.f32 %v3083, %v2959
      %v3116 = vadd.f32 %v3084, %v2964
      %v3117 = vadd.f32 %v3085, %v2967
      %v3118 = vadd.f32 %v3086, %v2972
      %v3119 = vadd.f32 %v3087, %v2975
      %v3120 = vadd.f32 %v3088, %v2980
      %v3121 = vadd.f32 %v3089, %v2983
      %v3122 = vadd.f32 %v3090, %v2988
      %v3123 = vadd.f32 %v3091, %v2991
      %v3124 = vadd.f32 %v3092, %v2996
      %v3125 = vadd.f32 %v3093, %v2999
      %v3126 = vadd.f32 %v3094, %v3004
      %v3127 = vadd.f32 %v3095, %v3007
      %v3128 = vadd.f32 %v3096, %v3012
      %v3129 = vadd.f32 %v3097, %v3015
      %v3130 = vadd.f32 %v3098, %v3020
      %v3131 = vadd.f32 %v3099, %v3023
      %v3132 = vadd.f32 %v3100, %v3028
      %v3133 = vadd.f32 %v3101, %v3031
      %v3134 = vadd.f32 %v3102, %v3036
      %v3135 = vadd.f32 %v3103, %v3039
      %v3136 = vadd.f32 %v3104, %v3044
      %v3137 = vadd.f32 %v3105, %v3047
      %v3138 = vadd.f32 %v3106, %v3052
      %v3139 = vadd.f32 %v3107, %v3055
      %v3140 = vadd.f32 %v3108, %v3060
      %v3141 = vadd.f32 %v3109, %v3063
      %v3142 = vadd.f32 %v3110, %v3068
      %v3143 = vadd.f32 %v3111, %v3071
      %v3144 = vadd.f32 %v3112, %v3076
      %v3145 = vadd.f32 %v3113, %v3079
      %3146 = vst [vmem:[#allocation5] sm:$0xff] %v3114
      %3147 = vst [vmem:[#allocation5 + $0x8] sm:$0xff] %v3115
      %3148 = vst [vmem:[#allocation5 + $0x10] sm:$0xff] %v3116
      %3149 = vst [vmem:[#allocation5 + $0x18] sm:$0xff] %v3117
      %3150 = vst [vmem:[#allocation5 + $0x20] sm:$0xff] %v3118
      %3151 = vst [vmem:[#allocation5 + $0x28] sm:$0xff] %v3119
      %3152 = vst [vmem:[#allocation5 + $0x30] sm:$0xff] %v3120
      %3153 = vst [vmem:[#allocation5 + $0x38] sm:$0xff] %v3121
      %3154 = vst [vmem:[#allocation5 + $0x40] sm:$0xff] %v3122
      %3155 = vst [vmem:[#allocation5 + $0x48] sm:$0xff] %v3123
      %3156 = vst [vmem:[#allocation5 + $0x50] sm:$0xff] %v3124
      %3157 = vst [vmem:[#allocation5 + $0x58] sm:$0xff] %v3125
      %3158 = vst [vmem:[#allocation5 + $0x60] sm:$0xff] %v3126
      %3159 = vst [vmem:[#allocation5 + $0x68] sm:$0xff] %v3127
      %3160 = vst [vmem:[#allocation5 + $0x70] sm:$0xff] %v3128
      %3161 = vst [vmem:[#allocation5 + $0x78] sm:$0xff] %v3129
      %3162 = vst [vmem:[#allocation5 + $0x80] sm:$0xff] %v3130
      %3163 = vst [vmem:[#allocation5 + $0x88] sm:$0xff] %v3131
      %3164 = vst [vmem:[#allocation5 + $0x90] sm:$0xff] %v3132
      %3165 = vst [vmem:[#allocation5 + $0x98] sm:$0xff] %v3133
      %3166 = vst [vmem:[#allocation5 + $0xa0] sm:$0xff] %v3134
      %3167 = vst [vmem:[#allocation5 + $0xa8] sm:$0xff] %v3135
      %3168 = vst [vmem:[#allocation5 + $0xb0] sm:$0xff] %v3136
      %3169 = vst [vmem:[#allocation5 + $0xb8] sm:$0xff] %v3137
      %3170 = vst [vmem:[#allocation5 + $0xc0] sm:$0xff] %v3138
      %3171 = vst [vmem:[#allocation5 + $0xc8] sm:$0xff] %v3139
      %3172 = vst [vmem:[#allocation5 + $0xd0] sm:$0xff] %v3140
      %3173 = vst [vmem:[#allocation5 + $0xd8] sm:$0xff] %v3141
      %3174 = vst [vmem:[#allocation5 + $0xe0] sm:$0xff] %v3142
      %3175 = vst [vmem:[#allocation5 + $0xe8] sm:$0xff] %v3143
      %3176 = vst [vmem:[#allocation5 + $0xf0] sm:$0xff] %v3144
      %3177 = vst [vmem:[#allocation5 + $0xf8] sm:$0xff] %v3145
      %v3178 = vld [vmem:[#allocation2 + $0x8] sm:$0xf]
      %v3179 = vld [vmem:[#allocation2 + $0xc] sm:$0xf]
      %v3180 = vld [vmem:[#allocation2 + $0x10] sm:$0xf]
      %v3181 = vld [vmem:[#allocation2 + $0x14] sm:$0xf]
      %v3182 = vld [vmem:[#allocation2 + $0x18] sm:$0xf]
      %v3183 = vld [vmem:[#allocation2 + $0x1c] sm:$0xf]
      %v3184 = vld [vmem:[#allocation2 + $0x20] sm:$0xf]
      %v3185 = vld [vmem:[#allocation2 + $0x24] sm:$0xf]
      %v3186 = vld [vmem:[#allocation2 + $0x28] sm:$0xf]
      %v3187 = vld [vmem:[#allocation2 + $0x2c] sm:$0xf]
      %v3188 = vld [vmem:[#allocation2 + $0x30] sm:$0xf]
      %v3189 = vld [vmem:[#allocation2 + $0x34] sm:$0xf]
      %v3190 = vld [vmem:[#allocation2 + $0x38] sm:$0xf]
      %v3191 = vld [vmem:[#allocation2 + $0x3c] sm:$0xf]
      %v3192 = vld [vmem:[#allocation2 + $0x40] sm:$0xf]
      %v3193 = vld [vmem:[#allocation2 + $0x44] sm:$0xf]
      %v3194 = vld [vmem:[#allocation2 + $0x48] sm:$0xf]
      %v3195 = vld [vmem:[#allocation2 + $0x4c] sm:$0xf]
      %v3196 = vld [vmem:[#allocation2 + $0x50] sm:$0xf]
      %v3197 = vld [vmem:[#allocation2 + $0x54] sm:$0xf]
      %v3198 = vld [vmem:[#allocation2 + $0x58] sm:$0xf]
      %v3199 = vld [vmem:[#allocation2 + $0x5c] sm:$0xf]
      %v3200 = vld [vmem:[#allocation2 + $0x60] sm:$0xf]
      %v3201 = vld [vmem:[#allocation2 + $0x64] sm:$0xf]
      %v3202 = vld [vmem:[#allocation2 + $0x68] sm:$0xf]
      %v3203 = vld [vmem:[#allocation2 + $0x6c] sm:$0xf]
      %v3204 = vld [vmem:[#allocation2 + $0x70] sm:$0xf]
      %v3205 = vld [vmem:[#allocation2 + $0x74] sm:$0xf]
      %v3206 = vld [vmem:[#allocation2 + $0x78] sm:$0xf]
      %v3207 = vld [vmem:[#allocation2 + $0x7c] sm:$0xf]
      %v3208 = vld [vmem:[#allocation2 + $0x80] sm:$0xf]
      %v3209 = vld [vmem:[#allocation2 + $0x84] sm:$0xf]
      %s3210 = scalar_lea.vmem %s3, 192
      %v3211 = vld [vmem:[%s3210] sm:$0xf]
      %v3212 = vld [vmem:[%s3210 + $0x4] sm:$0xf]
      %v3213 = vld [vmem:[%s3210 + $0x8] sm:$0xf]
      %v3214 = vld [vmem:[%s3210 + $0xc] sm:$0xf]
      %v3215 = vld [vmem:[%s3210 + $0x10] sm:$0xf]
      %v3216 = vld [vmem:[%s3210 + $0x14] sm:$0xf]
      %v3217 = vld [vmem:[%s3210 + $0x18] sm:$0xf]
      %v3218 = vld [vmem:[%s3210 + $0x1c] sm:$0xf]
      %v3219 = vld [vmem:[%s3210 + $0x20] sm:$0xf]
      %v3220 = vld [vmem:[%s3210 + $0x24] sm:$0xf]
      %v3221 = vld [vmem:[%s3210 + $0x28] sm:$0xf]
      %v3222 = vld [vmem:[%s3210 + $0x2c] sm:$0xf]
      %v3223 = vld [vmem:[%s3210 + $0x30] sm:$0xf]
      %v3224 = vld [vmem:[%s3210 + $0x34] sm:$0xf]
      %v3225 = vld [vmem:[%s3210 + $0x38] sm:$0xf]
      %v3226 = vld [vmem:[%s3210 + $0x3c] sm:$0xf]
      %v3259 = vunpack.c.l.b16 %v3178
      %v3260 = vunpack.c.l.b16 %v3179
      %v3261 = vunpack.c.l.b16 %v3180
      %v3262 = vunpack.c.l.b16 %v3181
      %v3263 = vunpack.c.l.b16 %v3182
      %v3264 = vunpack.c.l.b16 %v3183
      %v3265 = vunpack.c.l.b16 %v3184
      %v3266 = vunpack.c.l.b16 %v3185
      %v3267 = vunpack.c.l.b16 %v3186
      %v3268 = vunpack.c.l.b16 %v3187
      %v3269 = vunpack.c.l.b16 %v3188
      %v3270 = vunpack.c.l.b16 %v3189
      %v3271 = vunpack.c.l.b16 %v3190
      %v3272 = vunpack.c.l.b16 %v3191
      %v3273 = vunpack.c.l.b16 %v3192
      %v3274 = vunpack.c.l.b16 %v3193
      %v3275 = vunpack.c.l.b16 %v3194
      %v3276 = vunpack.c.l.b16 %v3195
      %v3277 = vunpack.c.l.b16 %v3196
      %v3278 = vunpack.c.l.b16 %v3197
      %v3279 = vunpack.c.l.b16 %v3198
      %v3280 = vunpack.c.l.b16 %v3199
      %v3281 = vunpack.c.l.b16 %v3200
      %v3282 = vunpack.c.l.b16 %v3201
      %v3283 = vunpack.c.l.b16 %v3202
      %v3284 = vunpack.c.l.b16 %v3203
      %v3285 = vunpack.c.l.b16 %v3204
      %v3286 = vunpack.c.l.b16 %v3205
      %v3287 = vunpack.c.l.b16 %v3206
      %v3288 = vunpack.c.l.b16 %v3207
      %v3289 = vunpack.c.l.b16 %v3208
      %v3290 = vunpack.c.l.b16 %v3209
      %v3291 = vpack.c.b16 %v3260, %v3259
      %v3292 = vpack.c.b16 %v3262, %v3261
      %v3293 = vpack.c.b16 %v3264, %v3263
      %v3294 = vpack.c.b16 %v3266, %v3265
      %v3295 = vpack.c.b16 %v3268, %v3267
      %v3296 = vpack.c.b16 %v3270, %v3269
      %v3297 = vpack.c.b16 %v3272, %v3271
      %v3298 = vpack.c.b16 %v3274, %v3273
      %v3299 = vpack.c.b16 %v3276, %v3275
      %v3300 = vpack.c.b16 %v3278, %v3277
      %v3301 = vpack.c.b16 %v3280, %v3279
      %v3302 = vpack.c.b16 %v3282, %v3281
      %v3303 = vpack.c.b16 %v3284, %v3283
      %v3304 = vpack.c.b16 %v3286, %v3285
      %v3305 = vpack.c.b16 %v3288, %v3287
      %v3306 = vpack.c.b16 %v3290, %v3289
      %v3339 = vunpack.c.l.b16 %v3211
      %v3340 = vunpack.c.l.b16 %v3212
      %v3341 = vunpack.c.l.b16 %v3213
      %v3342 = vunpack.c.l.b16 %v3214
      %v3343 = vunpack.c.l.b16 %v3215
      %v3344 = vunpack.c.l.b16 %v3216
      %v3345 = vunpack.c.l.b16 %v3217
      %v3346 = vunpack.c.l.b16 %v3218
      %v3347 = vunpack.c.l.b16 %v3219
      %v3348 = vunpack.c.l.b16 %v3220
      %v3349 = vunpack.c.l.b16 %v3221
      %v3350 = vunpack.c.l.b16 %v3222
      %v3351 = vunpack.c.l.b16 %v3223
      %v3352 = vunpack.c.l.b16 %v3224
      %v3353 = vunpack.c.l.b16 %v3225
      %v3354 = vunpack.c.l.b16 %v3226
      %v3355 = vpack.c.b16 %v3340, %v3339
      %v3356 = vpack.c.b16 %v3342, %v3341
      %v3357 = vpack.c.b16 %v3344, %v3343
      %v3358 = vpack.c.b16 %v3346, %v3345
      %v3359 = vpack.c.b16 %v3348, %v3347
      %v3360 = vpack.c.b16 %v3350, %v3349
      %v3361 = vpack.c.b16 %v3352, %v3351
      %v3362 = vpack.c.b16 %v3354, %v3353
      %3371 = vmatprep.subr.bf16.mxu0 0
      %3372 = vmatpush1.bf16.msra.mxu0 %v3362
      %3373 = vmatprep.subr.bf16.mxu0 0
      %3374 = vmatpush1.bf16.msra.mxu0 %v3361
      %3375 = vmatprep.subr.bf16.mxu0 0
      %3376 = vmatpush1.bf16.msra.mxu0 %v3360
      %3377 = vmatprep.subr.bf16.mxu0 0
      %3378 = vmatpush1.bf16.msra.mxu0 %v3359
      %3379 = vmatprep.subr.bf16.mxu0 0
      %3380 = vmatpush1.bf16.msra.mxu0 %v3358
      %3381 = vmatprep.subr.bf16.mxu0 0
      %3382 = vmatpush1.bf16.msra.mxu0 %v3357
      %3383 = vmatprep.subr.bf16.mxu0 0
      %3384 = vmatpush1.bf16.msra.mxu0 %v3356
      %3385 = vmatprep.subr.bf16.mxu0 0
      %3386 = vmatpush1.bf16.msra.mxu0 %v3355
      %3387 = vmatprep.subr.bf16.mxu0 0
      %3388 = vmatpush2.bf16.msra.mxu0 0
      %3389 = vmatprep.subr.bf16.mxu0 0
      %3390 = vmatpush2.bf16.msra.mxu0 0
      %3391 = vmatprep.subr.bf16.mxu0 0
      %3392 = vmatpush2.bf16.msra.mxu0 0
      %3393 = vmatprep.subr.bf16.mxu0 0
      %3394 = vmatpush2.bf16.msra.mxu0 0
      %3395 = vmatprep.subr.bf16.mxu0 0
      %3396 = vmatpush2.bf16.msra.mxu0 0
      %3397 = vmatprep.subr.bf16.mxu0 0
      %3398 = vmatpush2.bf16.msra.mxu0 0
      %3399 = vmatprep.subr.bf16.mxu0 0
      %3400 = vmatpush2.bf16.msra.mxu0 0
      %3401 = vmatprep.subr.bf16.mxu0 0
      %3402 = vmatpush2.bf16.msra.mxu0 0
      %3403 = vmatprep.mubr.bf16.mxu0 0
      %3404 = vmatmul.mubr.bf16.gmra.mxu0 %v3291
      %v3405 = vpop.f32.mrf.mxu0
      %v3406 = vadd.f32 0.0, %v3405
      %v3407 = vpop.f32.mrf.mxu0
      %v3408 = vpop.f32.mrf.mxu0
      %v3409 = vadd.f32 0.0, %v3408
      %v3410 = vpop.f32.mrf.mxu0
      %3411 = vmatprep.mubr.bf16.mxu0 0
      %3412 = vmatmul.mubr.bf16.gmra.mxu0 %v3292
      %v3413 = vpop.f32.mrf.mxu0
      %v3414 = vadd.f32 0.0, %v3413
      %v3415 = vpop.f32.mrf.mxu0
      %v3416 = vpop.f32.mrf.mxu0
      %v3417 = vadd.f32 0.0, %v3416
      %v3418 = vpop.f32.mrf.mxu0
      %3419 = vmatprep.mubr.bf16.mxu0 0
      %3420 = vmatmul.mubr.bf16.gmra.mxu0 %v3293
      %v3421 = vpop.f32.mrf.mxu0
      %v3422 = vadd.f32 0.0, %v3421
      %v3423 = vpop.f32.mrf.mxu0
      %v3424 = vpop.f32.mrf.mxu0
      %v3425 = vadd.f32 0.0, %v3424
      %v3426 = vpop.f32.mrf.mxu0
      %3427 = vmatprep.mubr.bf16.mxu0 0
      %3428 = vmatmul.mubr.bf16.gmra.mxu0 %v3294
      %v3429 = vpop.f32.mrf.mxu0
      %v3430 = vadd.f32 0.0, %v3429
      %v3431 = vpop.f32.mrf.mxu0
      %v3432 = vpop.f32.mrf.mxu0
      %v3433 = vadd.f32 0.0, %v3432
      %v3434 = vpop.f32.mrf.mxu0
      %3435 = vmatprep.mubr.bf16.mxu0 0
      %3436 = vmatmul.mubr.bf16.gmra.mxu0 %v3295
      %v3437 = vpop.f32.mrf.mxu0
      %v3438 = vadd.f32 0.0, %v3437
      %v3439 = vpop.f32.mrf.mxu0
      %v3440 = vpop.f32.mrf.mxu0
      %v3441 = vadd.f32 0.0, %v3440
      %v3442 = vpop.f32.mrf.mxu0
      %3443 = vmatprep.mubr.bf16.mxu0 0
      %3444 = vmatmul.mubr.bf16.gmra.mxu0 %v3296
      %v3445 = vpop.f32.mrf.mxu0
      %v3446 = vadd.f32 0.0, %v3445
      %v3447 = vpop.f32.mrf.mxu0
      %v3448 = vpop.f32.mrf.mxu0
      %v3449 = vadd.f32 0.0, %v3448
      %v3450 = vpop.f32.mrf.mxu0
      %3451 = vmatprep.mubr.bf16.mxu0 0
      %3452 = vmatmul.mubr.bf16.gmra.mxu0 %v3297
      %v3453 = vpop.f32.mrf.mxu0
      %v3454 = vadd.f32 0.0, %v3453
      %v3455 = vpop.f32.mrf.mxu0
      %v3456 = vpop.f32.mrf.mxu0
      %v3457 = vadd.f32 0.0, %v3456
      %v3458 = vpop.f32.mrf.mxu0
      %3459 = vmatprep.mubr.bf16.mxu0 0
      %3460 = vmatmul.mubr.bf16.gmra.mxu0 %v3298
      %v3461 = vpop.f32.mrf.mxu0
      %v3462 = vadd.f32 0.0, %v3461
      %v3463 = vpop.f32.mrf.mxu0
      %v3464 = vpop.f32.mrf.mxu0
      %v3465 = vadd.f32 0.0, %v3464
      %v3466 = vpop.f32.mrf.mxu0
      %3467 = vmatprep.mubr.bf16.mxu0 0
      %3468 = vmatmul.mubr.bf16.gmra.mxu0 %v3299
      %v3469 = vpop.f32.mrf.mxu0
      %v3470 = vadd.f32 0.0, %v3469
      %v3471 = vpop.f32.mrf.mxu0
      %v3472 = vpop.f32.mrf.mxu0
      %v3473 = vadd.f32 0.0, %v3472
      %v3474 = vpop.f32.mrf.mxu0
      %3475 = vmatprep.mubr.bf16.mxu0 0
      %3476 = vmatmul.mubr.bf16.gmra.mxu0 %v3300
      %v3477 = vpop.f32.mrf.mxu0
      %v3478 = vadd.f32 0.0, %v3477
      %v3479 = vpop.f32.mrf.mxu0
      %v3480 = vpop.f32.mrf.mxu0
      %v3481 = vadd.f32 0.0, %v3480
      %v3482 = vpop.f32.mrf.mxu0
      %3483 = vmatprep.mubr.bf16.mxu0 0
      %3484 = vmatmul.mubr.bf16.gmra.mxu0 %v3301
      %v3485 = vpop.f32.mrf.mxu0
      %v3486 = vadd.f32 0.0, %v3485
      %v3487 = vpop.f32.mrf.mxu0
      %v3488 = vpop.f32.mrf.mxu0
      %v3489 = vadd.f32 0.0, %v3488
      %v3490 = vpop.f32.mrf.mxu0
      %3491 = vmatprep.mubr.bf16.mxu0 0
      %3492 = vmatmul.mubr.bf16.gmra.mxu0 %v3302
      %v3493 = vpop.f32.mrf.mxu0
      %v3494 = vadd.f32 0.0, %v3493
      %v3495 = vpop.f32.mrf.mxu0
      %v3496 = vpop.f32.mrf.mxu0
      %v3497 = vadd.f32 0.0, %v3496
      %v3498 = vpop.f32.mrf.mxu0
      %3499 = vmatprep.mubr.bf16.mxu0 0
      %3500 = vmatmul.mubr.bf16.gmra.mxu0 %v3303
      %v3501 = vpop.f32.mrf.mxu0
      %v3502 = vadd.f32 0.0, %v3501
      %v3503 = vpop.f32.mrf.mxu0
      %v3504 = vpop.f32.mrf.mxu0
      %v3505 = vadd.f32 0.0, %v3504
      %v3506 = vpop.f32.mrf.mxu0
      %3507 = vmatprep.mubr.bf16.mxu0 0
      %3508 = vmatmul.mubr.bf16.gmra.mxu0 %v3304
      %v3509 = vpop.f32.mrf.mxu0
      %v3510 = vadd.f32 0.0, %v3509
      %v3511 = vpop.f32.mrf.mxu0
      %v3512 = vpop.f32.mrf.mxu0
      %v3513 = vadd.f32 0.0, %v3512
      %v3514 = vpop.f32.mrf.mxu0
      %3515 = vmatprep.mubr.bf16.mxu0 0
      %3516 = vmatmul.mubr.bf16.gmra.mxu0 %v3305
      %v3517 = vpop.f32.mrf.mxu0
      %v3518 = vadd.f32 0.0, %v3517
      %v3519 = vpop.f32.mrf.mxu0
      %v3520 = vpop.f32.mrf.mxu0
      %v3521 = vadd.f32 0.0, %v3520
      %v3522 = vpop.f32.mrf.mxu0
      %3523 = vmatprep.mubr.bf16.mxu0 0
      %3524 = vmatmul.mubr.bf16.gmra.mxu0 %v3306
      %v3525 = vpop.f32.mrf.mxu0
      %v3526 = vadd.f32 0.0, %v3525
      %v3527 = vpop.f32.mrf.mxu0
      %v3528 = vpop.f32.mrf.mxu0
      %v3529 = vadd.f32 0.0, %v3528
      %v3530 = vpop.f32.mrf.mxu0
      %3531 = vdwg.mxu0
      %v3532 = vld [vmem:[#allocation5] sm:$0xff]
      %v3533 = vld [vmem:[#allocation5 + $0x8] sm:$0xff]
      %v3534 = vld [vmem:[#allocation5 + $0x10] sm:$0xff]
      %v3535 = vld [vmem:[#allocation5 + $0x18] sm:$0xff]
      %v3536 = vld [vmem:[#allocation5 + $0x20] sm:$0xff]
      %v3537 = vld [vmem:[#allocation5 + $0x28] sm:$0xff]
      %v3538 = vld [vmem:[#allocation5 + $0x30] sm:$0xff]
      %v3539 = vld [vmem:[#allocation5 + $0x38] sm:$0xff]
      %v3540 = vld [vmem:[#allocation5 + $0x40] sm:$0xff]
      %v3541 = vld [vmem:[#allocation5 + $0x48] sm:$0xff]
      %v3542 = vld [vmem:[#allocation5 + $0x50] sm:$0xff]
      %v3543 = vld [vmem:[#allocation5 + $0x58] sm:$0xff]
      %v3544 = vld [vmem:[#allocation5 + $0x60] sm:$0xff]
      %v3545 = vld [vmem:[#allocation5 + $0x68] sm:$0xff]
      %v3546 = vld [vmem:[#allocation5 + $0x70] sm:$0xff]
      %v3547 = vld [vmem:[#allocation5 + $0x78] sm:$0xff]
      %v3548 = vld [vmem:[#allocation5 + $0x80] sm:$0xff]
      %v3549 = vld [vmem:[#allocation5 + $0x88] sm:$0xff]
      %v3550 = vld [vmem:[#allocation5 + $0x90] sm:$0xff]
      %v3551 = vld [vmem:[#allocation5 + $0x98] sm:$0xff]
      %v3552 = vld [vmem:[#allocation5 + $0xa0] sm:$0xff]
      %v3553 = vld [vmem:[#allocation5 + $0xa8] sm:$0xff]
      %v3554 = vld [vmem:[#allocation5 + $0xb0] sm:$0xff]
      %v3555 = vld [vmem:[#allocation5 + $0xb8] sm:$0xff]
      %v3556 = vld [vmem:[#allocation5 + $0xc0] sm:$0xff]
      %v3557 = vld [vmem:[#allocation5 + $0xc8] sm:$0xff]
      %v3558 = vld [vmem:[#allocation5 + $0xd0] sm:$0xff]
      %v3559 = vld [vmem:[#allocation5 + $0xd8] sm:$0xff]
      %v3560 = vld [vmem:[#allocation5 + $0xe0] sm:$0xff]
      %v3561 = vld [vmem:[#allocation5 + $0xe8] sm:$0xff]
      %v3562 = vld [vmem:[#allocation5 + $0xf0] sm:$0xff]
      %v3563 = vld [vmem:[#allocation5 + $0xf8] sm:$0xff]
      %v3564 = vadd.f32 %v3532, %v3406
      %v3565 = vadd.f32 %v3533, %v3409
      %v3566 = vadd.f32 %v3534, %v3414
      %v3567 = vadd.f32 %v3535, %v3417
      %v3568 = vadd.f32 %v3536, %v3422
      %v3569 = vadd.f32 %v3537, %v3425
      %v3570 = vadd.f32 %v3538, %v3430
      %v3571 = vadd.f32 %v3539, %v3433
      %v3572 = vadd.f32 %v3540, %v3438
      %v3573 = vadd.f32 %v3541, %v3441
      %v3574 = vadd.f32 %v3542, %v3446
      %v3575 = vadd.f32 %v3543, %v3449
      %v3576 = vadd.f32 %v3544, %v3454
      %v3577 = vadd.f32 %v3545, %v3457
      %v3578 = vadd.f32 %v3546, %v3462
      %v3579 = vadd.f32 %v3547, %v3465
      %v3580 = vadd.f32 %v3548, %v3470
      %v3581 = vadd.f32 %v3549, %v3473
      %v3582 = vadd.f32 %v3550, %v3478
      %v3583 = vadd.f32 %v3551, %v3481
      %v3584 = vadd.f32 %v3552, %v3486
      %v3585 = vadd.f32 %v3553, %v3489
      %v3586 = vadd.f32 %v3554, %v3494
      %v3587 = vadd.f32 %v3555, %v3497
      %v3588 = vadd.f32 %v3556, %v3502
      %v3589 = vadd.f32 %v3557, %v3505
      %v3590 = vadd.f32 %v3558, %v3510
      %v3591 = vadd.f32 %v3559, %v3513
      %v3592 = vadd.f32 %v3560, %v3518
      %v3593 = vadd.f32 %v3561, %v3521
      %v3594 = vadd.f32 %v3562, %v3526
      %v3595 = vadd.f32 %v3563, %v3529
      %3596 = vst [vmem:[#allocation5] sm:$0xff] %v3564
      %3597 = vst [vmem:[#allocation5 + $0x8] sm:$0xff] %v3565
      %3598 = vst [vmem:[#allocation5 + $0x10] sm:$0xff] %v3566
      %3599 = vst [vmem:[#allocation5 + $0x18] sm:$0xff] %v3567
      %3600 = vst [vmem:[#allocation5 + $0x20] sm:$0xff] %v3568
      %3601 = vst [vmem:[#allocation5 + $0x28] sm:$0xff] %v3569
      %3602 = vst [vmem:[#allocation5 + $0x30] sm:$0xff] %v3570
      %3603 = vst [vmem:[#allocation5 + $0x38] sm:$0xff] %v3571
      %3604 = vst [vmem:[#allocation5 + $0x40] sm:$0xff] %v3572
      %3605 = vst [vmem:[#allocation5 + $0x48] sm:$0xff] %v3573
      %3606 = vst [vmem:[#allocation5 + $0x50] sm:$0xff] %v3574
      %3607 = vst [vmem:[#allocation5 + $0x58] sm:$0xff] %v3575
      %3608 = vst [vmem:[#allocation5 + $0x60] sm:$0xff] %v3576
      %3609 = vst [vmem:[#allocation5 + $0x68] sm:$0xff] %v3577
      %3610 = vst [vmem:[#allocation5 + $0x70] sm:$0xff] %v3578
      %3611 = vst [vmem:[#allocation5 + $0x78] sm:$0xff] %v3579
      %3612 = vst [vmem:[#allocation5 + $0x80] sm:$0xff] %v3580
      %3613 = vst [vmem:[#allocation5 + $0x88] sm:$0xff] %v3581
      %3614 = vst [vmem:[#allocation5 + $0x90] sm:$0xff] %v3582
      %3615 = vst [vmem:[#allocation5 + $0x98] sm:$0xff] %v3583
      %3616 = vst [vmem:[#allocation5 + $0xa0] sm:$0xff] %v3584
      %3617 = vst [vmem:[#allocation5 + $0xa8] sm:$0xff] %v3585
      %3618 = vst [vmem:[#allocation5 + $0xb0] sm:$0xff] %v3586
      %3619 = vst [vmem:[#allocation5 + $0xb8] sm:$0xff] %v3587
      %3620 = vst [vmem:[#allocation5 + $0xc0] sm:$0xff] %v3588
      %3621 = vst [vmem:[#allocation5 + $0xc8] sm:$0xff] %v3589
      %3622 = vst [vmem:[#allocation5 + $0xd0] sm:$0xff] %v3590
      %3623 = vst [vmem:[#allocation5 + $0xd8] sm:$0xff] %v3591
      %3624 = vst [vmem:[#allocation5 + $0xe0] sm:$0xff] %v3592
      %3625 = vst [vmem:[#allocation5 + $0xe8] sm:$0xff] %v3593
      %3626 = vst [vmem:[#allocation5 + $0xf0] sm:$0xff] %v3594
      %3627 = vst [vmem:[#allocation5 + $0xf8] sm:$0xff] %v3595
      %v3628 = vld [vmem:[#allocation3 + $0x8] sm:$0xf]
      %v3629 = vld [vmem:[#allocation3 + $0xc] sm:$0xf]
      %v3630 = vld [vmem:[#allocation3 + $0x10] sm:$0xf]
      %v3631 = vld [vmem:[#allocation3 + $0x14] sm:$0xf]
      %v3632 = vld [vmem:[#allocation3 + $0x18] sm:$0xf]
      %v3633 = vld [vmem:[#allocation3 + $0x1c] sm:$0xf]
      %v3634 = vld [vmem:[#allocation3 + $0x20] sm:$0xf]
      %v3635 = vld [vmem:[#allocation3 + $0x24] sm:$0xf]
      %v3636 = vld [vmem:[#allocation3 + $0x28] sm:$0xf]
      %v3637 = vld [vmem:[#allocation3 + $0x2c] sm:$0xf]
      %v3638 = vld [vmem:[#allocation3 + $0x30] sm:$0xf]
      %v3639 = vld [vmem:[#allocation3 + $0x34] sm:$0xf]
      %v3640 = vld [vmem:[#allocation3 + $0x38] sm:$0xf]
      %v3641 = vld [vmem:[#allocation3 + $0x3c] sm:$0xf]
      %v3642 = vld [vmem:[#allocation3 + $0x40] sm:$0xf]
      %v3643 = vld [vmem:[#allocation3 + $0x44] sm:$0xf]
      %v3644 = vld [vmem:[#allocation3 + $0x48] sm:$0xf]
      %v3645 = vld [vmem:[#allocation3 + $0x4c] sm:$0xf]
      %v3646 = vld [vmem:[#allocation3 + $0x50] sm:$0xf]
      %v3647 = vld [vmem:[#allocation3 + $0x54] sm:$0xf]
      %v3648 = vld [vmem:[#allocation3 + $0x58] sm:$0xf]
      %v3649 = vld [vmem:[#allocation3 + $0x5c] sm:$0xf]
      %v3650 = vld [vmem:[#allocation3 + $0x60] sm:$0xf]
      %v3651 = vld [vmem:[#allocation3 + $0x64] sm:$0xf]
      %v3652 = vld [vmem:[#allocation3 + $0x68] sm:$0xf]
      %v3653 = vld [vmem:[#allocation3 + $0x6c] sm:$0xf]
      %v3654 = vld [vmem:[#allocation3 + $0x70] sm:$0xf]
      %v3655 = vld [vmem:[#allocation3 + $0x74] sm:$0xf]
      %v3656 = vld [vmem:[#allocation3 + $0x78] sm:$0xf]
      %v3657 = vld [vmem:[#allocation3 + $0x7c] sm:$0xf]
      %v3658 = vld [vmem:[#allocation3 + $0x80] sm:$0xf]
      %v3659 = vld [vmem:[#allocation3 + $0x84] sm:$0xf]
      %s3660 = scalar_lea.vmem %s3, 256
      %v3661 = vld [vmem:[%s3660] sm:$0xf]
      %v3662 = vld [vmem:[%s3660 + $0x4] sm:$0xf]
      %v3663 = vld [vmem:[%s3660 + $0x8] sm:$0xf]
      %v3664 = vld [vmem:[%s3660 + $0xc] sm:$0xf]
      %v3665 = vld [vmem:[%s3660 + $0x10] sm:$0xf]
      %v3666 = vld [vmem:[%s3660 + $0x14] sm:$0xf]
      %v3667 = vld [vmem:[%s3660 + $0x18] sm:$0xf]
      %v3668 = vld [vmem:[%s3660 + $0x1c] sm:$0xf]
      %v3669 = vld [vmem:[%s3660 + $0x20] sm:$0xf]
      %v3670 = vld [vmem:[%s3660 + $0x24] sm:$0xf]
      %v3671 = vld [vmem:[%s3660 + $0x28] sm:$0xf]
      %v3672 = vld [vmem:[%s3660 + $0x2c] sm:$0xf]
      %v3673 = vld [vmem:[%s3660 + $0x30] sm:$0xf]
      %v3674 = vld [vmem:[%s3660 + $0x34] sm:$0xf]
      %v3675 = vld [vmem:[%s3660 + $0x38] sm:$0xf]
      %v3676 = vld [vmem:[%s3660 + $0x3c] sm:$0xf]
      %v3709 = vunpack.c.l.b16 %v3628
      %v3710 = vunpack.c.l.b16 %v3629
      %v3711 = vunpack.c.l.b16 %v3630
      %v3712 = vunpack.c.l.b16 %v3631
      %v3713 = vunpack.c.l.b16 %v3632
      %v3714 = vunpack.c.l.b16 %v3633
      %v3715 = vunpack.c.l.b16 %v3634
      %v3716 = vunpack.c.l.b16 %v3635
      %v3717 = vunpack.c.l.b16 %v3636
      %v3718 = vunpack.c.l.b16 %v3637
      %v3719 = vunpack.c.l.b16 %v3638
      %v3720 = vunpack.c.l.b16 %v3639
      %v3721 = vunpack.c.l.b16 %v3640
      %v3722 = vunpack.c.l.b16 %v3641
      %v3723 = vunpack.c.l.b16 %v3642
      %v3724 = vunpack.c.l.b16 %v3643
      %v3725 = vunpack.c.l.b16 %v3644
      %v3726 = vunpack.c.l.b16 %v3645
      %v3727 = vunpack.c.l.b16 %v3646
      %v3728 = vunpack.c.l.b16 %v3647
      %v3729 = vunpack.c.l.b16 %v3648
      %v3730 = vunpack.c.l.b16 %v3649
      %v3731 = vunpack.c.l.b16 %v3650
      %v3732 = vunpack.c.l.b16 %v3651
      %v3733 = vunpack.c.l.b16 %v3652
      %v3734 = vunpack.c.l.b16 %v3653
      %v3735 = vunpack.c.l.b16 %v3654
      %v3736 = vunpack.c.l.b16 %v3655
      %v3737 = vunpack.c.l.b16 %v3656
      %v3738 = vunpack.c.l.b16 %v3657
      %v3739 = vunpack.c.l.b16 %v3658
      %v3740 = vunpack.c.l.b16 %v3659
      %v3741 = vpack.c.b16 %v3710, %v3709
      %v3742 = vpack.c.b16 %v3712, %v3711
      %v3743 = vpack.c.b16 %v3714, %v3713
      %v3744 = vpack.c.b16 %v3716, %v3715
      %v3745 = vpack.c.b16 %v3718, %v3717
      %v3746 = vpack.c.b16 %v3720, %v3719
      %v3747 = vpack.c.b16 %v3722, %v3721
      %v3748 = vpack.c.b16 %v3724, %v3723
      %v3749 = vpack.c.b16 %v3726, %v3725
      %v3750 = vpack.c.b16 %v3728, %v3727
      %v3751 = vpack.c.b16 %v3730, %v3729
      %v3752 = vpack.c.b16 %v3732, %v3731
      %v3753 = vpack.c.b16 %v3734, %v3733
      %v3754 = vpack.c.b16 %v3736, %v3735
      %v3755 = vpack.c.b16 %v3738, %v3737
      %v3756 = vpack.c.b16 %v3740, %v3739
      %v3789 = vunpack.c.l.b16 %v3661
      %v3790 = vunpack.c.l.b16 %v3662
      %v3791 = vunpack.c.l.b16 %v3663
      %v3792 = vunpack.c.l.b16 %v3664
      %v3793 = vunpack.c.l.b16 %v3665
      %v3794 = vunpack.c.l.b16 %v3666
      %v3795 = vunpack.c.l.b16 %v3667
      %v3796 = vunpack.c.l.b16 %v3668
      %v3797 = vunpack.c.l.b16 %v3669
      %v3798 = vunpack.c.l.b16 %v3670
      %v3799 = vunpack.c.l.b16 %v3671
      %v3800 = vunpack.c.l.b16 %v3672
      %v3801 = vunpack.c.l.b16 %v3673
      %v3802 = vunpack.c.l.b16 %v3674
      %v3803 = vunpack.c.l.b16 %v3675
      %v3804 = vunpack.c.l.b16 %v3676
      %v3805 = vpack.c.b16 %v3790, %v3789
      %v3806 = vpack.c.b16 %v3792, %v3791
      %v3807 = vpack.c.b16 %v3794, %v3793
      %v3808 = vpack.c.b16 %v3796, %v3795
      %v3809 = vpack.c.b16 %v3798, %v3797
      %v3810 = vpack.c.b16 %v3800, %v3799
      %v3811 = vpack.c.b16 %v3802, %v3801
      %v3812 = vpack.c.b16 %v3804, %v3803
      %3821 = vmatprep.subr.bf16.mxu0 0
      %3822 = vmatpush1.bf16.msra.mxu0 %v3812
      %3823 = vmatprep.subr.bf16.mxu0 0
      %3824 = vmatpush1.bf16.msra.mxu0 %v3811
      %3825 = vmatprep.subr.bf16.mxu0 0
      %3826 = vmatpush1.bf16.msra.mxu0 %v3810
      %3827 = vmatprep.subr.bf16.mxu0 0
      %3828 = vmatpush1.bf16.msra.mxu0 %v3809
      %3829 = vmatprep.subr.bf16.mxu0 0
      %3830 = vmatpush1.bf16.msra.mxu0 %v3808
      %3831 = vmatprep.subr.bf16.mxu0 0
      %3832 = vmatpush1.bf16.msra.mxu0 %v3807
      %3833 = vmatprep.subr.bf16.mxu0 0
      %3834 = vmatpush1.bf16.msra.mxu0 %v3806
      %3835 = vmatprep.subr.bf16.mxu0 0
      %3836 = vmatpush1.bf16.msra.mxu0 %v3805
      %3837 = vmatprep.subr.bf16.mxu0 0
      %3838 = vmatpush2.bf16.msra.mxu0 0
      %3839 = vmatprep.subr.bf16.mxu0 0
      %3840 = vmatpush2.bf16.msra.mxu0 0
      %3841 = vmatprep.subr.bf16.mxu0 0
      %3842 = vmatpush2.bf16.msra.mxu0 0
      %3843 = vmatprep.subr.bf16.mxu0 0
      %3844 = vmatpush2.bf16.msra.mxu0 0
      %3845 = vmatprep.subr.bf16.mxu0 0
      %3846 = vmatpush2.bf16.msra.mxu0 0
      %3847 = vmatprep.subr.bf16.mxu0 0
      %3848 = vmatpush2.bf16.msra.mxu0 0
      %3849 = vmatprep.subr.bf16.mxu0 0
      %3850 = vmatpush2.bf16.msra.mxu0 0
      %3851 = vmatprep.subr.bf16.mxu0 0
      %3852 = vmatpush2.bf16.msra.mxu0 0
      %3853 = vmatprep.mubr.bf16.mxu0 0
      %3854 = vmatmul.mubr.bf16.gmra.mxu0 %v3741
      %v3855 = vpop.f32.mrf.mxu0
      %v3856 = vadd.f32 0.0, %v3855
      %v3857 = vpop.f32.mrf.mxu0
      %v3858 = vpop.f32.mrf.mxu0
      %v3859 = vadd.f32 0.0, %v3858
      %v3860 = vpop.f32.mrf.mxu0
      %3861 = vmatprep.mubr.bf16.mxu0 0
      %3862 = vmatmul.mubr.bf16.gmra.mxu0 %v3742
      %v3863 = vpop.f32.mrf.mxu0
      %v3864 = vadd.f32 0.0, %v3863
      %v3865 = vpop.f32.mrf.mxu0
      %v3866 = vpop.f32.mrf.mxu0
      %v3867 = vadd.f32 0.0, %v3866
      %v3868 = vpop.f32.mrf.mxu0
      %3869 = vmatprep.mubr.bf16.mxu0 0
      %3870 = vmatmul.mubr.bf16.gmra.mxu0 %v3743
      %v3871 = vpop.f32.mrf.mxu0
      %v3872 = vadd.f32 0.0, %v3871
      %v3873 = vpop.f32.mrf.mxu0
      %v3874 = vpop.f32.mrf.mxu0
      %v3875 = vadd.f32 0.0, %v3874
      %v3876 = vpop.f32.mrf.mxu0
      %3877 = vmatprep.mubr.bf16.mxu0 0
      %3878 = vmatmul.mubr.bf16.gmra.mxu0 %v3744
      %v3879 = vpop.f32.mrf.mxu0
      %v3880 = vadd.f32 0.0, %v3879
      %v3881 = vpop.f32.mrf.mxu0
      %v3882 = vpop.f32.mrf.mxu0
      %v3883 = vadd.f32 0.0, %v3882
      %v3884 = vpop.f32.mrf.mxu0
      %3885 = vmatprep.mubr.bf16.mxu0 0
      %3886 = vmatmul.mubr.bf16.gmra.mxu0 %v3745
      %v3887 = vpop.f32.mrf.mxu0
      %v3888 = vadd.f32 0.0, %v3887
      %v3889 = vpop.f32.mrf.mxu0
      %v3890 = vpop.f32.mrf.mxu0
      %v3891 = vadd.f32 0.0, %v3890
      %v3892 = vpop.f32.mrf.mxu0
      %3893 = vmatprep.mubr.bf16.mxu0 0
      %3894 = vmatmul.mubr.bf16.gmra.mxu0 %v3746
      %v3895 = vpop.f32.mrf.mxu0
      %v3896 = vadd.f32 0.0, %v3895
      %v3897 = vpop.f32.mrf.mxu0
      %v3898 = vpop.f32.mrf.mxu0
      %v3899 = vadd.f32 0.0, %v3898
      %v3900 = vpop.f32.mrf.mxu0
      %3901 = vmatprep.mubr.bf16.mxu0 0
      %3902 = vmatmul.mubr.bf16.gmra.mxu0 %v3747
      %v3903 = vpop.f32.mrf.mxu0
      %v3904 = vadd.f32 0.0, %v3903
      %v3905 = vpop.f32.mrf.mxu0
      %v3906 = vpop.f32.mrf.mxu0
      %v3907 = vadd.f32 0.0, %v3906
      %v3908 = vpop.f32.mrf.mxu0
      %3909 = vmatprep.mubr.bf16.mxu0 0
      %3910 = vmatmul.mubr.bf16.gmra.mxu0 %v3748
      %v3911 = vpop.f32.mrf.mxu0
      %v3912 = vadd.f32 0.0, %v3911
      %v3913 = vpop.f32.mrf.mxu0
      %v3914 = vpop.f32.mrf.mxu0
      %v3915 = vadd.f32 0.0, %v3914
      %v3916 = vpop.f32.mrf.mxu0
      %3917 = vmatprep.mubr.bf16.mxu0 0
      %3918 = vmatmul.mubr.bf16.gmra.mxu0 %v3749
      %v3919 = vpop.f32.mrf.mxu0
      %v3920 = vadd.f32 0.0, %v3919
      %v3921 = vpop.f32.mrf.mxu0
      %v3922 = vpop.f32.mrf.mxu0
      %v3923 = vadd.f32 0.0, %v3922
      %v3924 = vpop.f32.mrf.mxu0
      %3925 = vmatprep.mubr.bf16.mxu0 0
      %3926 = vmatmul.mubr.bf16.gmra.mxu0 %v3750
      %v3927 = vpop.f32.mrf.mxu0
      %v3928 = vadd.f32 0.0, %v3927
      %v3929 = vpop.f32.mrf.mxu0
      %v3930 = vpop.f32.mrf.mxu0
      %v3931 = vadd.f32 0.0, %v3930
      %v3932 = vpop.f32.mrf.mxu0
      %3933 = vmatprep.mubr.bf16.mxu0 0
      %3934 = vmatmul.mubr.bf16.gmra.mxu0 %v3751
      %v3935 = vpop.f32.mrf.mxu0
      %v3936 = vadd.f32 0.0, %v3935
      %v3937 = vpop.f32.mrf.mxu0
      %v3938 = vpop.f32.mrf.mxu0
      %v3939 = vadd.f32 0.0, %v3938
      %v3940 = vpop.f32.mrf.mxu0
      %3941 = vmatprep.mubr.bf16.mxu0 0
      %3942 = vmatmul.mubr.bf16.gmra.mxu0 %v3752
      %v3943 = vpop.f32.mrf.mxu0
      %v3944 = vadd.f32 0.0, %v3943
      %v3945 = vpop.f32.mrf.mxu0
      %v3946 = vpop.f32.mrf.mxu0
      %v3947 = vadd.f32 0.0, %v3946
      %v3948 = vpop.f32.mrf.mxu0
      %3949 = vmatprep.mubr.bf16.mxu0 0
      %3950 = vmatmul.mubr.bf16.gmra.mxu0 %v3753
      %v3951 = vpop.f32.mrf.mxu0
      %v3952 = vadd.f32 0.0, %v3951
      %v3953 = vpop.f32.mrf.mxu0
      %v3954 = vpop.f32.mrf.mxu0
      %v3955 = vadd.f32 0.0, %v3954
      %v3956 = vpop.f32.mrf.mxu0
      %3957 = vmatprep.mubr.bf16.mxu0 0
      %3958 = vmatmul.mubr.bf16.gmra.mxu0 %v3754
      %v3959 = vpop.f32.mrf.mxu0
      %v3960 = vadd.f32 0.0, %v3959
      %v3961 = vpop.f32.mrf.mxu0
      %v3962 = vpop.f32.mrf.mxu0
      %v3963 = vadd.f32 0.0, %v3962
      %v3964 = vpop.f32.mrf.mxu0
      %3965 = vmatprep.mubr.bf16.mxu0 0
      %3966 = vmatmul.mubr.bf16.gmra.mxu0 %v3755
      %v3967 = vpop.f32.mrf.mxu0
      %v3968 = vadd.f32 0.0, %v3967
      %v3969 = vpop.f32.mrf.mxu0
      %v3970 = vpop.f32.mrf.mxu0
      %v3971 = vadd.f32 0.0, %v3970
      %v3972 = vpop.f32.mrf.mxu0
      %3973 = vmatprep.mubr.bf16.mxu0 0
      %3974 = vmatmul.mubr.bf16.gmra.mxu0 %v3756
      %v3975 = vpop.f32.mrf.mxu0
      %v3976 = vadd.f32 0.0, %v3975
      %v3977 = vpop.f32.mrf.mxu0
      %v3978 = vpop.f32.mrf.mxu0
      %v3979 = vadd.f32 0.0, %v3978
      %v3980 = vpop.f32.mrf.mxu0
      %3981 = vdwg.mxu0
      %v3982 = vld [vmem:[#allocation5] sm:$0xff]
      %v3983 = vld [vmem:[#allocation5 + $0x8] sm:$0xff]
      %v3984 = vld [vmem:[#allocation5 + $0x10] sm:$0xff]
      %v3985 = vld [vmem:[#allocation5 + $0x18] sm:$0xff]
      %v3986 = vld [vmem:[#allocation5 + $0x20] sm:$0xff]
      %v3987 = vld [vmem:[#allocation5 + $0x28] sm:$0xff]
      %v3988 = vld [vmem:[#allocation5 + $0x30] sm:$0xff]
      %v3989 = vld [vmem:[#allocation5 + $0x38] sm:$0xff]
      %v3990 = vld [vmem:[#allocation5 + $0x40] sm:$0xff]
      %v3991 = vld [vmem:[#allocation5 + $0x48] sm:$0xff]
      %v3992 = vld [vmem:[#allocation5 + $0x50] sm:$0xff]
      %v3993 = vld [vmem:[#allocation5 + $0x58] sm:$0xff]
      %v3994 = vld [vmem:[#allocation5 + $0x60] sm:$0xff]
      %v3995 = vld [vmem:[#allocation5 + $0x68] sm:$0xff]
      %v3996 = vld [vmem:[#allocation5 + $0x70] sm:$0xff]
      %v3997 = vld [vmem:[#allocation5 + $0x78] sm:$0xff]
      %v3998 = vld [vmem:[#allocation5 + $0x80] sm:$0xff]
      %v3999 = vld [vmem:[#allocation5 + $0x88] sm:$0xff]
      %v4000 = vld [vmem:[#allocation5 + $0x90] sm:$0xff]
      %v4001 = vld [vmem:[#allocation5 + $0x98] sm:$0xff]
      %v4002 = vld [vmem:[#allocation5 + $0xa0] sm:$0xff]
      %v4003 = vld [vmem:[#allocation5 + $0xa8] sm:$0xff]
      %v4004 = vld [vmem:[#allocation5 + $0xb0] sm:$0xff]
      %v4005 = vld [vmem:[#allocation5 + $0xb8] sm:$0xff]
      %v4006 = vld [vmem:[#allocation5 + $0xc0] sm:$0xff]
      %v4007 = vld [vmem:[#allocation5 + $0xc8] sm:$0xff]
      %v4008 = vld [vmem:[#allocation5 + $0xd0] sm:$0xff]
      %v4009 = vld [vmem:[#allocation5 + $0xd8] sm:$0xff]
      %v4010 = vld [vmem:[#allocation5 + $0xe0] sm:$0xff]
      %v4011 = vld [vmem:[#allocation5 + $0xe8] sm:$0xff]
      %v4012 = vld [vmem:[#allocation5 + $0xf0] sm:$0xff]
      %v4013 = vld [vmem:[#allocation5 + $0xf8] sm:$0xff]
      %v4014 = vadd.f32 %v3982, %v3856
      %v4015 = vadd.f32 %v3983, %v3859
      %v4016 = vadd.f32 %v3984, %v3864
      %v4017 = vadd.f32 %v3985, %v3867
      %v4018 = vadd.f32 %v3986, %v3872
      %v4019 = vadd.f32 %v3987, %v3875
      %v4020 = vadd.f32 %v3988, %v3880
      %v4021 = vadd.f32 %v3989, %v3883
      %v4022 = vadd.f32 %v3990, %v3888
      %v4023 = vadd.f32 %v3991, %v3891
      %v4024 = vadd.f32 %v3992, %v3896
      %v4025 = vadd.f32 %v3993, %v3899
      %v4026 = vadd.f32 %v3994, %v3904
      %v4027 = vadd.f32 %v3995, %v3907
      %v4028 = vadd.f32 %v3996, %v3912
      %v4029 = vadd.f32 %v3997, %v3915
      %v4030 = vadd.f32 %v3998, %v3920
      %v4031 = vadd.f32 %v3999, %v3923
      %v4032 = vadd.f32 %v4000, %v3928
      %v4033 = vadd.f32 %v4001, %v3931
      %v4034 = vadd.f32 %v4002, %v3936
      %v4035 = vadd.f32 %v4003, %v3939
      %v4036 = vadd.f32 %v4004, %v3944
      %v4037 = vadd.f32 %v4005, %v3947
      %v4038 = vadd.f32 %v4006, %v3952
      %v4039 = vadd.f32 %v4007, %v3955
      %v4040 = vadd.f32 %v4008, %v3960
      %v4041 = vadd.f32 %v4009, %v3963
      %v4042 = vadd.f32 %v4010, %v3968
      %v4043 = vadd.f32 %v4011, %v3971
      %v4044 = vadd.f32 %v4012, %v3976
      %v4045 = vadd.f32 %v4013, %v3979
      %4046 = vst [vmem:[#allocation5] sm:$0xff] %v4014
      %4047 = vst [vmem:[#allocation5 + $0x8] sm:$0xff] %v4015
      %4048 = vst [vmem:[#allocation5 + $0x10] sm:$0xff] %v4016
      %4049 = vst [vmem:[#allocation5 + $0x18] sm:$0xff] %v4017
      %4050 = vst [vmem:[#allocation5 + $0x20] sm:$0xff] %v4018
      %4051 = vst [vmem:[#allocation5 + $0x28] sm:$0xff] %v4019
      %4052 = vst [vmem:[#allocation5 + $0x30] sm:$0xff] %v4020
      %4053 = vst [vmem:[#allocation5 + $0x38] sm:$0xff] %v4021
      %4054 = vst [vmem:[#allocation5 + $0x40] sm:$0xff] %v4022
      %4055 = vst [vmem:[#allocation5 + $0x48] sm:$0xff] %v4023
      %4056 = vst [vmem:[#allocation5 + $0x50] sm:$0xff] %v4024
      %4057 = vst [vmem:[#allocation5 + $0x58] sm:$0xff] %v4025
      %4058 = vst [vmem:[#allocation5 + $0x60] sm:$0xff] %v4026
      %4059 = vst [vmem:[#allocation5 + $0x68] sm:$0xff] %v4027
      %4060 = vst [vmem:[#allocation5 + $0x70] sm:$0xff] %v4028
      %4061 = vst [vmem:[#allocation5 + $0x78] sm:$0xff] %v4029
      %4062 = vst [vmem:[#allocation5 + $0x80] sm:$0xff] %v4030
      %4063 = vst [vmem:[#allocation5 + $0x88] sm:$0xff] %v4031
      %4064 = vst [vmem:[#allocation5 + $0x90] sm:$0xff] %v4032
      %4065 = vst [vmem:[#allocation5 + $0x98] sm:$0xff] %v4033
      %4066 = vst [vmem:[#allocation5 + $0xa0] sm:$0xff] %v4034
      %4067 = vst [vmem:[#allocation5 + $0xa8] sm:$0xff] %v4035
      %4068 = vst [vmem:[#allocation5 + $0xb0] sm:$0xff] %v4036
      %4069 = vst [vmem:[#allocation5 + $0xb8] sm:$0xff] %v4037
      %4070 = vst [vmem:[#allocation5 + $0xc0] sm:$0xff] %v4038
      %4071 = vst [vmem:[#allocation5 + $0xc8] sm:$0xff] %v4039
      %4072 = vst [vmem:[#allocation5 + $0xd0] sm:$0xff] %v4040
      %4073 = vst [vmem:[#allocation5 + $0xd8] sm:$0xff] %v4041
      %4074 = vst [vmem:[#allocation5 + $0xe0] sm:$0xff] %v4042
      %4075 = vst [vmem:[#allocation5 + $0xe8] sm:$0xff] %v4043
      %4076 = vst [vmem:[#allocation5 + $0xf0] sm:$0xff] %v4044
      %4077 = vst [vmem:[#allocation5 + $0xf8] sm:$0xff] %v4045
      %v4078 = vld [vmem:[#allocation4 + $0x8] sm:$0xf]
      %v4079 = vld [vmem:[#allocation4 + $0xc] sm:$0xf]
      %v4080 = vld [vmem:[#allocation4 + $0x10] sm:$0xf]
      %v4081 = vld [vmem:[#allocation4 + $0x14] sm:$0xf]
      %v4082 = vld [vmem:[#allocation4 + $0x18] sm:$0xf]
      %v4083 = vld [vmem:[#allocation4 + $0x1c] sm:$0xf]
      %v4084 = vld [vmem:[#allocation4 + $0x20] sm:$0xf]
      %v4085 = vld [vmem:[#allocation4 + $0x24] sm:$0xf]
      %v4086 = vld [vmem:[#allocation4 + $0x28] sm:$0xf]
      %v4087 = vld [vmem:[#allocation4 + $0x2c] sm:$0xf]
      %v4088 = vld [vmem:[#allocation4 + $0x30] sm:$0xf]
      %v4089 = vld [vmem:[#allocation4 + $0x34] sm:$0xf]
      %v4090 = vld [vmem:[#allocation4 + $0x38] sm:$0xf]
      %v4091 = vld [vmem:[#allocation4 + $0x3c] sm:$0xf]
      %v4092 = vld [vmem:[#allocation4 + $0x40] sm:$0xf]
      %v4093 = vld [vmem:[#allocation4 + $0x44] sm:$0xf]
      %v4094 = vld [vmem:[#allocation4 + $0x48] sm:$0xf]
      %v4095 = vld [vmem:[#allocation4 + $0x4c] sm:$0xf]
      %v4096 = vld [vmem:[#allocation4 + $0x50] sm:$0xf]
      %v4097 = vld [vmem:[#allocation4 + $0x54] sm:$0xf]
      %v4098 = vld [vmem:[#allocation4 + $0x58] sm:$0xf]
      %v4099 = vld [vmem:[#allocation4 + $0x5c] sm:$0xf]
      %v4100 = vld [vmem:[#allocation4 + $0x60] sm:$0xf]
      %v4101 = vld [vmem:[#allocation4 + $0x64] sm:$0xf]
      %v4102 = vld [vmem:[#allocation4 + $0x68] sm:$0xf]
      %v4103 = vld [vmem:[#allocation4 + $0x6c] sm:$0xf]
      %v4104 = vld [vmem:[#allocation4 + $0x70] sm:$0xf]
      %v4105 = vld [vmem:[#allocation4 + $0x74] sm:$0xf]
      %v4106 = vld [vmem:[#allocation4 + $0x78] sm:$0xf]
      %v4107 = vld [vmem:[#allocation4 + $0x7c] sm:$0xf]
      %v4108 = vld [vmem:[#allocation4 + $0x80] sm:$0xf]
      %v4109 = vld [vmem:[#allocation4 + $0x84] sm:$0xf]
      %s4110 = scalar_lea.vmem %s3, 320
      %v4111 = vld [vmem:[%s4110] sm:$0xf]
      %v4112 = vld [vmem:[%s4110 + $0x4] sm:$0xf]
      %v4113 = vld [vmem:[%s4110 + $0x8] sm:$0xf]
      %v4114 = vld [vmem:[%s4110 + $0xc] sm:$0xf]
      %v4115 = vld [vmem:[%s4110 + $0x10] sm:$0xf]
      %v4116 = vld [vmem:[%s4110 + $0x14] sm:$0xf]
      %v4117 = vld [vmem:[%s4110 + $0x18] sm:$0xf]
      %v4118 = vld [vmem:[%s4110 + $0x1c] sm:$0xf]
      %v4119 = vld [vmem:[%s4110 + $0x20] sm:$0xf]
      %v4120 = vld [vmem:[%s4110 + $0x24] sm:$0xf]
      %v4121 = vld [vmem:[%s4110 + $0x28] sm:$0xf]
      %v4122 = vld [vmem:[%s4110 + $0x2c] sm:$0xf]
      %v4123 = vld [vmem:[%s4110 + $0x30] sm:$0xf]
      %v4124 = vld [vmem:[%s4110 + $0x34] sm:$0xf]
      %v4125 = vld [vmem:[%s4110 + $0x38] sm:$0xf]
      %v4126 = vld [vmem:[%s4110 + $0x3c] sm:$0xf]
      %v4159 = vunpack.c.l.b16 %v4078
      %v4160 = vunpack.c.l.b16 %v4079
      %v4161 = vunpack.c.l.b16 %v4080
      %v4162 = vunpack.c.l.b16 %v4081
      %v4163 = vunpack.c.l.b16 %v4082
      %v4164 = vunpack.c.l.b16 %v4083
      %v4165 = vunpack.c.l.b16 %v4084
      %v4166 = vunpack.c.l.b16 %v4085
      %v4167 = vunpack.c.l.b16 %v4086
      %v4168 = vunpack.c.l.b16 %v4087
      %v4169 = vunpack.c.l.b16 %v4088
      %v4170 = vunpack.c.l.b16 %v4089
      %v4171 = vunpack.c.l.b16 %v4090
      %v4172 = vunpack.c.l.b16 %v4091
      %v4173 = vunpack.c.l.b16 %v4092
      %v4174 = vunpack.c.l.b16 %v4093
      %v4175 = vunpack.c.l.b16 %v4094
      %v4176 = vunpack.c.l.b16 %v4095
      %v4177 = vunpack.c.l.b16 %v4096
      %v4178 = vunpack.c.l.b16 %v4097
      %v4179 = vunpack.c.l.b16 %v4098
      %v4180 = vunpack.c.l.b16 %v4099
      %v4181 = vunpack.c.l.b16 %v4100
      %v4182 = vunpack.c.l.b16 %v4101
      %v4183 = vunpack.c.l.b16 %v4102
      %v4184 = vunpack.c.l.b16 %v4103
      %v4185 = vunpack.c.l.b16 %v4104
      %v4186 = vunpack.c.l.b16 %v4105
      %v4187 = vunpack.c.l.b16 %v4106
      %v4188 = vunpack.c.l.b16 %v4107
      %v4189 = vunpack.c.l.b16 %v4108
      %v4190 = vunpack.c.l.b16 %v4109
      %v4191 = vpack.c.b16 %v4160, %v4159
      %v4192 = vpack.c.b16 %v4162, %v4161
      %v4193 = vpack.c.b16 %v4164, %v4163
      %v4194 = vpack.c.b16 %v4166, %v4165
      %v4195 = vpack.c.b16 %v4168, %v4167
      %v4196 = vpack.c.b16 %v4170, %v4169
      %v4197 = vpack.c.b16 %v4172, %v4171
      %v4198 = vpack.c.b16 %v4174, %v4173
      %v4199 = vpack.c.b16 %v4176, %v4175
      %v4200 = vpack.c.b16 %v4178, %v4177
      %v4201 = vpack.c.b16 %v4180, %v4179
      %v4202 = vpack.c.b16 %v4182, %v4181
      %v4203 = vpack.c.b16 %v4184, %v4183
      %v4204 = vpack.c.b16 %v4186, %v4185
      %v4205 = vpack.c.b16 %v4188, %v4187
      %v4206 = vpack.c.b16 %v4190, %v4189
      %v4239 = vunpack.c.l.b16 %v4111
      %v4240 = vunpack.c.l.b16 %v4112
      %v4241 = vunpack.c.l.b16 %v4113
      %v4242 = vunpack.c.l.b16 %v4114
      %v4243 = vunpack.c.l.b16 %v4115
      %v4244 = vunpack.c.l.b16 %v4116
      %v4245 = vunpack.c.l.b16 %v4117
      %v4246 = vunpack.c.l.b16 %v4118
      %v4247 = vunpack.c.l.b16 %v4119
      %v4248 = vunpack.c.l.b16 %v4120
      %v4249 = vunpack.c.l.b16 %v4121
      %v4250 = vunpack.c.l.b16 %v4122
      %v4251 = vunpack.c.l.b16 %v4123
      %v4252 = vunpack.c.l.b16 %v4124
      %v4253 = vunpack.c.l.b16 %v4125
      %v4254 = vunpack.c.l.b16 %v4126
      %v4255 = vpack.c.b16 %v4240, %v4239
      %v4256 = vpack.c.b16 %v4242, %v4241
      %v4257 = vpack.c.b16 %v4244, %v4243
      %v4258 = vpack.c.b16 %v4246, %v4245
      %v4259 = vpack.c.b16 %v4248, %v4247
      %v4260 = vpack.c.b16 %v4250, %v4249
      %v4261 = vpack.c.b16 %v4252, %v4251
      %v4262 = vpack.c.b16 %v4254, %v4253
      %4271 = vmatprep.subr.bf16.mxu0 0
      %4272 = vmatpush1.bf16.msra.mxu0 %v4262
      %4273 = vmatprep.subr.bf16.mxu0 0
      %4274 = vmatpush1.bf16.msra.mxu0 %v4261
      %4275 = vmatprep.subr.bf16.mxu0 0
      %4276 = vmatpush1.bf16.msra.mxu0 %v4260
      %4277 = vmatprep.subr.bf16.mxu0 0
      %4278 = vmatpush1.bf16.msra.mxu0 %v4259
      %4279 = vmatprep.subr.bf16.mxu0 0
      %4280 = vmatpush1.bf16.msra.mxu0 %v4258
      %4281 = vmatprep.subr.bf16.mxu0 0
      %4282 = vmatpush1.bf16.msra.mxu0 %v4257
      %4283 = vmatprep.subr.bf16.mxu0 0
      %4284 = vmatpush1.bf16.msra.mxu0 %v4256
      %4285 = vmatprep.subr.bf16.mxu0 0
      %4286 = vmatpush1.bf16.msra.mxu0 %v4255
      %4287 = vmatprep.subr.bf16.mxu0 0
      %4288 = vmatpush2.bf16.msra.mxu0 0
      %4289 = vmatprep.subr.bf16.mxu0 0
      %4290 = vmatpush2.bf16.msra.mxu0 0
      %4291 = vmatprep.subr.bf16.mxu0 0
      %4292 = vmatpush2.bf16.msra.mxu0 0
      %4293 = vmatprep.subr.bf16.mxu0 0
      %4294 = vmatpush2.bf16.msra.mxu0 0
      %4295 = vmatprep.subr.bf16.mxu0 0
      %4296 = vmatpush2.bf16.msra.mxu0 0
      %4297 = vmatprep.subr.bf16.mxu0 0
      %4298 = vmatpush2.bf16.msra.mxu0 0
      %4299 = vmatprep.subr.bf16.mxu0 0
      %4300 = vmatpush2.bf16.msra.mxu0 0
      %4301 = vmatprep.subr.bf16.mxu0 0
      %4302 = vmatpush2.bf16.msra.mxu0 0
      %4303 = vmatprep.mubr.bf16.mxu0 0
      %4304 = vmatmul.mubr.bf16.gmra.mxu0 %v4191
      %v4305 = vpop.f32.mrf.mxu0
      %v4306 = vadd.f32 0.0, %v4305
      %v4307 = vpop.f32.mrf.mxu0
      %v4308 = vpop.f32.mrf.mxu0
      %v4309 = vadd.f32 0.0, %v4308
      %v4310 = vpop.f32.mrf.mxu0
      %4311 = vmatprep.mubr.bf16.mxu0 0
      %4312 = vmatmul.mubr.bf16.gmra.mxu0 %v4192
      %v4313 = vpop.f32.mrf.mxu0
      %v4314 = vadd.f32 0.0, %v4313
      %v4315 = vpop.f32.mrf.mxu0
      %v4316 = vpop.f32.mrf.mxu0
      %v4317 = vadd.f32 0.0, %v4316
      %v4318 = vpop.f32.mrf.mxu0
      %4319 = vmatprep.mubr.bf16.mxu0 0
      %4320 = vmatmul.mubr.bf16.gmra.mxu0 %v4193
      %v4321 = vpop.f32.mrf.mxu0
      %v4322 = vadd.f32 0.0, %v4321
      %v4323 = vpop.f32.mrf.mxu0
      %v4324 = vpop.f32.mrf.mxu0
      %v4325 = vadd.f32 0.0, %v4324
      %v4326 = vpop.f32.mrf.mxu0
      %4327 = vmatprep.mubr.bf16.mxu0 0
      %4328 = vmatmul.mubr.bf16.gmra.mxu0 %v4194
      %v4329 = vpop.f32.mrf.mxu0
      %v4330 = vadd.f32 0.0, %v4329
      %v4331 = vpop.f32.mrf.mxu0
      %v4332 = vpop.f32.mrf.mxu0
      %v4333 = vadd.f32 0.0, %v4332
      %v4334 = vpop.f32.mrf.mxu0
      %4335 = vmatprep.mubr.bf16.mxu0 0
      %4336 = vmatmul.mubr.bf16.gmra.mxu0 %v4195
      %v4337 = vpop.f32.mrf.mxu0
      %v4338 = vadd.f32 0.0, %v4337
      %v4339 = vpop.f32.mrf.mxu0
      %v4340 = vpop.f32.mrf.mxu0
      %v4341 = vadd.f32 0.0, %v4340
      %v4342 = vpop.f32.mrf.mxu0
      %4343 = vmatprep.mubr.bf16.mxu0 0
      %4344 = vmatmul.mubr.bf16.gmra.mxu0 %v4196
      %v4345 = vpop.f32.mrf.mxu0
      %v4346 = vadd.f32 0.0, %v4345
      %v4347 = vpop.f32.mrf.mxu0
      %v4348 = vpop.f32.mrf.mxu0
      %v4349 = vadd.f32 0.0, %v4348
      %v4350 = vpop.f32.mrf.mxu0
      %4351 = vmatprep.mubr.bf16.mxu0 0
      %4352 = vmatmul.mubr.bf16.gmra.mxu0 %v4197
      %v4353 = vpop.f32.mrf.mxu0
      %v4354 = vadd.f32 0.0, %v4353
      %v4355 = vpop.f32.mrf.mxu0
      %v4356 = vpop.f32.mrf.mxu0
      %v4357 = vadd.f32 0.0, %v4356
      %v4358 = vpop.f32.mrf.mxu0
      %4359 = vmatprep.mubr.bf16.mxu0 0
      %4360 = vmatmul.mubr.bf16.gmra.mxu0 %v4198
      %v4361 = vpop.f32.mrf.mxu0
      %v4362 = vadd.f32 0.0, %v4361
      %v4363 = vpop.f32.mrf.mxu0
      %v4364 = vpop.f32.mrf.mxu0
      %v4365 = vadd.f32 0.0, %v4364
      %v4366 = vpop.f32.mrf.mxu0
      %4367 = vmatprep.mubr.bf16.mxu0 0
      %4368 = vmatmul.mubr.bf16.gmra.mxu0 %v4199
      %v4369 = vpop.f32.mrf.mxu0
      %v4370 = vadd.f32 0.0, %v4369
      %v4371 = vpop.f32.mrf.mxu0
      %v4372 = vpop.f32.mrf.mxu0
      %v4373 = vadd.f32 0.0, %v4372
      %v4374 = vpop.f32.mrf.mxu0
      %4375 = vmatprep.mubr.bf16.mxu0 0
      %4376 = vmatmul.mubr.bf16.gmra.mxu0 %v4200
      %v4377 = vpop.f32.mrf.mxu0
      %v4378 = vadd.f32 0.0, %v4377
      %v4379 = vpop.f32.mrf.mxu0
      %v4380 = vpop.f32.mrf.mxu0
      %v4381 = vadd.f32 0.0, %v4380
      %v4382 = vpop.f32.mrf.mxu0
      %4383 = vmatprep.mubr.bf16.mxu0 0
      %4384 = vmatmul.mubr.bf16.gmra.mxu0 %v4201
      %v4385 = vpop.f32.mrf.mxu0
      %v4386 = vadd.f32 0.0, %v4385
      %v4387 = vpop.f32.mrf.mxu0
      %v4388 = vpop.f32.mrf.mxu0
      %v4389 = vadd.f32 0.0, %v4388
      %v4390 = vpop.f32.mrf.mxu0
      %4391 = vmatprep.mubr.bf16.mxu0 0
      %4392 = vmatmul.mubr.bf16.gmra.mxu0 %v4202
      %v4393 = vpop.f32.mrf.mxu0
      %v4394 = vadd.f32 0.0, %v4393
      %v4395 = vpop.f32.mrf.mxu0
      %v4396 = vpop.f32.mrf.mxu0
      %v4397 = vadd.f32 0.0, %v4396
      %v4398 = vpop.f32.mrf.mxu0
      %4399 = vmatprep.mubr.bf16.mxu0 0
      %4400 = vmatmul.mubr.bf16.gmra.mxu0 %v4203
      %v4401 = vpop.f32.mrf.mxu0
      %v4402 = vadd.f32 0.0, %v4401
      %v4403 = vpop.f32.mrf.mxu0
      %v4404 = vpop.f32.mrf.mxu0
      %v4405 = vadd.f32 0.0, %v4404
      %v4406 = vpop.f32.mrf.mxu0
      %4407 = vmatprep.mubr.bf16.mxu0 0
      %4408 = vmatmul.mubr.bf16.gmra.mxu0 %v4204
      %v4409 = vpop.f32.mrf.mxu0
      %v4410 = vadd.f32 0.0, %v4409
      %v4411 = vpop.f32.mrf.mxu0
      %v4412 = vpop.f32.mrf.mxu0
      %v4413 = vadd.f32 0.0, %v4412
      %v4414 = vpop.f32.mrf.mxu0
      %4415 = vmatprep.mubr.bf16.mxu0 0
      %4416 = vmatmul.mubr.bf16.gmra.mxu0 %v4205
      %v4417 = vpop.f32.mrf.mxu0
      %v4418 = vadd.f32 0.0, %v4417
      %v4419 = vpop.f32.mrf.mxu0
      %v4420 = vpop.f32.mrf.mxu0
      %v4421 = vadd.f32 0.0, %v4420
      %v4422 = vpop.f32.mrf.mxu0
      %4423 = vmatprep.mubr.bf16.mxu0 0
      %4424 = vmatmul.mubr.bf16.gmra.mxu0 %v4206
      %v4425 = vpop.f32.mrf.mxu0
      %v4426 = vadd.f32 0.0, %v4425
      %v4427 = vpop.f32.mrf.mxu0
      %v4428 = vpop.f32.mrf.mxu0
      %v4429 = vadd.f32 0.0, %v4428
      %v4430 = vpop.f32.mrf.mxu0
      %4431 = vdwg.mxu0
      %v4432 = vld [vmem:[#allocation5] sm:$0xff]
      %v4433 = vld [vmem:[#allocation5 + $0x8] sm:$0xff]
      %v4434 = vld [vmem:[#allocation5 + $0x10] sm:$0xff]
      %v4435 = vld [vmem:[#allocation5 + $0x18] sm:$0xff]
      %v4436 = vld [vmem:[#allocation5 + $0x20] sm:$0xff]
      %v4437 = vld [vmem:[#allocation5 + $0x28] sm:$0xff]
      %v4438 = vld [vmem:[#allocation5 + $0x30] sm:$0xff]
      %v4439 = vld [vmem:[#allocation5 + $0x38] sm:$0xff]
      %v4440 = vld [vmem:[#allocation5 + $0x40] sm:$0xff]
      %v4441 = vld [vmem:[#allocation5 + $0x48] sm:$0xff]
      %v4442 = vld [vmem:[#allocation5 + $0x50] sm:$0xff]
      %v4443 = vld [vmem:[#allocation5 + $0x58] sm:$0xff]
      %v4444 = vld [vmem:[#allocation5 + $0x60] sm:$0xff]
      %v4445 = vld [vmem:[#allocation5 + $0x68] sm:$0xff]
      %v4446 = vld [vmem:[#allocation5 + $0x70] sm:$0xff]
      %v4447 = vld [vmem:[#allocation5 + $0x78] sm:$0xff]
      %v4448 = vld [vmem:[#allocation5 + $0x80] sm:$0xff]
      %v4449 = vld [vmem:[#allocation5 + $0x88] sm:$0xff]
      %v4450 = vld [vmem:[#allocation5 + $0x90] sm:$0xff]
      %v4451 = vld [vmem:[#allocation5 + $0x98] sm:$0xff]
      %v4452 = vld [vmem:[#allocation5 + $0xa0] sm:$0xff]
      %v4453 = vld [vmem:[#allocation5 + $0xa8] sm:$0xff]
      %v4454 = vld [vmem:[#allocation5 + $0xb0] sm:$0xff]
      %v4455 = vld [vmem:[#allocation5 + $0xb8] sm:$0xff]
      %v4456 = vld [vmem:[#allocation5 + $0xc0] sm:$0xff]
      %v4457 = vld [vmem:[#allocation5 + $0xc8] sm:$0xff]
      %v4458 = vld [vmem:[#allocation5 + $0xd0] sm:$0xff]
      %v4459 = vld [vmem:[#allocation5 + $0xd8] sm:$0xff]
      %v4460 = vld [vmem:[#allocation5 + $0xe0] sm:$0xff]
      %v4461 = vld [vmem:[#allocation5 + $0xe8] sm:$0xff]
      %v4462 = vld [vmem:[#allocation5 + $0xf0] sm:$0xff]
      %v4463 = vld [vmem:[#allocation5 + $0xf8] sm:$0xff]
      %v4464 = vadd.f32 %v4432, %v4306
      %v4465 = vadd.f32 %v4433, %v4309
      %v4466 = vadd.f32 %v4434, %v4314
      %v4467 = vadd.f32 %v4435, %v4317
      %v4468 = vadd.f32 %v4436, %v4322
      %v4469 = vadd.f32 %v4437, %v4325
      %v4470 = vadd.f32 %v4438, %v4330
      %v4471 = vadd.f32 %v4439, %v4333
      %v4472 = vadd.f32 %v4440, %v4338
      %v4473 = vadd.f32 %v4441, %v4341
      %v4474 = vadd.f32 %v4442, %v4346
      %v4475 = vadd.f32 %v4443, %v4349
      %v4476 = vadd.f32 %v4444, %v4354
      %v4477 = vadd.f32 %v4445, %v4357
      %v4478 = vadd.f32 %v4446, %v4362
      %v4479 = vadd.f32 %v4447, %v4365
      %v4480 = vadd.f32 %v4448, %v4370
      %v4481 = vadd.f32 %v4449, %v4373
      %v4482 = vadd.f32 %v4450, %v4378
      %v4483 = vadd.f32 %v4451, %v4381
      %v4484 = vadd.f32 %v4452, %v4386
      %v4485 = vadd.f32 %v4453, %v4389
      %v4486 = vadd.f32 %v4454, %v4394
      %v4487 = vadd.f32 %v4455, %v4397
      %v4488 = vadd.f32 %v4456, %v4402
      %v4489 = vadd.f32 %v4457, %v4405
      %v4490 = vadd.f32 %v4458, %v4410
      %v4491 = vadd.f32 %v4459, %v4413
      %v4492 = vadd.f32 %v4460, %v4418
      %v4493 = vadd.f32 %v4461, %v4421
      %v4494 = vadd.f32 %v4462, %v4426
      %v4495 = vadd.f32 %v4463, %v4429
      %4496 = vst [vmem:[#allocation5] sm:$0xff] %v4464
      %4497 = vst [vmem:[#allocation5 + $0x8] sm:$0xff] %v4465
      %4498 = vst [vmem:[#allocation5 + $0x10] sm:$0xff] %v4466
      %4499 = vst [vmem:[#allocation5 + $0x18] sm:$0xff] %v4467
      %4500 = vst [vmem:[#allocation5 + $0x20] sm:$0xff] %v4468
      %4501 = vst [vmem:[#allocation5 + $0x28] sm:$0xff] %v4469
      %4502 = vst [vmem:[#allocation5 + $0x30] sm:$0xff] %v4470
      %4503 = vst [vmem:[#allocation5 + $0x38] sm:$0xff] %v4471
      %4504 = vst [vmem:[#allocation5 + $0x40] sm:$0xff] %v4472
      %4505 = vst [vmem:[#allocation5 + $0x48] sm:$0xff] %v4473
      %4506 = vst [vmem:[#allocation5 + $0x50] sm:$0xff] %v4474
      %4507 = vst [vmem:[#allocation5 + $0x58] sm:$0xff] %v4475
      %4508 = vst [vmem:[#allocation5 + $0x60] sm:$0xff] %v4476
      %4509 = vst [vmem:[#allocation5 + $0x68] sm:$0xff] %v4477
      %4510 = vst [vmem:[#allocation5 + $0x70] sm:$0xff] %v4478
      %4511 = vst [vmem:[#allocation5 + $0x78] sm:$0xff] %v4479
      %4512 = vst [vmem:[#allocation5 + $0x80] sm:$0xff] %v4480
      %4513 = vst [vmem:[#allocation5 + $0x88] sm:$0xff] %v4481
      %4514 = vst [vmem:[#allocation5 + $0x90] sm:$0xff] %v4482
      %4515 = vst [vmem:[#allocation5 + $0x98] sm:$0xff] %v4483
      %4516 = vst [vmem:[#allocation5 + $0xa0] sm:$0xff] %v4484
      %4517 = vst [vmem:[#allocation5 + $0xa8] sm:$0xff] %v4485
      %4518 = vst [vmem:[#allocation5 + $0xb0] sm:$0xff] %v4486
      %4519 = vst [vmem:[#allocation5 + $0xb8] sm:$0xff] %v4487
      %4520 = vst [vmem:[#allocation5 + $0xc0] sm:$0xff] %v4488
      %4521 = vst [vmem:[#allocation5 + $0xc8] sm:$0xff] %v4489
      %4522 = vst [vmem:[#allocation5 + $0xd0] sm:$0xff] %v4490
      %4523 = vst [vmem:[#allocation5 + $0xd8] sm:$0xff] %v4491
      %4524 = vst [vmem:[#allocation5 + $0xe0] sm:$0xff] %v4492
      %4525 = vst [vmem:[#allocation5 + $0xe8] sm:$0xff] %v4493
      %4526 = vst [vmem:[#allocation5 + $0xf0] sm:$0xff] %v4494
      %4527 = vst [vmem:[#allocation5 + $0xf8] sm:$0xff] %v4495
      %v4528 = vld [vmem:[#allocation2 + $0x10] sm:$0xf]
      %v4529 = vld [vmem:[#allocation2 + $0x14] sm:$0xf]
      %v4530 = vld [vmem:[#allocation2 + $0x18] sm:$0xf]
      %v4531 = vld [vmem:[#allocation2 + $0x1c] sm:$0xf]
      %v4532 = vld [vmem:[#allocation2 + $0x20] sm:$0xf]
      %v4533 = vld [vmem:[#allocation2 + $0x24] sm:$0xf]
      %v4534 = vld [vmem:[#allocation2 + $0x28] sm:$0xf]
      %v4535 = vld [vmem:[#allocation2 + $0x2c] sm:$0xf]
      %v4536 = vld [vmem:[#allocation2 + $0x30] sm:$0xf]
      %v4537 = vld [vmem:[#allocation2 + $0x34] sm:$0xf]
      %v4538 = vld [vmem:[#allocation2 + $0x38] sm:$0xf]
      %v4539 = vld [vmem:[#allocation2 + $0x3c] sm:$0xf]
      %v4540 = vld [vmem:[#allocation2 + $0x40] sm:$0xf]
      %v4541 = vld [vmem:[#allocation2 + $0x44] sm:$0xf]
      %v4542 = vld [vmem:[#allocation2 + $0x48] sm:$0xf]
      %v4543 = vld [vmem:[#allocation2 + $0x4c] sm:$0xf]
      %v4544 = vld [vmem:[#allocation2 + $0x50] sm:$0xf]
      %v4545 = vld [vmem:[#allocation2 + $0x54] sm:$0xf]
      %v4546 = vld [vmem:[#allocation2 + $0x58] sm:$0xf]
      %v4547 = vld [vmem:[#allocation2 + $0x5c] sm:$0xf]
      %v4548 = vld [vmem:[#allocation2 + $0x60] sm:$0xf]
      %v4549 = vld [vmem:[#allocation2 + $0x64] sm:$0xf]
      %v4550 = vld [vmem:[#allocation2 + $0x68] sm:$0xf]
      %v4551 = vld [vmem:[#allocation2 + $0x6c] sm:$0xf]
      %v4552 = vld [vmem:[#allocation2 + $0x70] sm:$0xf]
      %v4553 = vld [vmem:[#allocation2 + $0x74] sm:$0xf]
      %v4554 = vld [vmem:[#allocation2 + $0x78] sm:$0xf]
      %v4555 = vld [vmem:[#allocation2 + $0x7c] sm:$0xf]
      %v4556 = vld [vmem:[#allocation2 + $0x80] sm:$0xf]
      %v4557 = vld [vmem:[#allocation2 + $0x84] sm:$0xf]
      %v4558 = vld [vmem:[#allocation2 + $0x88] sm:$0xf]
      %v4559 = vld [vmem:[#allocation2 + $0x8c] sm:$0xf]
      %s4560 = scalar_lea.vmem %s3, 384
      %v4561 = vld [vmem:[%s4560] sm:$0xf]
      %v4562 = vld [vmem:[%s4560 + $0x4] sm:$0xf]
      %v4563 = vld [vmem:[%s4560 + $0x8] sm:$0xf]
      %v4564 = vld [vmem:[%s4560 + $0xc] sm:$0xf]
      %v4565 = vld [vmem:[%s4560 + $0x10] sm:$0xf]
      %v4566 = vld [vmem:[%s4560 + $0x14] sm:$0xf]
      %v4567 = vld [vmem:[%s4560 + $0x18] sm:$0xf]
      %v4568 = vld [vmem:[%s4560 + $0x1c] sm:$0xf]
      %v4569 = vld [vmem:[%s4560 + $0x20] sm:$0xf]
      %v4570 = vld [vmem:[%s4560 + $0x24] sm:$0xf]
      %v4571 = vld [vmem:[%s4560 + $0x28] sm:$0xf]
      %v4572 = vld [vmem:[%s4560 + $0x2c] sm:$0xf]
      %v4573 = vld [vmem:[%s4560 + $0x30] sm:$0xf]
      %v4574 = vld [vmem:[%s4560 + $0x34] sm:$0xf]
      %v4575 = vld [vmem:[%s4560 + $0x38] sm:$0xf]
      %v4576 = vld [vmem:[%s4560 + $0x3c] sm:$0xf]
      %v4609 = vunpack.c.l.b16 %v4528
      %v4610 = vunpack.c.l.b16 %v4529
      %v4611 = vunpack.c.l.b16 %v4530
      %v4612 = vunpack.c.l.b16 %v4531
      %v4613 = vunpack.c.l.b16 %v4532
      %v4614 = vunpack.c.l.b16 %v4533
      %v4615 = vunpack.c.l.b16 %v4534
      %v4616 = vunpack.c.l.b16 %v4535
      %v4617 = vunpack.c.l.b16 %v4536
      %v4618 = vunpack.c.l.b16 %v4537
      %v4619 = vunpack.c.l.b16 %v4538
      %v4620 = vunpack.c.l.b16 %v4539
      %v4621 = vunpack.c.l.b16 %v4540
      %v4622 = vunpack.c.l.b16 %v4541
      %v4623 = vunpack.c.l.b16 %v4542
      %v4624 = vunpack.c.l.b16 %v4543
      %v4625 = vunpack.c.l.b16 %v4544
      %v4626 = vunpack.c.l.b16 %v4545
      %v4627 = vunpack.c.l.b16 %v4546
      %v4628 = vunpack.c.l.b16 %v4547
      %v4629 = vunpack.c.l.b16 %v4548
      %v4630 = vunpack.c.l.b16 %v4549
      %v4631 = vunpack.c.l.b16 %v4550
      %v4632 = vunpack.c.l.b16 %v4551
      %v4633 = vunpack.c.l.b16 %v4552
      %v4634 = vunpack.c.l.b16 %v4553
      %v4635 = vunpack.c.l.b16 %v4554
      %v4636 = vunpack.c.l.b16 %v4555
      %v4637 = vunpack.c.l.b16 %v4556
      %v4638 = vunpack.c.l.b16 %v4557
      %v4639 = vunpack.c.l.b16 %v4558
      %v4640 = vunpack.c.l.b16 %v4559
      %v4641 = vpack.c.b16 %v4610, %v4609
      %v4642 = vpack.c.b16 %v4612, %v4611
      %v4643 = vpack.c.b16 %v4614, %v4613
      %v4644 = vpack.c.b16 %v4616, %v4615
      %v4645 = vpack.c.b16 %v4618, %v4617
      %v4646 = vpack.c.b16 %v4620, %v4619
      %v4647 = vpack.c.b16 %v4622, %v4621
      %v4648 = vpack.c.b16 %v4624, %v4623
      %v4649 = vpack.c.b16 %v4626, %v4625
      %v4650 = vpack.c.b16 %v4628, %v4627
      %v4651 = vpack.c.b16 %v4630, %v4629
      %v4652 = vpack.c.b16 %v4632, %v4631
      %v4653 = vpack.c.b16 %v4634, %v4633
      %v4654 = vpack.c.b16 %v4636, %v4635
      %v4655 = vpack.c.b16 %v4638, %v4637
      %v4656 = vpack.c.b16 %v4640, %v4639
      %v4689 = vunpack.c.l.b16 %v4561
      %v4690 = vunpack.c.l.b16 %v4562
      %v4691 = vunpack.c.l.b16 %v4563
      %v4692 = vunpack.c.l.b16 %v4564
      %v4693 = vunpack.c.l.b16 %v4565
      %v4694 = vunpack.c.l.b16 %v4566
      %v4695 = vunpack.c.l.b16 %v4567
      %v4696 = vunpack.c.l.b16 %v4568
      %v4697 = vunpack.c.l.b16 %v4569
      %v4698 = vunpack.c.l.b16 %v4570
      %v4699 = vunpack.c.l.b16 %v4571
      %v4700 = vunpack.c.l.b16 %v4572
      %v4701 = vunpack.c.l.b16 %v4573
      %v4702 = vunpack.c.l.b16 %v4574
      %v4703 = vunpack.c.l.b16 %v4575
      %v4704 = vunpack.c.l.b16 %v4576
      %v4705 = vpack.c.b16 %v4690, %v4689
      %v4706 = vpack.c.b16 %v4692, %v4691
      %v4707 = vpack.c.b16 %v4694, %v4693
      %v4708 = vpack.c.b16 %v4696, %v4695
      %v4709 = vpack.c.b16 %v4698, %v4697
      %v4710 = vpack.c.b16 %v4700, %v4699
      %v4711 = vpack.c.b16 %v4702, %v4701
      %v4712 = vpack.c.b16 %v4704, %v4703
      %4721 = vmatprep.subr.bf16.mxu0 0
      %4722 = vmatpush1.bf16.msra.mxu0 %v4712
      %4723 = vmatprep.subr.bf16.mxu0 0
      %4724 = vmatpush1.bf16.msra.mxu0 %v4711
      %4725 = vmatprep.subr.bf16.mxu0 0
      %4726 = vmatpush1.bf16.msra.mxu0 %v4710
      %4727 = vmatprep.subr.bf16.mxu0 0
      %4728 = vmatpush1.bf16.msra.mxu0 %v4709
      %4729 = vmatprep.subr.bf16.mxu0 0
      %4730 = vmatpush1.bf16.msra.mxu0 %v4708
      %4731 = vmatprep.subr.bf16.mxu0 0
      %4732 = vmatpush1.bf16.msra.mxu0 %v4707
      %4733 = vmatprep.subr.bf16.mxu0 0
      %4734 = vmatpush1.bf16.msra.mxu0 %v4706
      %4735 = vmatprep.subr.bf16.mxu0 0
      %4736 = vmatpush1.bf16.msra.mxu0 %v4705
      %4737 = vmatprep.subr.bf16.mxu0 0
      %4738 = vmatpush2.bf16.msra.mxu0 0
      %4739 = vmatprep.subr.bf16.mxu0 0
      %4740 = vmatpush2.bf16.msra.mxu0 0
      %4741 = vmatprep.subr.bf16.mxu0 0
      %4742 = vmatpush2.bf16.msra.mxu0 0
      %4743 = vmatprep.subr.bf16.mxu0 0
      %4744 = vmatpush2.bf16.msra.mxu0 0
      %4745 = vmatprep.subr.bf16.mxu0 0
      %4746 = vmatpush2.bf16.msra.mxu0 0
      %4747 = vmatprep.subr.bf16.mxu0 0
      %4748 = vmatpush2.bf16.msra.mxu0 0
      %4749 = vmatprep.subr.bf16.mxu0 0
      %4750 = vmatpush2.bf16.msra.mxu0 0
      %4751 = vmatprep.subr.bf16.mxu0 0
      %4752 = vmatpush2.bf16.msra.mxu0 0
      %4753 = vmatprep.mubr.bf16.mxu0 0
      %4754 = vmatmul.mubr.bf16.gmra.mxu0 %v4641
      %v4755 = vpop.f32.mrf.mxu0
      %v4756 = vadd.f32 0.0, %v4755
      %v4757 = vpop.f32.mrf.mxu0
      %v4758 = vpop.f32.mrf.mxu0
      %v4759 = vadd.f32 0.0, %v4758
      %v4760 = vpop.f32.mrf.mxu0
      %4761 = vmatprep.mubr.bf16.mxu0 0
      %4762 = vmatmul.mubr.bf16.gmra.mxu0 %v4642
      %v4763 = vpop.f32.mrf.mxu0
      %v4764 = vadd.f32 0.0, %v4763
      %v4765 = vpop.f32.mrf.mxu0
      %v4766 = vpop.f32.mrf.mxu0
      %v4767 = vadd.f32 0.0, %v4766
      %v4768 = vpop.f32.mrf.mxu0
      %4769 = vmatprep.mubr.bf16.mxu0 0
      %4770 = vmatmul.mubr.bf16.gmra.mxu0 %v4643
      %v4771 = vpop.f32.mrf.mxu0
      %v4772 = vadd.f32 0.0, %v4771
      %v4773 = vpop.f32.mrf.mxu0
      %v4774 = vpop.f32.mrf.mxu0
      %v4775 = vadd.f32 0.0, %v4774
      %v4776 = vpop.f32.mrf.mxu0
      %4777 = vmatprep.mubr.bf16.mxu0 0
      %4778 = vmatmul.mubr.bf16.gmra.mxu0 %v4644
      %v4779 = vpop.f32.mrf.mxu0
      %v4780 = vadd.f32 0.0, %v4779
      %v4781 = vpop.f32.mrf.mxu0
      %v4782 = vpop.f32.mrf.mxu0
      %v4783 = vadd.f32 0.0, %v4782
      %v4784 = vpop.f32.mrf.mxu0
      %4785 = vmatprep.mubr.bf16.mxu0 0
      %4786 = vmatmul.mubr.bf16.gmra.mxu0 %v4645
      %v4787 = vpop.f32.mrf.mxu0
      %v4788 = vadd.f32 0.0, %v4787
      %v4789 = vpop.f32.mrf.mxu0
      %v4790 = vpop.f32.mrf.mxu0
      %v4791 = vadd.f32 0.0, %v4790
      %v4792 = vpop.f32.mrf.mxu0
      %4793 = vmatprep.mubr.bf16.mxu0 0
      %4794 = vmatmul.mubr.bf16.gmra.mxu0 %v4646
      %v4795 = vpop.f32.mrf.mxu0
      %v4796 = vadd.f32 0.0, %v4795
      %v4797 = vpop.f32.mrf.mxu0
      %v4798 = vpop.f32.mrf.mxu0
      %v4799 = vadd.f32 0.0, %v4798
      %v4800 = vpop.f32.mrf.mxu0
      %4801 = vmatprep.mubr.bf16.mxu0 0
      %4802 = vmatmul.mubr.bf16.gmra.mxu0 %v4647
      %v4803 = vpop.f32.mrf.mxu0
      %v4804 = vadd.f32 0.0, %v4803
      %v4805 = vpop.f32.mrf.mxu0
      %v4806 = vpop.f32.mrf.mxu0
      %v4807 = vadd.f32 0.0, %v4806
      %v4808 = vpop.f32.mrf.mxu0
      %4809 = vmatprep.mubr.bf16.mxu0 0
      %4810 = vmatmul.mubr.bf16.gmra.mxu0 %v4648
      %v4811 = vpop.f32.mrf.mxu0
      %v4812 = vadd.f32 0.0, %v4811
      %v4813 = vpop.f32.mrf.mxu0
      %v4814 = vpop.f32.mrf.mxu0
      %v4815 = vadd.f32 0.0, %v4814
      %v4816 = vpop.f32.mrf.mxu0
      %4817 = vmatprep.mubr.bf16.mxu0 0
      %4818 = vmatmul.mubr.bf16.gmra.mxu0 %v4649
      %v4819 = vpop.f32.mrf.mxu0
      %v4820 = vadd.f32 0.0, %v4819
      %v4821 = vpop.f32.mrf.mxu0
      %v4822 = vpop.f32.mrf.mxu0
      %v4823 = vadd.f32 0.0, %v4822
      %v4824 = vpop.f32.mrf.mxu0
      %4825 = vmatprep.mubr.bf16.mxu0 0
      %4826 = vmatmul.mubr.bf16.gmra.mxu0 %v4650
      %v4827 = vpop.f32.mrf.mxu0
      %v4828 = vadd.f32 0.0, %v4827
      %v4829 = vpop.f32.mrf.mxu0
      %v4830 = vpop.f32.mrf.mxu0
      %v4831 = vadd.f32 0.0, %v4830
      %v4832 = vpop.f32.mrf.mxu0
      %4833 = vmatprep.mubr.bf16.mxu0 0
      %4834 = vmatmul.mubr.bf16.gmra.mxu0 %v4651
      %v4835 = vpop.f32.mrf.mxu0
      %v4836 = vadd.f32 0.0, %v4835
      %v4837 = vpop.f32.mrf.mxu0
      %v4838 = vpop.f32.mrf.mxu0
      %v4839 = vadd.f32 0.0, %v4838
      %v4840 = vpop.f32.mrf.mxu0
      %4841 = vmatprep.mubr.bf16.mxu0 0
      %4842 = vmatmul.mubr.bf16.gmra.mxu0 %v4652
      %v4843 = vpop.f32.mrf.mxu0
      %v4844 = vadd.f32 0.0, %v4843
      %v4845 = vpop.f32.mrf.mxu0
      %v4846 = vpop.f32.mrf.mxu0
      %v4847 = vadd.f32 0.0, %v4846
      %v4848 = vpop.f32.mrf.mxu0
      %4849 = vmatprep.mubr.bf16.mxu0 0
      %4850 = vmatmul.mubr.bf16.gmra.mxu0 %v4653
      %v4851 = vpop.f32.mrf.mxu0
      %v4852 = vadd.f32 0.0, %v4851
      %v4853 = vpop.f32.mrf.mxu0
      %v4854 = vpop.f32.mrf.mxu0
      %v4855 = vadd.f32 0.0, %v4854
      %v4856 = vpop.f32.mrf.mxu0
      %4857 = vmatprep.mubr.bf16.mxu0 0
      %4858 = vmatmul.mubr.bf16.gmra.mxu0 %v4654
      %v4859 = vpop.f32.mrf.mxu0
      %v4860 = vadd.f32 0.0, %v4859
      %v4861 = vpop.f32.mrf.mxu0
      %v4862 = vpop.f32.mrf.mxu0
      %v4863 = vadd.f32 0.0, %v4862
      %v4864 = vpop.f32.mrf.mxu0
      %4865 = vmatprep.mubr.bf16.mxu0 0
      %4866 = vmatmul.mubr.bf16.gmra.mxu0 %v4655
      %v4867 = vpop.f32.mrf.mxu0
      %v4868 = vadd.f32 0.0, %v4867
      %v4869 = vpop.f32.mrf.mxu0
      %v4870 = vpop.f32.mrf.mxu0
      %v4871 = vadd.f32 0.0, %v4870
      %v4872 = vpop.f32.mrf.mxu0
      %4873 = vmatprep.mubr.bf16.mxu0 0
      %4874 = vmatmul.mubr.bf16.gmra.mxu0 %v4656
      %v4875 = vpop.f32.mrf.mxu0
      %v4876 = vadd.f32 0.0, %v4875
      %v4877 = vpop.f32.mrf.mxu0
      %v4878 = vpop.f32.mrf.mxu0
      %v4879 = vadd.f32 0.0, %v4878
      %v4880 = vpop.f32.mrf.mxu0
      %4881 = vdwg.mxu0
      %v4882 = vld [vmem:[#allocation5] sm:$0xff]
      %v4883 = vld [vmem:[#allocation5 + $0x8] sm:$0xff]
      %v4884 = vld [vmem:[#allocation5 + $0x10] sm:$0xff]
      %v4885 = vld [vmem:[#allocation5 + $0x18] sm:$0xff]
      %v4886 = vld [vmem:[#allocation5 + $0x20] sm:$0xff]
      %v4887 = vld [vmem:[#allocation5 + $0x28] sm:$0xff]
      %v4888 = vld [vmem:[#allocation5 + $0x30] sm:$0xff]
      %v4889 = vld [vmem:[#allocation5 + $0x38] sm:$0xff]
      %v4890 = vld [vmem:[#allocation5 + $0x40] sm:$0xff]
      %v4891 = vld [vmem:[#allocation5 + $0x48] sm:$0xff]
      %v4892 = vld [vmem:[#allocation5 + $0x50] sm:$0xff]
      %v4893 = vld [vmem:[#allocation5 + $0x58] sm:$0xff]
      %v4894 = vld [vmem:[#allocation5 + $0x60] sm:$0xff]
      %v4895 = vld [vmem:[#allocation5 + $0x68] sm:$0xff]
      %v4896 = vld [vmem:[#allocation5 + $0x70] sm:$0xff]
      %v4897 = vld [vmem:[#allocation5 + $0x78] sm:$0xff]
      %v4898 = vld [vmem:[#allocation5 + $0x80] sm:$0xff]
      %v4899 = vld [vmem:[#allocation5 + $0x88] sm:$0xff]
      %v4900 = vld [vmem:[#allocation5 + $0x90] sm:$0xff]
      %v4901 = vld [vmem:[#allocation5 + $0x98] sm:$0xff]
      %v4902 = vld [vmem:[#allocation5 + $0xa0] sm:$0xff]
      %v4903 = vld [vmem:[#allocation5 + $0xa8] sm:$0xff]
      %v4904 = vld [vmem:[#allocation5 + $0xb0] sm:$0xff]
      %v4905 = vld [vmem:[#allocation5 + $0xb8] sm:$0xff]
      %v4906 = vld [vmem:[#allocation5 + $0xc0] sm:$0xff]
      %v4907 = vld [vmem:[#allocation5 + $0xc8] sm:$0xff]
      %v4908 = vld [vmem:[#allocation5 + $0xd0] sm:$0xff]
      %v4909 = vld [vmem:[#allocation5 + $0xd8] sm:$0xff]
      %v4910 = vld [vmem:[#allocation5 + $0xe0] sm:$0xff]
      %v4911 = vld [vmem:[#allocation5 + $0xe8] sm:$0xff]
      %v4912 = vld [vmem:[#allocation5 + $0xf0] sm:$0xff]
      %v4913 = vld [vmem:[#allocation5 + $0xf8] sm:$0xff]
      %v4914 = vadd.f32 %v4882, %v4756
      %v4915 = vadd.f32 %v4883, %v4759
      %v4916 = vadd.f32 %v4884, %v4764
      %v4917 = vadd.f32 %v4885, %v4767
      %v4918 = vadd.f32 %v4886, %v4772
      %v4919 = vadd.f32 %v4887, %v4775
      %v4920 = vadd.f32 %v4888, %v4780
      %v4921 = vadd.f32 %v4889, %v4783
      %v4922 = vadd.f32 %v4890, %v4788
      %v4923 = vadd.f32 %v4891, %v4791
      %v4924 = vadd.f32 %v4892, %v4796
      %v4925 = vadd.f32 %v4893, %v4799
      %v4926 = vadd.f32 %v4894, %v4804
      %v4927 = vadd.f32 %v4895, %v4807
      %v4928 = vadd.f32 %v4896, %v4812
      %v4929 = vadd.f32 %v4897, %v4815
      %v4930 = vadd.f32 %v4898, %v4820
      %v4931 = vadd.f32 %v4899, %v4823
      %v4932 = vadd.f32 %v4900, %v4828
      %v4933 = vadd.f32 %v4901, %v4831
      %v4934 = vadd.f32 %v4902, %v4836
      %v4935 = vadd.f32 %v4903, %v4839
      %v4936 = vadd.f32 %v4904, %v4844
      %v4937 = vadd.f32 %v4905, %v4847
      %v4938 = vadd.f32 %v4906, %v4852
      %v4939 = vadd.f32 %v4907, %v4855
      %v4940 = vadd.f32 %v4908, %v4860
      %v4941 = vadd.f32 %v4909, %v4863
      %v4942 = vadd.f32 %v4910, %v4868
      %v4943 = vadd.f32 %v4911, %v4871
      %v4944 = vadd.f32 %v4912, %v4876
      %v4945 = vadd.f32 %v4913, %v4879
      %4946 = vst [vmem:[#allocation5] sm:$0xff] %v4914
      %4947 = vst [vmem:[#allocation5 + $0x8] sm:$0xff] %v4915
      %4948 = vst [vmem:[#allocation5 + $0x10] sm:$0xff] %v4916
      %4949 = vst [vmem:[#allocation5 + $0x18] sm:$0xff] %v4917
      %4950 = vst [vmem:[#allocation5 + $0x20] sm:$0xff] %v4918
      %4951 = vst [vmem:[#allocation5 + $0x28] sm:$0xff] %v4919
      %4952 = vst [vmem:[#allocation5 + $0x30] sm:$0xff] %v4920
      %4953 = vst [vmem:[#allocation5 + $0x38] sm:$0xff] %v4921
      %4954 = vst [vmem:[#allocation5 + $0x40] sm:$0xff] %v4922
      %4955 = vst [vmem:[#allocation5 + $0x48] sm:$0xff] %v4923
      %4956 = vst [vmem:[#allocation5 + $0x50] sm:$0xff] %v4924
      %4957 = vst [vmem:[#allocation5 + $0x58] sm:$0xff] %v4925
      %4958 = vst [vmem:[#allocation5 + $0x60] sm:$0xff] %v4926
      %4959 = vst [vmem:[#allocation5 + $0x68] sm:$0xff] %v4927
      %4960 = vst [vmem:[#allocation5 + $0x70] sm:$0xff] %v4928
      %4961 = vst [vmem:[#allocation5 + $0x78] sm:$0xff] %v4929
      %4962 = vst [vmem:[#allocation5 + $0x80] sm:$0xff] %v4930
      %4963 = vst [vmem:[#allocation5 + $0x88] sm:$0xff] %v4931
      %4964 = vst [vmem:[#allocation5 + $0x90] sm:$0xff] %v4932
      %4965 = vst [vmem:[#allocation5 + $0x98] sm:$0xff] %v4933
      %4966 = vst [vmem:[#allocation5 + $0xa0] sm:$0xff] %v4934
      %4967 = vst [vmem:[#allocation5 + $0xa8] sm:$0xff] %v4935
      %4968 = vst [vmem:[#allocation5 + $0xb0] sm:$0xff] %v4936
      %4969 = vst [vmem:[#allocation5 + $0xb8] sm:$0xff] %v4937
      %4970 = vst [vmem:[#allocation5 + $0xc0] sm:$0xff] %v4938
      %4971 = vst [vmem:[#allocation5 + $0xc8] sm:$0xff] %v4939
      %4972 = vst [vmem:[#allocation5 + $0xd0] sm:$0xff] %v4940
      %4973 = vst [vmem:[#allocation5 + $0xd8] sm:$0xff] %v4941
      %4974 = vst [vmem:[#allocation5 + $0xe0] sm:$0xff] %v4942
      %4975 = vst [vmem:[#allocation5 + $0xe8] sm:$0xff] %v4943
      %4976 = vst [vmem:[#allocation5 + $0xf0] sm:$0xff] %v4944
      %4977 = vst [vmem:[#allocation5 + $0xf8] sm:$0xff] %v4945
      %v4978 = vld [vmem:[#allocation3 + $0x10] sm:$0xf]
      %v4979 = vld [vmem:[#allocation3 + $0x14] sm:$0xf]
      %v4980 = vld [vmem:[#allocation3 + $0x18] sm:$0xf]
      %v4981 = vld [vmem:[#allocation3 + $0x1c] sm:$0xf]
      %v4982 = vld [vmem:[#allocation3 + $0x20] sm:$0xf]
      %v4983 = vld [vmem:[#allocation3 + $0x24] sm:$0xf]
      %v4984 = vld [vmem:[#allocation3 + $0x28] sm:$0xf]
      %v4985 = vld [vmem:[#allocation3 + $0x2c] sm:$0xf]
      %v4986 = vld [vmem:[#allocation3 + $0x30] sm:$0xf]
      %v4987 = vld [vmem:[#allocation3 + $0x34] sm:$0xf]
      %v4988 = vld [vmem:[#allocation3 + $0x38] sm:$0xf]
      %v4989 = vld [vmem:[#allocation3 + $0x3c] sm:$0xf]
      %v4990 = vld [vmem:[#allocation3 + $0x40] sm:$0xf]
      %v4991 = vld [vmem:[#allocation3 + $0x44] sm:$0xf]
      %v4992 = vld [vmem:[#allocation3 + $0x48] sm:$0xf]
      %v4993 = vld [vmem:[#allocation3 + $0x4c] sm:$0xf]
      %v4994 = vld [vmem:[#allocation3 + $0x50] sm:$0xf]
      %v4995 = vld [vmem:[#allocation3 + $0x54] sm:$0xf]
      %v4996 = vld [vmem:[#allocation3 + $0x58] sm:$0xf]
      %v4997 = vld [vmem:[#allocation3 + $0x5c] sm:$0xf]
      %v4998 = vld [vmem:[#allocation3 + $0x60] sm:$0xf]
      %v4999 = vld [vmem:[#allocation3 + $0x64] sm:$0xf]
      %v5000 = vld [vmem:[#allocation3 + $0x68] sm:$0xf]
      %v5001 = vld [vmem:[#allocation3 + $0x6c] sm:$0xf]
      %v5002 = vld [vmem:[#allocation3 + $0x70] sm:$0xf]
      %v5003 = vld [vmem:[#allocation3 + $0x74] sm:$0xf]
      %v5004 = vld [vmem:[#allocation3 + $0x78] sm:$0xf]
      %v5005 = vld [vmem:[#allocation3 + $0x7c] sm:$0xf]
      %v5006 = vld [vmem:[#allocation3 + $0x80] sm:$0xf]
      %v5007 = vld [vmem:[#allocation3 + $0x84] sm:$0xf]
      %v5008 = vld [vmem:[#allocation3 + $0x88] sm:$0xf]
      %v5009 = vld [vmem:[#allocation3 + $0x8c] sm:$0xf]
      %s5010 = scalar_lea.vmem %s3, 448
      %v5011 = vld [vmem:[%s5010] sm:$0xf]
      %v5012 = vld [vmem:[%s5010 + $0x4] sm:$0xf]
      %v5013 = vld [vmem:[%s5010 + $0x8] sm:$0xf]
      %v5014 = vld [vmem:[%s5010 + $0xc] sm:$0xf]
      %v5015 = vld [vmem:[%s5010 + $0x10] sm:$0xf]
      %v5016 = vld [vmem:[%s5010 + $0x14] sm:$0xf]
      %v5017 = vld [vmem:[%s5010 + $0x18] sm:$0xf]
      %v5018 = vld [vmem:[%s5010 + $0x1c] sm:$0xf]
      %v5019 = vld [vmem:[%s5010 + $0x20] sm:$0xf]
      %v5020 = vld [vmem:[%s5010 + $0x24] sm:$0xf]
      %v5021 = vld [vmem:[%s5010 + $0x28] sm:$0xf]
      %v5022 = vld [vmem:[%s5010 + $0x2c] sm:$0xf]
      %v5023 = vld [vmem:[%s5010 + $0x30] sm:$0xf]
      %v5024 = vld [vmem:[%s5010 + $0x34] sm:$0xf]
      %v5025 = vld [vmem:[%s5010 + $0x38] sm:$0xf]
      %v5026 = vld [vmem:[%s5010 + $0x3c] sm:$0xf]
      %v5059 = vunpack.c.l.b16 %v4978
      %v5060 = vunpack.c.l.b16 %v4979
      %v5061 = vunpack.c.l.b16 %v4980
      %v5062 = vunpack.c.l.b16 %v4981
      %v5063 = vunpack.c.l.b16 %v4982
      %v5064 = vunpack.c.l.b16 %v4983
      %v5065 = vunpack.c.l.b16 %v4984
      %v5066 = vunpack.c.l.b16 %v4985
      %v5067 = vunpack.c.l.b16 %v4986
      %v5068 = vunpack.c.l.b16 %v4987
      %v5069 = vunpack.c.l.b16 %v4988
      %v5070 = vunpack.c.l.b16 %v4989
      %v5071 = vunpack.c.l.b16 %v4990
      %v5072 = vunpack.c.l.b16 %v4991
      %v5073 = vunpack.c.l.b16 %v4992
      %v5074 = vunpack.c.l.b16 %v4993
      %v5075 = vunpack.c.l.b16 %v4994
      %v5076 = vunpack.c.l.b16 %v4995
      %v5077 = vunpack.c.l.b16 %v4996
      %v5078 = vunpack.c.l.b16 %v4997
      %v5079 = vunpack.c.l.b16 %v4998
      %v5080 = vunpack.c.l.b16 %v4999
      %v5081 = vunpack.c.l.b16 %v5000
      %v5082 = vunpack.c.l.b16 %v5001
      %v5083 = vunpack.c.l.b16 %v5002
      %v5084 = vunpack.c.l.b16 %v5003
      %v5085 = vunpack.c.l.b16 %v5004
      %v5086 = vunpack.c.l.b16 %v5005
      %v5087 = vunpack.c.l.b16 %v5006
      %v5088 = vunpack.c.l.b16 %v5007
      %v5089 = vunpack.c.l.b16 %v5008
      %v5090 = vunpack.c.l.b16 %v5009
      %v5091 = vpack.c.b16 %v5060, %v5059
      %v5092 = vpack.c.b16 %v5062, %v5061
      %v5093 = vpack.c.b16 %v5064, %v5063
      %v5094 = vpack.c.b16 %v5066, %v5065
      %v5095 = vpack.c.b16 %v5068, %v5067
      %v5096 = vpack.c.b16 %v5070, %v5069
      %v5097 = vpack.c.b16 %v5072, %v5071
      %v5098 = vpack.c.b16 %v5074, %v5073
      %v5099 = vpack.c.b16 %v5076, %v5075
      %v5100 = vpack.c.b16 %v5078, %v5077
      %v5101 = vpack.c.b16 %v5080, %v5079
      %v5102 = vpack.c.b16 %v5082, %v5081
      %v5103 = vpack.c.b16 %v5084, %v5083
      %v5104 = vpack.c.b16 %v5086, %v5085
      %v5105 = vpack.c.b16 %v5088, %v5087
      %v5106 = vpack.c.b16 %v5090, %v5089
      %v5139 = vunpack.c.l.b16 %v5011
      %v5140 = vunpack.c.l.b16 %v5012
      %v5141 = vunpack.c.l.b16 %v5013
      %v5142 = vunpack.c.l.b16 %v5014
      %v5143 = vunpack.c.l.b16 %v5015
      %v5144 = vunpack.c.l.b16 %v5016
      %v5145 = vunpack.c.l.b16 %v5017
      %v5146 = vunpack.c.l.b16 %v5018
      %v5147 = vunpack.c.l.b16 %v5019
      %v5148 = vunpack.c.l.b16 %v5020
      %v5149 = vunpack.c.l.b16 %v5021
      %v5150 = vunpack.c.l.b16 %v5022
      %v5151 = vunpack.c.l.b16 %v5023
      %v5152 = vunpack.c.l.b16 %v5024
      %v5153 = vunpack.c.l.b16 %v5025
      %v5154 = vunpack.c.l.b16 %v5026
      %v5155 = vpack.c.b16 %v5140, %v5139
      %v5156 = vpack.c.b16 %v5142, %v5141
      %v5157 = vpack.c.b16 %v5144, %v5143
      %v5158 = vpack.c.b16 %v5146, %v5145
      %v5159 = vpack.c.b16 %v5148, %v5147
      %v5160 = vpack.c.b16 %v5150, %v5149
      %v5161 = vpack.c.b16 %v5152, %v5151
      %v5162 = vpack.c.b16 %v5154, %v5153
      %5171 = vmatprep.subr.bf16.mxu0 0
      %5172 = vmatpush1.bf16.msra.mxu0 %v5162
      %5173 = vmatprep.subr.bf16.mxu0 0
      %5174 = vmatpush1.bf16.msra.mxu0 %v5161
      %5175 = vmatprep.subr.bf16.mxu0 0
      %5176 = vmatpush1.bf16.msra.mxu0 %v5160
      %5177 = vmatprep.subr.bf16.mxu0 0
      %5178 = vmatpush1.bf16.msra.mxu0 %v5159
      %5179 = vmatprep.subr.bf16.mxu0 0
      %5180 = vmatpush1.bf16.msra.mxu0 %v5158
      %5181 = vmatprep.subr.bf16.mxu0 0
      %5182 = vmatpush1.bf16.msra.mxu0 %v5157
      %5183 = vmatprep.subr.bf16.mxu0 0
      %5184 = vmatpush1.bf16.msra.mxu0 %v5156
      %5185 = vmatprep.subr.bf16.mxu0 0
      %5186 = vmatpush1.bf16.msra.mxu0 %v5155
      %5187 = vmatprep.subr.bf16.mxu0 0
      %5188 = vmatpush2.bf16.msra.mxu0 0
      %5189 = vmatprep.subr.bf16.mxu0 0
      %5190 = vmatpush2.bf16.msra.mxu0 0
      %5191 = vmatprep.subr.bf16.mxu0 0
      %5192 = vmatpush2.bf16.msra.mxu0 0
      %5193 = vmatprep.subr.bf16.mxu0 0
      %5194 = vmatpush2.bf16.msra.mxu0 0
      %5195 = vmatprep.subr.bf16.mxu0 0
      %5196 = vmatpush2.bf16.msra.mxu0 0
      %5197 = vmatprep.subr.bf16.mxu0 0
      %5198 = vmatpush2.bf16.msra.mxu0 0
      %5199 = vmatprep.subr.bf16.mxu0 0
      %5200 = vmatpush2.bf16.msra.mxu0 0
      %5201 = vmatprep.subr.bf16.mxu0 0
      %5202 = vmatpush2.bf16.msra.mxu0 0
      %5203 = vmatprep.mubr.bf16.mxu0 0
      %5204 = vmatmul.mubr.bf16.gmra.mxu0 %v5091
      %v5205 = vpop.f32.mrf.mxu0
      %v5206 = vadd.f32 0.0, %v5205
      %v5207 = vpop.f32.mrf.mxu0
      %v5208 = vpop.f32.mrf.mxu0
      %v5209 = vadd.f32 0.0, %v5208
      %v5210 = vpop.f32.mrf.mxu0
      %5211 = vmatprep.mubr.bf16.mxu0 0
      %5212 = vmatmul.mubr.bf16.gmra.mxu0 %v5092
      %v5213 = vpop.f32.mrf.mxu0
      %v5214 = vadd.f32 0.0, %v5213
      %v5215 = vpop.f32.mrf.mxu0
      %v5216 = vpop.f32.mrf.mxu0
      %v5217 = vadd.f32 0.0, %v5216
      %v5218 = vpop.f32.mrf.mxu0
      %5219 = vmatprep.mubr.bf16.mxu0 0
      %5220 = vmatmul.mubr.bf16.gmra.mxu0 %v5093
      %v5221 = vpop.f32.mrf.mxu0
      %v5222 = vadd.f32 0.0, %v5221
      %v5223 = vpop.f32.mrf.mxu0
      %v5224 = vpop.f32.mrf.mxu0
      %v5225 = vadd.f32 0.0, %v5224
      %v5226 = vpop.f32.mrf.mxu0
      %5227 = vmatprep.mubr.bf16.mxu0 0
      %5228 = vmatmul.mubr.bf16.gmra.mxu0 %v5094
      %v5229 = vpop.f32.mrf.mxu0
      %v5230 = vadd.f32 0.0, %v5229
      %v5231 = vpop.f32.mrf.mxu0
      %v5232 = vpop.f32.mrf.mxu0
      %v5233 = vadd.f32 0.0, %v5232
      %v5234 = vpop.f32.mrf.mxu0
      %5235 = vmatprep.mubr.bf16.mxu0 0
      %5236 = vmatmul.mubr.bf16.gmra.mxu0 %v5095
      %v5237 = vpop.f32.mrf.mxu0
      %v5238 = vadd.f32 0.0, %v5237
      %v5239 = vpop.f32.mrf.mxu0
      %v5240 = vpop.f32.mrf.mxu0
      %v5241 = vadd.f32 0.0, %v5240
      %v5242 = vpop.f32.mrf.mxu0
      %5243 = vmatprep.mubr.bf16.mxu0 0
      %5244 = vmatmul.mubr.bf16.gmra.mxu0 %v5096
      %v5245 = vpop.f32.mrf.mxu0
      %v5246 = vadd.f32 0.0, %v5245
      %v5247 = vpop.f32.mrf.mxu0
      %v5248 = vpop.f32.mrf.mxu0
      %v5249 = vadd.f32 0.0, %v5248
      %v5250 = vpop.f32.mrf.mxu0
      %5251 = vmatprep.mubr.bf16.mxu0 0
      %5252 = vmatmul.mubr.bf16.gmra.mxu0 %v5097
      %v5253 = vpop.f32.mrf.mxu0
      %v5254 = vadd.f32 0.0, %v5253
      %v5255 = vpop.f32.mrf.mxu0
      %v5256 = vpop.f32.mrf.mxu0
      %v5257 = vadd.f32 0.0, %v5256
      %v5258 = vpop.f32.mrf.mxu0
      %5259 = vmatprep.mubr.bf16.mxu0 0
      %5260 = vmatmul.mubr.bf16.gmra.mxu0 %v5098
      %v5261 = vpop.f32.mrf.mxu0
      %v5262 = vadd.f32 0.0, %v5261
      %v5263 = vpop.f32.mrf.mxu0
      %v5264 = vpop.f32.mrf.mxu0
      %v5265 = vadd.f32 0.0, %v5264
      %v5266 = vpop.f32.mrf.mxu0
      %5267 = vmatprep.mubr.bf16.mxu0 0
      %5268 = vmatmul.mubr.bf16.gmra.mxu0 %v5099
      %v5269 = vpop.f32.mrf.mxu0
      %v5270 = vadd.f32 0.0, %v5269
      %v5271 = vpop.f32.mrf.mxu0
      %v5272 = vpop.f32.mrf.mxu0
      %v5273 = vadd.f32 0.0, %v5272
      %v5274 = vpop.f32.mrf.mxu0
      %5275 = vmatprep.mubr.bf16.mxu0 0
      %5276 = vmatmul.mubr.bf16.gmra.mxu0 %v5100
      %v5277 = vpop.f32.mrf.mxu0
      %v5278 = vadd.f32 0.0, %v5277
      %v5279 = vpop.f32.mrf.mxu0
      %v5280 = vpop.f32.mrf.mxu0
      %v5281 = vadd.f32 0.0, %v5280
      %v5282 = vpop.f32.mrf.mxu0
      %5283 = vmatprep.mubr.bf16.mxu0 0
      %5284 = vmatmul.mubr.bf16.gmra.mxu0 %v5101
      %v5285 = vpop.f32.mrf.mxu0
      %v5286 = vadd.f32 0.0, %v5285
      %v5287 = vpop.f32.mrf.mxu0
      %v5288 = vpop.f32.mrf.mxu0
      %v5289 = vadd.f32 0.0, %v5288
      %v5290 = vpop.f32.mrf.mxu0
      %5291 = vmatprep.mubr.bf16.mxu0 0
      %5292 = vmatmul.mubr.bf16.gmra.mxu0 %v5102
      %v5293 = vpop.f32.mrf.mxu0
      %v5294 = vadd.f32 0.0, %v5293
      %v5295 = vpop.f32.mrf.mxu0
      %v5296 = vpop.f32.mrf.mxu0
      %v5297 = vadd.f32 0.0, %v5296
      %v5298 = vpop.f32.mrf.mxu0
      %5299 = vmatprep.mubr.bf16.mxu0 0
      %5300 = vmatmul.mubr.bf16.gmra.mxu0 %v5103
      %v5301 = vpop.f32.mrf.mxu0
      %v5302 = vadd.f32 0.0, %v5301
      %v5303 = vpop.f32.mrf.mxu0
      %v5304 = vpop.f32.mrf.mxu0
      %v5305 = vadd.f32 0.0, %v5304
      %v5306 = vpop.f32.mrf.mxu0
      %5307 = vmatprep.mubr.bf16.mxu0 0
      %5308 = vmatmul.mubr.bf16.gmra.mxu0 %v5104
      %v5309 = vpop.f32.mrf.mxu0
      %v5310 = vadd.f32 0.0, %v5309
      %v5311 = vpop.f32.mrf.mxu0
      %v5312 = vpop.f32.mrf.mxu0
      %v5313 = vadd.f32 0.0, %v5312
      %v5314 = vpop.f32.mrf.mxu0
      %5315 = vmatprep.mubr.bf16.mxu0 0
      %5316 = vmatmul.mubr.bf16.gmra.mxu0 %v5105
      %v5317 = vpop.f32.mrf.mxu0
      %v5318 = vadd.f32 0.0, %v5317
      %v5319 = vpop.f32.mrf.mxu0
      %v5320 = vpop.f32.mrf.mxu0
      %v5321 = vadd.f32 0.0, %v5320
      %v5322 = vpop.f32.mrf.mxu0
      %5323 = vmatprep.mubr.bf16.mxu0 0
      %5324 = vmatmul.mubr.bf16.gmra.mxu0 %v5106
      %v5325 = vpop.f32.mrf.mxu0
      %v5326 = vadd.f32 0.0, %v5325
      %v5327 = vpop.f32.mrf.mxu0
      %v5328 = vpop.f32.mrf.mxu0
      %v5329 = vadd.f32 0.0, %v5328
      %v5330 = vpop.f32.mrf.mxu0
      %5331 = vdwg.mxu0
      %v5332 = vld [vmem:[#allocation5] sm:$0xff]
      %v5333 = vld [vmem:[#allocation5 + $0x8] sm:$0xff]
      %v5334 = vld [vmem:[#allocation5 + $0x10] sm:$0xff]
      %v5335 = vld [vmem:[#allocation5 + $0x18] sm:$0xff]
      %v5336 = vld [vmem:[#allocation5 + $0x20] sm:$0xff]
      %v5337 = vld [vmem:[#allocation5 + $0x28] sm:$0xff]
      %v5338 = vld [vmem:[#allocation5 + $0x30] sm:$0xff]
      %v5339 = vld [vmem:[#allocation5 + $0x38] sm:$0xff]
      %v5340 = vld [vmem:[#allocation5 + $0x40] sm:$0xff]
      %v5341 = vld [vmem:[#allocation5 + $0x48] sm:$0xff]
      %v5342 = vld [vmem:[#allocation5 + $0x50] sm:$0xff]
      %v5343 = vld [vmem:[#allocation5 + $0x58] sm:$0xff]
      %v5344 = vld [vmem:[#allocation5 + $0x60] sm:$0xff]
      %v5345 = vld [vmem:[#allocation5 + $0x68] sm:$0xff]
      %v5346 = vld [vmem:[#allocation5 + $0x70] sm:$0xff]
      %v5347 = vld [vmem:[#allocation5 + $0x78] sm:$0xff]
      %v5348 = vld [vmem:[#allocation5 + $0x80] sm:$0xff]
      %v5349 = vld [vmem:[#allocation5 + $0x88] sm:$0xff]
      %v5350 = vld [vmem:[#allocation5 + $0x90] sm:$0xff]
      %v5351 = vld [vmem:[#allocation5 + $0x98] sm:$0xff]
      %v5352 = vld [vmem:[#allocation5 + $0xa0] sm:$0xff]
      %v5353 = vld [vmem:[#allocation5 + $0xa8] sm:$0xff]
      %v5354 = vld [vmem:[#allocation5 + $0xb0] sm:$0xff]
      %v5355 = vld [vmem:[#allocation5 + $0xb8] sm:$0xff]
      %v5356 = vld [vmem:[#allocation5 + $0xc0] sm:$0xff]
      %v5357 = vld [vmem:[#allocation5 + $0xc8] sm:$0xff]
      %v5358 = vld [vmem:[#allocation5 + $0xd0] sm:$0xff]
      %v5359 = vld [vmem:[#allocation5 + $0xd8] sm:$0xff]
      %v5360 = vld [vmem:[#allocation5 + $0xe0] sm:$0xff]
      %v5361 = vld [vmem:[#allocation5 + $0xe8] sm:$0xff]
      %v5362 = vld [vmem:[#allocation5 + $0xf0] sm:$0xff]
      %v5363 = vld [vmem:[#allocation5 + $0xf8] sm:$0xff]
      %v5364 = vadd.f32 %v5332, %v5206
      %v5365 = vadd.f32 %v5333, %v5209
      %v5366 = vadd.f32 %v5334, %v5214
      %v5367 = vadd.f32 %v5335, %v5217
      %v5368 = vadd.f32 %v5336, %v5222
      %v5369 = vadd.f32 %v5337, %v5225
      %v5370 = vadd.f32 %v5338, %v5230
      %v5371 = vadd.f32 %v5339, %v5233
      %v5372 = vadd.f32 %v5340, %v5238
      %v5373 = vadd.f32 %v5341, %v5241
      %v5374 = vadd.f32 %v5342, %v5246
      %v5375 = vadd.f32 %v5343, %v5249
      %v5376 = vadd.f32 %v5344, %v5254
      %v5377 = vadd.f32 %v5345, %v5257
      %v5378 = vadd.f32 %v5346, %v5262
      %v5379 = vadd.f32 %v5347, %v5265
      %v5380 = vadd.f32 %v5348, %v5270
      %v5381 = vadd.f32 %v5349, %v5273
      %v5382 = vadd.f32 %v5350, %v5278
      %v5383 = vadd.f32 %v5351, %v5281
      %v5384 = vadd.f32 %v5352, %v5286
      %v5385 = vadd.f32 %v5353, %v5289
      %v5386 = vadd.f32 %v5354, %v5294
      %v5387 = vadd.f32 %v5355, %v5297
      %v5388 = vadd.f32 %v5356, %v5302
      %v5389 = vadd.f32 %v5357, %v5305
      %v5390 = vadd.f32 %v5358, %v5310
      %v5391 = vadd.f32 %v5359, %v5313
      %v5392 = vadd.f32 %v5360, %v5318
      %v5393 = vadd.f32 %v5361, %v5321
      %v5394 = vadd.f32 %v5362, %v5326
      %v5395 = vadd.f32 %v5363, %v5329
      %5396 = vst [vmem:[#allocation5] sm:$0xff] %v5364
      %5397 = vst [vmem:[#allocation5 + $0x8] sm:$0xff] %v5365
      %5398 = vst [vmem:[#allocation5 + $0x10] sm:$0xff] %v5366
      %5399 = vst [vmem:[#allocation5 + $0x18] sm:$0xff] %v5367
      %5400 = vst [vmem:[#allocation5 + $0x20] sm:$0xff] %v5368
      %5401 = vst [vmem:[#allocation5 + $0x28] sm:$0xff] %v5369
      %5402 = vst [vmem:[#allocation5 + $0x30] sm:$0xff] %v5370
      %5403 = vst [vmem:[#allocation5 + $0x38] sm:$0xff] %v5371
      %5404 = vst [vmem:[#allocation5 + $0x40] sm:$0xff] %v5372
      %5405 = vst [vmem:[#allocation5 + $0x48] sm:$0xff] %v5373
      %5406 = vst [vmem:[#allocation5 + $0x50] sm:$0xff] %v5374
      %5407 = vst [vmem:[#allocation5 + $0x58] sm:$0xff] %v5375
      %5408 = vst [vmem:[#allocation5 + $0x60] sm:$0xff] %v5376
      %5409 = vst [vmem:[#allocation5 + $0x68] sm:$0xff] %v5377
      %5410 = vst [vmem:[#allocation5 + $0x70] sm:$0xff] %v5378
      %5411 = vst [vmem:[#allocation5 + $0x78] sm:$0xff] %v5379
      %5412 = vst [vmem:[#allocation5 + $0x80] sm:$0xff] %v5380
      %5413 = vst [vmem:[#allocation5 + $0x88] sm:$0xff] %v5381
      %5414 = vst [vmem:[#allocation5 + $0x90] sm:$0xff] %v5382
      %5415 = vst [vmem:[#allocation5 + $0x98] sm:$0xff] %v5383
      %5416 = vst [vmem:[#allocation5 + $0xa0] sm:$0xff] %v5384
      %5417 = vst [vmem:[#allocation5 + $0xa8] sm:$0xff] %v5385
      %5418 = vst [vmem:[#allocation5 + $0xb0] sm:$0xff] %v5386
      %5419 = vst [vmem:[#allocation5 + $0xb8] sm:$0xff] %v5387
      %5420 = vst [vmem:[#allocation5 + $0xc0] sm:$0xff] %v5388
      %5421 = vst [vmem:[#allocation5 + $0xc8] sm:$0xff] %v5389
      %5422 = vst [vmem:[#allocation5 + $0xd0] sm:$0xff] %v5390
      %5423 = vst [vmem:[#allocation5 + $0xd8] sm:$0xff] %v5391
      %5424 = vst [vmem:[#allocation5 + $0xe0] sm:$0xff] %v5392
      %5425 = vst [vmem:[#allocation5 + $0xe8] sm:$0xff] %v5393
      %5426 = vst [vmem:[#allocation5 + $0xf0] sm:$0xff] %v5394
      %5427 = vst [vmem:[#allocation5 + $0xf8] sm:$0xff] %v5395
      %v5428 = vld [vmem:[#allocation4 + $0x10] sm:$0xf]
      %v5429 = vld [vmem:[#allocation4 + $0x14] sm:$0xf]
      %v5430 = vld [vmem:[#allocation4 + $0x18] sm:$0xf]
      %v5431 = vld [vmem:[#allocation4 + $0x1c] sm:$0xf]
      %v5432 = vld [vmem:[#allocation4 + $0x20] sm:$0xf]
      %v5433 = vld [vmem:[#allocation4 + $0x24] sm:$0xf]
      %v5434 = vld [vmem:[#allocation4 + $0x28] sm:$0xf]
      %v5435 = vld [vmem:[#allocation4 + $0x2c] sm:$0xf]
      %v5436 = vld [vmem:[#allocation4 + $0x30] sm:$0xf]
      %v5437 = vld [vmem:[#allocation4 + $0x34] sm:$0xf]
      %v5438 = vld [vmem:[#allocation4 + $0x38] sm:$0xf]
      %v5439 = vld [vmem:[#allocation4 + $0x3c] sm:$0xf]
      %v5440 = vld [vmem:[#allocation4 + $0x40] sm:$0xf]
      %v5441 = vld [vmem:[#allocation4 + $0x44] sm:$0xf]
      %v5442 = vld [vmem:[#allocation4 + $0x48] sm:$0xf]
      %v5443 = vld [vmem:[#allocation4 + $0x4c] sm:$0xf]
      %v5444 = vld [vmem:[#allocation4 + $0x50] sm:$0xf]
      %v5445 = vld [vmem:[#allocation4 + $0x54] sm:$0xf]
      %v5446 = vld [vmem:[#allocation4 + $0x58] sm:$0xf]
      %v5447 = vld [vmem:[#allocation4 + $0x5c] sm:$0xf]
      %v5448 = vld [vmem:[#allocation4 + $0x60] sm:$0xf]
      %v5449 = vld [vmem:[#allocation4 + $0x64] sm:$0xf]
      %v5450 = vld [vmem:[#allocation4 + $0x68] sm:$0xf]
      %v5451 = vld [vmem:[#allocation4 + $0x6c] sm:$0xf]
      %v5452 = vld [vmem:[#allocation4 + $0x70] sm:$0xf]
      %v5453 = vld [vmem:[#allocation4 + $0x74] sm:$0xf]
      %v5454 = vld [vmem:[#allocation4 + $0x78] sm:$0xf]
      %v5455 = vld [vmem:[#allocation4 + $0x7c] sm:$0xf]
      %v5456 = vld [vmem:[#allocation4 + $0x80] sm:$0xf]
      %v5457 = vld [vmem:[#allocation4 + $0x84] sm:$0xf]
      %v5458 = vld [vmem:[#allocation4 + $0x88] sm:$0xf]
      %v5459 = vld [vmem:[#allocation4 + $0x8c] sm:$0xf]
      %s5460 = scalar_lea.vmem %s3, 512
      %v5461 = vld [vmem:[%s5460] sm:$0xf]
      %v5462 = vld [vmem:[%s5460 + $0x4] sm:$0xf]
      %v5463 = vld [vmem:[%s5460 + $0x8] sm:$0xf]
      %v5464 = vld [vmem:[%s5460 + $0xc] sm:$0xf]
      %v5465 = vld [vmem:[%s5460 + $0x10] sm:$0xf]
      %v5466 = vld [vmem:[%s5460 + $0x14] sm:$0xf]
      %v5467 = vld [vmem:[%s5460 + $0x18] sm:$0xf]
      %v5468 = vld [vmem:[%s5460 + $0x1c] sm:$0xf]
      %v5469 = vld [vmem:[%s5460 + $0x20] sm:$0xf]
      %v5470 = vld [vmem:[%s5460 + $0x24] sm:$0xf]
      %v5471 = vld [vmem:[%s5460 + $0x28] sm:$0xf]
      %v5472 = vld [vmem:[%s5460 + $0x2c] sm:$0xf]
      %v5473 = vld [vmem:[%s5460 + $0x30] sm:$0xf]
      %v5474 = vld [vmem:[%s5460 + $0x34] sm:$0xf]
      %v5475 = vld [vmem:[%s5460 + $0x38] sm:$0xf]
      %v5476 = vld [vmem:[%s5460 + $0x3c] sm:$0xf]
      %v5509 = vunpack.c.l.b16 %v5428
      %v5510 = vunpack.c.l.b16 %v5429
      %v5511 = vunpack.c.l.b16 %v5430
      %v5512 = vunpack.c.l.b16 %v5431
      %v5513 = vunpack.c.l.b16 %v5432
      %v5514 = vunpack.c.l.b16 %v5433
      %v5515 = vunpack.c.l.b16 %v5434
      %v5516 = vunpack.c.l.b16 %v5435
      %v5517 = vunpack.c.l.b16 %v5436
      %v5518 = vunpack.c.l.b16 %v5437
      %v5519 = vunpack.c.l.b16 %v5438
      %v5520 = vunpack.c.l.b16 %v5439
      %v5521 = vunpack.c.l.b16 %v5440
      %v5522 = vunpack.c.l.b16 %v5441
      %v5523 = vunpack.c.l.b16 %v5442
      %v5524 = vunpack.c.l.b16 %v5443
      %v5525 = vunpack.c.l.b16 %v5444
      %v5526 = vunpack.c.l.b16 %v5445
      %v5527 = vunpack.c.l.b16 %v5446
      %v5528 = vunpack.c.l.b16 %v5447
      %v5529 = vunpack.c.l.b16 %v5448
      %v5530 = vunpack.c.l.b16 %v5449
      %v5531 = vunpack.c.l.b16 %v5450
      %v5532 = vunpack.c.l.b16 %v5451
      %v5533 = vunpack.c.l.b16 %v5452
      %v5534 = vunpack.c.l.b16 %v5453
      %v5535 = vunpack.c.l.b16 %v5454
      %v5536 = vunpack.c.l.b16 %v5455
      %v5537 = vunpack.c.l.b16 %v5456
      %v5538 = vunpack.c.l.b16 %v5457
      %v5539 = vunpack.c.l.b16 %v5458
      %v5540 = vunpack.c.l.b16 %v5459
      %v5541 = vpack.c.b16 %v5510, %v5509
      %v5542 = vpack.c.b16 %v5512, %v5511
      %v5543 = vpack.c.b16 %v5514, %v5513
      %v5544 = vpack.c.b16 %v5516, %v5515
      %v5545 = vpack.c.b16 %v5518, %v5517
      %v5546 = vpack.c.b16 %v5520, %v5519
      %v5547 = vpack.c.b16 %v5522, %v5521
      %v5548 = vpack.c.b16 %v5524, %v5523
      %v5549 = vpack.c.b16 %v5526, %v5525
      %v5550 = vpack.c.b16 %v5528, %v5527
      %v5551 = vpack.c.b16 %v5530, %v5529
      %v5552 = vpack.c.b16 %v5532, %v5531
      %v5553 = vpack.c.b16 %v5534, %v5533
      %v5554 = vpack.c.b16 %v5536, %v5535
      %v5555 = vpack.c.b16 %v5538, %v5537
      %v5556 = vpack.c.b16 %v5540, %v5539
      %v5589 = vunpack.c.l.b16 %v5461
      %v5590 = vunpack.c.l.b16 %v5462
      %v5591 = vunpack.c.l.b16 %v5463
      %v5592 = vunpack.c.l.b16 %v5464
      %v5593 = vunpack.c.l.b16 %v5465
      %v5594 = vunpack.c.l.b16 %v5466
      %v5595 = vunpack.c.l.b16 %v5467
      %v5596 = vunpack.c.l.b16 %v5468
      %v5597 = vunpack.c.l.b16 %v5469
      %v5598 = vunpack.c.l.b16 %v5470
      %v5599 = vunpack.c.l.b16 %v5471
      %v5600 = vunpack.c.l.b16 %v5472
      %v5601 = vunpack.c.l.b16 %v5473
      %v5602 = vunpack.c.l.b16 %v5474
      %v5603 = vunpack.c.l.b16 %v5475
      %v5604 = vunpack.c.l.b16 %v5476
      %v5605 = vpack.c.b16 %v5590, %v5589
      %v5606 = vpack.c.b16 %v5592, %v5591
      %v5607 = vpack.c.b16 %v5594, %v5593
      %v5608 = vpack.c.b16 %v5596, %v5595
      %v5609 = vpack.c.b16 %v5598, %v5597
      %v5610 = vpack.c.b16 %v5600, %v5599
      %v5611 = vpack.c.b16 %v5602, %v5601
      %v5612 = vpack.c.b16 %v5604, %v5603
      %5621 = vmatprep.subr.bf16.mxu0 0
      %5622 = vmatpush1.bf16.msra.mxu0 %v5612
      %5623 = vmatprep.subr.bf16.mxu0 0
      %5624 = vmatpush1.bf16.msra.mxu0 %v5611
      %5625 = vmatprep.subr.bf16.mxu0 0
      %5626 = vmatpush1.bf16.msra.mxu0 %v5610
      %5627 = vmatprep.subr.bf16.mxu0 0
      %5628 = vmatpush1.bf16.msra.mxu0 %v5609
      %5629 = vmatprep.subr.bf16.mxu0 0
      %5630 = vmatpush1.bf16.msra.mxu0 %v5608
      %5631 = vmatprep.subr.bf16.mxu0 0
      %5632 = vmatpush1.bf16.msra.mxu0 %v5607
      %5633 = vmatprep.subr.bf16.mxu0 0
      %5634 = vmatpush1.bf16.msra.mxu0 %v5606
      %5635 = vmatprep.subr.bf16.mxu0 0
      %5636 = vmatpush1.bf16.msra.mxu0 %v5605
      %5637 = vmatprep.subr.bf16.mxu0 0
      %5638 = vmatpush2.bf16.msra.mxu0 0
      %5639 = vmatprep.subr.bf16.mxu0 0
      %5640 = vmatpush2.bf16.msra.mxu0 0
      %5641 = vmatprep.subr.bf16.mxu0 0
      %5642 = vmatpush2.bf16.msra.mxu0 0
      %5643 = vmatprep.subr.bf16.mxu0 0
      %5644 = vmatpush2.bf16.msra.mxu0 0
      %5645 = vmatprep.subr.bf16.mxu0 0
      %5646 = vmatpush2.bf16.msra.mxu0 0
      %5647 = vmatprep.subr.bf16.mxu0 0
      %5648 = vmatpush2.bf16.msra.mxu0 0
      %5649 = vmatprep.subr.bf16.mxu0 0
      %5650 = vmatpush2.bf16.msra.mxu0 0
      %5651 = vmatprep.subr.bf16.mxu0 0
      %5652 = vmatpush2.bf16.msra.mxu0 0
      %5653 = vmatprep.mubr.bf16.mxu0 0
      %5654 = vmatmul.mubr.bf16.gmra.mxu0 %v5541
      %v5655 = vpop.f32.mrf.mxu0
      %v5656 = vadd.f32 0.0, %v5655
      %v5657 = vpop.f32.mrf.mxu0
      %v5658 = vpop.f32.mrf.mxu0
      %v5659 = vadd.f32 0.0, %v5658
      %v5660 = vpop.f32.mrf.mxu0
      %5661 = vmatprep.mubr.bf16.mxu0 0
      %5662 = vmatmul.mubr.bf16.gmra.mxu0 %v5542
      %v5663 = vpop.f32.mrf.mxu0
      %v5664 = vadd.f32 0.0, %v5663
      %v5665 = vpop.f32.mrf.mxu0
      %v5666 = vpop.f32.mrf.mxu0
      %v5667 = vadd.f32 0.0, %v5666
      %v5668 = vpop.f32.mrf.mxu0
      %5669 = vmatprep.mubr.bf16.mxu0 0
      %5670 = vmatmul.mubr.bf16.gmra.mxu0 %v5543
      %v5671 = vpop.f32.mrf.mxu0
      %v5672 = vadd.f32 0.0, %v5671
      %v5673 = vpop.f32.mrf.mxu0
      %v5674 = vpop.f32.mrf.mxu0
      %v5675 = vadd.f32 0.0, %v5674
      %v5676 = vpop.f32.mrf.mxu0
      %5677 = vmatprep.mubr.bf16.mxu0 0
      %5678 = vmatmul.mubr.bf16.gmra.mxu0 %v5544
      %v5679 = vpop.f32.mrf.mxu0
      %v5680 = vadd.f32 0.0, %v5679
      %v5681 = vpop.f32.mrf.mxu0
      %v5682 = vpop.f32.mrf.mxu0
      %v5683 = vadd.f32 0.0, %v5682
      %v5684 = vpop.f32.mrf.mxu0
      %5685 = vmatprep.mubr.bf16.mxu0 0
      %5686 = vmatmul.mubr.bf16.gmra.mxu0 %v5545
      %v5687 = vpop.f32.mrf.mxu0
      %v5688 = vadd.f32 0.0, %v5687
      %v5689 = vpop.f32.mrf.mxu0
      %v5690 = vpop.f32.mrf.mxu0
      %v5691 = vadd.f32 0.0, %v5690
      %v5692 = vpop.f32.mrf.mxu0
      %5693 = vmatprep.mubr.bf16.mxu0 0
      %5694 = vmatmul.mubr.bf16.gmra.mxu0 %v5546
      %v5695 = vpop.f32.mrf.mxu0
      %v5696 = vadd.f32 0.0, %v5695
      %v5697 = vpop.f32.mrf.mxu0
      %v5698 = vpop.f32.mrf.mxu0
      %v5699 = vadd.f32 0.0, %v5698
      %v5700 = vpop.f32.mrf.mxu0
      %5701 = vmatprep.mubr.bf16.mxu0 0
      %5702 = vmatmul.mubr.bf16.gmra.mxu0 %v5547
      %v5703 = vpop.f32.mrf.mxu0
      %v5704 = vadd.f32 0.0, %v5703
      %v5705 = vpop.f32.mrf.mxu0
      %v5706 = vpop.f32.mrf.mxu0
      %v5707 = vadd.f32 0.0, %v5706
      %v5708 = vpop.f32.mrf.mxu0
      %5709 = vmatprep.mubr.bf16.mxu0 0
      %5710 = vmatmul.mubr.bf16.gmra.mxu0 %v5548
      %v5711 = vpop.f32.mrf.mxu0
      %v5712 = vadd.f32 0.0, %v5711
      %v5713 = vpop.f32.mrf.mxu0
      %v5714 = vpop.f32.mrf.mxu0
      %v5715 = vadd.f32 0.0, %v5714
      %v5716 = vpop.f32.mrf.mxu0
      %5717 = vmatprep.mubr.bf16.mxu0 0
      %5718 = vmatmul.mubr.bf16.gmra.mxu0 %v5549
      %v5719 = vpop.f32.mrf.mxu0
      %v5720 = vadd.f32 0.0, %v5719
      %v5721 = vpop.f32.mrf.mxu0
      %v5722 = vpop.f32.mrf.mxu0
      %v5723 = vadd.f32 0.0, %v5722
      %v5724 = vpop.f32.mrf.mxu0
      %5725 = vmatprep.mubr.bf16.mxu0 0
      %5726 = vmatmul.mubr.bf16.gmra.mxu0 %v5550
      %v5727 = vpop.f32.mrf.mxu0
      %v5728 = vadd.f32 0.0, %v5727
      %v5729 = vpop.f32.mrf.mxu0
      %v5730 = vpop.f32.mrf.mxu0
      %v5731 = vadd.f32 0.0, %v5730
      %v5732 = vpop.f32.mrf.mxu0
      %5733 = vmatprep.mubr.bf16.mxu0 0
      %5734 = vmatmul.mubr.bf16.gmra.mxu0 %v5551
      %v5735 = vpop.f32.mrf.mxu0
      %v5736 = vadd.f32 0.0, %v5735
      %v5737 = vpop.f32.mrf.mxu0
      %v5738 = vpop.f32.mrf.mxu0
      %v5739 = vadd.f32 0.0, %v5738
      %v5740 = vpop.f32.mrf.mxu0
      %5741 = vmatprep.mubr.bf16.mxu0 0
      %5742 = vmatmul.mubr.bf16.gmra.mxu0 %v5552
      %v5743 = vpop.f32.mrf.mxu0
      %v5744 = vadd.f32 0.0, %v5743
      %v5745 = vpop.f32.mrf.mxu0
      %v5746 = vpop.f32.mrf.mxu0
      %v5747 = vadd.f32 0.0, %v5746
      %v5748 = vpop.f32.mrf.mxu0
      %5749 = vmatprep.mubr.bf16.mxu0 0
      %5750 = vmatmul.mubr.bf16.gmra.mxu0 %v5553
      %v5751 = vpop.f32.mrf.mxu0
      %v5752 = vadd.f32 0.0, %v5751
      %v5753 = vpop.f32.mrf.mxu0
      %v5754 = vpop.f32.mrf.mxu0
      %v5755 = vadd.f32 0.0, %v5754
      %v5756 = vpop.f32.mrf.mxu0
      %5757 = vmatprep.mubr.bf16.mxu0 0
      %5758 = vmatmul.mubr.bf16.gmra.mxu0 %v5554
      %v5759 = vpop.f32.mrf.mxu0
      %v5760 = vadd.f32 0.0, %v5759
      %v5761 = vpop.f32.mrf.mxu0
      %v5762 = vpop.f32.mrf.mxu0
      %v5763 = vadd.f32 0.0, %v5762
      %v5764 = vpop.f32.mrf.mxu0
      %5765 = vmatprep.mubr.bf16.mxu0 0
      %5766 = vmatmul.mubr.bf16.gmra.mxu0 %v5555
      %v5767 = vpop.f32.mrf.mxu0
      %v5768 = vadd.f32 0.0, %v5767
      %v5769 = vpop.f32.mrf.mxu0
      %v5770 = vpop.f32.mrf.mxu0
      %v5771 = vadd.f32 0.0, %v5770
      %v5772 = vpop.f32.mrf.mxu0
      %5773 = vmatprep.mubr.bf16.mxu0 0
      %5774 = vmatmul.mubr.bf16.gmra.mxu0 %v5556
      %v5775 = vpop.f32.mrf.mxu0
      %v5776 = vadd.f32 0.0, %v5775
      %v5777 = vpop.f32.mrf.mxu0
      %v5778 = vpop.f32.mrf.mxu0
      %v5779 = vadd.f32 0.0, %v5778
      %v5780 = vpop.f32.mrf.mxu0
      %5781 = vdwg.mxu0
      %v5782 = vld [vmem:[#allocation5] sm:$0xff]
      %v5783 = vld [vmem:[#allocation5 + $0x8] sm:$0xff]
      %v5784 = vld [vmem:[#allocation5 + $0x10] sm:$0xff]
      %v5785 = vld [vmem:[#allocation5 + $0x18] sm:$0xff]
      %v5786 = vld [vmem:[#allocation5 + $0x20] sm:$0xff]
      %v5787 = vld [vmem:[#allocation5 + $0x28] sm:$0xff]
      %v5788 = vld [vmem:[#allocation5 + $0x30] sm:$0xff]
      %v5789 = vld [vmem:[#allocation5 + $0x38] sm:$0xff]
      %v5790 = vld [vmem:[#allocation5 + $0x40] sm:$0xff]
      %v5791 = vld [vmem:[#allocation5 + $0x48] sm:$0xff]
      %v5792 = vld [vmem:[#allocation5 + $0x50] sm:$0xff]
      %v5793 = vld [vmem:[#allocation5 + $0x58] sm:$0xff]
      %v5794 = vld [vmem:[#allocation5 + $0x60] sm:$0xff]
      %v5795 = vld [vmem:[#allocation5 + $0x68] sm:$0xff]
      %v5796 = vld [vmem:[#allocation5 + $0x70] sm:$0xff]
      %v5797 = vld [vmem:[#allocation5 + $0x78] sm:$0xff]
      %v5798 = vld [vmem:[#allocation5 + $0x80] sm:$0xff]
      %v5799 = vld [vmem:[#allocation5 + $0x88] sm:$0xff]
      %v5800 = vld [vmem:[#allocation5 + $0x90] sm:$0xff]
      %v5801 = vld [vmem:[#allocation5 + $0x98] sm:$0xff]
      %v5802 = vld [vmem:[#allocation5 + $0xa0] sm:$0xff]
      %v5803 = vld [vmem:[#allocation5 + $0xa8] sm:$0xff]
      %v5804 = vld [vmem:[#allocation5 + $0xb0] sm:$0xff]
      %v5805 = vld [vmem:[#allocation5 + $0xb8] sm:$0xff]
      %v5806 = vld [vmem:[#allocation5 + $0xc0] sm:$0xff]
      %v5807 = vld [vmem:[#allocation5 + $0xc8] sm:$0xff]
      %v5808 = vld [vmem:[#allocation5 + $0xd0] sm:$0xff]
      %v5809 = vld [vmem:[#allocation5 + $0xd8] sm:$0xff]
      %v5810 = vld [vmem:[#allocation5 + $0xe0] sm:$0xff]
      %v5811 = vld [vmem:[#allocation5 + $0xe8] sm:$0xff]
      %v5812 = vld [vmem:[#allocation5 + $0xf0] sm:$0xff]
      %v5813 = vld [vmem:[#allocation5 + $0xf8] sm:$0xff]
      %v5814 = vadd.f32 %v5782, %v5656
      %v5815 = vadd.f32 %v5783, %v5659
      %v5816 = vadd.f32 %v5784, %v5664
      %v5817 = vadd.f32 %v5785, %v5667
      %v5818 = vadd.f32 %v5786, %v5672
      %v5819 = vadd.f32 %v5787, %v5675
      %v5820 = vadd.f32 %v5788, %v5680
      %v5821 = vadd.f32 %v5789, %v5683
      %v5822 = vadd.f32 %v5790, %v5688
      %v5823 = vadd.f32 %v5791, %v5691
      %v5824 = vadd.f32 %v5792, %v5696
      %v5825 = vadd.f32 %v5793, %v5699
      %v5826 = vadd.f32 %v5794, %v5704
      %v5827 = vadd.f32 %v5795, %v5707
      %v5828 = vadd.f32 %v5796, %v5712
      %v5829 = vadd.f32 %v5797, %v5715
      %v5830 = vadd.f32 %v5798, %v5720
      %v5831 = vadd.f32 %v5799, %v5723
      %v5832 = vadd.f32 %v5800, %v5728
      %v5833 = vadd.f32 %v5801, %v5731
      %v5834 = vadd.f32 %v5802, %v5736
      %v5835 = vadd.f32 %v5803, %v5739
      %v5836 = vadd.f32 %v5804, %v5744
      %v5837 = vadd.f32 %v5805, %v5747
      %v5838 = vadd.f32 %v5806, %v5752
      %v5839 = vadd.f32 %v5807, %v5755
      %v5840 = vadd.f32 %v5808, %v5760
      %v5841 = vadd.f32 %v5809, %v5763
      %v5842 = vadd.f32 %v5810, %v5768
      %v5843 = vadd.f32 %v5811, %v5771
      %v5844 = vadd.f32 %v5812, %v5776
      %v5845 = vadd.f32 %v5813, %v5779
      %5846 = vst [vmem:[#allocation5] sm:$0xff] %v5814
      %5847 = vst [vmem:[#allocation5 + $0x8] sm:$0xff] %v5815
      %5848 = vst [vmem:[#allocation5 + $0x10] sm:$0xff] %v5816
      %5849 = vst [vmem:[#allocation5 + $0x18] sm:$0xff] %v5817
      %5850 = vst [vmem:[#allocation5 + $0x20] sm:$0xff] %v5818
      %5851 = vst [vmem:[#allocation5 + $0x28] sm:$0xff] %v5819
      %5852 = vst [vmem:[#allocation5 + $0x30] sm:$0xff] %v5820
      %5853 = vst [vmem:[#allocation5 + $0x38] sm:$0xff] %v5821
      %5854 = vst [vmem:[#allocation5 + $0x40] sm:$0xff] %v5822
      %5855 = vst [vmem:[#allocation5 + $0x48] sm:$0xff] %v5823
      %5856 = vst [vmem:[#allocation5 + $0x50] sm:$0xff] %v5824
      %5857 = vst [vmem:[#allocation5 + $0x58] sm:$0xff] %v5825
      %5858 = vst [vmem:[#allocation5 + $0x60] sm:$0xff] %v5826
      %5859 = vst [vmem:[#allocation5 + $0x68] sm:$0xff] %v5827
      %5860 = vst [vmem:[#allocation5 + $0x70] sm:$0xff] %v5828
      %5861 = vst [vmem:[#allocation5 + $0x78] sm:$0xff] %v5829
      %5862 = vst [vmem:[#allocation5 + $0x80] sm:$0xff] %v5830
      %5863 = vst [vmem:[#allocation5 + $0x88] sm:$0xff] %v5831
      %5864 = vst [vmem:[#allocation5 + $0x90] sm:$0xff] %v5832
      %5865 = vst [vmem:[#allocation5 + $0x98] sm:$0xff] %v5833
      %5866 = vst [vmem:[#allocation5 + $0xa0] sm:$0xff] %v5834
      %5867 = vst [vmem:[#allocation5 + $0xa8] sm:$0xff] %v5835
      %5868 = vst [vmem:[#allocation5 + $0xb0] sm:$0xff] %v5836
      %5869 = vst [vmem:[#allocation5 + $0xb8] sm:$0xff] %v5837
      %5870 = vst [vmem:[#allocation5 + $0xc0] sm:$0xff] %v5838
      %5871 = vst [vmem:[#allocation5 + $0xc8] sm:$0xff] %v5839
      %5872 = vst [vmem:[#allocation5 + $0xd0] sm:$0xff] %v5840
      %5873 = vst [vmem:[#allocation5 + $0xd8] sm:$0xff] %v5841
      %5874 = vst [vmem:[#allocation5 + $0xe0] sm:$0xff] %v5842
      %5875 = vst [vmem:[#allocation5 + $0xe8] sm:$0xff] %v5843
      %5876 = vst [vmem:[#allocation5 + $0xf0] sm:$0xff] %v5844
      %5877 = vst [vmem:[#allocation5 + $0xf8] sm:$0xff] %v5845
      %v5878 = vld [vmem:[#allocation5] sm:$0xff]
      %v5879 = vld [vmem:[#allocation5 + $0x8] sm:$0xff]
      %v5880 = vld [vmem:[#allocation5 + $0x10] sm:$0xff]
      %v5881 = vld [vmem:[#allocation5 + $0x18] sm:$0xff]
      %v5882 = vld [vmem:[#allocation5 + $0x20] sm:$0xff]
      %v5883 = vld [vmem:[#allocation5 + $0x28] sm:$0xff]
      %v5884 = vld [vmem:[#allocation5 + $0x30] sm:$0xff]
      %v5885 = vld [vmem:[#allocation5 + $0x38] sm:$0xff]
      %v5886 = vld [vmem:[#allocation5 + $0x40] sm:$0xff]
      %v5887 = vld [vmem:[#allocation5 + $0x48] sm:$0xff]
      %v5888 = vld [vmem:[#allocation5 + $0x50] sm:$0xff]
      %v5889 = vld [vmem:[#allocation5 + $0x58] sm:$0xff]
      %v5890 = vld [vmem:[#allocation5 + $0x60] sm:$0xff]
      %v5891 = vld [vmem:[#allocation5 + $0x68] sm:$0xff]
      %v5892 = vld [vmem:[#allocation5 + $0x70] sm:$0xff]
      %v5893 = vld [vmem:[#allocation5 + $0x78] sm:$0xff]
      %v5894 = vld [vmem:[#allocation5 + $0x80] sm:$0xff]
      %v5895 = vld [vmem:[#allocation5 + $0x88] sm:$0xff]
      %v5896 = vld [vmem:[#allocation5 + $0x90] sm:$0xff]
      %v5897 = vld [vmem:[#allocation5 + $0x98] sm:$0xff]
      %v5898 = vld [vmem:[#allocation5 + $0xa0] sm:$0xff]
      %v5899 = vld [vmem:[#allocation5 + $0xa8] sm:$0xff]
      %v5900 = vld [vmem:[#allocation5 + $0xb0] sm:$0xff]
      %v5901 = vld [vmem:[#allocation5 + $0xb8] sm:$0xff]
      %v5902 = vld [vmem:[#allocation5 + $0xc0] sm:$0xff]
      %v5903 = vld [vmem:[#allocation5 + $0xc8] sm:$0xff]
      %v5904 = vld [vmem:[#allocation5 + $0xd0] sm:$0xff]
      %v5905 = vld [vmem:[#allocation5 + $0xd8] sm:$0xff]
      %v5906 = vld [vmem:[#allocation5 + $0xe0] sm:$0xff]
      %v5907 = vld [vmem:[#allocation5 + $0xe8] sm:$0xff]
      %v5908 = vld [vmem:[#allocation5 + $0xf0] sm:$0xff]
      %v5909 = vld [vmem:[#allocation5 + $0xf8] sm:$0xff]
      %v5910 = vld [vmem:[%s4] sm:$0x1]
      %v5912 = vlaneseq
      %v5913 = vshrl.u32 %v5912, 7
      %v5914 = vsub.s32 0, %v5913
      %v5915 = vrot.slane %v5910, %v5914
      %v5917 = vadd.f32 %v5878, %v5915
      %v5918 = vadd.f32 %v5879, %v5915
      %v5919 = vadd.f32 %v5880, %v5915
      %v5920 = vadd.f32 %v5881, %v5915
      %v5921 = vadd.f32 %v5882, %v5915
      %v5922 = vadd.f32 %v5883, %v5915
      %v5923 = vadd.f32 %v5884, %v5915
      %v5924 = vadd.f32 %v5885, %v5915
      %v5925 = vadd.f32 %v5886, %v5915
      %v5926 = vadd.f32 %v5887, %v5915
      %v5927 = vadd.f32 %v5888, %v5915
      %v5928 = vadd.f32 %v5889, %v5915
      %v5929 = vadd.f32 %v5890, %v5915
      %v5930 = vadd.f32 %v5891, %v5915
      %v5931 = vadd.f32 %v5892, %v5915
      %v5932 = vadd.f32 %v5893, %v5915
      %v5933 = vadd.f32 %v5894, %v5915
      %v5934 = vadd.f32 %v5895, %v5915
      %v5935 = vadd.f32 %v5896, %v5915
      %v5936 = vadd.f32 %v5897, %v5915
      %v5937 = vadd.f32 %v5898, %v5915
      %v5938 = vadd.f32 %v5899, %v5915
      %v5939 = vadd.f32 %v5900, %v5915
      %v5940 = vadd.f32 %v5901, %v5915
      %v5941 = vadd.f32 %v5902, %v5915
      %v5942 = vadd.f32 %v5903, %v5915
      %v5943 = vadd.f32 %v5904, %v5915
      %v5944 = vadd.f32 %v5905, %v5915
      %v5945 = vadd.f32 %v5906, %v5915
      %v5946 = vadd.f32 %v5907, %v5915
      %v5947 = vadd.f32 %v5908, %v5915
      %v5948 = vadd.f32 %v5909, %v5915
      %v5949 = vmax.f32 %v5917, 0.0
      %v5950 = vmax.f32 %v5918, 0.0
      %v5951 = vmax.f32 %v5919, 0.0
      %v5952 = vmax.f32 %v5920, 0.0
      %v5953 = vmax.f32 %v5921, 0.0
      %v5954 = vmax.f32 %v5922, 0.0
      %v5955 = vmax.f32 %v5923, 0.0
      %v5956 = vmax.f32 %v5924, 0.0
      %v5957 = vmax.f32 %v5925, 0.0
      %v5958 = vmax.f32 %v5926, 0.0
      %v5959 = vmax.f32 %v5927, 0.0
      %v5960 = vmax.f32 %v5928, 0.0
      %v5961 = vmax.f32 %v5929, 0.0
      %v5962 = vmax.f32 %v5930, 0.0
      %v5963 = vmax.f32 %v5931, 0.0
      %v5964 = vmax.f32 %v5932, 0.0
      %v5965 = vmax.f32 %v5933, 0.0
      %v5966 = vmax.f32 %v5934, 0.0
      %v5967 = vmax.f32 %v5935, 0.0
      %v5968 = vmax.f32 %v5936, 0.0
      %v5969 = vmax.f32 %v5937, 0.0
      %v5970 = vmax.f32 %v5938, 0.0
      %v5971 = vmax.f32 %v5939, 0.0
      %v5972 = vmax.f32 %v5940, 0.0
      %v5973 = vmax.f32 %v5941, 0.0
      %v5974 = vmax.f32 %v5942, 0.0
      %v5975 = vmax.f32 %v5943, 0.0
      %v5976 = vmax.f32 %v5944, 0.0
      %v5977 = vmax.f32 %v5945, 0.0
      %v5978 = vmax.f32 %v5946, 0.0
      %v5979 = vmax.f32 %v5947, 0.0
      %v5980 = vmax.f32 %v5948, 0.0
      %v5981 = vpack.c.bf16 %v5950, %v5949
      %v5982 = vpack.c.bf16 %v5952, %v5951
      %v5983 = vpack.c.bf16 %v5954, %v5953
      %v5984 = vpack.c.bf16 %v5956, %v5955
      %v5985 = vpack.c.bf16 %v5958, %v5957
      %v5986 = vpack.c.bf16 %v5960, %v5959
      %v5987 = vpack.c.bf16 %v5962, %v5961
      %v5988 = vpack.c.bf16 %v5964, %v5963
      %v5989 = vpack.c.bf16 %v5966, %v5965
      %v5990 = vpack.c.bf16 %v5968, %v5967
      %v5991 = vpack.c.bf16 %v5970, %v5969
      %v5992 = vpack.c.bf16 %v5972, %v5971
      %v5993 = vpack.c.bf16 %v5974, %v5973
      %v5994 = vpack.c.bf16 %v5976, %v5975
      %v5995 = vpack.c.bf16 %v5978, %v5977
      %v5996 = vpack.c.bf16 %v5980, %v5979
      %v5997 = vld [vmem:[%s5] sm:$0xf]
      %v5998 = vld [vmem:[%s5 + $0x4] sm:$0xf]
      %v5999 = vld [vmem:[%s5 + $0x8] sm:$0xf]
      %v6000 = vld [vmem:[%s5 + $0xc] sm:$0xf]
      %v6001 = vld [vmem:[%s5 + $0x10] sm:$0xf]
      %v6002 = vld [vmem:[%s5 + $0x14] sm:$0xf]
      %v6003 = vld [vmem:[%s5 + $0x18] sm:$0xf]
      %v6004 = vld [vmem:[%s5 + $0x1c] sm:$0xf]
      %v6005 = vld [vmem:[%s5 + $0x20] sm:$0xf]
      %v6006 = vld [vmem:[%s5 + $0x24] sm:$0xf]
      %v6007 = vld [vmem:[%s5 + $0x28] sm:$0xf]
      %v6008 = vld [vmem:[%s5 + $0x2c] sm:$0xf]
      %v6009 = vld [vmem:[%s5 + $0x30] sm:$0xf]
      %v6010 = vld [vmem:[%s5 + $0x34] sm:$0xf]
      %v6011 = vld [vmem:[%s5 + $0x38] sm:$0xf]
      %v6012 = vld [vmem:[%s5 + $0x3c] sm:$0xf]
      %v6013 = vld [vmem:[%s6] sm:$0x1]
      %v6015 = vlaneseq
      %v6016 = vshrl.u32 %v6015, 7
      %v6017 = vsub.s32 0, %v6016
      %v6018 = vrot.slane %v6013, %v6017
      %v6036 = vunpack.c.l.b16 %v5997
      %v6037 = vunpack.c.l.b16 %v5998
      %v6038 = vunpack.c.l.b16 %v5999
      %v6039 = vunpack.c.l.b16 %v6000
      %v6040 = vunpack.c.l.b16 %v6001
      %v6041 = vunpack.c.l.b16 %v6002
      %v6042 = vunpack.c.l.b16 %v6003
      %v6043 = vunpack.c.l.b16 %v6004
      %v6044 = vunpack.c.l.b16 %v6005
      %v6045 = vunpack.c.l.b16 %v6006
      %v6046 = vunpack.c.l.b16 %v6007
      %v6047 = vunpack.c.l.b16 %v6008
      %v6048 = vunpack.c.l.b16 %v6009
      %v6049 = vunpack.c.l.b16 %v6010
      %v6050 = vunpack.c.l.b16 %v6011
      %v6051 = vunpack.c.l.b16 %v6012
      %v6052 = vpack.c.b16 %v6037, %v6036
      %v6053 = vpack.c.b16 %v6039, %v6038
      %v6054 = vpack.c.b16 %v6041, %v6040
      %v6055 = vpack.c.b16 %v6043, %v6042
      %v6056 = vpack.c.b16 %v6045, %v6044
      %v6057 = vpack.c.b16 %v6047, %v6046
      %v6058 = vpack.c.b16 %v6049, %v6048
      %v6059 = vpack.c.b16 %v6051, %v6050
      %6068 = vmatprep.subr.bf16.mxu0 0
      %6069 = vmatpush1.bf16.msra.mxu0 %v6059
      %6070 = vmatprep.subr.bf16.mxu0 0
      %6071 = vmatpush1.bf16.msra.mxu0 %v6058
      %6072 = vmatprep.subr.bf16.mxu0 0
      %6073 = vmatpush1.bf16.msra.mxu0 %v6057
      %6074 = vmatprep.subr.bf16.mxu0 0
      %6075 = vmatpush1.bf16.msra.mxu0 %v6056
      %6076 = vmatprep.subr.bf16.mxu0 0
      %6077 = vmatpush1.bf16.msra.mxu0 %v6055
      %6078 = vmatprep.subr.bf16.mxu0 0
      %6079 = vmatpush1.bf16.msra.mxu0 %v6054
      %6080 = vmatprep.subr.bf16.mxu0 0
      %6081 = vmatpush1.bf16.msra.mxu0 %v6053
      %6082 = vmatprep.subr.bf16.mxu0 0
      %6083 = vmatpush1.bf16.msra.mxu0 %v6052
      %6084 = vmatprep.subr.bf16.mxu0 0
      %6085 = vmatpush2.bf16.msra.mxu0 0
      %6086 = vmatprep.subr.bf16.mxu0 0
      %6087 = vmatpush2.bf16.msra.mxu0 0
      %6088 = vmatprep.subr.bf16.mxu0 0
      %6089 = vmatpush2.bf16.msra.mxu0 0
      %6090 = vmatprep.subr.bf16.mxu0 0
      %6091 = vmatpush2.bf16.msra.mxu0 0
      %6092 = vmatprep.subr.bf16.mxu0 0
      %6093 = vmatpush2.bf16.msra.mxu0 0
      %6094 = vmatprep.subr.bf16.mxu0 0
      %6095 = vmatpush2.bf16.msra.mxu0 0
      %6096 = vmatprep.subr.bf16.mxu0 0
      %6097 = vmatpush2.bf16.msra.mxu0 0
      %6098 = vmatprep.subr.bf16.mxu0 0
      %6099 = vmatpush2.bf16.msra.mxu0 0
      %6100 = vmatprep.mubr.bf16.mxu0 0
      %6101 = vmatmul.mubr.bf16.gmra.mxu0 %v5981
      %v6102 = vpop.f32.mrf.mxu0
      %v6103 = vadd.f32 %v6018, %v6102
      %v6104 = vpop.f32.mrf.mxu0
      %v6105 = vpop.f32.mrf.mxu0
      %v6106 = vadd.f32 %v6018, %v6105
      %v6107 = vpop.f32.mrf.mxu0
      %6108 = vmatprep.mubr.bf16.mxu0 0
      %6109 = vmatmul.mubr.bf16.gmra.mxu0 %v5982
      %v6110 = vpop.f32.mrf.mxu0
      %v6111 = vadd.f32 %v6018, %v6110
      %v6112 = vpop.f32.mrf.mxu0
      %v6113 = vpop.f32.mrf.mxu0
      %v6114 = vadd.f32 %v6018, %v6113
      %v6115 = vpop.f32.mrf.mxu0
      %6116 = vmatprep.mubr.bf16.mxu0 0
      %6117 = vmatmul.mubr.bf16.gmra.mxu0 %v5983
      %v6118 = vpop.f32.mrf.mxu0
      %v6119 = vadd.f32 %v6018, %v6118
      %v6120 = vpop.f32.mrf.mxu0
      %v6121 = vpop.f32.mrf.mxu0
      %v6122 = vadd.f32 %v6018, %v6121
      %v6123 = vpop.f32.mrf.mxu0
      %6124 = vmatprep.mubr.bf16.mxu0 0
      %6125 = vmatmul.mubr.bf16.gmra.mxu0 %v5984
      %v6126 = vpop.f32.mrf.mxu0
      %v6127 = vadd.f32 %v6018, %v6126
      %v6128 = vpop.f32.mrf.mxu0
      %v6129 = vpop.f32.mrf.mxu0
      %v6130 = vadd.f32 %v6018, %v6129
      %v6131 = vpop.f32.mrf.mxu0
      %6132 = vmatprep.mubr.bf16.mxu0 0
      %6133 = vmatmul.mubr.bf16.gmra.mxu0 %v5985
      %v6134 = vpop.f32.mrf.mxu0
      %v6135 = vadd.f32 %v6018, %v6134
      %v6136 = vpop.f32.mrf.mxu0
      %v6137 = vpop.f32.mrf.mxu0
      %v6138 = vadd.f32 %v6018, %v6137
      %v6139 = vpop.f32.mrf.mxu0
      %6140 = vmatprep.mubr.bf16.mxu0 0
      %6141 = vmatmul.mubr.bf16.gmra.mxu0 %v5986
      %v6142 = vpop.f32.mrf.mxu0
      %v6143 = vadd.f32 %v6018, %v6142
      %v6144 = vpop.f32.mrf.mxu0
      %v6145 = vpop.f32.mrf.mxu0
      %v6146 = vadd.f32 %v6018, %v6145
      %v6147 = vpop.f32.mrf.mxu0
      %6148 = vmatprep.mubr.bf16.mxu0 0
      %6149 = vmatmul.mubr.bf16.gmra.mxu0 %v5987
      %v6150 = vpop.f32.mrf.mxu0
      %v6151 = vadd.f32 %v6018, %v6150
      %v6152 = vpop.f32.mrf.mxu0
      %v6153 = vpop.f32.mrf.mxu0
      %v6154 = vadd.f32 %v6018, %v6153
      %v6155 = vpop.f32.mrf.mxu0
      %6156 = vmatprep.mubr.bf16.mxu0 0
      %6157 = vmatmul.mubr.bf16.gmra.mxu0 %v5988
      %v6158 = vpop.f32.mrf.mxu0
      %v6159 = vadd.f32 %v6018, %v6158
      %v6160 = vpop.f32.mrf.mxu0
      %v6161 = vpop.f32.mrf.mxu0
      %v6162 = vadd.f32 %v6018, %v6161
      %v6163 = vpop.f32.mrf.mxu0
      %6164 = vmatprep.mubr.bf16.mxu0 0
      %6165 = vmatmul.mubr.bf16.gmra.mxu0 %v5989
      %v6166 = vpop.f32.mrf.mxu0
      %v6167 = vadd.f32 %v6018, %v6166
      %v6168 = vpop.f32.mrf.mxu0
      %v6169 = vpop.f32.mrf.mxu0
      %v6170 = vadd.f32 %v6018, %v6169
      %v6171 = vpop.f32.mrf.mxu0
      %6172 = vmatprep.mubr.bf16.mxu0 0
      %6173 = vmatmul.mubr.bf16.gmra.mxu0 %v5990
      %v6174 = vpop.f32.mrf.mxu0
      %v6175 = vadd.f32 %v6018, %v6174
      %v6176 = vpop.f32.mrf.mxu0
      %v6177 = vpop.f32.mrf.mxu0
      %v6178 = vadd.f32 %v6018, %v6177
      %v6179 = vpop.f32.mrf.mxu0
      %6180 = vmatprep.mubr.bf16.mxu0 0
      %6181 = vmatmul.mubr.bf16.gmra.mxu0 %v5991
      %v6182 = vpop.f32.mrf.mxu0
      %v6183 = vadd.f32 %v6018, %v6182
      %v6184 = vpop.f32.mrf.mxu0
      %v6185 = vpop.f32.mrf.mxu0
      %v6186 = vadd.f32 %v6018, %v6185
      %v6187 = vpop.f32.mrf.mxu0
      %6188 = vmatprep.mubr.bf16.mxu0 0
      %6189 = vmatmul.mubr.bf16.gmra.mxu0 %v5992
      %v6190 = vpop.f32.mrf.mxu0
      %v6191 = vadd.f32 %v6018, %v6190
      %v6192 = vpop.f32.mrf.mxu0
      %v6193 = vpop.f32.mrf.mxu0
      %v6194 = vadd.f32 %v6018, %v6193
      %v6195 = vpop.f32.mrf.mxu0
      %6196 = vmatprep.mubr.bf16.mxu0 0
      %6197 = vmatmul.mubr.bf16.gmra.mxu0 %v5993
      %v6198 = vpop.f32.mrf.mxu0
      %v6199 = vadd.f32 %v6018, %v6198
      %v6200 = vpop.f32.mrf.mxu0
      %v6201 = vpop.f32.mrf.mxu0
      %v6202 = vadd.f32 %v6018, %v6201
      %v6203 = vpop.f32.mrf.mxu0
      %6204 = vmatprep.mubr.bf16.mxu0 0
      %6205 = vmatmul.mubr.bf16.gmra.mxu0 %v5994
      %v6206 = vpop.f32.mrf.mxu0
      %v6207 = vadd.f32 %v6018, %v6206
      %v6208 = vpop.f32.mrf.mxu0
      %v6209 = vpop.f32.mrf.mxu0
      %v6210 = vadd.f32 %v6018, %v6209
      %v6211 = vpop.f32.mrf.mxu0
      %6212 = vmatprep.mubr.bf16.mxu0 0
      %6213 = vmatmul.mubr.bf16.gmra.mxu0 %v5995
      %v6214 = vpop.f32.mrf.mxu0
      %v6215 = vadd.f32 %v6018, %v6214
      %v6216 = vpop.f32.mrf.mxu0
      %v6217 = vpop.f32.mrf.mxu0
      %v6218 = vadd.f32 %v6018, %v6217
      %v6219 = vpop.f32.mrf.mxu0
      %6220 = vmatprep.mubr.bf16.mxu0 0
      %6221 = vmatmul.mubr.bf16.gmra.mxu0 %v5996
      %v6222 = vpop.f32.mrf.mxu0
      %v6223 = vadd.f32 %v6018, %v6222
      %v6224 = vpop.f32.mrf.mxu0
      %v6225 = vpop.f32.mrf.mxu0
      %v6226 = vadd.f32 %v6018, %v6225
      %v6227 = vpop.f32.mrf.mxu0
      %6228 = vdwg.mxu0
      %v6229 = vld [vmem:[%s7] sm:$0xf]
      %v6230 = vld [vmem:[%s7 + $0x4] sm:$0xf]
      %v6231 = vld [vmem:[%s7 + $0x8] sm:$0xf]
      %v6232 = vld [vmem:[%s7 + $0xc] sm:$0xf]
      %v6233 = vld [vmem:[%s7 + $0x10] sm:$0xf]
      %v6234 = vld [vmem:[%s7 + $0x14] sm:$0xf]
      %v6235 = vld [vmem:[%s7 + $0x18] sm:$0xf]
      %v6236 = vld [vmem:[%s7 + $0x1c] sm:$0xf]
      %v6237 = vld [vmem:[%s7 + $0x20] sm:$0xf]
      %v6238 = vld [vmem:[%s7 + $0x24] sm:$0xf]
      %v6239 = vld [vmem:[%s7 + $0x28] sm:$0xf]
      %v6240 = vld [vmem:[%s7 + $0x2c] sm:$0xf]
      %v6241 = vld [vmem:[%s7 + $0x30] sm:$0xf]
      %v6242 = vld [vmem:[%s7 + $0x34] sm:$0xf]
      %v6243 = vld [vmem:[%s7 + $0x38] sm:$0xf]
      %v6244 = vld [vmem:[%s7 + $0x3c] sm:$0xf]
      %v6245 = vld [vmem:[%s8] sm:$0x1]
      %v6247 = vlaneseq
      %v6248 = vshrl.u32 %v6247, 7
      %v6249 = vsub.s32 0, %v6248
      %v6250 = vrot.slane %v6245, %v6249
      %v6268 = vunpack.c.l.b16 %v6229
      %v6269 = vunpack.c.l.b16 %v6230
      %v6270 = vunpack.c.l.b16 %v6231
      %v6271 = vunpack.c.l.b16 %v6232
      %v6272 = vunpack.c.l.b16 %v6233
      %v6273 = vunpack.c.l.b16 %v6234
      %v6274 = vunpack.c.l.b16 %v6235
      %v6275 = vunpack.c.l.b16 %v6236
      %v6276 = vunpack.c.l.b16 %v6237
      %v6277 = vunpack.c.l.b16 %v6238
      %v6278 = vunpack.c.l.b16 %v6239
      %v6279 = vunpack.c.l.b16 %v6240
      %v6280 = vunpack.c.l.b16 %v6241
      %v6281 = vunpack.c.l.b16 %v6242
      %v6282 = vunpack.c.l.b16 %v6243
      %v6283 = vunpack.c.l.b16 %v6244
      %v6284 = vpack.c.b16 %v6269, %v6268
      %v6285 = vpack.c.b16 %v6271, %v6270
      %v6286 = vpack.c.b16 %v6273, %v6272
      %v6287 = vpack.c.b16 %v6275, %v6274
      %v6288 = vpack.c.b16 %v6277, %v6276
      %v6289 = vpack.c.b16 %v6279, %v6278
      %v6290 = vpack.c.b16 %v6281, %v6280
      %v6291 = vpack.c.b16 %v6283, %v6282
      %6300 = vmatprep.subr.bf16.mxu0 0
      %6301 = vmatpush1.bf16.msra.mxu0 %v6291
      %6302 = vmatprep.subr.bf16.mxu0 0
      %6303 = vmatpush1.bf16.msra.mxu0 %v6290
      %6304 = vmatprep.subr.bf16.mxu0 0
      %6305 = vmatpush1.bf16.msra.mxu0 %v6289
      %6306 = vmatprep.subr.bf16.mxu0 0
      %6307 = vmatpush1.bf16.msra.mxu0 %v6288
      %6308 = vmatprep.subr.bf16.mxu0 0
      %6309 = vmatpush1.bf16.msra.mxu0 %v6287
      %6310 = vmatprep.subr.bf16.mxu0 0
      %6311 = vmatpush1.bf16.msra.mxu0 %v6286
      %6312 = vmatprep.subr.bf16.mxu0 0
      %6313 = vmatpush1.bf16.msra.mxu0 %v6285
      %6314 = vmatprep.subr.bf16.mxu0 0
      %6315 = vmatpush1.bf16.msra.mxu0 %v6284
      %6316 = vmatprep.subr.bf16.mxu0 0
      %6317 = vmatpush2.bf16.msra.mxu0 0
      %6318 = vmatprep.subr.bf16.mxu0 0
      %6319 = vmatpush2.bf16.msra.mxu0 0
      %6320 = vmatprep.subr.bf16.mxu0 0
      %6321 = vmatpush2.bf16.msra.mxu0 0
      %6322 = vmatprep.subr.bf16.mxu0 0
      %6323 = vmatpush2.bf16.msra.mxu0 0
      %6324 = vmatprep.subr.bf16.mxu0 0
      %6325 = vmatpush2.bf16.msra.mxu0 0
      %6326 = vmatprep.subr.bf16.mxu0 0
      %6327 = vmatpush2.bf16.msra.mxu0 0
      %6328 = vmatprep.subr.bf16.mxu0 0
      %6329 = vmatpush2.bf16.msra.mxu0 0
      %6330 = vmatprep.subr.bf16.mxu0 0
      %6331 = vmatpush2.bf16.msra.mxu0 0
      %6332 = vmatprep.mubr.bf16.mxu0 0
      %6333 = vmatmul.mubr.bf16.gmra.mxu0 %v453
      %v6334 = vpop.f32.mrf.mxu0
      %v6335 = vadd.f32 %v6250, %v6334
      %v6336 = vpop.f32.mrf.mxu0
      %v6337 = vpop.f32.mrf.mxu0
      %v6338 = vadd.f32 %v6250, %v6337
      %v6339 = vpop.f32.mrf.mxu0
      %6340 = vmatprep.mubr.bf16.mxu0 0
      %6341 = vmatmul.mubr.bf16.gmra.mxu0 %v454
      %v6342 = vpop.f32.mrf.mxu0
      %v6343 = vadd.f32 %v6250, %v6342
      %v6344 = vpop.f32.mrf.mxu0
      %v6345 = vpop.f32.mrf.mxu0
      %v6346 = vadd.f32 %v6250, %v6345
      %v6347 = vpop.f32.mrf.mxu0
      %6348 = vmatprep.mubr.bf16.mxu0 0
      %6349 = vmatmul.mubr.bf16.gmra.mxu0 %v455
      %v6350 = vpop.f32.mrf.mxu0
      %v6351 = vadd.f32 %v6250, %v6350
      %v6352 = vpop.f32.mrf.mxu0
      %v6353 = vpop.f32.mrf.mxu0
      %v6354 = vadd.f32 %v6250, %v6353
      %v6355 = vpop.f32.mrf.mxu0
      %6356 = vmatprep.mubr.bf16.mxu0 0
      %6357 = vmatmul.mubr.bf16.gmra.mxu0 %v456
      %v6358 = vpop.f32.mrf.mxu0
      %v6359 = vadd.f32 %v6250, %v6358
      %v6360 = vpop.f32.mrf.mxu0
      %v6361 = vpop.f32.mrf.mxu0
      %v6362 = vadd.f32 %v6250, %v6361
      %v6363 = vpop.f32.mrf.mxu0
      %6364 = vmatprep.mubr.bf16.mxu0 0
      %6365 = vmatmul.mubr.bf16.gmra.mxu0 %v457
      %v6366 = vpop.f32.mrf.mxu0
      %v6367 = vadd.f32 %v6250, %v6366
      %v6368 = vpop.f32.mrf.mxu0
      %v6369 = vpop.f32.mrf.mxu0
      %v6370 = vadd.f32 %v6250, %v6369
      %v6371 = vpop.f32.mrf.mxu0
      %6372 = vmatprep.mubr.bf16.mxu0 0
      %6373 = vmatmul.mubr.bf16.gmra.mxu0 %v458
      %v6374 = vpop.f32.mrf.mxu0
      %v6375 = vadd.f32 %v6250, %v6374
      %v6376 = vpop.f32.mrf.mxu0
      %v6377 = vpop.f32.mrf.mxu0
      %v6378 = vadd.f32 %v6250, %v6377
      %v6379 = vpop.f32.mrf.mxu0
      %6380 = vmatprep.mubr.bf16.mxu0 0
      %6381 = vmatmul.mubr.bf16.gmra.mxu0 %v459
      %v6382 = vpop.f32.mrf.mxu0
      %v6383 = vadd.f32 %v6250, %v6382
      %v6384 = vpop.f32.mrf.mxu0
      %v6385 = vpop.f32.mrf.mxu0
      %v6386 = vadd.f32 %v6250, %v6385
      %v6387 = vpop.f32.mrf.mxu0
      %6388 = vmatprep.mubr.bf16.mxu0 0
      %6389 = vmatmul.mubr.bf16.gmra.mxu0 %v460
      %v6390 = vpop.f32.mrf.mxu0
      %v6391 = vadd.f32 %v6250, %v6390
      %v6392 = vpop.f32.mrf.mxu0
      %v6393 = vpop.f32.mrf.mxu0
      %v6394 = vadd.f32 %v6250, %v6393
      %v6395 = vpop.f32.mrf.mxu0
      %6396 = vmatprep.mubr.bf16.mxu0 0
      %6397 = vmatmul.mubr.bf16.gmra.mxu0 %v461
      %v6398 = vpop.f32.mrf.mxu0
      %v6399 = vadd.f32 %v6250, %v6398
      %v6400 = vpop.f32.mrf.mxu0
      %v6401 = vpop.f32.mrf.mxu0
      %v6402 = vadd.f32 %v6250, %v6401
      %v6403 = vpop.f32.mrf.mxu0
      %6404 = vmatprep.mubr.bf16.mxu0 0
      %6405 = vmatmul.mubr.bf16.gmra.mxu0 %v462
      %v6406 = vpop.f32.mrf.mxu0
      %v6407 = vadd.f32 %v6250, %v6406
      %v6408 = vpop.f32.mrf.mxu0
      %v6409 = vpop.f32.mrf.mxu0
      %v6410 = vadd.f32 %v6250, %v6409
      %v6411 = vpop.f32.mrf.mxu0
      %6412 = vmatprep.mubr.bf16.mxu0 0
      %6413 = vmatmul.mubr.bf16.gmra.mxu0 %v463
      %v6414 = vpop.f32.mrf.mxu0
      %v6415 = vadd.f32 %v6250, %v6414
      %v6416 = vpop.f32.mrf.mxu0
      %v6417 = vpop.f32.mrf.mxu0
      %v6418 = vadd.f32 %v6250, %v6417
      %v6419 = vpop.f32.mrf.mxu0
      %6420 = vmatprep.mubr.bf16.mxu0 0
      %6421 = vmatmul.mubr.bf16.gmra.mxu0 %v464
      %v6422 = vpop.f32.mrf.mxu0
      %v6423 = vadd.f32 %v6250, %v6422
      %v6424 = vpop.f32.mrf.mxu0
      %v6425 = vpop.f32.mrf.mxu0
      %v6426 = vadd.f32 %v6250, %v6425
      %v6427 = vpop.f32.mrf.mxu0
      %6428 = vmatprep.mubr.bf16.mxu0 0
      %6429 = vmatmul.mubr.bf16.gmra.mxu0 %v465
      %v6430 = vpop.f32.mrf.mxu0
      %v6431 = vadd.f32 %v6250, %v6430
      %v6432 = vpop.f32.mrf.mxu0
      %v6433 = vpop.f32.mrf.mxu0
      %v6434 = vadd.f32 %v6250, %v6433
      %v6435 = vpop.f32.mrf.mxu0
      %6436 = vmatprep.mubr.bf16.mxu0 0
      %6437 = vmatmul.mubr.bf16.gmra.mxu0 %v466
      %v6438 = vpop.f32.mrf.mxu0
      %v6439 = vadd.f32 %v6250, %v6438
      %v6440 = vpop.f32.mrf.mxu0
      %v6441 = vpop.f32.mrf.mxu0
      %v6442 = vadd.f32 %v6250, %v6441
      %v6443 = vpop.f32.mrf.mxu0
      %6444 = vmatprep.mubr.bf16.mxu0 0
      %6445 = vmatmul.mubr.bf16.gmra.mxu0 %v467
      %v6446 = vpop.f32.mrf.mxu0
      %v6447 = vadd.f32 %v6250, %v6446
      %v6448 = vpop.f32.mrf.mxu0
      %v6449 = vpop.f32.mrf.mxu0
      %v6450 = vadd.f32 %v6250, %v6449
      %v6451 = vpop.f32.mrf.mxu0
      %6452 = vmatprep.mubr.bf16.mxu0 0
      %6453 = vmatmul.mubr.bf16.gmra.mxu0 %v468
      %v6454 = vpop.f32.mrf.mxu0
      %v6455 = vadd.f32 %v6250, %v6454
      %v6456 = vpop.f32.mrf.mxu0
      %v6457 = vpop.f32.mrf.mxu0
      %v6458 = vadd.f32 %v6250, %v6457
      %v6459 = vpop.f32.mrf.mxu0
      %6460 = vdwg.mxu0
      %v6461 = vadd.f32 %v6103, %v6335
      %v6462 = vadd.f32 %v6106, %v6338
      %v6463 = vadd.f32 %v6111, %v6343
      %v6464 = vadd.f32 %v6114, %v6346
      %v6465 = vadd.f32 %v6119, %v6351
      %v6466 = vadd.f32 %v6122, %v6354
      %v6467 = vadd.f32 %v6127, %v6359
      %v6468 = vadd.f32 %v6130, %v6362
      %v6469 = vadd.f32 %v6135, %v6367
      %v6470 = vadd.f32 %v6138, %v6370
      %v6471 = vadd.f32 %v6143, %v6375
      %v6472 = vadd.f32 %v6146, %v6378
      %v6473 = vadd.f32 %v6151, %v6383
      %v6474 = vadd.f32 %v6154, %v6386
      %v6475 = vadd.f32 %v6159, %v6391
      %v6476 = vadd.f32 %v6162, %v6394
      %v6477 = vadd.f32 %v6167, %v6399
      %v6478 = vadd.f32 %v6170, %v6402
      %v6479 = vadd.f32 %v6175, %v6407
      %v6480 = vadd.f32 %v6178, %v6410
      %v6481 = vadd.f32 %v6183, %v6415
      %v6482 = vadd.f32 %v6186, %v6418
      %v6483 = vadd.f32 %v6191, %v6423
      %v6484 = vadd.f32 %v6194, %v6426
      %v6485 = vadd.f32 %v6199, %v6431
      %v6486 = vadd.f32 %v6202, %v6434
      %v6487 = vadd.f32 %v6207, %v6439
      %v6488 = vadd.f32 %v6210, %v6442
      %v6489 = vadd.f32 %v6215, %v6447
      %v6490 = vadd.f32 %v6218, %v6450
      %v6491 = vadd.f32 %v6223, %v6455
      %v6492 = vadd.f32 %v6226, %v6458
      %v6493 = vmax.f32 %v6461, 0.0
      %v6494 = vmax.f32 %v6462, 0.0
      %v6495 = vmax.f32 %v6463, 0.0
      %v6496 = vmax.f32 %v6464, 0.0
      %v6497 = vmax.f32 %v6465, 0.0
      %v6498 = vmax.f32 %v6466, 0.0
      %v6499 = vmax.f32 %v6467, 0.0
      %v6500 = vmax.f32 %v6468, 0.0
      %v6501 = vmax.f32 %v6469, 0.0
      %v6502 = vmax.f32 %v6470, 0.0
      %v6503 = vmax.f32 %v6471, 0.0
      %v6504 = vmax.f32 %v6472, 0.0
      %v6505 = vmax.f32 %v6473, 0.0
      %v6506 = vmax.f32 %v6474, 0.0
      %v6507 = vmax.f32 %v6475, 0.0
      %v6508 = vmax.f32 %v6476, 0.0
      %v6509 = vmax.f32 %v6477, 0.0
      %v6510 = vmax.f32 %v6478, 0.0
      %v6511 = vmax.f32 %v6479, 0.0
      %v6512 = vmax.f32 %v6480, 0.0
      %v6513 = vmax.f32 %v6481, 0.0
      %v6514 = vmax.f32 %v6482, 0.0
      %v6515 = vmax.f32 %v6483, 0.0
      %v6516 = vmax.f32 %v6484, 0.0
      %v6517 = vmax.f32 %v6485, 0.0
      %v6518 = vmax.f32 %v6486, 0.0
      %v6519 = vmax.f32 %v6487, 0.0
      %v6520 = vmax.f32 %v6488, 0.0
      %v6521 = vmax.f32 %v6489, 0.0
      %v6522 = vmax.f32 %v6490, 0.0
      %v6523 = vmax.f32 %v6491, 0.0
      %v6524 = vmax.f32 %v6492, 0.0
      %v6525 = vpack.c.bf16 %v6494, %v6493
      %v6526 = vpack.c.bf16 %v6496, %v6495
      %v6527 = vpack.c.bf16 %v6498, %v6497
      %v6528 = vpack.c.bf16 %v6500, %v6499
      %v6529 = vpack.c.bf16 %v6502, %v6501
      %v6530 = vpack.c.bf16 %v6504, %v6503
      %v6531 = vpack.c.bf16 %v6506, %v6505
      %v6532 = vpack.c.bf16 %v6508, %v6507
      %v6533 = vpack.c.bf16 %v6510, %v6509
      %v6534 = vpack.c.bf16 %v6512, %v6511
      %v6535 = vpack.c.bf16 %v6514, %v6513
      %v6536 = vpack.c.bf16 %v6516, %v6515
      %v6537 = vpack.c.bf16 %v6518, %v6517
      %v6538 = vpack.c.bf16 %v6520, %v6519
      %v6539 = vpack.c.bf16 %v6522, %v6521
      %v6540 = vpack.c.bf16 %v6524, %v6523
      %v6557 = vunpack.c.l.b16 %v6525
      %v6558 = vunpack.c.h.b16 %v6525
      %v6559 = vunpack.c.l.b16 %v6526
      %v6560 = vunpack.c.h.b16 %v6526
      %v6561 = vunpack.c.l.b16 %v6527
      %v6562 = vunpack.c.h.b16 %v6527
      %v6563 = vunpack.c.l.b16 %v6528
      %v6564 = vunpack.c.h.b16 %v6528
      %v6565 = vunpack.c.l.b16 %v6529
      %v6566 = vunpack.c.h.b16 %v6529
      %v6567 = vunpack.c.l.b16 %v6530
      %v6568 = vunpack.c.h.b16 %v6530
      %v6569 = vunpack.c.l.b16 %v6531
      %v6570 = vunpack.c.h.b16 %v6531
      %v6571 = vunpack.c.l.b16 %v6532
      %v6572 = vunpack.c.h.b16 %v6532
      %v6573 = vunpack.c.l.b16 %v6533
      %v6574 = vunpack.c.h.b16 %v6533
      %v6575 = vunpack.c.l.b16 %v6534
      %v6576 = vunpack.c.h.b16 %v6534
      %v6577 = vunpack.c.l.b16 %v6535
      %v6578 = vunpack.c.h.b16 %v6535
      %v6579 = vunpack.c.l.b16 %v6536
      %v6580 = vunpack.c.h.b16 %v6536
      %v6581 = vunpack.c.l.b16 %v6537
      %v6582 = vunpack.c.h.b16 %v6537
      %v6583 = vunpack.c.l.b16 %v6538
      %v6584 = vunpack.c.h.b16 %v6538
      %v6585 = vunpack.c.l.b16 %v6539
      %v6586 = vunpack.c.h.b16 %v6539
      %v6587 = vunpack.c.l.b16 %v6540
      %v6588 = vunpack.c.h.b16 %v6540
      %v6589 = vpack.c.b16 %v6557, %v6557
      %v6590 = vpack.c.b16 %v6558, %v6558
      %v6591 = vpack.c.b16 %v6559, %v6559
      %v6592 = vpack.c.b16 %v6560, %v6560
      %v6593 = vpack.c.b16 %v6561, %v6561
      %v6594 = vpack.c.b16 %v6562, %v6562
      %v6595 = vpack.c.b16 %v6563, %v6563
      %v6596 = vpack.c.b16 %v6564, %v6564
      %v6597 = vpack.c.b16 %v6565, %v6565
      %v6598 = vpack.c.b16 %v6566, %v6566
      %v6599 = vpack.c.b16 %v6567, %v6567
      %v6600 = vpack.c.b16 %v6568, %v6568
      %v6601 = vpack.c.b16 %v6569, %v6569
      %v6602 = vpack.c.b16 %v6570, %v6570
      %v6603 = vpack.c.b16 %v6571, %v6571
      %v6604 = vpack.c.b16 %v6572, %v6572
      %v6605 = vpack.c.b16 %v6573, %v6573
      %v6606 = vpack.c.b16 %v6574, %v6574
      %v6607 = vpack.c.b16 %v6575, %v6575
      %v6608 = vpack.c.b16 %v6576, %v6576
      %v6609 = vpack.c.b16 %v6577, %v6577
      %v6610 = vpack.c.b16 %v6578, %v6578
      %v6611 = vpack.c.b16 %v6579, %v6579
      %v6612 = vpack.c.b16 %v6580, %v6580
      %v6613 = vpack.c.b16 %v6581, %v6581
      %v6614 = vpack.c.b16 %v6582, %v6582
      %v6615 = vpack.c.b16 %v6583, %v6583
      %v6616 = vpack.c.b16 %v6584, %v6584
      %v6617 = vpack.c.b16 %v6585, %v6585
      %v6618 = vpack.c.b16 %v6586, %v6586
      %v6619 = vpack.c.b16 %v6587, %v6587
      %v6620 = vpack.c.b16 %v6588, %v6588
      %6653 = vst [vmem:[%s332] sm:$0xf] %v6589
      %6654 = vst [vmem:[%s332 + $0x4] sm:$0xf] %v6590
      %6655 = vst [vmem:[%s332 + $0x8] sm:$0xf] %v6591
      %6656 = vst [vmem:[%s332 + $0xc] sm:$0xf] %v6592
      %6657 = vst [vmem:[%s332 + $0x10] sm:$0xf] %v6593
      %6658 = vst [vmem:[%s332 + $0x14] sm:$0xf] %v6594
      %6659 = vst [vmem:[%s332 + $0x18] sm:$0xf] %v6595
      %6660 = vst [vmem:[%s332 + $0x1c] sm:$0xf] %v6596
      %6661 = vst [vmem:[%s332 + $0x20] sm:$0xf] %v6597
      %6662 = vst [vmem:[%s332 + $0x24] sm:$0xf] %v6598
      %6663 = vst [vmem:[%s332 + $0x28] sm:$0xf] %v6599
      %6664 = vst [vmem:[%s332 + $0x2c] sm:$0xf] %v6600
      %6665 = vst [vmem:[%s332 + $0x30] sm:$0xf] %v6601
      %6666 = vst [vmem:[%s332 + $0x34] sm:$0xf] %v6602
      %6667 = vst [vmem:[%s332 + $0x38] sm:$0xf] %v6603
      %6668 = vst [vmem:[%s332 + $0x3c] sm:$0xf] %v6604
      %6669 = vst [vmem:[%s332 + $0x40] sm:$0xf] %v6605
      %6670 = vst [vmem:[%s332 + $0x44] sm:$0xf] %v6606
      %6671 = vst [vmem:[%s332 + $0x48] sm:$0xf] %v6607
      %6672 = vst [vmem:[%s332 + $0x4c] sm:$0xf] %v6608
      %6673 = vst [vmem:[%s332 + $0x50] sm:$0xf] %v6609
      %6674 = vst [vmem:[%s332 + $0x54] sm:$0xf] %v6610
      %6675 = vst [vmem:[%s332 + $0x58] sm:$0xf] %v6611
      %6676 = vst [vmem:[%s332 + $0x5c] sm:$0xf] %v6612
      %6677 = vst [vmem:[%s332 + $0x60] sm:$0xf] %v6613
      %6678 = vst [vmem:[%s332 + $0x64] sm:$0xf] %v6614
      %6679 = vst [vmem:[%s332 + $0x68] sm:$0xf] %v6615
      %6680 = vst [vmem:[%s332 + $0x6c] sm:$0xf] %v6616
      %6681 = vst [vmem:[%s332 + $0x70] sm:$0xf] %v6617
      %6682 = vst [vmem:[%s332 + $0x74] sm:$0xf] %v6618
      %6683 = vst [vmem:[%s332 + $0x78] sm:$0xf] %v6619
      %6684 = vst [vmem:[%s332 + $0x7c] sm:$0xf] %v6620
      %p6685 = scmp.lt.s32.totalorder %s20, 1
      %s6686 = scalar_select %p6685, %s20, 1
      %s6687 = smul.addr %s6686, 32
      %s6688 = smul.addr %s6687, 4
      %s6689 = scalar_lea.vmem %s9, %s6688
      // Predicated region
      $region57: #{forward.1} parent=55 // pred_check
        %p6690 = pneg %p232
      $region58: #{forward.1} parent=55 // pred_check_branch
        %6692 = sbr.rel (%p6690) target = $region60
      $region59: #{forward.1} parent=55 // pred_region
        _
      $region60: #{forward.1} parent=55 // pred_fallthru
        _
    $region56: #{forward.1} parent=5 // pred_fallthru
      _
    %p6693 = scmp.le.s32.totalorder 2, %s15
    // Predicated region
    $region61: #{forward.1} parent=5 // pred_check
      %p6694 = pneg %p6693
    $region62: #{forward.1} parent=5 // pred_check_branch
      %6696 = sbr.rel (%p6694) target = $region64
    $region63: #{forward.1} parent=5 // pred_region
      %s6697 = ssub.s32 %s15, 2
      // Predicated region
      $region65: #{forward.1} parent=63 // pred_check
        %p6698 = pneg %p238
      $region66: #{forward.1} parent=63 // pred_check_branch
        %6700 = sbr.rel (%p6698) target = $region68
      $region67: #{forward.1} parent=63 // pred_region
        %p6701 = scmp.lt.s32.totalorder %s21, 1
        %s6702 = scalar_select %p6701, %s21, 1
        %s6703 = smul.addr %s6702, 32
        %s6704 = smul.addr %s6703, 4
        %s6705 = scalar_lea.vmem %s9, %s6704
      $region68: #{forward.1} parent=63 // pred_fallthru
        _
    $region64: #{forward.1} parent=5 // pred_fallthru
      _
  $region6: #{forward.1} parent=0 // loop_footer
    %s19 = sadd.s32 1, %s15
  $region7: #{forward.1} parent=0 // loop_footer_branch
    %14 = sbr.rel target = $region3
  $region8: #{forward.1} parent=0 // loop_exit
    _

</llo_original>
